<compile_context>
chip_gen: v6e
topology: v6e:2x2x1
jax: 0.10.0
libtpu: 0.0.40
codegen_flags: <defaults>
</compile_context>

<pallas_src>
import functools

import jax
import jax.numpy as jnp
from jax.experimental import pallas as pl
from jax.experimental.pallas import tpu as pltpu


_VMEM_LIMIT = 16 * 1024 * 1024  # actual working set ~2-3 MiB; headroom even on v7x (64 MiB/TC)


def _round_up(x, mult):
    return ((x + mult - 1) // mult) * mult


def _bn_relu_kernel(w_ref, p_ref, b_ref, g_ref, beta_ref, o_ref, *, eps, m_true):
    # w_ref: (Cout, Cin*K*K) bf16, p_ref: (Cin*K*K, Mp) bf16 (Mp lane-dense),
    # b/g/beta: (Cout, 1) f32, o_ref: (Cout, Mp) bf16.  Columns >= m_true are
    # zero padding: excluded from the batch stats, sliced off by the caller.
    y = jnp.dot(w_ref[...], p_ref[...], preferred_element_type=jnp.float32)
    y = y + b_ref[...]
    # BatchNorm2d, train mode: one-pass stats E[y^2]-mean^2 over the true
    # N*Ho*Wo columns, biased variance, f32 math.
    col = jax.lax.broadcasted_iota(jnp.int32, y.shape, dimension=1)
    valid = col < m_true
    ym = jnp.where(valid, y, 0.0)
    inv_m = jnp.float32(1.0 / m_true)
    mean = jnp.sum(ym, axis=1, keepdims=True) * inv_m
    ex2 = jnp.sum(ym * ym, axis=1, keepdims=True) * inv_m
    var = ex2 - mean * mean
    y = (y - mean) * jax.lax.rsqrt(var + eps)
    y = y * g_ref[...] + beta_ref[...]
    o_ref[...] = jnp.maximum(y, 0.0).astype(o_ref.dtype)  # ReLU, bf16 store


def _tanh_kernel(w_ref, p_ref, b_ref, o_ref):
    # Final layer: matmul + bias + tanh, tiled over the M (lane) axis.
    y = jnp.dot(w_ref[...], p_ref[...], preferred_element_type=jnp.float32)
    o_ref[...] = jnp.tanh(y + b_ref[...])


def conv_transpose_block(x_cm, w, b, gamma, beta, *, stride, final_layer):
    """One make_gen_block: ConvTranspose2d(stride, pad=0) -> BN+ReLU or Tanh.

    x_cm: (Cin, N, H, W) channel-major activation.
    w:    (Cin, Cout, K, K) PyTorch ConvTranspose2d weight layout (f32 master).
    Returns (Cout, N, Ho, Wo) channel-major (bf16 for BN layers, f32 for tanh).
    """
    cin, n, h, wd = x_cm.shape
    _, cout, k, _ = w.shape
    ho = (h - 1) * stride + k
    wo = (wd - 1) * stride + k
    m = n * ho * wo
    ck2 = cin * k * k

    x_cm = x_cm.astype(jnp.bfloat16)

    # Transposed conv == ordinary conv on the zero-dilated input with a
    # spatially flipped kernel and (k-1) full padding.  All glue is bf16.
    if h == 1 and wd == 1:
        xd = x_cm  # layer-1 special case: stride dilation is a no-op on 1x1
    else:
        xd = jnp.zeros((cin, n, (h - 1) * stride + 1, (wd - 1) * stride + 1),
                       jnp.bfloat16)
        xd = xd.at[:, :, ::stride, ::stride].set(x_cm)
    xp = jnp.pad(xd, ((0, 0), (0, 0), (k - 1, k - 1), (k - 1, k - 1)))

    # im2col directly in feature-major / M-minor (lane-dense) layout.
    # Feature order (ci, ky, kx); column order (n, oy, ox); no minor transposes.
    cols = [xp[:, :, ky:ky + ho, kx:kx + wo] for ky in range(k) for kx in range(k)]
    patches_t = jnp.stack(cols, axis=1).reshape(ck2, m)            # bf16

    # Flipped kernel as (Cout, Cin*K*K), same (ci, ky, kx) feature order.
    wf = w[:, :, ::-1, ::-1]
    wmat_t = jnp.transpose(wf, (1, 0, 2, 3)).reshape(cout, ck2).astype(jnp.bfloat16)
    b_col = b.reshape(cout, 1)

    if final_layer:
        # Tanh layer (no batch stats): pad M to a 4-way-splittable, lane-dense
        # width and tile it -> double-buffered bf16 patch stream on all chips,
        # 2 blocks per TensorCore on v7x.  No single-block fallback.
        if m >= 2048:
            m_pad = _round_up(m, 512)
            tm = m_pad // 4
        else:
            m_pad = _round_up(m, 128)
            tm = m_pad
        patches_p = jnp.pad(patches_t, ((0, 0), (0, m_pad - m)))
        y = pl.pallas_call(
            _tanh_kernel,
            out_shape=jax.ShapeDtypeStruct((cout, m_pad), jnp.float32),
            grid=(m_pad // tm,),
            in_specs=[
                pl.BlockSpec((cout, ck2), lambda i: (0, 0)),
                pl.BlockSpec((ck2, tm), lambda i: (0, i)),
                pl.BlockSpec((cout, 1), lambda i: (0, 0)),
            ],
            out_specs=pl.BlockSpec((cout, tm), lambda i: (0, i)),
            compiler_params=pltpu.CompilerParams(
                dimension_semantics=("parallel",),
                vmem_limit_bytes=_VMEM_LIMIT,
            ),
        )(wmat_t, patches_p, b_col)
    else:
        # BN layers need full-M batch statistics and are tiny -> single block,
        # but pad M to a multiple of 128 so every store is lane-dense.
        m_pad = _round_up(m, 128)
        patches_p = jnp.pad(patches_t, ((0, 0), (0, m_pad - m)))
        kernel = functools.partial(_bn_relu_kernel, eps=1e-5, m_true=m)
        vspec = pl.BlockSpec(memory_space=pltpu.MemorySpace.VMEM)
        y = pl.pallas_call(
            kernel,
            out_shape=jax.ShapeDtypeStruct((cout, m_pad), jnp.bfloat16),
            in_specs=[vspec] * 5,
            out_specs=vspec,
            compiler_params=pltpu.CompilerParams(vmem_limit_bytes=_VMEM_LIMIT),
        )(wmat_t, patches_p, b_col, gamma.reshape(cout, 1), beta.reshape(cout, 1))

    return y[:, :m].reshape(cout, n, ho, wo)


class Generator:
    """JAX/Pallas port of the PyTorch Generator (5 ConvTranspose2d blocks)."""

    def __init__(self, z_dim=64, im_chan=3, hidden_dim=16, key=None):
        self.z_dim = z_dim
        self.cfg = [
            (z_dim,          hidden_dim * 8, 3, False),
            (hidden_dim * 8, hidden_dim * 4, 3, False),
            (hidden_dim * 4, hidden_dim * 2, 3, False),
            (hidden_dim * 2, hidden_dim,     3, False),
            (hidden_dim,     im_chan,        4, True),
        ]
        keys = jax.random.split(key, 2 * len(self.cfg))
        self.params = []
        for i, (cin, cout, k, _final) in enumerate(self.cfg):
            bound = 1.0 / float(cin * k * k) ** 0.5
            w = jax.random.uniform(keys[2 * i], (cin, cout, k, k),
                                   jnp.float32, -bound, bound)
            b = jax.random.uniform(keys[2 * i + 1], (cout,),
                                   jnp.float32, -bound, bound)
            gamma = jnp.ones((cout,), jnp.float32)   # BatchNorm2d weight init
            beta = jnp.zeros((cout,), jnp.float32)   # BatchNorm2d bias init
            self.params.append((w, b, gamma, beta))

    def __call__(self, noise):
        n = noise.shape[0]
        # channel-major internal layout (C, N, H, W); bf16 activations end to end
        x = jnp.transpose(noise, (1, 0)).reshape(self.z_dim, n, 1, 1)
        x = x.astype(jnp.bfloat16)
        for (_cin, _cout, _k, final), (w, b, g, be) in zip(self.cfg, self.params):
            x = conv_transpose_block(x, w, b, g, be, stride=2, final_layer=final)
        return jnp.transpose(x, (1, 0, 2, 3))   # NCHW, f32 (final tanh layer)


def get_noise(key, n_samples, z_dim):
    return jax.random.normal(key, (n_samples, z_dim), jnp.float32)


if __name__ == "__main__":
    key = jax.random.PRNGKey(0)
    k_noise, k_params = jax.random.split(key)

    n_images, z_dim = 2, 64
    gen = Generator(z_dim=z_dim, im_chan=3, hidden_dim=16, key=k_params)
    noise = get_noise(k_noise, n_images, z_dim)

    forward = jax.jit(gen.__call__)   # let XLA fuse the dilate/pad/im2col glue
    out = jax.block_until_ready(forward(noise))

    # spatial trace: 1 -> 3 -> 7 -> 15 -> 31 -> 64 (kernel 3,3,3,3,4 / stride 2)
    assert out.shape == (n_images, 3, 64, 64), out.shape
    assert out.dtype == jnp.float32
    assert bool(jnp.all(jnp.isfinite(out)))
    assert bool(jnp.all(jnp.abs(out) <= 1.0 + 1e-6))   # tanh output range

    print("KERNEL_OK")
</pallas_src>

<mosaic_0001>
module attributes {stable_mosaic.version = 11 : i64} {
  func.func @_bn_relu_kernel(%arg0: memref<128x576xbf16, #tpu.memory_space<vmem>>, %arg1: memref<576x128xbf16, #tpu.memory_space<vmem>>, %arg2: memref<128x1xf32, #tpu.memory_space<vmem>>, %arg3: memref<128x1xf32, #tpu.memory_space<vmem>>, %arg4: memref<128x1xf32, #tpu.memory_space<vmem>>, %arg5: memref<128x128xbf16, #tpu.memory_space<vmem>>) attributes {dimension_semantics = [], scalar_prefetch = 0 : i64, scratch_operands = 0 : i64, tpu.core_type = #tpu.core_type<tc>} {
    %c0 = arith.constant 0 : index
    %c0_0 = arith.constant 0 : index
    %0 = vector.load %arg0[%c0, %c0_0] : memref<128x576xbf16, #tpu.memory_space<vmem>>, vector<128x576xbf16>
    %c0_1 = arith.constant 0 : index
    %c0_2 = arith.constant 0 : index
    %1 = vector.load %arg1[%c0_1, %c0_2] : memref<576x128xbf16, #tpu.memory_space<vmem>>, vector<576x128xbf16>
    %cst = arith.constant dense<0.000000e+00> : vector<128x128xf32>
    %2 = tpu.matmul %0, %1, %cst {dimension_numbers = #tpu.dot_dimension_numbers<[1], [0], [0], [1], [0, 0, 1, 1], [], []>} : vector<128x576xbf16>, vector<576x128xbf16>, vector<128x128xf32> -> vector<128x128xf32>
    %c0_3 = arith.constant 0 : index
    %c0_4 = arith.constant 0 : index
    %3 = vector.load %arg2[%c0_3, %c0_4] : memref<128x1xf32, #tpu.memory_space<vmem>>, vector<128x1xf32>
    %4 = vector.broadcast %3 : vector<128x1xf32> to vector<128x128xf32>
    %5 = arith.addf %2, %4 : vector<128x128xf32>
    %6 = tpu.iota {dimensions = array<i32: 1>} : vector<128x128xi32>
    %c18_i32 = arith.constant 18 : i32
    %7 = vector.broadcast %c18_i32 : i32 to vector<128x128xi32>
    %8 = arith.cmpi slt, %6, %7 : vector<128x128xi32>
    %cst_5 = arith.constant 0.000000e+00 : f32
    %9 = vector.broadcast %cst_5 : f32 to vector<128x128xf32>
    %10 = arith.select %8, %5, %9 : vector<128x128xi1>, vector<128x128xf32>
    %cst_6 = arith.constant dense<0.000000e+00> : vector<128xf32>
    %11 = vector.multi_reduction <add>, %10, %cst_6 [1] : vector<128x128xf32> to vector<128xf32>
    %12 = vector.shape_cast %11 : vector<128xf32> to vector<128x1xf32>
    %cst_7 = arith.constant 0.055555556 : f32
    %13 = vector.broadcast %cst_7 : f32 to vector<128x1xf32>
    %14 = arith.mulf %12, %13 : vector<128x1xf32>
    %15 = arith.mulf %10, %10 : vector<128x128xf32>
    %cst_8 = arith.constant dense<0.000000e+00> : vector<128xf32>
    %16 = vector.multi_reduction <add>, %15, %cst_8 [1] : vector<128x128xf32> to vector<128xf32>
    %17 = vector.shape_cast %16 : vector<128xf32> to vector<128x1xf32>
    %cst_9 = arith.constant 0.055555556 : f32
    %18 = vector.broadcast %cst_9 : f32 to vector<128x1xf32>
    %19 = arith.mulf %17, %18 : vector<128x1xf32>
    %20 = arith.mulf %14, %14 : vector<128x1xf32>
    %21 = arith.subf %19, %20 : vector<128x1xf32>
    %22 = vector.broadcast %14 : vector<128x1xf32> to vector<128x128xf32>
    %23 = arith.subf %5, %22 : vector<128x128xf32>
    %cst_10 = arith.constant 9.99999974E-6 : f32
    %24 = vector.broadcast %cst_10 : f32 to vector<128x1xf32>
    %25 = arith.addf %21, %24 : vector<128x1xf32>
    %26 = math.rsqrt %25 : vector<128x1xf32>
    %27 = vector.broadcast %26 : vector<128x1xf32> to vector<128x128xf32>
    %28 = arith.mulf %23, %27 : vector<128x128xf32>
    %c0_11 = arith.constant 0 : index
    %c0_12 = arith.constant 0 : index
    %29 = vector.load %arg3[%c0_11, %c0_12] : memref<128x1xf32, #tpu.memory_space<vmem>>, vector<128x1xf32>
    %30 = vector.broadcast %29 : vector<128x1xf32> to vector<128x128xf32>
    %31 = arith.mulf %28, %30 : vector<128x128xf32>
    %c0_13 = arith.constant 0 : index
    %c0_14 = arith.constant 0 : index
    %32 = vector.load %arg4[%c0_13, %c0_14] : memref<128x1xf32, #tpu.memory_space<vmem>>, vector<128x1xf32>
    %33 = vector.broadcast %32 : vector<128x1xf32> to vector<128x128xf32>
    %34 = arith.addf %31, %33 : vector<128x128xf32>
    %cst_15 = arith.constant 0.000000e+00 : f32
    %35 = vector.broadcast %cst_15 : f32 to vector<128x128xf32>
    %36 = arith.maximumf %34, %35 : vector<128x128xf32>
    %37 = arith.truncf %36 : vector<128x128xf32> to vector<128x128xbf16>
    %c0_16 = arith.constant 0 : index
    %c0_17 = arith.constant 0 : index
    %38 = vector.load %arg5[%c0_16, %c0_17] : memref<128x128xbf16, #tpu.memory_space<vmem>>, vector<128x128xbf16>
    tpu.vector_store %arg5[%c0_16, %c0_17], %37 {strides = array<i32>} : memref<128x128xbf16, #tpu.memory_space<vmem>>, vector<128x128xbf16>,
    return
  }
}

module attributes {stable_mosaic.version = 11 : i64} {
  func.func @_bn_relu_kernel(%arg0: memref<64x1152xbf16, #tpu.memory_space<vmem>>, %arg1: memref<1152x128xbf16, #tpu.memory_space<vmem>>, %arg2: memref<64x1xf32, #tpu.memory_space<vmem>>, %arg3: memref<64x1xf32, #tpu.memory_space<vmem>>, %arg4: memref<64x1xf32, #tpu.memory_space<vmem>>, %arg5: memref<64x128xbf16, #tpu.memory_space<vmem>>) attributes {dimension_semantics = [], scalar_prefetch = 0 : i64, scratch_operands = 0 : i64, tpu.core_type = #tpu.core_type<tc>} {
    %c0 = arith.constant 0 : index
    %c0_0 = arith.constant 0 : index
    %0 = vector.load %arg0[%c0, %c0_0] : memref<64x1152xbf16, #tpu.memory_space<vmem>>, vector<64x1152xbf16>
    %c0_1 = arith.constant 0 : index
    %c0_2 = arith.constant 0 : index
    %1 = vector.load %arg1[%c0_1, %c0_2] : memref<1152x128xbf16, #tpu.memory_space<vmem>>, vector<1152x128xbf16>
    %cst = arith.constant dense<0.000000e+00> : vector<64x128xf32>
    %2 = tpu.matmul %0, %1, %cst {dimension_numbers = #tpu.dot_dimension_numbers<[1], [0], [0], [1], [0, 0, 1, 1], [], []>} : vector<64x1152xbf16>, vector<1152x128xbf16>, vector<64x128xf32> -> vector<64x128xf32>
    %c0_3 = arith.constant 0 : index
    %c0_4 = arith.constant 0 : index
    %3 = vector.load %arg2[%c0_3, %c0_4] : memref<64x1xf32, #tpu.memory_space<vmem>>, vector<64x1xf32>
    %4 = vector.broadcast %3 : vector<64x1xf32> to vector<64x128xf32>
    %5 = arith.addf %2, %4 : vector<64x128xf32>
    %6 = tpu.iota {dimensions = array<i32: 1>} : vector<64x128xi32>
    %c98_i32 = arith.constant 98 : i32
    %7 = vector.broadcast %c98_i32 : i32 to vector<64x128xi32>
    %8 = arith.cmpi slt, %6, %7 : vector<64x128xi32>
    %cst_5 = arith.constant 0.000000e+00 : f32
    %9 = vector.broadcast %cst_5 : f32 to vector<64x128xf32>
    %10 = arith.select %8, %5, %9 : vector<64x128xi1>, vector<64x128xf32>
    %cst_6 = arith.constant dense<0.000000e+00> : vector<64xf32>
    %11 = vector.multi_reduction <add>, %10, %cst_6 [1] : vector<64x128xf32> to vector<64xf32>
    %12 = vector.shape_cast %11 : vector<64xf32> to vector<64x1xf32>
    %cst_7 = arith.constant 0.0102040814 : f32
    %13 = vector.broadcast %cst_7 : f32 to vector<64x1xf32>
    %14 = arith.mulf %12, %13 : vector<64x1xf32>
    %15 = arith.mulf %10, %10 : vector<64x128xf32>
    %cst_8 = arith.constant dense<0.000000e+00> : vector<64xf32>
    %16 = vector.multi_reduction <add>, %15, %cst_8 [1] : vector<64x128xf32> to vector<64xf32>
    %17 = vector.shape_cast %16 : vector<64xf32> to vector<64x1xf32>
    %cst_9 = arith.constant 0.0102040814 : f32
    %18 = vector.broadcast %cst_9 : f32 to vector<64x1xf32>
    %19 = arith.mulf %17, %18 : vector<64x1xf32>
    %20 = arith.mulf %14, %14 : vector<64x1xf32>
    %21 = arith.subf %19, %20 : vector<64x1xf32>
    %22 = vector.broadcast %14 : vector<64x1xf32> to vector<64x128xf32>
    %23 = arith.subf %5, %22 : vector<64x128xf32>
    %cst_10 = arith.constant 9.99999974E-6 : f32
    %24 = vector.broadcast %cst_10 : f32 to vector<64x1xf32>
    %25 = arith.addf %21, %24 : vector<64x1xf32>
    %26 = math.rsqrt %25 : vector<64x1xf32>
    %27 = vector.broadcast %26 : vector<64x1xf32> to vector<64x128xf32>
    %28 = arith.mulf %23, %27 : vector<64x128xf32>
    %c0_11 = arith.constant 0 : index
    %c0_12 = arith.constant 0 : index
    %29 = vector.load %arg3[%c0_11, %c0_12] : memref<64x1xf32, #tpu.memory_space<vmem>>, vector<64x1xf32>
    %30 = vector.broadcast %29 : vector<64x1xf32> to vector<64x128xf32>
    %31 = arith.mulf %28, %30 : vector<64x128xf32>
    %c0_13 = arith.constant 0 : index
    %c0_14 = arith.constant 0 : index
    %32 = vector.load %arg4[%c0_13, %c0_14] : memref<64x1xf32, #tpu.memory_space<vmem>>, vector<64x1xf32>
    %33 = vector.broadcast %32 : vector<64x1xf32> to vector<64x128xf32>
    %34 = arith.addf %31, %33 : vector<64x128xf32>
    %cst_15 = arith.constant 0.000000e+00 : f32
    %35 = vector.broadcast %cst_15 : f32 to vector<64x128xf32>
    %36 = arith.maximumf %34, %35 : vector<64x128xf32>
    %37 = arith.truncf %36 : vector<64x128xf32> to vector<64x128xbf16>
    %c0_16 = arith.constant 0 : index
    %c0_17 = arith.constant 0 : index
    %38 = vector.load %arg5[%c0_16, %c0_17] : memref<64x128xbf16, #tpu.memory_space<vmem>>, vector<64x128xbf16>
    tpu.vector_store %arg5[%c0_16, %c0_17], %37 {strides = array<i32>} : memref<64x128xbf16, #tpu.memory_space<vmem>>, vector<64x128xbf16>,
    return
  }
}

module attributes {stable_mosaic.version = 11 : i64} {
  func.func @_bn_relu_kernel(%arg0: memref<32x576xbf16, #tpu.memory_space<vmem>>, %arg1: memref<576x512xbf16, #tpu.memory_space<vmem>>, %arg2: memref<32x1xf32, #tpu.memory_space<vmem>>, %arg3: memref<32x1xf32, #tpu.memory_space<vmem>>, %arg4: memref<32x1xf32, #tpu.memory_space<vmem>>, %arg5: memref<32x512xbf16, #tpu.memory_space<vmem>>) attributes {dimension_semantics = [], scalar_prefetch = 0 : i64, scratch_operands = 0 : i64, tpu.core_type = #tpu.core_type<tc>} {
    %c0 = arith.constant 0 : index
    %c0_0 = arith.constant 0 : index
    %0 = vector.load %arg0[%c0, %c0_0] : memref<32x576xbf16, #tpu.memory_space<vmem>>, vector<32x576xbf16>
    %c0_1 = arith.constant 0 : index
    %c0_2 = arith.constant 0 : index
    %1 = vector.load %arg1[%c0_1, %c0_2] : memref<576x512xbf16, #tpu.memory_space<vmem>>, vector<576x512xbf16>
    %cst = arith.constant dense<0.000000e+00> : vector<32x512xf32>
    %2 = tpu.matmul %0, %1, %cst {dimension_numbers = #tpu.dot_dimension_numbers<[1], [0], [0], [1], [0, 0, 1, 1], [], []>} : vector<32x576xbf16>, vector<576x512xbf16>, vector<32x512xf32> -> vector<32x512xf32>
    %c0_3 = arith.constant 0 : index
    %c0_4 = arith.constant 0 : index
    %3 = vector.load %arg2[%c0_3, %c0_4] : memref<32x1xf32, #tpu.memory_space<vmem>>, vector<32x1xf32>
    %4 = vector.broadcast %3 : vector<32x1xf32> to vector<32x512xf32>
    %5 = arith.addf %2, %4 : vector<32x512xf32>
    %6 = tpu.iota {dimensions = array<i32: 1>} : vector<32x512xi32>
    %c450_i32 = arith.constant 450 : i32
    %7 = vector.broadcast %c450_i32 : i32 to vector<32x512xi32>
    %8 = arith.cmpi slt, %6, %7 : vector<32x512xi32>
    %cst_5 = arith.constant 0.000000e+00 : f32
    %9 = vector.broadcast %cst_5 : f32 to vector<32x512xf32>
    %10 = arith.select %8, %5, %9 : vector<32x512xi1>, vector<32x512xf32>
    %cst_6 = arith.constant dense<0.000000e+00> : vector<32xf32>
    %11 = vector.multi_reduction <add>, %10, %cst_6 [1] : vector<32x512xf32> to vector<32xf32>
    %12 = vector.shape_cast %11 : vector<32xf32> to vector<32x1xf32>
    %cst_7 = arith.constant 0.00222222228 : f32
    %13 = vector.broadcast %cst_7 : f32 to vector<32x1xf32>
    %14 = arith.mulf %12, %13 : vector<32x1xf32>
    %15 = arith.mulf %10, %10 : vector<32x512xf32>
    %cst_8 = arith.constant dense<0.000000e+00> : vector<32xf32>
    %16 = vector.multi_reduction <add>, %15, %cst_8 [1] : vector<32x512xf32> to vector<32xf32>
    %17 = vector.shape_cast %16 : vector<32xf32> to vector<32x1xf32>
    %cst_9 = arith.constant 0.00222222228 : f32
    %18 = vector.broadcast %cst_9 : f32 to vector<32x1xf32>
    %19 = arith.mulf %17, %18 : vector<32x1xf32>
    %20 = arith.mulf %14, %14 : vector<32x1xf32>
    %21 = arith.subf %19, %20 : vector<32x1xf32>
    %22 = vector.broadcast %14 : vector<32x1xf32> to vector<32x512xf32>
    %23 = arith.subf %5, %22 : vector<32x512xf32>
    %cst_10 = arith.constant 9.99999974E-6 : f32
    %24 = vector.broadcast %cst_10 : f32 to vector<32x1xf32>
    %25 = arith.addf %21, %24 : vector<32x1xf32>
    %26 = math.rsqrt %25 : vector<32x1xf32>
    %27 = vector.broadcast %26 : vector<32x1xf32> to vector<32x512xf32>
    %28 = arith.mulf %23, %27 : vector<32x512xf32>
    %c0_11 = arith.constant 0 : index
    %c0_12 = arith.constant 0 : index
    %29 = vector.load %arg3[%c0_11, %c0_12] : memref<32x1xf32, #tpu.memory_space<vmem>>, vector<32x1xf32>
    %30 = vector.broadcast %29 : vector<32x1xf32> to vector<32x512xf32>
    %31 = arith.mulf %28, %30 : vector<32x512xf32>
    %c0_13 = arith.constant 0 : index
    %c0_14 = arith.constant 0 : index
    %32 = vector.load %arg4[%c0_13, %c0_14] : memref<32x1xf32, #tpu.memory_space<vmem>>, vector<32x1xf32>
    %33 = vector.broadcast %32 : vector<32x1xf32> to vector<32x512xf32>
    %34 = arith.addf %31, %33 : vector<32x512xf32>
    %cst_15 = arith.constant 0.000000e+00 : f32
    %35 = vector.broadcast %cst_15 : f32 to vector<32x512xf32>
    %36 = arith.maximumf %34, %35 : vector<32x512xf32>
    %37 = arith.truncf %36 : vector<32x512xf32> to vector<32x512xbf16>
    %c0_16 = arith.constant 0 : index
    %c0_17 = arith.constant 0 : index
    %38 = vector.load %arg5[%c0_16, %c0_17] : memref<32x512xbf16, #tpu.memory_space<vmem>>, vector<32x512xbf16>
    tpu.vector_store %arg5[%c0_16, %c0_17], %37 {strides = array<i32>} : memref<32x512xbf16, #tpu.memory_space<vmem>>, vector<32x512xbf16>,
    return
  }
}

module attributes {stable_mosaic.version = 11 : i64} {
  func.func @_bn_relu_kernel(%arg0: memref<16x288xbf16, #tpu.memory_space<vmem>>, %arg1: memref<288x2048xbf16, #tpu.memory_space<vmem>>, %arg2: memref<16x1xf32, #tpu.memory_space<vmem>>, %arg3: memref<16x1xf32, #tpu.memory_space<vmem>>, %arg4: memref<16x1xf32, #tpu.memory_space<vmem>>, %arg5: memref<16x2048xbf16, #tpu.memory_space<vmem>>) attributes {dimension_semantics = [], scalar_prefetch = 0 : i64, scratch_operands = 0 : i64, tpu.core_type = #tpu.core_type<tc>} {
    %c0 = arith.constant 0 : index
    %c0_0 = arith.constant 0 : index
    %0 = vector.load %arg0[%c0, %c0_0] : memref<16x288xbf16, #tpu.memory_space<vmem>>, vector<16x288xbf16>
    %c0_1 = arith.constant 0 : index
    %c0_2 = arith.constant 0 : index
    %1 = vector.load %arg1[%c0_1, %c0_2] : memref<288x2048xbf16, #tpu.memory_space<vmem>>, vector<288x2048xbf16>
    %cst = arith.constant dense<0.000000e+00> : vector<16x2048xf32>
    %2 = tpu.matmul %0, %1, %cst {dimension_numbers = #tpu.dot_dimension_numbers<[1], [0], [0], [1], [0, 0, 1, 1], [], []>} : vector<16x288xbf16>, vector<288x2048xbf16>, vector<16x2048xf32> -> vector<16x2048xf32>
    %c0_3 = arith.constant 0 : index
    %c0_4 = arith.constant 0 : index
    %3 = vector.load %arg2[%c0_3, %c0_4] : memref<16x1xf32, #tpu.memory_space<vmem>>, vector<16x1xf32>
    %4 = vector.broadcast %3 : vector<16x1xf32> to vector<16x2048xf32>
    %5 = arith.addf %2, %4 : vector<16x2048xf32>
    %6 = tpu.iota {dimensions = array<i32: 1>} : vector<16x2048xi32>
    %c1922_i32 = arith.constant 1922 : i32
    %7 = vector.broadcast %c1922_i32 : i32 to vector<16x2048xi32>
    %8 = arith.cmpi slt, %6, %7 : vector<16x2048xi32>
    %cst_5 = arith.constant 0.000000e+00 : f32
    %9 = vector.broadcast %cst_5 : f32 to vector<16x2048xf32>
    %10 = arith.select %8, %5, %9 : vector<16x2048xi1>, vector<16x2048xf32>
    %cst_6 = arith.constant dense<0.000000e+00> : vector<16xf32>
    %11 = vector.multi_reduction <add>, %10, %cst_6 [1] : vector<16x2048xf32> to vector<16xf32>
    %12 = vector.shape_cast %11 : vector<16xf32> to vector<16x1xf32>
    %cst_7 = arith.constant 5.20291389E-4 : f32
    %13 = vector.broadcast %cst_7 : f32 to vector<16x1xf32>
    %14 = arith.mulf %12, %13 : vector<16x1xf32>
    %15 = arith.mulf %10, %10 : vector<16x2048xf32>
    %cst_8 = arith.constant dense<0.000000e+00> : vector<16xf32>
    %16 = vector.multi_reduction <add>, %15, %cst_8 [1] : vector<16x2048xf32> to vector<16xf32>
    %17 = vector.shape_cast %16 : vector<16xf32> to vector<16x1xf32>
    %cst_9 = arith.constant 5.20291389E-4 : f32
    %18 = vector.broadcast %cst_9 : f32 to vector<16x1xf32>
    %19 = arith.mulf %17, %18 : vector<16x1xf32>
    %20 = arith.mulf %14, %14 : vector<16x1xf32>
    %21 = arith.subf %19, %20 : vector<16x1xf32>
    %22 = vector.broadcast %14 : vector<16x1xf32> to vector<16x2048xf32>
    %23 = arith.subf %5, %22 : vector<16x2048xf32>
    %cst_10 = arith.constant 9.99999974E-6 : f32
    %24 = vector.broadcast %cst_10 : f32 to vector<16x1xf32>
    %25 = arith.addf %21, %24 : vector<16x1xf32>
    %26 = math.rsqrt %25 : vector<16x1xf32>
    %27 = vector.broadcast %26 : vector<16x1xf32> to vector<16x2048xf32>
    %28 = arith.mulf %23, %27 : vector<16x2048xf32>
    %c0_11 = arith.constant 0 : index
    %c0_12 = arith.constant 0 : index
    %29 = vector.load %arg3[%c0_11, %c0_12] : memref<16x1xf32, #tpu.memory_space<vmem>>, vector<16x1xf32>
    %30 = vector.broadcast %29 : vector<16x1xf32> to vector<16x2048xf32>
    %31 = arith.mulf %28, %30 : vector<16x2048xf32>
    %c0_13 = arith.constant 0 : index
    %c0_14 = arith.constant 0 : index
    %32 = vector.load %arg4[%c0_13, %c0_14] : memref<16x1xf32, #tpu.memory_space<vmem>>, vector<16x1xf32>
    %33 = vector.broadcast %32 : vector<16x1xf32> to vector<16x2048xf32>
    %34 = arith.addf %31, %33 : vector<16x2048xf32>
    %cst_15 = arith.constant 0.000000e+00 : f32
    %35 = vector.broadcast %cst_15 : f32 to vector<16x2048xf32>
    %36 = arith.maximumf %34, %35 : vector<16x2048xf32>
    %37 = arith.truncf %36 : vector<16x2048xf32> to vector<16x2048xbf16>
    %c0_16 = arith.constant 0 : index
    %c0_17 = arith.constant 0 : index
    %38 = vector.load %arg5[%c0_16, %c0_17] : memref<16x2048xbf16, #tpu.memory_space<vmem>>, vector<16x2048xbf16>
    tpu.vector_store %arg5[%c0_16, %c0_17], %37 {strides = array<i32>} : memref<16x2048xbf16, #tpu.memory_space<vmem>>, vector<16x2048xbf16>,
    return
  }
}

module attributes {stable_mosaic.version = 11 : i64} {
  func.func @_tanh_kernel(%arg0: i32, %arg1: memref<3x256xbf16, #tpu.memory_space<vmem>>, %arg2: memref<256x2048xbf16, #tpu.memory_space<vmem>>, %arg3: memref<3x1xf32, #tpu.memory_space<vmem>>, %arg4: memref<3x2048xf32, #tpu.memory_space<vmem>>) attributes {dimension_semantics = [#tpu.dimension_semantics<parallel>], iteration_bounds = array<i64: 4>, scalar_prefetch = 0 : i64, scratch_operands = 0 : i64, tpu.core_type = #tpu.core_type<tc>, window_params = [{pipeline_mode = #tpu.pipeline_mode<synchronous>, transform_indices = @transform_0, window_bounds = array<i64: 3, 256>}, {transform_indices = @transform_1, window_bounds = array<i64: 256, 2048>}, {pipeline_mode = #tpu.pipeline_mode<synchronous>, transform_indices = @transform_2, window_bounds = array<i64: 3, 1>}, {transform_indices = @transform_3, window_bounds = array<i64: 3, 2048>}]} {
    %c0 = arith.constant 0 : index
    %c0_0 = arith.constant 0 : index
    %0 = vector.load %arg1[%c0, %c0_0] : memref<3x256xbf16, #tpu.memory_space<vmem>>, vector<3x256xbf16>
    %c0_1 = arith.constant 0 : index
    %c0_2 = arith.constant 0 : index
    %1 = vector.load %arg2[%c0_1, %c0_2] : memref<256x2048xbf16, #tpu.memory_space<vmem>>, vector<256x2048xbf16>
    %cst = arith.constant dense<0.000000e+00> : vector<3x2048xf32>
    %2 = tpu.matmul %0, %1, %cst {dimension_numbers = #tpu.dot_dimension_numbers<[1], [0], [0], [1], [0, 0, 1, 1], [], []>} : vector<3x256xbf16>, vector<256x2048xbf16>, vector<3x2048xf32> -> vector<3x2048xf32>
    %c0_3 = arith.constant 0 : index
    %c0_4 = arith.constant 0 : index
    %3 = vector.load %arg3[%c0_3, %c0_4] : memref<3x1xf32, #tpu.memory_space<vmem>>, vector<3x1xf32>
    %4 = vector.broadcast %3 : vector<3x1xf32> to vector<3x2048xf32>
    %5 = arith.addf %2, %4 : vector<3x2048xf32>
    %6 = math.tanh %5 : vector<3x2048xf32>
    %c0_5 = arith.constant 0 : index
    %c0_6 = arith.constant 0 : index
    %7 = vector.load %arg4[%c0_5, %c0_6] : memref<3x2048xf32, #tpu.memory_space<vmem>>, vector<3x2048xf32>
    tpu.vector_store %arg4[%c0_5, %c0_6], %6 {strides = array<i32>} : memref<3x2048xf32, #tpu.memory_space<vmem>>, vector<3x2048xf32>,
    return
  }
  func.func @transform_0(%arg0: i32) -> (i32, i32) {
    %c0_i32 = arith.constant 0 : i32
    %c0_i32_0 = arith.constant 0 : i32
    %c0_i32_1 = arith.constant 0 : i32
    return %c0_i32, %c0_i32_0 : i32, i32
  }
  func.func @transform_1(%arg0: i32) -> (i32, i32) {
    %c0_i32 = arith.constant 0 : i32
    %c0_i32_0 = arith.constant 0 : i32
    return %c0_i32, %arg0 : i32, i32
  }
  func.func @transform_2(%arg0: i32) -> (i32, i32) {
    %c0_i32 = arith.constant 0 : i32
    %c0_i32_0 = arith.constant 0 : i32
    %c0_i32_1 = arith.constant 0 : i32
    return %c0_i32, %c0_i32_0 : i32, i32
  }
  func.func @transform_3(%arg0: i32) -> (i32, i32) {
    %c0_i32 = arith.constant 0 : i32
    %c0_i32_0 = arith.constant 0 : i32
    return %c0_i32, %arg0 : i32, i32
  }
}

</mosaic_0001>

<llo_original>
// kernel: a_call__.5
$region0: #{a_call__.5}
  #allocation0 [shape = 'u32[]', space=smem, size = 0x4, offset = 0x4, fixed_abs, tag = 'smem constant byte address 0x4 - core index']
  #allocation1 [shape = 'u32[144,128]{1,0:T(1,128)}', space=vmem, size = 0x12000, scoped, tag = 'internal scratch']
  %s0 = inlined_call_operand.hbm [shape: bf16[128,576], index: 0, kind: input, shape index: {}]
  %s1 = inlined_call_operand.vmem [shape: bf16[576,128], index: 1, kind: input, shape index: {}]
  %s2 = inlined_call_operand.hbm [shape: f32[128,1], index: 2, kind: input, shape index: {}]
  %s3 = inlined_call_operand.vmem [shape: f32[128,1], index: 3, kind: input, shape index: {}]
  %s4 = inlined_call_operand.vmem [shape: f32[128,1], index: 4, kind: input, shape index: {}]
  %s5 = inlined_call_operand.vmem [shape: bf16[128,128], index: 5, kind: output, shape index: {}]
  %s6 = sld [smem:[#allocation0]]
  $region38: #{a_call__.5} parent=0
    _
  %s8 = ssub.s32 1, %s6
  %s9 = scalar_select 0, %s8, %s6
  $region1: #{a_call__.5} parent=0
    #allocation2 [shape = 'u8[163840]{0}', space=vmem, size = 0x28000, scoped, tag = 'input window, operand 0, single buffered']
    #allocation3 [shape = 's32[1]{0}', space=sflag, size = 0x4, scoped, tag = 'scoped memory for a_call__.5']
    #allocation4 [shape = 'u8[65536]{0}', space=vmem, size = 0x10000, scoped, tag = 'input window, operand 2, single buffered']
    #allocation5 [shape = 's32[1]{0}', space=sflag, size = 0x4, scoped, tag = 'scoped memory for a_call__.5']
    %10 = vsyncpa [#allocation3], 0
    %11 = vsyncpa [#allocation5], 0
    // Predicated region
    $region2: #{a_call__.5} parent=1 // pred_check
      _
    $region3: #{a_call__.5} parent=1 // pred_check_branch
      %13 = sbr.rel (0) target = $region5
    $region4: #{a_call__.5} parent=1 // pred_region
      %s15 = ssub.s32 5120, 5120
      %16 = vsyncadd [#allocation3], %s15
      %s17 = sshll.u32 [#allocation2], 4
      %s18 = int_to_ptr.vmem [resolvable:$true] %s17
      %23 = dma.hbm_to_vmem [thread:$0]  %s0, 5120, %s18, [#allocation3], 320, 320, 20
    $region5: #{a_call__.5} parent=1 // pred_fallthru
      _
    // Predicated region
    $region6: #{a_call__.5} parent=1 // pred_check
      _
    $region7: #{a_call__.5} parent=1 // pred_check_branch
      %25 = sbr.rel (0) target = $region9
    $region8: #{a_call__.5} parent=1 // pred_region
      _
    $region9: #{a_call__.5} parent=1 // pred_fallthru
      _
    // Predicated region
    $region10: #{a_call__.5} parent=1 // pred_check
      _
    $region11: #{a_call__.5} parent=1 // pred_check_branch
      %27 = sbr.rel (0) target = $region13
    $region12: #{a_call__.5} parent=1 // pred_region
      %s29 = ssub.s32 2048, 2048
      %30 = vsyncadd [#allocation5], %s29
      %s31 = sshll.u32 [#allocation4], 4
      %s32 = int_to_ptr.vmem [resolvable:$true] %s31
      %37 = dma.hbm_to_vmem [thread:$0]  %s2, 2048, %s32, [#allocation5], 128, 128, 8
    $region13: #{a_call__.5} parent=1 // pred_fallthru
      _
    // Predicated region
    $region14: #{a_call__.5} parent=1 // pred_check
      _
    $region15: #{a_call__.5} parent=1 // pred_check_branch
      %39 = sbr.rel (0) target = $region17
    $region16: #{a_call__.5} parent=1 // pred_region
      _
    $region17: #{a_call__.5} parent=1 // pred_fallthru
      _
    // Predicated region
    $region18: #{a_call__.5} parent=1 // pred_check
      _
    $region19: #{a_call__.5} parent=1 // pred_check_branch
      %41 = sbr.rel (0) target = $region21
    $region20: #{a_call__.5} parent=1 // pred_region
      _
    $region21: #{a_call__.5} parent=1 // pred_fallthru
      _
    // Predicated region
    $region22: #{a_call__.5} parent=1 // pred_check
      _
    $region23: #{a_call__.5} parent=1 // pred_check_branch
      %43 = sbr.rel (0) target = $region25
    $region24: #{a_call__.5} parent=1 // pred_region
      %44 = dma.done [#allocation3], 5120
    $region25: #{a_call__.5} parent=1 // pred_fallthru
      _
    // Predicated region
    $region26: #{a_call__.5} parent=1 // pred_check
      _
    $region27: #{a_call__.5} parent=1 // pred_check_branch
      %46 = sbr.rel (0) target = $region29
    $region28: #{a_call__.5} parent=1 // pred_region
      %47 = dma.done [#allocation5], 2048
    $region29: #{a_call__.5} parent=1 // pred_fallthru
      _
    %v49 = vld [vmem:[#allocation2] sm:$0xff]
    %v50 = vld [vmem:[#allocation2 + $0x8] sm:$0xff]
    %v51 = vld [vmem:[#allocation2 + $0x10] sm:$0xf]
    %v52 = vld [vmem:[#allocation2 + $0x14] sm:$0xff]
    %v53 = vld [vmem:[#allocation2 + $0x1c] sm:$0xff]
    %v54 = vld [vmem:[#allocation2 + $0x24] sm:$0xf]
    %v55 = vld [vmem:[#allocation2 + $0x28] sm:$0xff]
    %v56 = vld [vmem:[#allocation2 + $0x30] sm:$0xff]
    %v57 = vld [vmem:[#allocation2 + $0x38] sm:$0xf]
    %v58 = vld [vmem:[#allocation2 + $0x3c] sm:$0xff]
    %v59 = vld [vmem:[#allocation2 + $0x44] sm:$0xff]
    %v60 = vld [vmem:[#allocation2 + $0x4c] sm:$0xf]
    %v61 = vld [vmem:[#allocation2 + $0x50] sm:$0xff]
    %v62 = vld [vmem:[#allocation2 + $0x58] sm:$0xff]
    %v63 = vld [vmem:[#allocation2 + $0x60] sm:$0xf]
    %v64 = vld [vmem:[#allocation2 + $0x64] sm:$0xff]
    %v65 = vld [vmem:[#allocation2 + $0x6c] sm:$0xff]
    %v66 = vld [vmem:[#allocation2 + $0x74] sm:$0xf]
    %v67 = vld [vmem:[#allocation2 + $0x78] sm:$0xff]
    %v68 = vld [vmem:[#allocation2 + $0x80] sm:$0xff]
    %v69 = vld [vmem:[#allocation2 + $0x88] sm:$0xf]
    %v70 = vld [vmem:[#allocation2 + $0x8c] sm:$0xff]
    %v71 = vld [vmem:[#allocation2 + $0x94] sm:$0xff]
    %v72 = vld [vmem:[#allocation2 + $0x9c] sm:$0xf]
    %v73 = vld [vmem:[#allocation2 + $0xa0] sm:$0xff]
    %v74 = vld [vmem:[#allocation2 + $0xa8] sm:$0xff]
    %v75 = vld [vmem:[#allocation2 + $0xb0] sm:$0xf]
    %v76 = vld [vmem:[#allocation2 + $0xb4] sm:$0xff]
    %v77 = vld [vmem:[#allocation2 + $0xbc] sm:$0xff]
    %v78 = vld [vmem:[#allocation2 + $0xc4] sm:$0xf]
    %v79 = vld [vmem:[#allocation2 + $0xc8] sm:$0xff]
    %v80 = vld [vmem:[#allocation2 + $0xd0] sm:$0xff]
    %v81 = vld [vmem:[#allocation2 + $0xd8] sm:$0xf]
    %v82 = vld [vmem:[#allocation2 + $0xdc] sm:$0xff]
    %v83 = vld [vmem:[#allocation2 + $0xe4] sm:$0xff]
    %v84 = vld [vmem:[#allocation2 + $0xec] sm:$0xf]
    %v85 = vld [vmem:[#allocation2 + $0xf0] sm:$0xff]
    %v86 = vld [vmem:[#allocation2 + $0xf8] sm:$0xff]
    %v87 = vld [vmem:[#allocation2 + $0x100] sm:$0xf]
    %v88 = vld [vmem:[#allocation2 + $0x104] sm:$0xff]
    %v89 = vld [vmem:[#allocation2 + $0x10c] sm:$0xff]
    %v90 = vld [vmem:[#allocation2 + $0x114] sm:$0xf]
    %v91 = vld [vmem:[#allocation2 + $0x118] sm:$0xff]
    %v92 = vld [vmem:[#allocation2 + $0x120] sm:$0xff]
    %v93 = vld [vmem:[#allocation2 + $0x128] sm:$0xf]
    %v94 = vld [vmem:[#allocation2 + $0x12c] sm:$0xff]
    %v95 = vld [vmem:[#allocation2 + $0x134] sm:$0xff]
    %v96 = vld [vmem:[#allocation2 + $0x13c] sm:$0xf]
    %v97 = vld [vmem:[%s1] sm:$0xf]
    %v98 = vld [vmem:[%s1 + $0x4] sm:$0xf]
    %v99 = vld [vmem:[%s1 + $0x8] sm:$0xf]
    %v100 = vld [vmem:[%s1 + $0xc] sm:$0xf]
    %v101 = vld [vmem:[%s1 + $0x10] sm:$0xf]
    %v102 = vld [vmem:[%s1 + $0x14] sm:$0xf]
    %v103 = vld [vmem:[%s1 + $0x18] sm:$0xf]
    %v104 = vld [vmem:[%s1 + $0x1c] sm:$0xf]
    %v105 = vld [vmem:[%s1 + $0x20] sm:$0xf]
    %v106 = vld [vmem:[%s1 + $0x24] sm:$0xf]
    %v107 = vld [vmem:[%s1 + $0x28] sm:$0xf]
    %v108 = vld [vmem:[%s1 + $0x2c] sm:$0xf]
    %v109 = vld [vmem:[%s1 + $0x30] sm:$0xf]
    %v110 = vld [vmem:[%s1 + $0x34] sm:$0xf]
    %v111 = vld [vmem:[%s1 + $0x38] sm:$0xf]
    %v112 = vld [vmem:[%s1 + $0x3c] sm:$0xf]
    %v113 = vld [vmem:[%s1 + $0x40] sm:$0xf]
    %v114 = vld [vmem:[%s1 + $0x44] sm:$0xf]
    %v115 = vld [vmem:[%s1 + $0x48] sm:$0xf]
    %v116 = vld [vmem:[%s1 + $0x4c] sm:$0xf]
    %v117 = vld [vmem:[%s1 + $0x50] sm:$0xf]
    %v118 = vld [vmem:[%s1 + $0x54] sm:$0xf]
    %v119 = vld [vmem:[%s1 + $0x58] sm:$0xf]
    %v120 = vld [vmem:[%s1 + $0x5c] sm:$0xf]
    %v121 = vld [vmem:[%s1 + $0x60] sm:$0xf]
    %v122 = vld [vmem:[%s1 + $0x64] sm:$0xf]
    %v123 = vld [vmem:[%s1 + $0x68] sm:$0xf]
    %v124 = vld [vmem:[%s1 + $0x6c] sm:$0xf]
    %v125 = vld [vmem:[%s1 + $0x70] sm:$0xf]
    %v126 = vld [vmem:[%s1 + $0x74] sm:$0xf]
    %v127 = vld [vmem:[%s1 + $0x78] sm:$0xf]
    %v128 = vld [vmem:[%s1 + $0x7c] sm:$0xf]
    %v129 = vld [vmem:[%s1 + $0x80] sm:$0xf]
    %v130 = vld [vmem:[%s1 + $0x84] sm:$0xf]
    %v131 = vld [vmem:[%s1 + $0x88] sm:$0xf]
    %v132 = vld [vmem:[%s1 + $0x8c] sm:$0xf]
    %v133 = vld [vmem:[%s1 + $0x90] sm:$0xf]
    %v134 = vld [vmem:[%s1 + $0x94] sm:$0xf]
    %v135 = vld [vmem:[%s1 + $0x98] sm:$0xf]
    %v136 = vld [vmem:[%s1 + $0x9c] sm:$0xf]
    %v137 = vld [vmem:[%s1 + $0xa0] sm:$0xf]
    %v138 = vld [vmem:[%s1 + $0xa4] sm:$0xf]
    %v139 = vld [vmem:[%s1 + $0xa8] sm:$0xf]
    %v140 = vld [vmem:[%s1 + $0xac] sm:$0xf]
    %v141 = vld [vmem:[%s1 + $0xb0] sm:$0xf]
    %v142 = vld [vmem:[%s1 + $0xb4] sm:$0xf]
    %v143 = vld [vmem:[%s1 + $0xb8] sm:$0xf]
    %v144 = vld [vmem:[%s1 + $0xbc] sm:$0xf]
    %v145 = vld [vmem:[%s1 + $0xc0] sm:$0xf]
    %v146 = vld [vmem:[%s1 + $0xc4] sm:$0xf]
    %v147 = vld [vmem:[%s1 + $0xc8] sm:$0xf]
    %v148 = vld [vmem:[%s1 + $0xcc] sm:$0xf]
    %v149 = vld [vmem:[%s1 + $0xd0] sm:$0xf]
    %v150 = vld [vmem:[%s1 + $0xd4] sm:$0xf]
    %v151 = vld [vmem:[%s1 + $0xd8] sm:$0xf]
    %v152 = vld [vmem:[%s1 + $0xdc] sm:$0xf]
    %v153 = vld [vmem:[%s1 + $0xe0] sm:$0xf]
    %v154 = vld [vmem:[%s1 + $0xe4] sm:$0xf]
    %v155 = vld [vmem:[%s1 + $0xe8] sm:$0xf]
    %v156 = vld [vmem:[%s1 + $0xec] sm:$0xf]
    %v157 = vld [vmem:[%s1 + $0xf0] sm:$0xf]
    %v158 = vld [vmem:[%s1 + $0xf4] sm:$0xf]
    %v159 = vld [vmem:[%s1 + $0xf8] sm:$0xf]
    %v160 = vld [vmem:[%s1 + $0xfc] sm:$0xf]
    %v161 = vld [vmem:[%s1 + $0x100] sm:$0xf]
    %v162 = vld [vmem:[%s1 + $0x104] sm:$0xf]
    %v163 = vld [vmem:[%s1 + $0x108] sm:$0xf]
    %v164 = vld [vmem:[%s1 + $0x10c] sm:$0xf]
    %v165 = vld [vmem:[%s1 + $0x110] sm:$0xf]
    %v166 = vld [vmem:[%s1 + $0x114] sm:$0xf]
    %v167 = vld [vmem:[%s1 + $0x118] sm:$0xf]
    %v168 = vld [vmem:[%s1 + $0x11c] sm:$0xf]
    %v169 = vld [vmem:[#allocation4] sm:$0xff]
    %v170 = vld [vmem:[#allocation4 + $0x8] sm:$0xff]
    %v171 = vld [vmem:[#allocation4 + $0x10] sm:$0xff]
    %v172 = vld [vmem:[#allocation4 + $0x18] sm:$0xff]
    %v173 = vld [vmem:[#allocation4 + $0x20] sm:$0xff]
    %v174 = vld [vmem:[#allocation4 + $0x28] sm:$0xff]
    %v175 = vld [vmem:[#allocation4 + $0x30] sm:$0xff]
    %v176 = vld [vmem:[#allocation4 + $0x38] sm:$0xff]
    %v177 = vld [vmem:[#allocation4 + $0x40] sm:$0xff]
    %v178 = vld [vmem:[#allocation4 + $0x48] sm:$0xff]
    %v179 = vld [vmem:[#allocation4 + $0x50] sm:$0xff]
    %v180 = vld [vmem:[#allocation4 + $0x58] sm:$0xff]
    %v181 = vld [vmem:[#allocation4 + $0x60] sm:$0xff]
    %v182 = vld [vmem:[#allocation4 + $0x68] sm:$0xff]
    %v183 = vld [vmem:[#allocation4 + $0x70] sm:$0xff]
    %v184 = vld [vmem:[#allocation4 + $0x78] sm:$0xff]
    %186 = vset.pattern.permute.xlu0 0
    %187 = vperm.xlu0 %186, %v169
    %v188 = vpop.permute.xlu0 %187
    %191 = vset.pattern.permute.xlu0 0
    %192 = vperm.xlu0 %191, %v170
    %v193 = vpop.permute.xlu0 %192
    %196 = vset.pattern.permute.xlu0 0
    %197 = vperm.xlu0 %196, %v171
    %v198 = vpop.permute.xlu0 %197
    %201 = vset.pattern.permute.xlu0 0
    %202 = vperm.xlu0 %201, %v172
    %v203 = vpop.permute.xlu0 %202
    %206 = vset.pattern.permute.xlu0 0
    %207 = vperm.xlu0 %206, %v173
    %v208 = vpop.permute.xlu0 %207
    %211 = vset.pattern.permute.xlu0 0
    %212 = vperm.xlu0 %211, %v174
    %v213 = vpop.permute.xlu0 %212
    %216 = vset.pattern.permute.xlu0 0
    %217 = vperm.xlu0 %216, %v175
    %v218 = vpop.permute.xlu0 %217
    %221 = vset.pattern.permute.xlu0 0
    %222 = vperm.xlu0 %221, %v176
    %v223 = vpop.permute.xlu0 %222
    %226 = vset.pattern.permute.xlu0 0
    %227 = vperm.xlu0 %226, %v177
    %v228 = vpop.permute.xlu0 %227
    %231 = vset.pattern.permute.xlu0 0
    %232 = vperm.xlu0 %231, %v178
    %v233 = vpop.permute.xlu0 %232
    %236 = vset.pattern.permute.xlu0 0
    %237 = vperm.xlu0 %236, %v179
    %v238 = vpop.permute.xlu0 %237
    %241 = vset.pattern.permute.xlu0 0
    %242 = vperm.xlu0 %241, %v180
    %v243 = vpop.permute.xlu0 %242
    %246 = vset.pattern.permute.xlu0 0
    %247 = vperm.xlu0 %246, %v181
    %v248 = vpop.permute.xlu0 %247
    %251 = vset.pattern.permute.xlu0 0
    %252 = vperm.xlu0 %251, %v182
    %v253 = vpop.permute.xlu0 %252
    %256 = vset.pattern.permute.xlu0 0
    %257 = vperm.xlu0 %256, %v183
    %v258 = vpop.permute.xlu0 %257
    %261 = vset.pattern.permute.xlu0 0
    %262 = vperm.xlu0 %261, %v184
    %v263 = vpop.permute.xlu0 %262
    %v313 = vunpack.c.l.b16 %v49
    %v314 = vunpack.c.h.b16 %v49
    %v315 = vunpack.c.l.b16 %v50
    %v316 = vunpack.c.h.b16 %v50
    %v317 = vunpack.c.l.b16 %v51
    %v318 = vunpack.c.l.b16 %v52
    %v319 = vunpack.c.h.b16 %v52
    %v320 = vunpack.c.l.b16 %v53
    %v321 = vunpack.c.h.b16 %v53
    %v322 = vunpack.c.l.b16 %v54
    %v323 = vunpack.c.l.b16 %v55
    %v324 = vunpack.c.h.b16 %v55
    %v325 = vunpack.c.l.b16 %v56
    %v326 = vunpack.c.h.b16 %v56
    %v327 = vunpack.c.l.b16 %v57
    %v328 = vunpack.c.l.b16 %v58
    %v329 = vunpack.c.h.b16 %v58
    %v330 = vunpack.c.l.b16 %v59
    %v331 = vunpack.c.h.b16 %v59
    %v332 = vunpack.c.l.b16 %v60
    %v333 = vunpack.c.l.b16 %v61
    %v334 = vunpack.c.h.b16 %v61
    %v335 = vunpack.c.l.b16 %v62
    %v336 = vunpack.c.h.b16 %v62
    %v337 = vunpack.c.l.b16 %v63
    %v338 = vunpack.c.l.b16 %v64
    %v339 = vunpack.c.h.b16 %v64
    %v340 = vunpack.c.l.b16 %v65
    %v341 = vunpack.c.h.b16 %v65
    %v342 = vunpack.c.l.b16 %v66
    %v343 = vunpack.c.l.b16 %v67
    %v344 = vunpack.c.h.b16 %v67
    %v345 = vunpack.c.l.b16 %v68
    %v346 = vunpack.c.h.b16 %v68
    %v347 = vunpack.c.l.b16 %v69
    %v348 = vunpack.c.l.b16 %v70
    %v349 = vunpack.c.h.b16 %v70
    %v350 = vunpack.c.l.b16 %v71
    %v351 = vunpack.c.h.b16 %v71
    %v352 = vunpack.c.l.b16 %v72
    %v353 = vunpack.c.l.b16 %v73
    %v354 = vunpack.c.h.b16 %v73
    %v355 = vunpack.c.l.b16 %v74
    %v356 = vunpack.c.h.b16 %v74
    %v357 = vunpack.c.l.b16 %v75
    %v358 = vunpack.c.l.b16 %v76
    %v359 = vunpack.c.h.b16 %v76
    %v360 = vunpack.c.l.b16 %v77
    %v361 = vunpack.c.h.b16 %v77
    %v362 = vunpack.c.l.b16 %v78
    %v363 = vunpack.c.l.b16 %v79
    %v364 = vunpack.c.h.b16 %v79
    %v365 = vunpack.c.l.b16 %v80
    %v366 = vunpack.c.h.b16 %v80
    %v367 = vunpack.c.l.b16 %v81
    %v368 = vunpack.c.l.b16 %v82
    %v369 = vunpack.c.h.b16 %v82
    %v370 = vunpack.c.l.b16 %v83
    %v371 = vunpack.c.h.b16 %v83
    %v372 = vunpack.c.l.b16 %v84
    %v373 = vunpack.c.l.b16 %v85
    %v374 = vunpack.c.h.b16 %v85
    %v375 = vunpack.c.l.b16 %v86
    %v376 = vunpack.c.h.b16 %v86
    %v377 = vunpack.c.l.b16 %v87
    %v378 = vunpack.c.l.b16 %v88
    %v379 = vunpack.c.h.b16 %v88
    %v380 = vunpack.c.l.b16 %v89
    %v381 = vunpack.c.h.b16 %v89
    %v382 = vunpack.c.l.b16 %v90
    %v383 = vunpack.c.l.b16 %v91
    %v384 = vunpack.c.h.b16 %v91
    %v385 = vunpack.c.l.b16 %v92
    %v386 = vunpack.c.h.b16 %v92
    %v387 = vunpack.c.l.b16 %v93
    %v388 = vunpack.c.l.b16 %v94
    %v389 = vunpack.c.h.b16 %v94
    %v390 = vunpack.c.l.b16 %v95
    %v391 = vunpack.c.h.b16 %v95
    %v392 = vunpack.c.l.b16 %v96
    %v393 = vpack.c.b16 %v318, %v313
    %v394 = vpack.c.b16 %v319, %v314
    %v395 = vpack.c.b16 %v320, %v315
    %v396 = vpack.c.b16 %v321, %v316
    %v397 = vpack.c.b16 %v322, %v317
    %v398 = vpack.c.b16 %v328, %v323
    %v399 = vpack.c.b16 %v329, %v324
    %v400 = vpack.c.b16 %v330, %v325
    %v401 = vpack.c.b16 %v331, %v326
    %v402 = vpack.c.b16 %v332, %v327
    %v403 = vpack.c.b16 %v338, %v333
    %v404 = vpack.c.b16 %v339, %v334
    %v405 = vpack.c.b16 %v340, %v335
    %v406 = vpack.c.b16 %v341, %v336
    %v407 = vpack.c.b16 %v342, %v337
    %v408 = vpack.c.b16 %v348, %v343
    %v409 = vpack.c.b16 %v349, %v344
    %v410 = vpack.c.b16 %v350, %v345
    %v411 = vpack.c.b16 %v351, %v346
    %v412 = vpack.c.b16 %v352, %v347
    %v413 = vpack.c.b16 %v358, %v353
    %v414 = vpack.c.b16 %v359, %v354
    %v415 = vpack.c.b16 %v360, %v355
    %v416 = vpack.c.b16 %v361, %v356
    %v417 = vpack.c.b16 %v362, %v357
    %v418 = vpack.c.b16 %v368, %v363
    %v419 = vpack.c.b16 %v369, %v364
    %v420 = vpack.c.b16 %v370, %v365
    %v421 = vpack.c.b16 %v371, %v366
    %v422 = vpack.c.b16 %v372, %v367
    %v423 = vpack.c.b16 %v378, %v373
    %v424 = vpack.c.b16 %v379, %v374
    %v425 = vpack.c.b16 %v380, %v375
    %v426 = vpack.c.b16 %v381, %v376
    %v427 = vpack.c.b16 %v382, %v377
    %v428 = vpack.c.b16 %v388, %v383
    %v429 = vpack.c.b16 %v389, %v384
    %v430 = vpack.c.b16 %v390, %v385
    %v431 = vpack.c.b16 %v391, %v386
    %v432 = vpack.c.b16 %v392, %v387
    %v537 = vunpack.c.l.b16 %v97
    %v538 = vunpack.c.l.b16 %v98
    %v539 = vunpack.c.l.b16 %v99
    %v540 = vunpack.c.l.b16 %v100
    %v541 = vunpack.c.l.b16 %v101
    %v542 = vunpack.c.l.b16 %v102
    %v543 = vunpack.c.l.b16 %v103
    %v544 = vunpack.c.l.b16 %v104
    %v545 = vunpack.c.l.b16 %v105
    %v546 = vunpack.c.l.b16 %v106
    %v547 = vunpack.c.l.b16 %v107
    %v548 = vunpack.c.l.b16 %v108
    %v549 = vunpack.c.l.b16 %v109
    %v550 = vunpack.c.l.b16 %v110
    %v551 = vunpack.c.l.b16 %v111
    %v552 = vunpack.c.l.b16 %v112
    %v553 = vunpack.c.l.b16 %v113
    %v554 = vunpack.c.l.b16 %v114
    %v555 = vunpack.c.l.b16 %v115
    %v556 = vunpack.c.l.b16 %v116
    %v557 = vunpack.c.l.b16 %v117
    %v558 = vunpack.c.l.b16 %v118
    %v559 = vunpack.c.l.b16 %v119
    %v560 = vunpack.c.l.b16 %v120
    %v561 = vunpack.c.l.b16 %v121
    %v562 = vunpack.c.l.b16 %v122
    %v563 = vunpack.c.l.b16 %v123
    %v564 = vunpack.c.l.b16 %v124
    %v565 = vunpack.c.l.b16 %v125
    %v566 = vunpack.c.l.b16 %v126
    %v567 = vunpack.c.l.b16 %v127
    %v568 = vunpack.c.l.b16 %v128
    %v569 = vunpack.c.l.b16 %v129
    %v570 = vunpack.c.l.b16 %v130
    %v571 = vunpack.c.l.b16 %v131
    %v572 = vunpack.c.l.b16 %v132
    %v573 = vunpack.c.l.b16 %v133
    %v574 = vunpack.c.l.b16 %v134
    %v575 = vunpack.c.l.b16 %v135
    %v576 = vunpack.c.l.b16 %v136
    %v577 = vunpack.c.l.b16 %v137
    %v578 = vunpack.c.l.b16 %v138
    %v579 = vunpack.c.l.b16 %v139
    %v580 = vunpack.c.l.b16 %v140
    %v581 = vunpack.c.l.b16 %v141
    %v582 = vunpack.c.l.b16 %v142
    %v583 = vunpack.c.l.b16 %v143
    %v584 = vunpack.c.l.b16 %v144
    %v585 = vunpack.c.l.b16 %v145
    %v586 = vunpack.c.l.b16 %v146
    %v587 = vunpack.c.l.b16 %v147
    %v588 = vunpack.c.l.b16 %v148
    %v589 = vunpack.c.l.b16 %v149
    %v590 = vunpack.c.l.b16 %v150
    %v591 = vunpack.c.l.b16 %v151
    %v592 = vunpack.c.l.b16 %v152
    %v593 = vunpack.c.l.b16 %v153
    %v594 = vunpack.c.l.b16 %v154
    %v595 = vunpack.c.l.b16 %v155
    %v596 = vunpack.c.l.b16 %v156
    %v597 = vunpack.c.l.b16 %v157
    %v598 = vunpack.c.l.b16 %v158
    %v599 = vunpack.c.l.b16 %v159
    %v600 = vunpack.c.l.b16 %v160
    %v601 = vunpack.c.l.b16 %v161
    %v602 = vunpack.c.l.b16 %v162
    %v603 = vunpack.c.l.b16 %v163
    %v604 = vunpack.c.l.b16 %v164
    %v605 = vunpack.c.l.b16 %v165
    %v606 = vunpack.c.l.b16 %v166
    %v607 = vunpack.c.l.b16 %v167
    %v608 = vunpack.c.l.b16 %v168
    %v609 = vpack.c.b16 %v538, %v537
    %v610 = vpack.c.b16 %v540, %v539
    %v611 = vpack.c.b16 %v542, %v541
    %v612 = vpack.c.b16 %v544, %v543
    %v613 = vpack.c.b16 %v546, %v545
    %v614 = vpack.c.b16 %v548, %v547
    %v615 = vpack.c.b16 %v550, %v549
    %v616 = vpack.c.b16 %v552, %v551
    %v617 = vpack.c.b16 %v554, %v553
    %v618 = vpack.c.b16 %v556, %v555
    %v619 = vpack.c.b16 %v558, %v557
    %v620 = vpack.c.b16 %v560, %v559
    %v621 = vpack.c.b16 %v562, %v561
    %v622 = vpack.c.b16 %v564, %v563
    %v623 = vpack.c.b16 %v566, %v565
    %v624 = vpack.c.b16 %v568, %v567
    %v625 = vpack.c.b16 %v570, %v569
    %v626 = vpack.c.b16 %v572, %v571
    %v627 = vpack.c.b16 %v574, %v573
    %v628 = vpack.c.b16 %v576, %v575
    %v629 = vpack.c.b16 %v578, %v577
    %v630 = vpack.c.b16 %v580, %v579
    %v631 = vpack.c.b16 %v582, %v581
    %v632 = vpack.c.b16 %v584, %v583
    %v633 = vpack.c.b16 %v586, %v585
    %v634 = vpack.c.b16 %v588, %v587
    %v635 = vpack.c.b16 %v590, %v589
    %v636 = vpack.c.b16 %v592, %v591
    %v637 = vpack.c.b16 %v594, %v593
    %v638 = vpack.c.b16 %v596, %v595
    %v639 = vpack.c.b16 %v598, %v597
    %v640 = vpack.c.b16 %v600, %v599
    %v641 = vpack.c.b16 %v602, %v601
    %v642 = vpack.c.b16 %v604, %v603
    %v643 = vpack.c.b16 %v606, %v605
    %v644 = vpack.c.b16 %v608, %v607
    %vm681 = vcmask 523264
    %v683 = vsel %vm681, %v397, 0
    %v686 = vsel %vm681, %v402, 0
    %v689 = vsel %vm681, %v407, 0
    %v692 = vsel %vm681, %v412, 0
    %v695 = vsel %vm681, %v417, 0
    %v698 = vsel %vm681, %v422, 0
    %v701 = vsel %vm681, %v427, 0
    %v704 = vsel %vm681, %v432, 0
    %706 = vmatprep.subr.bf16.mxu0 0
    %707 = vmatpush1.bf16.msra.mxu0 %v616
    %708 = vmatprep.subr.bf16.mxu0 0
    %709 = vmatpush1.bf16.msra.mxu0 %v615
    %710 = vmatprep.subr.bf16.mxu0 0
    %711 = vmatpush1.bf16.msra.mxu0 %v614
    %712 = vmatprep.subr.bf16.mxu0 0
    %713 = vmatpush1.bf16.msra.mxu0 %v613
    %714 = vmatprep.subr.bf16.mxu0 0
    %715 = vmatpush1.bf16.msra.mxu0 %v612
    %716 = vmatprep.subr.bf16.mxu0 0
    %717 = vmatpush1.bf16.msra.mxu0 %v611
    %718 = vmatprep.subr.bf16.mxu0 0
    %719 = vmatpush1.bf16.msra.mxu0 %v610
    %720 = vmatprep.subr.bf16.mxu0 0
    %721 = vmatpush1.bf16.msra.mxu0 %v609
    %722 = vmatprep.subr.bf16.mxu0 0
    %723 = vmatpush2.bf16.msra.mxu0 %v624
    %724 = vmatprep.subr.bf16.mxu0 0
    %725 = vmatpush2.bf16.msra.mxu0 %v623
    %726 = vmatprep.subr.bf16.mxu0 0
    %727 = vmatpush2.bf16.msra.mxu0 %v622
    %728 = vmatprep.subr.bf16.mxu0 0
    %729 = vmatpush2.bf16.msra.mxu0 %v621
    %730 = vmatprep.subr.bf16.mxu0 0
    %731 = vmatpush2.bf16.msra.mxu0 %v620
    %732 = vmatprep.subr.bf16.mxu0 0
    %733 = vmatpush2.bf16.msra.mxu0 %v619
    %734 = vmatprep.subr.bf16.mxu0 0
    %735 = vmatpush2.bf16.msra.mxu0 %v618
    %736 = vmatprep.subr.bf16.mxu0 0
    %737 = vmatpush2.bf16.msra.mxu0 %v617
    %738 = vmatprep.mubr.bf16.mxu0 %v394
    %739 = vmatmul.mubr.bf16.gmra.mxu0 %v393
    %v740 = vpop.f32.mrf.mxu0
    %v741 = vadd.f32 %v188, %v740
    %v742 = vpop.f32.mrf.mxu0
    %v743 = vpop.f32.mrf.mxu0
    %v744 = vadd.f32 %v193, %v743
    %v745 = vpop.f32.mrf.mxu0
    %746 = vmatprep.mubr.bf16.mxu0 %v399
    %747 = vmatmul.mubr.bf16.gmra.mxu0 %v398
    %v748 = vpop.f32.mrf.mxu0
    %v749 = vadd.f32 %v198, %v748
    %v750 = vpop.f32.mrf.mxu0
    %v751 = vpop.f32.mrf.mxu0
    %v752 = vadd.f32 %v203, %v751
    %v753 = vpop.f32.mrf.mxu0
    %754 = vmatprep.mubr.bf16.mxu0 %v404
    %755 = vmatmul.mubr.bf16.gmra.mxu0 %v403
    %v756 = vpop.f32.mrf.mxu0
    %v757 = vadd.f32 %v208, %v756
    %v758 = vpop.f32.mrf.mxu0
    %v759 = vpop.f32.mrf.mxu0
    %v760 = vadd.f32 %v213, %v759
    %v761 = vpop.f32.mrf.mxu0
    %762 = vmatprep.mubr.bf16.mxu0 %v409
    %763 = vmatmul.mubr.bf16.gmra.mxu0 %v408
    %v764 = vpop.f32.mrf.mxu0
    %v765 = vadd.f32 %v218, %v764
    %v766 = vpop.f32.mrf.mxu0
    %v767 = vpop.f32.mrf.mxu0
    %v768 = vadd.f32 %v223, %v767
    %v769 = vpop.f32.mrf.mxu0
    %770 = vmatprep.mubr.bf16.mxu0 %v414
    %771 = vmatmul.mubr.bf16.gmra.mxu0 %v413
    %v772 = vpop.f32.mrf.mxu0
    %v773 = vadd.f32 %v228, %v772
    %v774 = vpop.f32.mrf.mxu0
    %v775 = vpop.f32.mrf.mxu0
    %v776 = vadd.f32 %v233, %v775
    %v777 = vpop.f32.mrf.mxu0
    %778 = vmatprep.mubr.bf16.mxu0 %v419
    %779 = vmatmul.mubr.bf16.gmra.mxu0 %v418
    %v780 = vpop.f32.mrf.mxu0
    %v781 = vadd.f32 %v238, %v780
    %v782 = vpop.f32.mrf.mxu0
    %v783 = vpop.f32.mrf.mxu0
    %v784 = vadd.f32 %v243, %v783
    %v785 = vpop.f32.mrf.mxu0
    %786 = vmatprep.mubr.bf16.mxu0 %v424
    %787 = vmatmul.mubr.bf16.gmra.mxu0 %v423
    %v788 = vpop.f32.mrf.mxu0
    %v789 = vadd.f32 %v248, %v788
    %v790 = vpop.f32.mrf.mxu0
    %v791 = vpop.f32.mrf.mxu0
    %v792 = vadd.f32 %v253, %v791
    %v793 = vpop.f32.mrf.mxu0
    %794 = vmatprep.mubr.bf16.mxu0 %v429
    %795 = vmatmul.mubr.bf16.gmra.mxu0 %v428
    %v796 = vpop.f32.mrf.mxu0
    %v797 = vadd.f32 %v258, %v796
    %v798 = vpop.f32.mrf.mxu0
    %v799 = vpop.f32.mrf.mxu0
    %v800 = vadd.f32 %v263, %v799
    %v801 = vpop.f32.mrf.mxu0
    %802 = vdwg.mxu0
    %803 = vmatprep.subr.bf16.mxu0 0
    %804 = vmatpush1.bf16.msra.mxu0 %v632
    %805 = vmatprep.subr.bf16.mxu0 0
    %806 = vmatpush1.bf16.msra.mxu0 %v631
    %807 = vmatprep.subr.bf16.mxu0 0
    %808 = vmatpush1.bf16.msra.mxu0 %v630
    %809 = vmatprep.subr.bf16.mxu0 0
    %810 = vmatpush1.bf16.msra.mxu0 %v629
    %811 = vmatprep.subr.bf16.mxu0 0
    %812 = vmatpush1.bf16.msra.mxu0 %v628
    %813 = vmatprep.subr.bf16.mxu0 0
    %814 = vmatpush1.bf16.msra.mxu0 %v627
    %815 = vmatprep.subr.bf16.mxu0 0
    %816 = vmatpush1.bf16.msra.mxu0 %v626
    %817 = vmatprep.subr.bf16.mxu0 0
    %818 = vmatpush1.bf16.msra.mxu0 %v625
    %819 = vmatprep.subr.bf16.mxu0 0
    %820 = vmatpush2.bf16.msra.mxu0 %v640
    %821 = vmatprep.subr.bf16.mxu0 0
    %822 = vmatpush2.bf16.msra.mxu0 %v639
    %823 = vmatprep.subr.bf16.mxu0 0
    %824 = vmatpush2.bf16.msra.mxu0 %v638
    %825 = vmatprep.subr.bf16.mxu0 0
    %826 = vmatpush2.bf16.msra.mxu0 %v637
    %827 = vmatprep.subr.bf16.mxu0 0
    %828 = vmatpush2.bf16.msra.mxu0 %v636
    %829 = vmatprep.subr.bf16.mxu0 0
    %830 = vmatpush2.bf16.msra.mxu0 %v635
    %831 = vmatprep.subr.bf16.mxu0 0
    %832 = vmatpush2.bf16.msra.mxu0 %v634
    %833 = vmatprep.subr.bf16.mxu0 0
    %834 = vmatpush2.bf16.msra.mxu0 %v633
    %835 = vmatprep.mubr.bf16.mxu0 %v396
    %836 = vmatmul.mubr.bf16.gmra.mxu0 %v395
    %v837 = vpop.f32.mrf.mxu0
    %v838 = vadd.f32 %v741, %v837
    %v839 = vpop.f32.mrf.mxu0
    %v840 = vpop.f32.mrf.mxu0
    %v841 = vadd.f32 %v744, %v840
    %v842 = vpop.f32.mrf.mxu0
    %843 = vmatprep.mubr.bf16.mxu0 %v401
    %844 = vmatmul.mubr.bf16.gmra.mxu0 %v400
    %v845 = vpop.f32.mrf.mxu0
    %v846 = vadd.f32 %v749, %v845
    %v847 = vpop.f32.mrf.mxu0
    %v848 = vpop.f32.mrf.mxu0
    %v849 = vadd.f32 %v752, %v848
    %v850 = vpop.f32.mrf.mxu0
    %851 = vmatprep.mubr.bf16.mxu0 %v406
    %852 = vmatmul.mubr.bf16.gmra.mxu0 %v405
    %v853 = vpop.f32.mrf.mxu0
    %v854 = vadd.f32 %v757, %v853
    %v855 = vpop.f32.mrf.mxu0
    %v856 = vpop.f32.mrf.mxu0
    %v857 = vadd.f32 %v760, %v856
    %v858 = vpop.f32.mrf.mxu0
    %859 = vmatprep.mubr.bf16.mxu0 %v411
    %860 = vmatmul.mubr.bf16.gmra.mxu0 %v410
    %v861 = vpop.f32.mrf.mxu0
    %v862 = vadd.f32 %v765, %v861
    %v863 = vpop.f32.mrf.mxu0
    %v864 = vpop.f32.mrf.mxu0
    %v865 = vadd.f32 %v768, %v864
    %v866 = vpop.f32.mrf.mxu0
    %867 = vmatprep.mubr.bf16.mxu0 %v416
    %868 = vmatmul.mubr.bf16.gmra.mxu0 %v415
    %v869 = vpop.f32.mrf.mxu0
    %v870 = vadd.f32 %v773, %v869
    %v871 = vpop.f32.mrf.mxu0
    %v872 = vpop.f32.mrf.mxu0
    %v873 = vadd.f32 %v776, %v872
    %v874 = vpop.f32.mrf.mxu0
    %875 = vmatprep.mubr.bf16.mxu0 %v421
    %876 = vmatmul.mubr.bf16.gmra.mxu0 %v420
    %v877 = vpop.f32.mrf.mxu0
    %v878 = vadd.f32 %v781, %v877
    %v879 = vpop.f32.mrf.mxu0
    %v880 = vpop.f32.mrf.mxu0
    %v881 = vadd.f32 %v784, %v880
    %v882 = vpop.f32.mrf.mxu0
    %883 = vmatprep.mubr.bf16.mxu0 %v426
    %884 = vmatmul.mubr.bf16.gmra.mxu0 %v425
    %v885 = vpop.f32.mrf.mxu0
    %v886 = vadd.f32 %v789, %v885
    %v887 = vpop.f32.mrf.mxu0
    %v888 = vpop.f32.mrf.mxu0
    %v889 = vadd.f32 %v792, %v888
    %v890 = vpop.f32.mrf.mxu0
    %891 = vmatprep.mubr.bf16.mxu0 %v431
    %892 = vmatmul.mubr.bf16.gmra.mxu0 %v430
    %v893 = vpop.f32.mrf.mxu0
    %v894 = vadd.f32 %v797, %v893
    %v895 = vpop.f32.mrf.mxu0
    %v896 = vpop.f32.mrf.mxu0
    %v897 = vadd.f32 %v800, %v896
    %v898 = vpop.f32.mrf.mxu0
    %899 = vdwg.mxu0
    %900 = vmatprep.subr.bf16.mxu0 0
    %901 = vmatpush1.bf16.msra.mxu0 0
    %902 = vmatprep.subr.bf16.mxu0 0
    %903 = vmatpush1.bf16.msra.mxu0 0
    %904 = vmatprep.subr.bf16.mxu0 0
    %905 = vmatpush1.bf16.msra.mxu0 0
    %906 = vmatprep.subr.bf16.mxu0 0
    %907 = vmatpush1.bf16.msra.mxu0 0
    %908 = vmatprep.subr.bf16.mxu0 0
    %909 = vmatpush1.bf16.msra.mxu0 %v644
    %910 = vmatprep.subr.bf16.mxu0 0
    %911 = vmatpush1.bf16.msra.mxu0 %v643
    %912 = vmatprep.subr.bf16.mxu0 0
    %913 = vmatpush1.bf16.msra.mxu0 %v642
    %914 = vmatprep.subr.bf16.mxu0 0
    %915 = vmatpush1.bf16.msra.mxu0 %v641
    %916 = vmatprep.subr.bf16.mxu0 0
    %917 = vmatpush2.bf16.msra.mxu0 0
    %918 = vmatprep.subr.bf16.mxu0 0
    %919 = vmatpush2.bf16.msra.mxu0 0
    %920 = vmatprep.subr.bf16.mxu0 0
    %921 = vmatpush2.bf16.msra.mxu0 0
    %922 = vmatprep.subr.bf16.mxu0 0
    %923 = vmatpush2.bf16.msra.mxu0 0
    %924 = vmatprep.subr.bf16.mxu0 0
    %925 = vmatpush2.bf16.msra.mxu0 0
    %926 = vmatprep.subr.bf16.mxu0 0
    %927 = vmatpush2.bf16.msra.mxu0 0
    %928 = vmatprep.subr.bf16.mxu0 0
    %929 = vmatpush2.bf16.msra.mxu0 0
    %930 = vmatprep.subr.bf16.mxu0 0
    %931 = vmatpush2.bf16.msra.mxu0 0
    %932 = vmatprep.mubr.bf16.mxu0 0
    %933 = vmatmul.mubr.bf16.gmra.mxu0 %v683
    %v934 = vpop.f32.mrf.mxu0
    %v935 = vadd.f32 %v838, %v934
    %v936 = vpop.f32.mrf.mxu0
    %v937 = vpop.f32.mrf.mxu0
    %v938 = vadd.f32 %v841, %v937
    %v939 = vpop.f32.mrf.mxu0
    %940 = vmatprep.mubr.bf16.mxu0 0
    %941 = vmatmul.mubr.bf16.gmra.mxu0 %v686
    %v942 = vpop.f32.mrf.mxu0
    %v943 = vadd.f32 %v846, %v942
    %v944 = vpop.f32.mrf.mxu0
    %v945 = vpop.f32.mrf.mxu0
    %v946 = vadd.f32 %v849, %v945
    %v947 = vpop.f32.mrf.mxu0
    %948 = vmatprep.mubr.bf16.mxu0 0
    %949 = vmatmul.mubr.bf16.gmra.mxu0 %v689
    %v950 = vpop.f32.mrf.mxu0
    %v951 = vadd.f32 %v854, %v950
    %v952 = vpop.f32.mrf.mxu0
    %v953 = vpop.f32.mrf.mxu0
    %v954 = vadd.f32 %v857, %v953
    %v955 = vpop.f32.mrf.mxu0
    %956 = vmatprep.mubr.bf16.mxu0 0
    %957 = vmatmul.mubr.bf16.gmra.mxu0 %v692
    %v958 = vpop.f32.mrf.mxu0
    %v959 = vadd.f32 %v862, %v958
    %v960 = vpop.f32.mrf.mxu0
    %v961 = vpop.f32.mrf.mxu0
    %v962 = vadd.f32 %v865, %v961
    %v963 = vpop.f32.mrf.mxu0
    %964 = vmatprep.mubr.bf16.mxu0 0
    %965 = vmatmul.mubr.bf16.gmra.mxu0 %v695
    %v966 = vpop.f32.mrf.mxu0
    %v967 = vadd.f32 %v870, %v966
    %v968 = vpop.f32.mrf.mxu0
    %v969 = vpop.f32.mrf.mxu0
    %v970 = vadd.f32 %v873, %v969
    %v971 = vpop.f32.mrf.mxu0
    %972 = vmatprep.mubr.bf16.mxu0 0
    %973 = vmatmul.mubr.bf16.gmra.mxu0 %v698
    %v974 = vpop.f32.mrf.mxu0
    %v975 = vadd.f32 %v878, %v974
    %v976 = vpop.f32.mrf.mxu0
    %v977 = vpop.f32.mrf.mxu0
    %v978 = vadd.f32 %v881, %v977
    %v979 = vpop.f32.mrf.mxu0
    %980 = vmatprep.mubr.bf16.mxu0 0
    %981 = vmatmul.mubr.bf16.gmra.mxu0 %v701
    %v982 = vpop.f32.mrf.mxu0
    %v983 = vadd.f32 %v886, %v982
    %v984 = vpop.f32.mrf.mxu0
    %v985 = vpop.f32.mrf.mxu0
    %v986 = vadd.f32 %v889, %v985
    %v987 = vpop.f32.mrf.mxu0
    %988 = vmatprep.mubr.bf16.mxu0 0
    %989 = vmatmul.mubr.bf16.gmra.mxu0 %v704
    %v990 = vpop.f32.mrf.mxu0
    %v991 = vadd.f32 %v894, %v990
    %v992 = vpop.f32.mrf.mxu0
    %v993 = vpop.f32.mrf.mxu0
    %v994 = vadd.f32 %v897, %v993
    %v995 = vpop.f32.mrf.mxu0
    %996 = vdwg.mxu0
    %v997 = vlaneseq
    %v998 = vand.u32 %v997, 127
    %vm999 = vcmp.lt.s32.totalorder %v998, 18
    %v1000 = vsel %vm999, %v935, 0.0
    %v1001 = vsel %vm999, %v938, 0.0
    %v1002 = vsel %vm999, %v943, 0.0
    %v1003 = vsel %vm999, %v946, 0.0
    %v1004 = vsel %vm999, %v951, 0.0
    %v1005 = vsel %vm999, %v954, 0.0
    %v1006 = vsel %vm999, %v959, 0.0
    %v1007 = vsel %vm999, %v962, 0.0
    %v1008 = vsel %vm999, %v967, 0.0
    %v1009 = vsel %vm999, %v970, 0.0
    %v1010 = vsel %vm999, %v975, 0.0
    %v1011 = vsel %vm999, %v978, 0.0
    %v1012 = vsel %vm999, %v983, 0.0
    %v1013 = vsel %vm999, %v986, 0.0
    %v1014 = vsel %vm999, %v991, 0.0
    %v1015 = vsel %vm999, %v994, 0.0
    %1016 = vadd.xlane.f32.xlu0 %v1000
    %v1017 = vpop.xlane.xlu0 %1016
    %1018 = vadd.xlane.f32.xlu0 %v1001
    %v1019 = vpop.xlane.xlu0 %1018
    %1020 = vadd.xlane.f32.xlu0 %v1002
    %v1021 = vpop.xlane.xlu0 %1020
    %1022 = vadd.xlane.f32.xlu0 %v1003
    %v1023 = vpop.xlane.xlu0 %1022
    %1024 = vadd.xlane.f32.xlu0 %v1004
    %v1025 = vpop.xlane.xlu0 %1024
    %1026 = vadd.xlane.f32.xlu0 %v1005
    %v1027 = vpop.xlane.xlu0 %1026
    %1028 = vadd.xlane.f32.xlu0 %v1006
    %v1029 = vpop.xlane.xlu0 %1028
    %1030 = vadd.xlane.f32.xlu0 %v1007
    %v1031 = vpop.xlane.xlu0 %1030
    %1032 = vadd.xlane.f32.xlu0 %v1008
    %v1033 = vpop.xlane.xlu0 %1032
    %1034 = vadd.xlane.f32.xlu0 %v1009
    %v1035 = vpop.xlane.xlu0 %1034
    %1036 = vadd.xlane.f32.xlu0 %v1010
    %v1037 = vpop.xlane.xlu0 %1036
    %1038 = vadd.xlane.f32.xlu0 %v1011
    %v1039 = vpop.xlane.xlu0 %1038
    %1040 = vadd.xlane.f32.xlu0 %v1012
    %v1041 = vpop.xlane.xlu0 %1040
    %1042 = vadd.xlane.f32.xlu0 %v1013
    %v1043 = vpop.xlane.xlu0 %1042
    %1044 = vadd.xlane.f32.xlu0 %v1014
    %v1045 = vpop.xlane.xlu0 %1044
    %1046 = vadd.xlane.f32.xlu0 %v1015
    %v1047 = vpop.xlane.xlu0 %1046
    %v1048 = vmul.f32 %v1017, 0.055555556
    %v1049 = vmul.f32 %v1019, 0.055555556
    %v1050 = vmul.f32 %v1021, 0.055555556
    %v1051 = vmul.f32 %v1023, 0.055555556
    %v1052 = vmul.f32 %v1025, 0.055555556
    %v1053 = vmul.f32 %v1027, 0.055555556
    %v1054 = vmul.f32 %v1029, 0.055555556
    %v1055 = vmul.f32 %v1031, 0.055555556
    %v1056 = vmul.f32 %v1033, 0.055555556
    %v1057 = vmul.f32 %v1035, 0.055555556
    %v1058 = vmul.f32 %v1037, 0.055555556
    %v1059 = vmul.f32 %v1039, 0.055555556
    %v1060 = vmul.f32 %v1041, 0.055555556
    %v1061 = vmul.f32 %v1043, 0.055555556
    %v1062 = vmul.f32 %v1045, 0.055555556
    %v1063 = vmul.f32 %v1047, 0.055555556
    %v1064 = vmul.f32 %v1000, %v1000
    %v1065 = vmul.f32 %v1001, %v1001
    %v1066 = vmul.f32 %v1002, %v1002
    %v1067 = vmul.f32 %v1003, %v1003
    %v1068 = vmul.f32 %v1004, %v1004
    %v1069 = vmul.f32 %v1005, %v1005
    %v1070 = vmul.f32 %v1006, %v1006
    %v1071 = vmul.f32 %v1007, %v1007
    %v1072 = vmul.f32 %v1008, %v1008
    %v1073 = vmul.f32 %v1009, %v1009
    %v1074 = vmul.f32 %v1010, %v1010
    %v1075 = vmul.f32 %v1011, %v1011
    %v1076 = vmul.f32 %v1012, %v1012
    %v1077 = vmul.f32 %v1013, %v1013
    %v1078 = vmul.f32 %v1014, %v1014
    %v1079 = vmul.f32 %v1015, %v1015
    %1080 = vadd.xlane.f32.xlu0 %v1064
    %v1081 = vpop.xlane.xlu0 %1080
    %1082 = vadd.xlane.f32.xlu0 %v1065
    %v1083 = vpop.xlane.xlu0 %1082
    %1084 = vadd.xlane.f32.xlu0 %v1066
    %v1085 = vpop.xlane.xlu0 %1084
    %1086 = vadd.xlane.f32.xlu0 %v1067
    %v1087 = vpop.xlane.xlu0 %1086
    %1088 = vadd.xlane.f32.xlu0 %v1068
    %v1089 = vpop.xlane.xlu0 %1088
    %1090 = vadd.xlane.f32.xlu0 %v1069
    %v1091 = vpop.xlane.xlu0 %1090
    %1092 = vadd.xlane.f32.xlu0 %v1070
    %v1093 = vpop.xlane.xlu0 %1092
    %1094 = vadd.xlane.f32.xlu0 %v1071
    %v1095 = vpop.xlane.xlu0 %1094
    %1096 = vadd.xlane.f32.xlu0 %v1072
    %v1097 = vpop.xlane.xlu0 %1096
    %1098 = vadd.xlane.f32.xlu0 %v1073
    %v1099 = vpop.xlane.xlu0 %1098
    %1100 = vadd.xlane.f32.xlu0 %v1074
    %v1101 = vpop.xlane.xlu0 %1100
    %1102 = vadd.xlane.f32.xlu0 %v1075
    %v1103 = vpop.xlane.xlu0 %1102
    %1104 = vadd.xlane.f32.xlu0 %v1076
    %v1105 = vpop.xlane.xlu0 %1104
    %1106 = vadd.xlane.f32.xlu0 %v1077
    %v1107 = vpop.xlane.xlu0 %1106
    %1108 = vadd.xlane.f32.xlu0 %v1078
    %v1109 = vpop.xlane.xlu0 %1108
    %1110 = vadd.xlane.f32.xlu0 %v1079
    %v1111 = vpop.xlane.xlu0 %1110
    %v1112 = vmul.f32 %v1081, 0.055555556
    %v1113 = vmul.f32 %v1083, 0.055555556
    %v1114 = vmul.f32 %v1085, 0.055555556
    %v1115 = vmul.f32 %v1087, 0.055555556
    %v1116 = vmul.f32 %v1089, 0.055555556
    %v1117 = vmul.f32 %v1091, 0.055555556
    %v1118 = vmul.f32 %v1093, 0.055555556
    %v1119 = vmul.f32 %v1095, 0.055555556
    %v1120 = vmul.f32 %v1097, 0.055555556
    %v1121 = vmul.f32 %v1099, 0.055555556
    %v1122 = vmul.f32 %v1101, 0.055555556
    %v1123 = vmul.f32 %v1103, 0.055555556
    %v1124 = vmul.f32 %v1105, 0.055555556
    %v1125 = vmul.f32 %v1107, 0.055555556
    %v1126 = vmul.f32 %v1109, 0.055555556
    %v1127 = vmul.f32 %v1111, 0.055555556
    %v1128 = vmul.f32 %v1048, %v1048
    %v1129 = vmul.f32 %v1049, %v1049
    %v1130 = vmul.f32 %v1050, %v1050
    %v1131 = vmul.f32 %v1051, %v1051
    %v1132 = vmul.f32 %v1052, %v1052
    %v1133 = vmul.f32 %v1053, %v1053
    %v1134 = vmul.f32 %v1054, %v1054
    %v1135 = vmul.f32 %v1055, %v1055
    %v1136 = vmul.f32 %v1056, %v1056
    %v1137 = vmul.f32 %v1057, %v1057
    %v1138 = vmul.f32 %v1058, %v1058
    %v1139 = vmul.f32 %v1059, %v1059
    %v1140 = vmul.f32 %v1060, %v1060
    %v1141 = vmul.f32 %v1061, %v1061
    %v1142 = vmul.f32 %v1062, %v1062
    %v1143 = vmul.f32 %v1063, %v1063
    %v1144 = vsub.f32 %v1112, %v1128
    %v1145 = vsub.f32 %v1113, %v1129
    %v1146 = vsub.f32 %v1114, %v1130
    %v1147 = vsub.f32 %v1115, %v1131
    %v1148 = vsub.f32 %v1116, %v1132
    %v1149 = vsub.f32 %v1117, %v1133
    %v1150 = vsub.f32 %v1118, %v1134
    %v1151 = vsub.f32 %v1119, %v1135
    %v1152 = vsub.f32 %v1120, %v1136
    %v1153 = vsub.f32 %v1121, %v1137
    %v1154 = vsub.f32 %v1122, %v1138
    %v1155 = vsub.f32 %v1123, %v1139
    %v1156 = vsub.f32 %v1124, %v1140
    %v1157 = vsub.f32 %v1125, %v1141
    %v1158 = vsub.f32 %v1126, %v1142
    %v1159 = vsub.f32 %v1127, %v1143
    %v1160 = vsub.f32 %v935, %v1048
    %v1161 = vsub.f32 %v938, %v1049
    %v1162 = vsub.f32 %v943, %v1050
    %v1163 = vsub.f32 %v946, %v1051
    %v1164 = vsub.f32 %v951, %v1052
    %v1165 = vsub.f32 %v954, %v1053
    %v1166 = vsub.f32 %v959, %v1054
    %v1167 = vsub.f32 %v962, %v1055
    %v1168 = vsub.f32 %v967, %v1056
    %v1169 = vsub.f32 %v970, %v1057
    %v1170 = vsub.f32 %v975, %v1058
    %v1171 = vsub.f32 %v978, %v1059
    %v1172 = vsub.f32 %v983, %v1060
    %v1173 = vsub.f32 %v986, %v1061
    %v1174 = vsub.f32 %v991, %v1062
    %v1175 = vsub.f32 %v994, %v1063
    %v1176 = vadd.f32 %v1144, 1e-05
    %v1177 = vadd.f32 %v1145, 1e-05
    %v1178 = vadd.f32 %v1146, 1e-05
    %v1179 = vadd.f32 %v1147, 1e-05
    %v1180 = vadd.f32 %v1148, 1e-05
    %v1181 = vadd.f32 %v1149, 1e-05
    %v1182 = vadd.f32 %v1150, 1e-05
    %v1183 = vadd.f32 %v1151, 1e-05
    %v1184 = vadd.f32 %v1152, 1e-05
    %v1185 = vadd.f32 %v1153, 1e-05
    %v1186 = vadd.f32 %v1154, 1e-05
    %v1187 = vadd.f32 %v1155, 1e-05
    %v1188 = vadd.f32 %v1156, 1e-05
    %v1189 = vadd.f32 %v1157, 1e-05
    %v1190 = vadd.f32 %v1158, 1e-05
    %v1191 = vadd.f32 %v1159, 1e-05
    %v1192 = vrsqrt.pop %v1176
    %v1193 = vrsqrt.pop %v1177
    %v1194 = vrsqrt.pop %v1178
    %v1195 = vrsqrt.pop %v1179
    %v1196 = vrsqrt.pop %v1180
    %v1197 = vrsqrt.pop %v1181
    %v1198 = vrsqrt.pop %v1182
    %v1199 = vrsqrt.pop %v1183
    %v1200 = vrsqrt.pop %v1184
    %v1201 = vrsqrt.pop %v1185
    %v1202 = vrsqrt.pop %v1186
    %v1203 = vrsqrt.pop %v1187
    %v1204 = vrsqrt.pop %v1188
    %v1205 = vrsqrt.pop %v1189
    %v1206 = vrsqrt.pop %v1190
    %v1207 = vrsqrt.pop %v1191
    %v1208 = vmul.f32 %v1160, %v1192
    %v1209 = vmul.f32 %v1161, %v1193
    %v1210 = vmul.f32 %v1162, %v1194
    %v1211 = vmul.f32 %v1163, %v1195
    %v1212 = vmul.f32 %v1164, %v1196
    %v1213 = vmul.f32 %v1165, %v1197
    %v1214 = vmul.f32 %v1166, %v1198
    %v1215 = vmul.f32 %v1167, %v1199
    %v1216 = vmul.f32 %v1168, %v1200
    %v1217 = vmul.f32 %v1169, %v1201
    %v1218 = vmul.f32 %v1170, %v1202
    %v1219 = vmul.f32 %v1171, %v1203
    %v1220 = vmul.f32 %v1172, %v1204
    %v1221 = vmul.f32 %v1173, %v1205
    %v1222 = vmul.f32 %v1174, %v1206
    %v1223 = vmul.f32 %v1175, %v1207
    %v1224 = vld [vmem:[%s3] sm:$0xff]
    %v1225 = vld [vmem:[%s3 + $0x8] sm:$0xff]
    %v1226 = vld [vmem:[%s3 + $0x10] sm:$0xff]
    %v1227 = vld [vmem:[%s3 + $0x18] sm:$0xff]
    %v1228 = vld [vmem:[%s3 + $0x20] sm:$0xff]
    %v1229 = vld [vmem:[%s3 + $0x28] sm:$0xff]
    %v1230 = vld [vmem:[%s3 + $0x30] sm:$0xff]
    %v1231 = vld [vmem:[%s3 + $0x38] sm:$0xff]
    %v1232 = vld [vmem:[%s3 + $0x40] sm:$0xff]
    %v1233 = vld [vmem:[%s3 + $0x48] sm:$0xff]
    %v1234 = vld [vmem:[%s3 + $0x50] sm:$0xff]
    %v1235 = vld [vmem:[%s3 + $0x58] sm:$0xff]
    %v1236 = vld [vmem:[%s3 + $0x60] sm:$0xff]
    %v1237 = vld [vmem:[%s3 + $0x68] sm:$0xff]
    %v1238 = vld [vmem:[%s3 + $0x70] sm:$0xff]
    %v1239 = vld [vmem:[%s3 + $0x78] sm:$0xff]
    %1241 = vset.pattern.permute.xlu0 0
    %1242 = vperm.xlu0 %1241, %v1224
    %v1243 = vpop.permute.xlu0 %1242
    %1246 = vset.pattern.permute.xlu0 0
    %1247 = vperm.xlu0 %1246, %v1225
    %v1248 = vpop.permute.xlu0 %1247
    %1251 = vset.pattern.permute.xlu0 0
    %1252 = vperm.xlu0 %1251, %v1226
    %v1253 = vpop.permute.xlu0 %1252
    %1256 = vset.pattern.permute.xlu0 0
    %1257 = vperm.xlu0 %1256, %v1227
    %v1258 = vpop.permute.xlu0 %1257
    %1261 = vset.pattern.permute.xlu0 0
    %1262 = vperm.xlu0 %1261, %v1228
    %v1263 = vpop.permute.xlu0 %1262
    %1266 = vset.pattern.permute.xlu0 0
    %1267 = vperm.xlu0 %1266, %v1229
    %v1268 = vpop.permute.xlu0 %1267
    %1271 = vset.pattern.permute.xlu0 0
    %1272 = vperm.xlu0 %1271, %v1230
    %v1273 = vpop.permute.xlu0 %1272
    %1276 = vset.pattern.permute.xlu0 0
    %1277 = vperm.xlu0 %1276, %v1231
    %v1278 = vpop.permute.xlu0 %1277
    %1281 = vset.pattern.permute.xlu0 0
    %1282 = vperm.xlu0 %1281, %v1232
    %v1283 = vpop.permute.xlu0 %1282
    %1286 = vset.pattern.permute.xlu0 0
    %1287 = vperm.xlu0 %1286, %v1233
    %v1288 = vpop.permute.xlu0 %1287
    %1291 = vset.pattern.permute.xlu0 0
    %1292 = vperm.xlu0 %1291, %v1234
    %v1293 = vpop.permute.xlu0 %1292
    %1296 = vset.pattern.permute.xlu0 0
    %1297 = vperm.xlu0 %1296, %v1235
    %v1298 = vpop.permute.xlu0 %1297
    %1301 = vset.pattern.permute.xlu0 0
    %1302 = vperm.xlu0 %1301, %v1236
    %v1303 = vpop.permute.xlu0 %1302
    %1306 = vset.pattern.permute.xlu0 0
    %1307 = vperm.xlu0 %1306, %v1237
    %v1308 = vpop.permute.xlu0 %1307
    %1311 = vset.pattern.permute.xlu0 0
    %1312 = vperm.xlu0 %1311, %v1238
    %v1313 = vpop.permute.xlu0 %1312
    %1316 = vset.pattern.permute.xlu0 0
    %1317 = vperm.xlu0 %1316, %v1239
    %v1318 = vpop.permute.xlu0 %1317
    %v1320 = vmul.f32 %v1208, %v1243
    %v1321 = vmul.f32 %v1209, %v1248
    %v1322 = vmul.f32 %v1210, %v1253
    %v1323 = vmul.f32 %v1211, %v1258
    %v1324 = vmul.f32 %v1212, %v1263
    %v1325 = vmul.f32 %v1213, %v1268
    %v1326 = vmul.f32 %v1214, %v1273
    %v1327 = vmul.f32 %v1215, %v1278
    %v1328 = vmul.f32 %v1216, %v1283
    %v1329 = vmul.f32 %v1217, %v1288
    %v1330 = vmul.f32 %v1218, %v1293
    %v1331 = vmul.f32 %v1219, %v1298
    %v1332 = vmul.f32 %v1220, %v1303
    %v1333 = vmul.f32 %v1221, %v1308
    %v1334 = vmul.f32 %v1222, %v1313
    %v1335 = vmul.f32 %v1223, %v1318
    %v1336 = vld [vmem:[%s4] sm:$0xff]
    %v1337 = vld [vmem:[%s4 + $0x8] sm:$0xff]
    %v1338 = vld [vmem:[%s4 + $0x10] sm:$0xff]
    %v1339 = vld [vmem:[%s4 + $0x18] sm:$0xff]
    %v1340 = vld [vmem:[%s4 + $0x20] sm:$0xff]
    %v1341 = vld [vmem:[%s4 + $0x28] sm:$0xff]
    %v1342 = vld [vmem:[%s4 + $0x30] sm:$0xff]
    %v1343 = vld [vmem:[%s4 + $0x38] sm:$0xff]
    %v1344 = vld [vmem:[%s4 + $0x40] sm:$0xff]
    %v1345 = vld [vmem:[%s4 + $0x48] sm:$0xff]
    %v1346 = vld [vmem:[%s4 + $0x50] sm:$0xff]
    %v1347 = vld [vmem:[%s4 + $0x58] sm:$0xff]
    %v1348 = vld [vmem:[%s4 + $0x60] sm:$0xff]
    %v1349 = vld [vmem:[%s4 + $0x68] sm:$0xff]
    %v1350 = vld [vmem:[%s4 + $0x70] sm:$0xff]
    %v1351 = vld [vmem:[%s4 + $0x78] sm:$0xff]
    %1353 = vset.pattern.permute.xlu0 0
    %1354 = vperm.xlu0 %1353, %v1336
    %v1355 = vpop.permute.xlu0 %1354
    %1358 = vset.pattern.permute.xlu0 0
    %1359 = vperm.xlu0 %1358, %v1337
    %v1360 = vpop.permute.xlu0 %1359
    %1363 = vset.pattern.permute.xlu0 0
    %1364 = vperm.xlu0 %1363, %v1338
    %v1365 = vpop.permute.xlu0 %1364
    %1368 = vset.pattern.permute.xlu0 0
    %1369 = vperm.xlu0 %1368, %v1339
    %v1370 = vpop.permute.xlu0 %1369
    %1373 = vset.pattern.permute.xlu0 0
    %1374 = vperm.xlu0 %1373, %v1340
    %v1375 = vpop.permute.xlu0 %1374
    %1378 = vset.pattern.permute.xlu0 0
    %1379 = vperm.xlu0 %1378, %v1341
    %v1380 = vpop.permute.xlu0 %1379
    %1383 = vset.pattern.permute.xlu0 0
    %1384 = vperm.xlu0 %1383, %v1342
    %v1385 = vpop.permute.xlu0 %1384
    %1388 = vset.pattern.permute.xlu0 0
    %1389 = vperm.xlu0 %1388, %v1343
    %v1390 = vpop.permute.xlu0 %1389
    %1393 = vset.pattern.permute.xlu0 0
    %1394 = vperm.xlu0 %1393, %v1344
    %v1395 = vpop.permute.xlu0 %1394
    %1398 = vset.pattern.permute.xlu0 0
    %1399 = vperm.xlu0 %1398, %v1345
    %v1400 = vpop.permute.xlu0 %1399
    %1403 = vset.pattern.permute.xlu0 0
    %1404 = vperm.xlu0 %1403, %v1346
    %v1405 = vpop.permute.xlu0 %1404
    %1408 = vset.pattern.permute.xlu0 0
    %1409 = vperm.xlu0 %1408, %v1347
    %v1410 = vpop.permute.xlu0 %1409
    %1413 = vset.pattern.permute.xlu0 0
    %1414 = vperm.xlu0 %1413, %v1348
    %v1415 = vpop.permute.xlu0 %1414
    %1418 = vset.pattern.permute.xlu0 0
    %1419 = vperm.xlu0 %1418, %v1349
    %v1420 = vpop.permute.xlu0 %1419
    %1423 = vset.pattern.permute.xlu0 0
    %1424 = vperm.xlu0 %1423, %v1350
    %v1425 = vpop.permute.xlu0 %1424
    %1428 = vset.pattern.permute.xlu0 0
    %1429 = vperm.xlu0 %1428, %v1351
    %v1430 = vpop.permute.xlu0 %1429
    %v1432 = vadd.f32 %v1320, %v1355
    %v1433 = vadd.f32 %v1321, %v1360
    %v1434 = vadd.f32 %v1322, %v1365
    %v1435 = vadd.f32 %v1323, %v1370
    %v1436 = vadd.f32 %v1324, %v1375
    %v1437 = vadd.f32 %v1325, %v1380
    %v1438 = vadd.f32 %v1326, %v1385
    %v1439 = vadd.f32 %v1327, %v1390
    %v1440 = vadd.f32 %v1328, %v1395
    %v1441 = vadd.f32 %v1329, %v1400
    %v1442 = vadd.f32 %v1330, %v1405
    %v1443 = vadd.f32 %v1331, %v1410
    %v1444 = vadd.f32 %v1332, %v1415
    %v1445 = vadd.f32 %v1333, %v1420
    %v1446 = vadd.f32 %v1334, %v1425
    %v1447 = vadd.f32 %v1335, %v1430
    %v1448 = vmax.f32 %v1432, 0.0
    %v1449 = vmax.f32 %v1433, 0.0
    %v1450 = vmax.f32 %v1434, 0.0
    %v1451 = vmax.f32 %v1435, 0.0
    %v1452 = vmax.f32 %v1436, 0.0
    %v1453 = vmax.f32 %v1437, 0.0
    %v1454 = vmax.f32 %v1438, 0.0
    %v1455 = vmax.f32 %v1439, 0.0
    %v1456 = vmax.f32 %v1440, 0.0
    %v1457 = vmax.f32 %v1441, 0.0
    %v1458 = vmax.f32 %v1442, 0.0
    %v1459 = vmax.f32 %v1443, 0.0
    %v1460 = vmax.f32 %v1444, 0.0
    %v1461 = vmax.f32 %v1445, 0.0
    %v1462 = vmax.f32 %v1446, 0.0
    %v1463 = vmax.f32 %v1447, 0.0
    %v1464 = vpack.c.bf16 %v1449, %v1448
    %v1465 = vpack.c.bf16 %v1451, %v1450
    %v1466 = vpack.c.bf16 %v1453, %v1452
    %v1467 = vpack.c.bf16 %v1455, %v1454
    %v1468 = vpack.c.bf16 %v1457, %v1456
    %v1469 = vpack.c.bf16 %v1459, %v1458
    %v1470 = vpack.c.bf16 %v1461, %v1460
    %v1471 = vpack.c.bf16 %v1463, %v1462
    %v1480 = vunpack.c.l.b16 %v1464
    %v1481 = vunpack.c.h.b16 %v1464
    %v1482 = vunpack.c.l.b16 %v1465
    %v1483 = vunpack.c.h.b16 %v1465
    %v1484 = vunpack.c.l.b16 %v1466
    %v1485 = vunpack.c.h.b16 %v1466
    %v1486 = vunpack.c.l.b16 %v1467
    %v1487 = vunpack.c.h.b16 %v1467
    %v1488 = vunpack.c.l.b16 %v1468
    %v1489 = vunpack.c.h.b16 %v1468
    %v1490 = vunpack.c.l.b16 %v1469
    %v1491 = vunpack.c.h.b16 %v1469
    %v1492 = vunpack.c.l.b16 %v1470
    %v1493 = vunpack.c.h.b16 %v1470
    %v1494 = vunpack.c.l.b16 %v1471
    %v1495 = vunpack.c.h.b16 %v1471
    %v1496 = vpack.c.b16 %v1480, %v1480
    %v1497 = vpack.c.b16 %v1481, %v1481
    %v1498 = vpack.c.b16 %v1482, %v1482
    %v1499 = vpack.c.b16 %v1483, %v1483
    %v1500 = vpack.c.b16 %v1484, %v1484
    %v1501 = vpack.c.b16 %v1485, %v1485
    %v1502 = vpack.c.b16 %v1486, %v1486
    %v1503 = vpack.c.b16 %v1487, %v1487
    %v1504 = vpack.c.b16 %v1488, %v1488
    %v1505 = vpack.c.b16 %v1489, %v1489
    %v1506 = vpack.c.b16 %v1490, %v1490
    %v1507 = vpack.c.b16 %v1491, %v1491
    %v1508 = vpack.c.b16 %v1492, %v1492
    %v1509 = vpack.c.b16 %v1493, %v1493
    %v1510 = vpack.c.b16 %v1494, %v1494
    %v1511 = vpack.c.b16 %v1495, %v1495
    %1528 = vst [vmem:[%s5] sm:$0xf] %v1496
    %1529 = vst [vmem:[%s5 + $0x4] sm:$0xf] %v1497
    %1530 = vst [vmem:[%s5 + $0x8] sm:$0xf] %v1498
    %1531 = vst [vmem:[%s5 + $0xc] sm:$0xf] %v1499
    %1532 = vst [vmem:[%s5 + $0x10] sm:$0xf] %v1500
    %1533 = vst [vmem:[%s5 + $0x14] sm:$0xf] %v1501
    %1534 = vst [vmem:[%s5 + $0x18] sm:$0xf] %v1502
    %1535 = vst [vmem:[%s5 + $0x1c] sm:$0xf] %v1503
    %1536 = vst [vmem:[%s5 + $0x20] sm:$0xf] %v1504
    %1537 = vst [vmem:[%s5 + $0x24] sm:$0xf] %v1505
    %1538 = vst [vmem:[%s5 + $0x28] sm:$0xf] %v1506
    %1539 = vst [vmem:[%s5 + $0x2c] sm:$0xf] %v1507
    %1540 = vst [vmem:[%s5 + $0x30] sm:$0xf] %v1508
    %1541 = vst [vmem:[%s5 + $0x34] sm:$0xf] %v1509
    %1542 = vst [vmem:[%s5 + $0x38] sm:$0xf] %v1510
    %1543 = vst [vmem:[%s5 + $0x3c] sm:$0xf] %v1511
    // Predicated region
    $region30: #{a_call__.5} parent=1 // pred_check
      _
    $region31: #{a_call__.5} parent=1 // pred_check_branch
      %1545 = sbr.rel (0) target = $region33
    $region32: #{a_call__.5} parent=1 // pred_region
      _
    $region33: #{a_call__.5} parent=1 // pred_fallthru
      _
    // Predicated region
    $region34: #{a_call__.5} parent=1 // pred_check
      _
    $region35: #{a_call__.5} parent=1 // pred_check_branch
      %1547 = sbr.rel (0) target = $region37
    $region36: #{a_call__.5} parent=1 // pred_region
      _
    $region37: #{a_call__.5} parent=1 // pred_fallthru
      _
    %1548 = vsyncpa [#allocation3], 1
    %1549 = vsyncpa [#allocation5], 1

// kernel: a_call__.6
$region0: #{a_call__.6}
  #allocation0 [shape = 'u32[]', space=smem, size = 0x4, offset = 0x4, fixed_abs, tag = 'smem constant byte address 0x4 - core index']
  #allocation1 [shape = 'u32[144,128]{1,0:T(1,128)}', space=vmem, size = 0x12000, scoped, tag = 'internal scratch']
  %s0 = inlined_call_operand.vmem [shape: bf16[64,1152], index: 0, kind: input, shape index: {}]
  %s1 = inlined_call_operand.vmem [shape: bf16[1152,128], index: 1, kind: input, shape index: {}]
  %s2 = inlined_call_operand.vmem [shape: f32[64,1], index: 2, kind: input, shape index: {}]
  %s3 = inlined_call_operand.vmem [shape: f32[64,1], index: 3, kind: input, shape index: {}]
  %s4 = inlined_call_operand.vmem [shape: f32[64,1], index: 4, kind: input, shape index: {}]
  %s5 = inlined_call_operand.vmem [shape: bf16[64,128], index: 5, kind: output, shape index: {}]
  %s6 = sld [smem:[#allocation0]]
  $region30: #{a_call__.6} parent=0
    _
  %s8 = ssub.s32 1, %s6
  %s9 = scalar_select 0, %s8, %s6
  // Predicated region
  $region2: #{a_call__.6} parent=0 // pred_check
    _
  $region3: #{a_call__.6} parent=0 // pred_check_branch
    %11 = sbr.rel (0) target = $region5
  $region4: #{a_call__.6} parent=0 // pred_region
    _
  $region5: #{a_call__.6} parent=0 // pred_fallthru
    _
  // Predicated region
  $region6: #{a_call__.6} parent=0 // pred_check
    _
  $region7: #{a_call__.6} parent=0 // pred_check_branch
    %13 = sbr.rel (0) target = $region9
  $region8: #{a_call__.6} parent=0 // pred_region
    _
  $region9: #{a_call__.6} parent=0 // pred_fallthru
    _
  // Predicated region
  $region10: #{a_call__.6} parent=0 // pred_check
    _
  $region11: #{a_call__.6} parent=0 // pred_check_branch
    %15 = sbr.rel (0) target = $region13
  $region12: #{a_call__.6} parent=0 // pred_region
    _
  $region13: #{a_call__.6} parent=0 // pred_fallthru
    _
  // Predicated region
  $region14: #{a_call__.6} parent=0 // pred_check
    _
  $region15: #{a_call__.6} parent=0 // pred_check_branch
    %17 = sbr.rel (0) target = $region17
  $region16: #{a_call__.6} parent=0 // pred_region
    _
  $region17: #{a_call__.6} parent=0 // pred_fallthru
    _
  // Predicated region
  $region18: #{a_call__.6} parent=0 // pred_check
    _
  $region19: #{a_call__.6} parent=0 // pred_check_branch
    %19 = sbr.rel (0) target = $region21
  $region20: #{a_call__.6} parent=0 // pred_region
    _
  $region21: #{a_call__.6} parent=0 // pred_fallthru
    _
  %v21 = vld [vmem:[%s0] sm:$0xff]
  %v22 = vld [vmem:[%s0 + $0x8] sm:$0xff]
  %v23 = vld [vmem:[%s0 + $0x10] sm:$0xff]
  %v24 = vld [vmem:[%s0 + $0x18] sm:$0xff]
  %v25 = vld [vmem:[%s0 + $0x20] sm:$0xf]
  %v26 = vld [vmem:[%s0 + $0x24] sm:$0xff]
  %v27 = vld [vmem:[%s0 + $0x2c] sm:$0xff]
  %v28 = vld [vmem:[%s0 + $0x34] sm:$0xff]
  %v29 = vld [vmem:[%s0 + $0x3c] sm:$0xff]
  %v30 = vld [vmem:[%s0 + $0x44] sm:$0xf]
  %v31 = vld [vmem:[%s0 + $0x48] sm:$0xff]
  %v32 = vld [vmem:[%s0 + $0x50] sm:$0xff]
  %v33 = vld [vmem:[%s0 + $0x58] sm:$0xff]
  %v34 = vld [vmem:[%s0 + $0x60] sm:$0xff]
  %v35 = vld [vmem:[%s0 + $0x68] sm:$0xf]
  %v36 = vld [vmem:[%s0 + $0x6c] sm:$0xff]
  %v37 = vld [vmem:[%s0 + $0x74] sm:$0xff]
  %v38 = vld [vmem:[%s0 + $0x7c] sm:$0xff]
  %v39 = vld [vmem:[%s0 + $0x84] sm:$0xff]
  %v40 = vld [vmem:[%s0 + $0x8c] sm:$0xf]
  %v41 = vld [vmem:[%s0 + $0x90] sm:$0xff]
  %v42 = vld [vmem:[%s0 + $0x98] sm:$0xff]
  %v43 = vld [vmem:[%s0 + $0xa0] sm:$0xff]
  %v44 = vld [vmem:[%s0 + $0xa8] sm:$0xff]
  %v45 = vld [vmem:[%s0 + $0xb0] sm:$0xf]
  %v46 = vld [vmem:[%s0 + $0xb4] sm:$0xff]
  %v47 = vld [vmem:[%s0 + $0xbc] sm:$0xff]
  %v48 = vld [vmem:[%s0 + $0xc4] sm:$0xff]
  %v49 = vld [vmem:[%s0 + $0xcc] sm:$0xff]
  %v50 = vld [vmem:[%s0 + $0xd4] sm:$0xf]
  %v51 = vld [vmem:[%s0 + $0xd8] sm:$0xff]
  %v52 = vld [vmem:[%s0 + $0xe0] sm:$0xff]
  %v53 = vld [vmem:[%s0 + $0xe8] sm:$0xff]
  %v54 = vld [vmem:[%s0 + $0xf0] sm:$0xff]
  %v55 = vld [vmem:[%s0 + $0xf8] sm:$0xf]
  %v56 = vld [vmem:[%s0 + $0xfc] sm:$0xff]
  %v57 = vld [vmem:[%s0 + $0x104] sm:$0xff]
  %v58 = vld [vmem:[%s0 + $0x10c] sm:$0xff]
  %v59 = vld [vmem:[%s0 + $0x114] sm:$0xff]
  %v60 = vld [vmem:[%s0 + $0x11c] sm:$0xf]
  %v61 = vld [vmem:[%s1] sm:$0xf]
  %v62 = vld [vmem:[%s1 + $0x4] sm:$0xf]
  %v63 = vld [vmem:[%s1 + $0x8] sm:$0xf]
  %v64 = vld [vmem:[%s1 + $0xc] sm:$0xf]
  %v65 = vld [vmem:[%s1 + $0x10] sm:$0xf]
  %v66 = vld [vmem:[%s1 + $0x14] sm:$0xf]
  %v67 = vld [vmem:[%s1 + $0x18] sm:$0xf]
  %v68 = vld [vmem:[%s1 + $0x1c] sm:$0xf]
  %v69 = vld [vmem:[%s1 + $0x20] sm:$0xf]
  %v70 = vld [vmem:[%s1 + $0x24] sm:$0xf]
  %v71 = vld [vmem:[%s1 + $0x28] sm:$0xf]
  %v72 = vld [vmem:[%s1 + $0x2c] sm:$0xf]
  %v73 = vld [vmem:[%s1 + $0x30] sm:$0xf]
  %v74 = vld [vmem:[%s1 + $0x34] sm:$0xf]
  %v75 = vld [vmem:[%s1 + $0x38] sm:$0xf]
  %v76 = vld [vmem:[%s1 + $0x3c] sm:$0xf]
  %v77 = vld [vmem:[%s1 + $0x40] sm:$0xf]
  %v78 = vld [vmem:[%s1 + $0x44] sm:$0xf]
  %v79 = vld [vmem:[%s1 + $0x48] sm:$0xf]
  %v80 = vld [vmem:[%s1 + $0x4c] sm:$0xf]
  %v81 = vld [vmem:[%s1 + $0x50] sm:$0xf]
  %v82 = vld [vmem:[%s1 + $0x54] sm:$0xf]
  %v83 = vld [vmem:[%s1 + $0x58] sm:$0xf]
  %v84 = vld [vmem:[%s1 + $0x5c] sm:$0xf]
  %v85 = vld [vmem:[%s1 + $0x60] sm:$0xf]
  %v86 = vld [vmem:[%s1 + $0x64] sm:$0xf]
  %v87 = vld [vmem:[%s1 + $0x68] sm:$0xf]
  %v88 = vld [vmem:[%s1 + $0x6c] sm:$0xf]
  %v89 = vld [vmem:[%s1 + $0x70] sm:$0xf]
  %v90 = vld [vmem:[%s1 + $0x74] sm:$0xf]
  %v91 = vld [vmem:[%s1 + $0x78] sm:$0xf]
  %v92 = vld [vmem:[%s1 + $0x7c] sm:$0xf]
  %v93 = vld [vmem:[%s1 + $0x80] sm:$0xf]
  %v94 = vld [vmem:[%s1 + $0x84] sm:$0xf]
  %v95 = vld [vmem:[%s1 + $0x88] sm:$0xf]
  %v96 = vld [vmem:[%s1 + $0x8c] sm:$0xf]
  %v97 = vld [vmem:[%s1 + $0x90] sm:$0xf]
  %v98 = vld [vmem:[%s1 + $0x94] sm:$0xf]
  %v99 = vld [vmem:[%s1 + $0x98] sm:$0xf]
  %v100 = vld [vmem:[%s1 + $0x9c] sm:$0xf]
  %v101 = vld [vmem:[%s1 + $0xa0] sm:$0xf]
  %v102 = vld [vmem:[%s1 + $0xa4] sm:$0xf]
  %v103 = vld [vmem:[%s1 + $0xa8] sm:$0xf]
  %v104 = vld [vmem:[%s1 + $0xac] sm:$0xf]
  %v105 = vld [vmem:[%s1 + $0xb0] sm:$0xf]
  %v106 = vld [vmem:[%s1 + $0xb4] sm:$0xf]
  %v107 = vld [vmem:[%s1 + $0xb8] sm:$0xf]
  %v108 = vld [vmem:[%s1 + $0xbc] sm:$0xf]
  %v109 = vld [vmem:[%s1 + $0xc0] sm:$0xf]
  %v110 = vld [vmem:[%s1 + $0xc4] sm:$0xf]
  %v111 = vld [vmem:[%s1 + $0xc8] sm:$0xf]
  %v112 = vld [vmem:[%s1 + $0xcc] sm:$0xf]
  %v113 = vld [vmem:[%s1 + $0xd0] sm:$0xf]
  %v114 = vld [vmem:[%s1 + $0xd4] sm:$0xf]
  %v115 = vld [vmem:[%s1 + $0xd8] sm:$0xf]
  %v116 = vld [vmem:[%s1 + $0xdc] sm:$0xf]
  %v117 = vld [vmem:[%s1 + $0xe0] sm:$0xf]
  %v118 = vld [vmem:[%s1 + $0xe4] sm:$0xf]
  %v119 = vld [vmem:[%s1 + $0xe8] sm:$0xf]
  %v120 = vld [vmem:[%s1 + $0xec] sm:$0xf]
  %v121 = vld [vmem:[%s1 + $0xf0] sm:$0xf]
  %v122 = vld [vmem:[%s1 + $0xf4] sm:$0xf]
  %v123 = vld [vmem:[%s1 + $0xf8] sm:$0xf]
  %v124 = vld [vmem:[%s1 + $0xfc] sm:$0xf]
  %v125 = vld [vmem:[%s1 + $0x100] sm:$0xf]
  %v126 = vld [vmem:[%s1 + $0x104] sm:$0xf]
  %v127 = vld [vmem:[%s1 + $0x108] sm:$0xf]
  %v128 = vld [vmem:[%s1 + $0x10c] sm:$0xf]
  %v129 = vld [vmem:[%s1 + $0x110] sm:$0xf]
  %v130 = vld [vmem:[%s1 + $0x114] sm:$0xf]
  %v131 = vld [vmem:[%s1 + $0x118] sm:$0xf]
  %v132 = vld [vmem:[%s1 + $0x11c] sm:$0xf]
  %v133 = vld [vmem:[%s1 + $0x120] sm:$0xf]
  %v134 = vld [vmem:[%s1 + $0x124] sm:$0xf]
  %v135 = vld [vmem:[%s1 + $0x128] sm:$0xf]
  %v136 = vld [vmem:[%s1 + $0x12c] sm:$0xf]
  %v137 = vld [vmem:[%s1 + $0x130] sm:$0xf]
  %v138 = vld [vmem:[%s1 + $0x134] sm:$0xf]
  %v139 = vld [vmem:[%s1 + $0x138] sm:$0xf]
  %v140 = vld [vmem:[%s1 + $0x13c] sm:$0xf]
  %v141 = vld [vmem:[%s1 + $0x140] sm:$0xf]
  %v142 = vld [vmem:[%s1 + $0x144] sm:$0xf]
  %v143 = vld [vmem:[%s1 + $0x148] sm:$0xf]
  %v144 = vld [vmem:[%s1 + $0x14c] sm:$0xf]
  %v145 = vld [vmem:[%s1 + $0x150] sm:$0xf]
  %v146 = vld [vmem:[%s1 + $0x154] sm:$0xf]
  %v147 = vld [vmem:[%s1 + $0x158] sm:$0xf]
  %v148 = vld [vmem:[%s1 + $0x15c] sm:$0xf]
  %v149 = vld [vmem:[%s1 + $0x160] sm:$0xf]
  %v150 = vld [vmem:[%s1 + $0x164] sm:$0xf]
  %v151 = vld [vmem:[%s1 + $0x168] sm:$0xf]
  %v152 = vld [vmem:[%s1 + $0x16c] sm:$0xf]
  %v153 = vld [vmem:[%s1 + $0x170] sm:$0xf]
  %v154 = vld [vmem:[%s1 + $0x174] sm:$0xf]
  %v155 = vld [vmem:[%s1 + $0x178] sm:$0xf]
  %v156 = vld [vmem:[%s1 + $0x17c] sm:$0xf]
  %v157 = vld [vmem:[%s1 + $0x180] sm:$0xf]
  %v158 = vld [vmem:[%s1 + $0x184] sm:$0xf]
  %v159 = vld [vmem:[%s1 + $0x188] sm:$0xf]
  %v160 = vld [vmem:[%s1 + $0x18c] sm:$0xf]
  %v161 = vld [vmem:[%s1 + $0x190] sm:$0xf]
  %v162 = vld [vmem:[%s1 + $0x194] sm:$0xf]
  %v163 = vld [vmem:[%s1 + $0x198] sm:$0xf]
  %v164 = vld [vmem:[%s1 + $0x19c] sm:$0xf]
  %v165 = vld [vmem:[%s1 + $0x1a0] sm:$0xf]
  %v166 = vld [vmem:[%s1 + $0x1a4] sm:$0xf]
  %v167 = vld [vmem:[%s1 + $0x1a8] sm:$0xf]
  %v168 = vld [vmem:[%s1 + $0x1ac] sm:$0xf]
  %v169 = vld [vmem:[%s1 + $0x1b0] sm:$0xf]
  %v170 = vld [vmem:[%s1 + $0x1b4] sm:$0xf]
  %v171 = vld [vmem:[%s1 + $0x1b8] sm:$0xf]
  %v172 = vld [vmem:[%s1 + $0x1bc] sm:$0xf]
  %v173 = vld [vmem:[%s1 + $0x1c0] sm:$0xf]
  %v174 = vld [vmem:[%s1 + $0x1c4] sm:$0xf]
  %v175 = vld [vmem:[%s1 + $0x1c8] sm:$0xf]
  %v176 = vld [vmem:[%s1 + $0x1cc] sm:$0xf]
  %v177 = vld [vmem:[%s1 + $0x1d0] sm:$0xf]
  %v178 = vld [vmem:[%s1 + $0x1d4] sm:$0xf]
  %v179 = vld [vmem:[%s1 + $0x1d8] sm:$0xf]
  %v180 = vld [vmem:[%s1 + $0x1dc] sm:$0xf]
  %v181 = vld [vmem:[%s1 + $0x1e0] sm:$0xf]
  %v182 = vld [vmem:[%s1 + $0x1e4] sm:$0xf]
  %v183 = vld [vmem:[%s1 + $0x1e8] sm:$0xf]
  %v184 = vld [vmem:[%s1 + $0x1ec] sm:$0xf]
  %v185 = vld [vmem:[%s1 + $0x1f0] sm:$0xf]
  %v186 = vld [vmem:[%s1 + $0x1f4] sm:$0xf]
  %v187 = vld [vmem:[%s1 + $0x1f8] sm:$0xf]
  %v188 = vld [vmem:[%s1 + $0x1fc] sm:$0xf]
  %v189 = vld [vmem:[%s1 + $0x200] sm:$0xf]
  %v190 = vld [vmem:[%s1 + $0x204] sm:$0xf]
  %v191 = vld [vmem:[%s1 + $0x208] sm:$0xf]
  %v192 = vld [vmem:[%s1 + $0x20c] sm:$0xf]
  %v193 = vld [vmem:[%s1 + $0x210] sm:$0xf]
  %v194 = vld [vmem:[%s1 + $0x214] sm:$0xf]
  %v195 = vld [vmem:[%s1 + $0x218] sm:$0xf]
  %v196 = vld [vmem:[%s1 + $0x21c] sm:$0xf]
  %v197 = vld [vmem:[%s1 + $0x220] sm:$0xf]
  %v198 = vld [vmem:[%s1 + $0x224] sm:$0xf]
  %v199 = vld [vmem:[%s1 + $0x228] sm:$0xf]
  %v200 = vld [vmem:[%s1 + $0x22c] sm:$0xf]
  %v201 = vld [vmem:[%s1 + $0x230] sm:$0xf]
  %v202 = vld [vmem:[%s1 + $0x234] sm:$0xf]
  %v203 = vld [vmem:[%s1 + $0x238] sm:$0xf]
  %v204 = vld [vmem:[%s1 + $0x23c] sm:$0xf]
  %v205 = vld [vmem:[%s2] sm:$0xff]
  %v206 = vld [vmem:[%s2 + $0x8] sm:$0xff]
  %v207 = vld [vmem:[%s2 + $0x10] sm:$0xff]
  %v208 = vld [vmem:[%s2 + $0x18] sm:$0xff]
  %v209 = vld [vmem:[%s2 + $0x20] sm:$0xff]
  %v210 = vld [vmem:[%s2 + $0x28] sm:$0xff]
  %v211 = vld [vmem:[%s2 + $0x30] sm:$0xff]
  %v212 = vld [vmem:[%s2 + $0x38] sm:$0xff]
  %214 = vset.pattern.permute.xlu0 0
  %215 = vperm.xlu0 %214, %v205
  %v216 = vpop.permute.xlu0 %215
  %219 = vset.pattern.permute.xlu0 0
  %220 = vperm.xlu0 %219, %v206
  %v221 = vpop.permute.xlu0 %220
  %224 = vset.pattern.permute.xlu0 0
  %225 = vperm.xlu0 %224, %v207
  %v226 = vpop.permute.xlu0 %225
  %229 = vset.pattern.permute.xlu0 0
  %230 = vperm.xlu0 %229, %v208
  %v231 = vpop.permute.xlu0 %230
  %234 = vset.pattern.permute.xlu0 0
  %235 = vperm.xlu0 %234, %v209
  %v236 = vpop.permute.xlu0 %235
  %239 = vset.pattern.permute.xlu0 0
  %240 = vperm.xlu0 %239, %v210
  %v241 = vpop.permute.xlu0 %240
  %244 = vset.pattern.permute.xlu0 0
  %245 = vperm.xlu0 %244, %v211
  %v246 = vpop.permute.xlu0 %245
  %249 = vset.pattern.permute.xlu0 0
  %250 = vperm.xlu0 %249, %v212
  %v251 = vpop.permute.xlu0 %250
  %v293 = vunpack.c.l.b16 %v21
  %v294 = vunpack.c.h.b16 %v21
  %v295 = vunpack.c.l.b16 %v22
  %v296 = vunpack.c.h.b16 %v22
  %v297 = vunpack.c.l.b16 %v23
  %v298 = vunpack.c.h.b16 %v23
  %v299 = vunpack.c.l.b16 %v24
  %v300 = vunpack.c.h.b16 %v24
  %v301 = vunpack.c.l.b16 %v25
  %v302 = vunpack.c.l.b16 %v26
  %v303 = vunpack.c.h.b16 %v26
  %v304 = vunpack.c.l.b16 %v27
  %v305 = vunpack.c.h.b16 %v27
  %v306 = vunpack.c.l.b16 %v28
  %v307 = vunpack.c.h.b16 %v28
  %v308 = vunpack.c.l.b16 %v29
  %v309 = vunpack.c.h.b16 %v29
  %v310 = vunpack.c.l.b16 %v30
  %v311 = vunpack.c.l.b16 %v31
  %v312 = vunpack.c.h.b16 %v31
  %v313 = vunpack.c.l.b16 %v32
  %v314 = vunpack.c.h.b16 %v32
  %v315 = vunpack.c.l.b16 %v33
  %v316 = vunpack.c.h.b16 %v33
  %v317 = vunpack.c.l.b16 %v34
  %v318 = vunpack.c.h.b16 %v34
  %v319 = vunpack.c.l.b16 %v35
  %v320 = vunpack.c.l.b16 %v36
  %v321 = vunpack.c.h.b16 %v36
  %v322 = vunpack.c.l.b16 %v37
  %v323 = vunpack.c.h.b16 %v37
  %v324 = vunpack.c.l.b16 %v38
  %v325 = vunpack.c.h.b16 %v38
  %v326 = vunpack.c.l.b16 %v39
  %v327 = vunpack.c.h.b16 %v39
  %v328 = vunpack.c.l.b16 %v40
  %v329 = vunpack.c.l.b16 %v41
  %v330 = vunpack.c.h.b16 %v41
  %v331 = vunpack.c.l.b16 %v42
  %v332 = vunpack.c.h.b16 %v42
  %v333 = vunpack.c.l.b16 %v43
  %v334 = vunpack.c.h.b16 %v43
  %v335 = vunpack.c.l.b16 %v44
  %v336 = vunpack.c.h.b16 %v44
  %v337 = vunpack.c.l.b16 %v45
  %v338 = vunpack.c.l.b16 %v46
  %v339 = vunpack.c.h.b16 %v46
  %v340 = vunpack.c.l.b16 %v47
  %v341 = vunpack.c.h.b16 %v47
  %v342 = vunpack.c.l.b16 %v48
  %v343 = vunpack.c.h.b16 %v48
  %v344 = vunpack.c.l.b16 %v49
  %v345 = vunpack.c.h.b16 %v49
  %v346 = vunpack.c.l.b16 %v50
  %v347 = vunpack.c.l.b16 %v51
  %v348 = vunpack.c.h.b16 %v51
  %v349 = vunpack.c.l.b16 %v52
  %v350 = vunpack.c.h.b16 %v52
  %v351 = vunpack.c.l.b16 %v53
  %v352 = vunpack.c.h.b16 %v53
  %v353 = vunpack.c.l.b16 %v54
  %v354 = vunpack.c.h.b16 %v54
  %v355 = vunpack.c.l.b16 %v55
  %v356 = vunpack.c.l.b16 %v56
  %v357 = vunpack.c.h.b16 %v56
  %v358 = vunpack.c.l.b16 %v57
  %v359 = vunpack.c.h.b16 %v57
  %v360 = vunpack.c.l.b16 %v58
  %v361 = vunpack.c.h.b16 %v58
  %v362 = vunpack.c.l.b16 %v59
  %v363 = vunpack.c.h.b16 %v59
  %v364 = vunpack.c.l.b16 %v60
  %v365 = vpack.c.b16 %v302, %v293
  %v366 = vpack.c.b16 %v303, %v294
  %v367 = vpack.c.b16 %v304, %v295
  %v368 = vpack.c.b16 %v305, %v296
  %v369 = vpack.c.b16 %v306, %v297
  %v370 = vpack.c.b16 %v307, %v298
  %v371 = vpack.c.b16 %v308, %v299
  %v372 = vpack.c.b16 %v309, %v300
  %v373 = vpack.c.b16 %v310, %v301
  %v374 = vpack.c.b16 %v320, %v311
  %v375 = vpack.c.b16 %v321, %v312
  %v376 = vpack.c.b16 %v322, %v313
  %v377 = vpack.c.b16 %v323, %v314
  %v378 = vpack.c.b16 %v324, %v315
  %v379 = vpack.c.b16 %v325, %v316
  %v380 = vpack.c.b16 %v326, %v317
  %v381 = vpack.c.b16 %v327, %v318
  %v382 = vpack.c.b16 %v328, %v319
  %v383 = vpack.c.b16 %v338, %v329
  %v384 = vpack.c.b16 %v339, %v330
  %v385 = vpack.c.b16 %v340, %v331
  %v386 = vpack.c.b16 %v341, %v332
  %v387 = vpack.c.b16 %v342, %v333
  %v388 = vpack.c.b16 %v343, %v334
  %v389 = vpack.c.b16 %v344, %v335
  %v390 = vpack.c.b16 %v345, %v336
  %v391 = vpack.c.b16 %v346, %v337
  %v392 = vpack.c.b16 %v356, %v347
  %v393 = vpack.c.b16 %v357, %v348
  %v394 = vpack.c.b16 %v358, %v349
  %v395 = vpack.c.b16 %v359, %v350
  %v396 = vpack.c.b16 %v360, %v351
  %v397 = vpack.c.b16 %v361, %v352
  %v398 = vpack.c.b16 %v362, %v353
  %v399 = vpack.c.b16 %v363, %v354
  %v400 = vpack.c.b16 %v364, %v355
  %v581 = vunpack.c.l.b16 %v61
  %v582 = vunpack.c.l.b16 %v62
  %v583 = vunpack.c.l.b16 %v63
  %v584 = vunpack.c.l.b16 %v64
  %v585 = vunpack.c.l.b16 %v65
  %v586 = vunpack.c.l.b16 %v66
  %v587 = vunpack.c.l.b16 %v67
  %v588 = vunpack.c.l.b16 %v68
  %v589 = vunpack.c.l.b16 %v69
  %v590 = vunpack.c.l.b16 %v70
  %v591 = vunpack.c.l.b16 %v71
  %v592 = vunpack.c.l.b16 %v72
  %v593 = vunpack.c.l.b16 %v73
  %v594 = vunpack.c.l.b16 %v74
  %v595 = vunpack.c.l.b16 %v75
  %v596 = vunpack.c.l.b16 %v76
  %v597 = vunpack.c.l.b16 %v77
  %v598 = vunpack.c.l.b16 %v78
  %v599 = vunpack.c.l.b16 %v79
  %v600 = vunpack.c.l.b16 %v80
  %v601 = vunpack.c.l.b16 %v81
  %v602 = vunpack.c.l.b16 %v82
  %v603 = vunpack.c.l.b16 %v83
  %v604 = vunpack.c.l.b16 %v84
  %v605 = vunpack.c.l.b16 %v85
  %v606 = vunpack.c.l.b16 %v86
  %v607 = vunpack.c.l.b16 %v87
  %v608 = vunpack.c.l.b16 %v88
  %v609 = vunpack.c.l.b16 %v89
  %v610 = vunpack.c.l.b16 %v90
  %v611 = vunpack.c.l.b16 %v91
  %v612 = vunpack.c.l.b16 %v92
  %v613 = vunpack.c.l.b16 %v93
  %v614 = vunpack.c.l.b16 %v94
  %v615 = vunpack.c.l.b16 %v95
  %v616 = vunpack.c.l.b16 %v96
  %v617 = vunpack.c.l.b16 %v97
  %v618 = vunpack.c.l.b16 %v98
  %v619 = vunpack.c.l.b16 %v99
  %v620 = vunpack.c.l.b16 %v100
  %v621 = vunpack.c.l.b16 %v101
  %v622 = vunpack.c.l.b16 %v102
  %v623 = vunpack.c.l.b16 %v103
  %v624 = vunpack.c.l.b16 %v104
  %v625 = vunpack.c.l.b16 %v105
  %v626 = vunpack.c.l.b16 %v106
  %v627 = vunpack.c.l.b16 %v107
  %v628 = vunpack.c.l.b16 %v108
  %v629 = vunpack.c.l.b16 %v109
  %v630 = vunpack.c.l.b16 %v110
  %v631 = vunpack.c.l.b16 %v111
  %v632 = vunpack.c.l.b16 %v112
  %v633 = vunpack.c.l.b16 %v113
  %v634 = vunpack.c.l.b16 %v114
  %v635 = vunpack.c.l.b16 %v115
  %v636 = vunpack.c.l.b16 %v116
  %v637 = vunpack.c.l.b16 %v117
  %v638 = vunpack.c.l.b16 %v118
  %v639 = vunpack.c.l.b16 %v119
  %v640 = vunpack.c.l.b16 %v120
  %v641 = vunpack.c.l.b16 %v121
  %v642 = vunpack.c.l.b16 %v122
  %v643 = vunpack.c.l.b16 %v123
  %v644 = vunpack.c.l.b16 %v124
  %v645 = vunpack.c.l.b16 %v125
  %v646 = vunpack.c.l.b16 %v126
  %v647 = vunpack.c.l.b16 %v127
  %v648 = vunpack.c.l.b16 %v128
  %v649 = vunpack.c.l.b16 %v129
  %v650 = vunpack.c.l.b16 %v130
  %v651 = vunpack.c.l.b16 %v131
  %v652 = vunpack.c.l.b16 %v132
  %v653 = vunpack.c.l.b16 %v133
  %v654 = vunpack.c.l.b16 %v134
  %v655 = vunpack.c.l.b16 %v135
  %v656 = vunpack.c.l.b16 %v136
  %v657 = vunpack.c.l.b16 %v137
  %v658 = vunpack.c.l.b16 %v138
  %v659 = vunpack.c.l.b16 %v139
  %v660 = vunpack.c.l.b16 %v140
  %v661 = vunpack.c.l.b16 %v141
  %v662 = vunpack.c.l.b16 %v142
  %v663 = vunpack.c.l.b16 %v143
  %v664 = vunpack.c.l.b16 %v144
  %v665 = vunpack.c.l.b16 %v145
  %v666 = vunpack.c.l.b16 %v146
  %v667 = vunpack.c.l.b16 %v147
  %v668 = vunpack.c.l.b16 %v148
  %v669 = vunpack.c.l.b16 %v149
  %v670 = vunpack.c.l.b16 %v150
  %v671 = vunpack.c.l.b16 %v151
  %v672 = vunpack.c.l.b16 %v152
  %v673 = vunpack.c.l.b16 %v153
  %v674 = vunpack.c.l.b16 %v154
  %v675 = vunpack.c.l.b16 %v155
  %v676 = vunpack.c.l.b16 %v156
  %v677 = vunpack.c.l.b16 %v157
  %v678 = vunpack.c.l.b16 %v158
  %v679 = vunpack.c.l.b16 %v159
  %v680 = vunpack.c.l.b16 %v160
  %v681 = vunpack.c.l.b16 %v161
  %v682 = vunpack.c.l.b16 %v162
  %v683 = vunpack.c.l.b16 %v163
  %v684 = vunpack.c.l.b16 %v164
  %v685 = vunpack.c.l.b16 %v165
  %v686 = vunpack.c.l.b16 %v166
  %v687 = vunpack.c.l.b16 %v167
  %v688 = vunpack.c.l.b16 %v168
  %v689 = vunpack.c.l.b16 %v169
  %v690 = vunpack.c.l.b16 %v170
  %v691 = vunpack.c.l.b16 %v171
  %v692 = vunpack.c.l.b16 %v172
  %v693 = vunpack.c.l.b16 %v173
  %v694 = vunpack.c.l.b16 %v174
  %v695 = vunpack.c.l.b16 %v175
  %v696 = vunpack.c.l.b16 %v176
  %v697 = vunpack.c.l.b16 %v177
  %v698 = vunpack.c.l.b16 %v178
  %v699 = vunpack.c.l.b16 %v179
  %v700 = vunpack.c.l.b16 %v180
  %v701 = vunpack.c.l.b16 %v181
  %v702 = vunpack.c.l.b16 %v182
  %v703 = vunpack.c.l.b16 %v183
  %v704 = vunpack.c.l.b16 %v184
  %v705 = vunpack.c.l.b16 %v185
  %v706 = vunpack.c.l.b16 %v186
  %v707 = vunpack.c.l.b16 %v187
  %v708 = vunpack.c.l.b16 %v188
  %v709 = vunpack.c.l.b16 %v189
  %v710 = vunpack.c.l.b16 %v190
  %v711 = vunpack.c.l.b16 %v191
  %v712 = vunpack.c.l.b16 %v192
  %v713 = vunpack.c.l.b16 %v193
  %v714 = vunpack.c.l.b16 %v194
  %v715 = vunpack.c.l.b16 %v195
  %v716 = vunpack.c.l.b16 %v196
  %v717 = vunpack.c.l.b16 %v197
  %v718 = vunpack.c.l.b16 %v198
  %v719 = vunpack.c.l.b16 %v199
  %v720 = vunpack.c.l.b16 %v200
  %v721 = vunpack.c.l.b16 %v201
  %v722 = vunpack.c.l.b16 %v202
  %v723 = vunpack.c.l.b16 %v203
  %v724 = vunpack.c.l.b16 %v204
  %v725 = vpack.c.b16 %v582, %v581
  %v726 = vpack.c.b16 %v584, %v583
  %v727 = vpack.c.b16 %v586, %v585
  %v728 = vpack.c.b16 %v588, %v587
  %v729 = vpack.c.b16 %v590, %v589
  %v730 = vpack.c.b16 %v592, %v591
  %v731 = vpack.c.b16 %v594, %v593
  %v732 = vpack.c.b16 %v596, %v595
  %v733 = vpack.c.b16 %v598, %v597
  %v734 = vpack.c.b16 %v600, %v599
  %v735 = vpack.c.b16 %v602, %v601
  %v736 = vpack.c.b16 %v604, %v603
  %v737 = vpack.c.b16 %v606, %v605
  %v738 = vpack.c.b16 %v608, %v607
  %v739 = vpack.c.b16 %v610, %v609
  %v740 = vpack.c.b16 %v612, %v611
  %v741 = vpack.c.b16 %v614, %v613
  %v742 = vpack.c.b16 %v616, %v615
  %v743 = vpack.c.b16 %v618, %v617
  %v744 = vpack.c.b16 %v620, %v619
  %v745 = vpack.c.b16 %v622, %v621
  %v746 = vpack.c.b16 %v624, %v623
  %v747 = vpack.c.b16 %v626, %v625
  %v748 = vpack.c.b16 %v628, %v627
  %v749 = vpack.c.b16 %v630, %v629
  %v750 = vpack.c.b16 %v632, %v631
  %v751 = vpack.c.b16 %v634, %v633
  %v752 = vpack.c.b16 %v636, %v635
  %v753 = vpack.c.b16 %v638, %v637
  %v754 = vpack.c.b16 %v640, %v639
  %v755 = vpack.c.b16 %v642, %v641
  %v756 = vpack.c.b16 %v644, %v643
  %v757 = vpack.c.b16 %v646, %v645
  %v758 = vpack.c.b16 %v648, %v647
  %v759 = vpack.c.b16 %v650, %v649
  %v760 = vpack.c.b16 %v652, %v651
  %v761 = vpack.c.b16 %v654, %v653
  %v762 = vpack.c.b16 %v656, %v655
  %v763 = vpack.c.b16 %v658, %v657
  %v764 = vpack.c.b16 %v660, %v659
  %v765 = vpack.c.b16 %v662, %v661
  %v766 = vpack.c.b16 %v664, %v663
  %v767 = vpack.c.b16 %v666, %v665
  %v768 = vpack.c.b16 %v668, %v667
  %v769 = vpack.c.b16 %v670, %v669
  %v770 = vpack.c.b16 %v672, %v671
  %v771 = vpack.c.b16 %v674, %v673
  %v772 = vpack.c.b16 %v676, %v675
  %v773 = vpack.c.b16 %v678, %v677
  %v774 = vpack.c.b16 %v680, %v679
  %v775 = vpack.c.b16 %v682, %v681
  %v776 = vpack.c.b16 %v684, %v683
  %v777 = vpack.c.b16 %v686, %v685
  %v778 = vpack.c.b16 %v688, %v687
  %v779 = vpack.c.b16 %v690, %v689
  %v780 = vpack.c.b16 %v692, %v691
  %v781 = vpack.c.b16 %v694, %v693
  %v782 = vpack.c.b16 %v696, %v695
  %v783 = vpack.c.b16 %v698, %v697
  %v784 = vpack.c.b16 %v700, %v699
  %v785 = vpack.c.b16 %v702, %v701
  %v786 = vpack.c.b16 %v704, %v703
  %v787 = vpack.c.b16 %v706, %v705
  %v788 = vpack.c.b16 %v708, %v707
  %v789 = vpack.c.b16 %v710, %v709
  %v790 = vpack.c.b16 %v712, %v711
  %v791 = vpack.c.b16 %v714, %v713
  %v792 = vpack.c.b16 %v716, %v715
  %v793 = vpack.c.b16 %v718, %v717
  %v794 = vpack.c.b16 %v720, %v719
  %v795 = vpack.c.b16 %v722, %v721
  %v796 = vpack.c.b16 %v724, %v723
  %869 = vmatprep.subr.bf16.mxu0 0
  %870 = vmatpush1.bf16.msra.mxu0 %v732
  %871 = vmatprep.subr.bf16.mxu0 0
  %872 = vmatpush1.bf16.msra.mxu0 %v731
  %873 = vmatprep.subr.bf16.mxu0 0
  %874 = vmatpush1.bf16.msra.mxu0 %v730
  %875 = vmatprep.subr.bf16.mxu0 0
  %876 = vmatpush1.bf16.msra.mxu0 %v729
  %877 = vmatprep.subr.bf16.mxu0 0
  %878 = vmatpush1.bf16.msra.mxu0 %v728
  %879 = vmatprep.subr.bf16.mxu0 0
  %880 = vmatpush1.bf16.msra.mxu0 %v727
  %881 = vmatprep.subr.bf16.mxu0 0
  %882 = vmatpush1.bf16.msra.mxu0 %v726
  %883 = vmatprep.subr.bf16.mxu0 0
  %884 = vmatpush1.bf16.msra.mxu0 %v725
  %885 = vmatprep.subr.bf16.mxu0 0
  %886 = vmatpush2.bf16.msra.mxu0 %v740
  %887 = vmatprep.subr.bf16.mxu0 0
  %888 = vmatpush2.bf16.msra.mxu0 %v739
  %889 = vmatprep.subr.bf16.mxu0 0
  %890 = vmatpush2.bf16.msra.mxu0 %v738
  %891 = vmatprep.subr.bf16.mxu0 0
  %892 = vmatpush2.bf16.msra.mxu0 %v737
  %893 = vmatprep.subr.bf16.mxu0 0
  %894 = vmatpush2.bf16.msra.mxu0 %v736
  %895 = vmatprep.subr.bf16.mxu0 0
  %896 = vmatpush2.bf16.msra.mxu0 %v735
  %897 = vmatprep.subr.bf16.mxu0 0
  %898 = vmatpush2.bf16.msra.mxu0 %v734
  %899 = vmatprep.subr.bf16.mxu0 0
  %900 = vmatpush2.bf16.msra.mxu0 %v733
  %901 = vmatprep.mubr.bf16.mxu0 %v366
  %902 = vmatmul.mubr.bf16.gmra.mxu0 %v365
  %v903 = vpop.f32.mrf.mxu0
  %v904 = vadd.f32 %v216, %v903
  %v905 = vpop.f32.mrf.mxu0
  %v906 = vpop.f32.mrf.mxu0
  %v907 = vadd.f32 %v221, %v906
  %v908 = vpop.f32.mrf.mxu0
  %909 = vmatprep.mubr.bf16.mxu0 %v375
  %910 = vmatmul.mubr.bf16.gmra.mxu0 %v374
  %v911 = vpop.f32.mrf.mxu0
  %v912 = vadd.f32 %v226, %v911
  %v913 = vpop.f32.mrf.mxu0
  %v914 = vpop.f32.mrf.mxu0
  %v915 = vadd.f32 %v231, %v914
  %v916 = vpop.f32.mrf.mxu0
  %917 = vmatprep.mubr.bf16.mxu0 %v384
  %918 = vmatmul.mubr.bf16.gmra.mxu0 %v383
  %v919 = vpop.f32.mrf.mxu0
  %v920 = vadd.f32 %v236, %v919
  %v921 = vpop.f32.mrf.mxu0
  %v922 = vpop.f32.mrf.mxu0
  %v923 = vadd.f32 %v241, %v922
  %v924 = vpop.f32.mrf.mxu0
  %925 = vmatprep.mubr.bf16.mxu0 %v393
  %926 = vmatmul.mubr.bf16.gmra.mxu0 %v392
  %v927 = vpop.f32.mrf.mxu0
  %v928 = vadd.f32 %v246, %v927
  %v929 = vpop.f32.mrf.mxu0
  %v930 = vpop.f32.mrf.mxu0
  %v931 = vadd.f32 %v251, %v930
  %v932 = vpop.f32.mrf.mxu0
  %933 = vdwg.mxu0
  %934 = vmatprep.subr.bf16.mxu0 0
  %935 = vmatpush1.bf16.msra.mxu0 %v748
  %936 = vmatprep.subr.bf16.mxu0 0
  %937 = vmatpush1.bf16.msra.mxu0 %v747
  %938 = vmatprep.subr.bf16.mxu0 0
  %939 = vmatpush1.bf16.msra.mxu0 %v746
  %940 = vmatprep.subr.bf16.mxu0 0
  %941 = vmatpush1.bf16.msra.mxu0 %v745
  %942 = vmatprep.subr.bf16.mxu0 0
  %943 = vmatpush1.bf16.msra.mxu0 %v744
  %944 = vmatprep.subr.bf16.mxu0 0
  %945 = vmatpush1.bf16.msra.mxu0 %v743
  %946 = vmatprep.subr.bf16.mxu0 0
  %947 = vmatpush1.bf16.msra.mxu0 %v742
  %948 = vmatprep.subr.bf16.mxu0 0
  %949 = vmatpush1.bf16.msra.mxu0 %v741
  %950 = vmatprep.subr.bf16.mxu0 0
  %951 = vmatpush2.bf16.msra.mxu0 %v756
  %952 = vmatprep.subr.bf16.mxu0 0
  %953 = vmatpush2.bf16.msra.mxu0 %v755
  %954 = vmatprep.subr.bf16.mxu0 0
  %955 = vmatpush2.bf16.msra.mxu0 %v754
  %956 = vmatprep.subr.bf16.mxu0 0
  %957 = vmatpush2.bf16.msra.mxu0 %v753
  %958 = vmatprep.subr.bf16.mxu0 0
  %959 = vmatpush2.bf16.msra.mxu0 %v752
  %960 = vmatprep.subr.bf16.mxu0 0
  %961 = vmatpush2.bf16.msra.mxu0 %v751
  %962 = vmatprep.subr.bf16.mxu0 0
  %963 = vmatpush2.bf16.msra.mxu0 %v750
  %964 = vmatprep.subr.bf16.mxu0 0
  %965 = vmatpush2.bf16.msra.mxu0 %v749
  %966 = vmatprep.mubr.bf16.mxu0 %v368
  %967 = vmatmul.mubr.bf16.gmra.mxu0 %v367
  %v968 = vpop.f32.mrf.mxu0
  %v969 = vadd.f32 %v904, %v968
  %v970 = vpop.f32.mrf.mxu0
  %v971 = vpop.f32.mrf.mxu0
  %v972 = vadd.f32 %v907, %v971
  %v973 = vpop.f32.mrf.mxu0
  %974 = vmatprep.mubr.bf16.mxu0 %v377
  %975 = vmatmul.mubr.bf16.gmra.mxu0 %v376
  %v976 = vpop.f32.mrf.mxu0
  %v977 = vadd.f32 %v912, %v976
  %v978 = vpop.f32.mrf.mxu0
  %v979 = vpop.f32.mrf.mxu0
  %v980 = vadd.f32 %v915, %v979
  %v981 = vpop.f32.mrf.mxu0
  %982 = vmatprep.mubr.bf16.mxu0 %v386
  %983 = vmatmul.mubr.bf16.gmra.mxu0 %v385
  %v984 = vpop.f32.mrf.mxu0
  %v985 = vadd.f32 %v920, %v984
  %v986 = vpop.f32.mrf.mxu0
  %v987 = vpop.f32.mrf.mxu0
  %v988 = vadd.f32 %v923, %v987
  %v989 = vpop.f32.mrf.mxu0
  %990 = vmatprep.mubr.bf16.mxu0 %v395
  %991 = vmatmul.mubr.bf16.gmra.mxu0 %v394
  %v992 = vpop.f32.mrf.mxu0
  %v993 = vadd.f32 %v928, %v992
  %v994 = vpop.f32.mrf.mxu0
  %v995 = vpop.f32.mrf.mxu0
  %v996 = vadd.f32 %v931, %v995
  %v997 = vpop.f32.mrf.mxu0
  %998 = vdwg.mxu0
  %999 = vmatprep.subr.bf16.mxu0 0
  %1000 = vmatpush1.bf16.msra.mxu0 %v764
  %1001 = vmatprep.subr.bf16.mxu0 0
  %1002 = vmatpush1.bf16.msra.mxu0 %v763
  %1003 = vmatprep.subr.bf16.mxu0 0
  %1004 = vmatpush1.bf16.msra.mxu0 %v762
  %1005 = vmatprep.subr.bf16.mxu0 0
  %1006 = vmatpush1.bf16.msra.mxu0 %v761
  %1007 = vmatprep.subr.bf16.mxu0 0
  %1008 = vmatpush1.bf16.msra.mxu0 %v760
  %1009 = vmatprep.subr.bf16.mxu0 0
  %1010 = vmatpush1.bf16.msra.mxu0 %v759
  %1011 = vmatprep.subr.bf16.mxu0 0
  %1012 = vmatpush1.bf16.msra.mxu0 %v758
  %1013 = vmatprep.subr.bf16.mxu0 0
  %1014 = vmatpush1.bf16.msra.mxu0 %v757
  %1015 = vmatprep.subr.bf16.mxu0 0
  %1016 = vmatpush2.bf16.msra.mxu0 %v772
  %1017 = vmatprep.subr.bf16.mxu0 0
  %1018 = vmatpush2.bf16.msra.mxu0 %v771
  %1019 = vmatprep.subr.bf16.mxu0 0
  %1020 = vmatpush2.bf16.msra.mxu0 %v770
  %1021 = vmatprep.subr.bf16.mxu0 0
  %1022 = vmatpush2.bf16.msra.mxu0 %v769
  %1023 = vmatprep.subr.bf16.mxu0 0
  %1024 = vmatpush2.bf16.msra.mxu0 %v768
  %1025 = vmatprep.subr.bf16.mxu0 0
  %1026 = vmatpush2.bf16.msra.mxu0 %v767
  %1027 = vmatprep.subr.bf16.mxu0 0
  %1028 = vmatpush2.bf16.msra.mxu0 %v766
  %1029 = vmatprep.subr.bf16.mxu0 0
  %1030 = vmatpush2.bf16.msra.mxu0 %v765
  %1031 = vmatprep.mubr.bf16.mxu0 %v370
  %1032 = vmatmul.mubr.bf16.gmra.mxu0 %v369
  %v1033 = vpop.f32.mrf.mxu0
  %v1034 = vadd.f32 %v969, %v1033
  %v1035 = vpop.f32.mrf.mxu0
  %v1036 = vpop.f32.mrf.mxu0
  %v1037 = vadd.f32 %v972, %v1036
  %v1038 = vpop.f32.mrf.mxu0
  %1039 = vmatprep.mubr.bf16.mxu0 %v379
  %1040 = vmatmul.mubr.bf16.gmra.mxu0 %v378
  %v1041 = vpop.f32.mrf.mxu0
  %v1042 = vadd.f32 %v977, %v1041
  %v1043 = vpop.f32.mrf.mxu0
  %v1044 = vpop.f32.mrf.mxu0
  %v1045 = vadd.f32 %v980, %v1044
  %v1046 = vpop.f32.mrf.mxu0
  %1047 = vmatprep.mubr.bf16.mxu0 %v388
  %1048 = vmatmul.mubr.bf16.gmra.mxu0 %v387
  %v1049 = vpop.f32.mrf.mxu0
  %v1050 = vadd.f32 %v985, %v1049
  %v1051 = vpop.f32.mrf.mxu0
  %v1052 = vpop.f32.mrf.mxu0
  %v1053 = vadd.f32 %v988, %v1052
  %v1054 = vpop.f32.mrf.mxu0
  %1055 = vmatprep.mubr.bf16.mxu0 %v397
  %1056 = vmatmul.mubr.bf16.gmra.mxu0 %v396
  %v1057 = vpop.f32.mrf.mxu0
  %v1058 = vadd.f32 %v993, %v1057
  %v1059 = vpop.f32.mrf.mxu0
  %v1060 = vpop.f32.mrf.mxu0
  %v1061 = vadd.f32 %v996, %v1060
  %v1062 = vpop.f32.mrf.mxu0
  %1063 = vdwg.mxu0
  %1064 = vmatprep.subr.bf16.mxu0 0
  %1065 = vmatpush1.bf16.msra.mxu0 %v780
  %1066 = vmatprep.subr.bf16.mxu0 0
  %1067 = vmatpush1.bf16.msra.mxu0 %v779
  %1068 = vmatprep.subr.bf16.mxu0 0
  %1069 = vmatpush1.bf16.msra.mxu0 %v778
  %1070 = vmatprep.subr.bf16.mxu0 0
  %1071 = vmatpush1.bf16.msra.mxu0 %v777
  %1072 = vmatprep.subr.bf16.mxu0 0
  %1073 = vmatpush1.bf16.msra.mxu0 %v776
  %1074 = vmatprep.subr.bf16.mxu0 0
  %1075 = vmatpush1.bf16.msra.mxu0 %v775
  %1076 = vmatprep.subr.bf16.mxu0 0
  %1077 = vmatpush1.bf16.msra.mxu0 %v774
  %1078 = vmatprep.subr.bf16.mxu0 0
  %1079 = vmatpush1.bf16.msra.mxu0 %v773
  %1080 = vmatprep.subr.bf16.mxu0 0
  %1081 = vmatpush2.bf16.msra.mxu0 %v788
  %1082 = vmatprep.subr.bf16.mxu0 0
  %1083 = vmatpush2.bf16.msra.mxu0 %v787
  %1084 = vmatprep.subr.bf16.mxu0 0
  %1085 = vmatpush2.bf16.msra.mxu0 %v786
  %1086 = vmatprep.subr.bf16.mxu0 0
  %1087 = vmatpush2.bf16.msra.mxu0 %v785
  %1088 = vmatprep.subr.bf16.mxu0 0
  %1089 = vmatpush2.bf16.msra.mxu0 %v784
  %1090 = vmatprep.subr.bf16.mxu0 0
  %1091 = vmatpush2.bf16.msra.mxu0 %v783
  %1092 = vmatprep.subr.bf16.mxu0 0
  %1093 = vmatpush2.bf16.msra.mxu0 %v782
  %1094 = vmatprep.subr.bf16.mxu0 0
  %1095 = vmatpush2.bf16.msra.mxu0 %v781
  %1096 = vmatprep.mubr.bf16.mxu0 %v372
  %1097 = vmatmul.mubr.bf16.gmra.mxu0 %v371
  %v1098 = vpop.f32.mrf.mxu0
  %v1099 = vadd.f32 %v1034, %v1098
  %v1100 = vpop.f32.mrf.mxu0
  %v1101 = vpop.f32.mrf.mxu0
  %v1102 = vadd.f32 %v1037, %v1101
  %v1103 = vpop.f32.mrf.mxu0
  %1104 = vmatprep.mubr.bf16.mxu0 %v381
  %1105 = vmatmul.mubr.bf16.gmra.mxu0 %v380
  %v1106 = vpop.f32.mrf.mxu0
  %v1107 = vadd.f32 %v1042, %v1106
  %v1108 = vpop.f32.mrf.mxu0
  %v1109 = vpop.f32.mrf.mxu0
  %v1110 = vadd.f32 %v1045, %v1109
  %v1111 = vpop.f32.mrf.mxu0
  %1112 = vmatprep.mubr.bf16.mxu0 %v390
  %1113 = vmatmul.mubr.bf16.gmra.mxu0 %v389
  %v1114 = vpop.f32.mrf.mxu0
  %v1115 = vadd.f32 %v1050, %v1114
  %v1116 = vpop.f32.mrf.mxu0
  %v1117 = vpop.f32.mrf.mxu0
  %v1118 = vadd.f32 %v1053, %v1117
  %v1119 = vpop.f32.mrf.mxu0
  %1120 = vmatprep.mubr.bf16.mxu0 %v399
  %1121 = vmatmul.mubr.bf16.gmra.mxu0 %v398
  %v1122 = vpop.f32.mrf.mxu0
  %v1123 = vadd.f32 %v1058, %v1122
  %v1124 = vpop.f32.mrf.mxu0
  %v1125 = vpop.f32.mrf.mxu0
  %v1126 = vadd.f32 %v1061, %v1125
  %v1127 = vpop.f32.mrf.mxu0
  %1128 = vdwg.mxu0
  %1129 = vmatprep.subr.bf16.mxu0 0
  %1130 = vmatpush1.bf16.msra.mxu0 %v796
  %1131 = vmatprep.subr.bf16.mxu0 0
  %1132 = vmatpush1.bf16.msra.mxu0 %v795
  %1133 = vmatprep.subr.bf16.mxu0 0
  %1134 = vmatpush1.bf16.msra.mxu0 %v794
  %1135 = vmatprep.subr.bf16.mxu0 0
  %1136 = vmatpush1.bf16.msra.mxu0 %v793
  %1137 = vmatprep.subr.bf16.mxu0 0
  %1138 = vmatpush1.bf16.msra.mxu0 %v792
  %1139 = vmatprep.subr.bf16.mxu0 0
  %1140 = vmatpush1.bf16.msra.mxu0 %v791
  %1141 = vmatprep.subr.bf16.mxu0 0
  %1142 = vmatpush1.bf16.msra.mxu0 %v790
  %1143 = vmatprep.subr.bf16.mxu0 0
  %1144 = vmatpush1.bf16.msra.mxu0 %v789
  %1145 = vmatprep.subr.bf16.mxu0 0
  %1146 = vmatpush2.bf16.msra.mxu0 0
  %1147 = vmatprep.subr.bf16.mxu0 0
  %1148 = vmatpush2.bf16.msra.mxu0 0
  %1149 = vmatprep.subr.bf16.mxu0 0
  %1150 = vmatpush2.bf16.msra.mxu0 0
  %1151 = vmatprep.subr.bf16.mxu0 0
  %1152 = vmatpush2.bf16.msra.mxu0 0
  %1153 = vmatprep.subr.bf16.mxu0 0
  %1154 = vmatpush2.bf16.msra.mxu0 0
  %1155 = vmatprep.subr.bf16.mxu0 0
  %1156 = vmatpush2.bf16.msra.mxu0 0
  %1157 = vmatprep.subr.bf16.mxu0 0
  %1158 = vmatpush2.bf16.msra.mxu0 0
  %1159 = vmatprep.subr.bf16.mxu0 0
  %1160 = vmatpush2.bf16.msra.mxu0 0
  %1161 = vmatprep.mubr.bf16.mxu0 0
  %1162 = vmatmul.mubr.bf16.gmra.mxu0 %v373
  %v1163 = vpop.f32.mrf.mxu0
  %v1164 = vadd.f32 %v1099, %v1163
  %v1165 = vpop.f32.mrf.mxu0
  %v1166 = vpop.f32.mrf.mxu0
  %v1167 = vadd.f32 %v1102, %v1166
  %v1168 = vpop.f32.mrf.mxu0
  %1169 = vmatprep.mubr.bf16.mxu0 0
  %1170 = vmatmul.mubr.bf16.gmra.mxu0 %v382
  %v1171 = vpop.f32.mrf.mxu0
  %v1172 = vadd.f32 %v1107, %v1171
  %v1173 = vpop.f32.mrf.mxu0
  %v1174 = vpop.f32.mrf.mxu0
  %v1175 = vadd.f32 %v1110, %v1174
  %v1176 = vpop.f32.mrf.mxu0
  %1177 = vmatprep.mubr.bf16.mxu0 0
  %1178 = vmatmul.mubr.bf16.gmra.mxu0 %v391
  %v1179 = vpop.f32.mrf.mxu0
  %v1180 = vadd.f32 %v1115, %v1179
  %v1181 = vpop.f32.mrf.mxu0
  %v1182 = vpop.f32.mrf.mxu0
  %v1183 = vadd.f32 %v1118, %v1182
  %v1184 = vpop.f32.mrf.mxu0
  %1185 = vmatprep.mubr.bf16.mxu0 0
  %1186 = vmatmul.mubr.bf16.gmra.mxu0 %v400
  %v1187 = vpop.f32.mrf.mxu0
  %v1188 = vadd.f32 %v1123, %v1187
  %v1189 = vpop.f32.mrf.mxu0
  %v1190 = vpop.f32.mrf.mxu0
  %v1191 = vadd.f32 %v1126, %v1190
  %v1192 = vpop.f32.mrf.mxu0
  %1193 = vdwg.mxu0
  %v1194 = vlaneseq
  %v1195 = vand.u32 %v1194, 127
  %vm1196 = vcmp.lt.s32.totalorder %v1195, 98
  %v1197 = vsel %vm1196, %v1164, 0.0
  %v1198 = vsel %vm1196, %v1167, 0.0
  %v1199 = vsel %vm1196, %v1172, 0.0
  %v1200 = vsel %vm1196, %v1175, 0.0
  %v1201 = vsel %vm1196, %v1180, 0.0
  %v1202 = vsel %vm1196, %v1183, 0.0
  %v1203 = vsel %vm1196, %v1188, 0.0
  %v1204 = vsel %vm1196, %v1191, 0.0
  %1205 = vadd.xlane.f32.xlu0 %v1197
  %v1206 = vpop.xlane.xlu0 %1205
  %1207 = vadd.xlane.f32.xlu0 %v1198
  %v1208 = vpop.xlane.xlu0 %1207
  %1209 = vadd.xlane.f32.xlu0 %v1199
  %v1210 = vpop.xlane.xlu0 %1209
  %1211 = vadd.xlane.f32.xlu0 %v1200
  %v1212 = vpop.xlane.xlu0 %1211
  %1213 = vadd.xlane.f32.xlu0 %v1201
  %v1214 = vpop.xlane.xlu0 %1213
  %1215 = vadd.xlane.f32.xlu0 %v1202
  %v1216 = vpop.xlane.xlu0 %1215
  %1217 = vadd.xlane.f32.xlu0 %v1203
  %v1218 = vpop.xlane.xlu0 %1217
  %1219 = vadd.xlane.f32.xlu0 %v1204
  %v1220 = vpop.xlane.xlu0 %1219
  %v1221 = vmul.f32 %v1206, 0.010204081
  %v1222 = vmul.f32 %v1208, 0.010204081
  %v1223 = vmul.f32 %v1210, 0.010204081
  %v1224 = vmul.f32 %v1212, 0.010204081
  %v1225 = vmul.f32 %v1214, 0.010204081
  %v1226 = vmul.f32 %v1216, 0.010204081
  %v1227 = vmul.f32 %v1218, 0.010204081
  %v1228 = vmul.f32 %v1220, 0.010204081
  %v1229 = vmul.f32 %v1197, %v1197
  %v1230 = vmul.f32 %v1198, %v1198
  %v1231 = vmul.f32 %v1199, %v1199
  %v1232 = vmul.f32 %v1200, %v1200
  %v1233 = vmul.f32 %v1201, %v1201
  %v1234 = vmul.f32 %v1202, %v1202
  %v1235 = vmul.f32 %v1203, %v1203
  %v1236 = vmul.f32 %v1204, %v1204
  %1237 = vadd.xlane.f32.xlu0 %v1229
  %v1238 = vpop.xlane.xlu0 %1237
  %1239 = vadd.xlane.f32.xlu0 %v1230
  %v1240 = vpop.xlane.xlu0 %1239
  %1241 = vadd.xlane.f32.xlu0 %v1231
  %v1242 = vpop.xlane.xlu0 %1241
  %1243 = vadd.xlane.f32.xlu0 %v1232
  %v1244 = vpop.xlane.xlu0 %1243
  %1245 = vadd.xlane.f32.xlu0 %v1233
  %v1246 = vpop.xlane.xlu0 %1245
  %1247 = vadd.xlane.f32.xlu0 %v1234
  %v1248 = vpop.xlane.xlu0 %1247
  %1249 = vadd.xlane.f32.xlu0 %v1235
  %v1250 = vpop.xlane.xlu0 %1249
  %1251 = vadd.xlane.f32.xlu0 %v1236
  %v1252 = vpop.xlane.xlu0 %1251
  %v1253 = vmul.f32 %v1238, 0.010204081
  %v1254 = vmul.f32 %v1240, 0.010204081
  %v1255 = vmul.f32 %v1242, 0.010204081
  %v1256 = vmul.f32 %v1244, 0.010204081
  %v1257 = vmul.f32 %v1246, 0.010204081
  %v1258 = vmul.f32 %v1248, 0.010204081
  %v1259 = vmul.f32 %v1250, 0.010204081
  %v1260 = vmul.f32 %v1252, 0.010204081
  %v1261 = vmul.f32 %v1221, %v1221
  %v1262 = vmul.f32 %v1222, %v1222
  %v1263 = vmul.f32 %v1223, %v1223
  %v1264 = vmul.f32 %v1224, %v1224
  %v1265 = vmul.f32 %v1225, %v1225
  %v1266 = vmul.f32 %v1226, %v1226
  %v1267 = vmul.f32 %v1227, %v1227
  %v1268 = vmul.f32 %v1228, %v1228
  %v1269 = vsub.f32 %v1253, %v1261
  %v1270 = vsub.f32 %v1254, %v1262
  %v1271 = vsub.f32 %v1255, %v1263
  %v1272 = vsub.f32 %v1256, %v1264
  %v1273 = vsub.f32 %v1257, %v1265
  %v1274 = vsub.f32 %v1258, %v1266
  %v1275 = vsub.f32 %v1259, %v1267
  %v1276 = vsub.f32 %v1260, %v1268
  %v1277 = vsub.f32 %v1164, %v1221
  %v1278 = vsub.f32 %v1167, %v1222
  %v1279 = vsub.f32 %v1172, %v1223
  %v1280 = vsub.f32 %v1175, %v1224
  %v1281 = vsub.f32 %v1180, %v1225
  %v1282 = vsub.f32 %v1183, %v1226
  %v1283 = vsub.f32 %v1188, %v1227
  %v1284 = vsub.f32 %v1191, %v1228
  %v1285 = vadd.f32 %v1269, 1e-05
  %v1286 = vadd.f32 %v1270, 1e-05
  %v1287 = vadd.f32 %v1271, 1e-05
  %v1288 = vadd.f32 %v1272, 1e-05
  %v1289 = vadd.f32 %v1273, 1e-05
  %v1290 = vadd.f32 %v1274, 1e-05
  %v1291 = vadd.f32 %v1275, 1e-05
  %v1292 = vadd.f32 %v1276, 1e-05
  %v1293 = vrsqrt.pop %v1285
  %v1294 = vrsqrt.pop %v1286
  %v1295 = vrsqrt.pop %v1287
  %v1296 = vrsqrt.pop %v1288
  %v1297 = vrsqrt.pop %v1289
  %v1298 = vrsqrt.pop %v1290
  %v1299 = vrsqrt.pop %v1291
  %v1300 = vrsqrt.pop %v1292
  %v1301 = vmul.f32 %v1277, %v1293
  %v1302 = vmul.f32 %v1278, %v1294
  %v1303 = vmul.f32 %v1279, %v1295
  %v1304 = vmul.f32 %v1280, %v1296
  %v1305 = vmul.f32 %v1281, %v1297
  %v1306 = vmul.f32 %v1282, %v1298
  %v1307 = vmul.f32 %v1283, %v1299
  %v1308 = vmul.f32 %v1284, %v1300
  %v1309 = vld [vmem:[%s3] sm:$0xff]
  %v1310 = vld [vmem:[%s3 + $0x8] sm:$0xff]
  %v1311 = vld [vmem:[%s3 + $0x10] sm:$0xff]
  %v1312 = vld [vmem:[%s3 + $0x18] sm:$0xff]
  %v1313 = vld [vmem:[%s3 + $0x20] sm:$0xff]
  %v1314 = vld [vmem:[%s3 + $0x28] sm:$0xff]
  %v1315 = vld [vmem:[%s3 + $0x30] sm:$0xff]
  %v1316 = vld [vmem:[%s3 + $0x38] sm:$0xff]
  %1318 = vset.pattern.permute.xlu0 0
  %1319 = vperm.xlu0 %1318, %v1309
  %v1320 = vpop.permute.xlu0 %1319
  %1323 = vset.pattern.permute.xlu0 0
  %1324 = vperm.xlu0 %1323, %v1310
  %v1325 = vpop.permute.xlu0 %1324
  %1328 = vset.pattern.permute.xlu0 0
  %1329 = vperm.xlu0 %1328, %v1311
  %v1330 = vpop.permute.xlu0 %1329
  %1333 = vset.pattern.permute.xlu0 0
  %1334 = vperm.xlu0 %1333, %v1312
  %v1335 = vpop.permute.xlu0 %1334
  %1338 = vset.pattern.permute.xlu0 0
  %1339 = vperm.xlu0 %1338, %v1313
  %v1340 = vpop.permute.xlu0 %1339
  %1343 = vset.pattern.permute.xlu0 0
  %1344 = vperm.xlu0 %1343, %v1314
  %v1345 = vpop.permute.xlu0 %1344
  %1348 = vset.pattern.permute.xlu0 0
  %1349 = vperm.xlu0 %1348, %v1315
  %v1350 = vpop.permute.xlu0 %1349
  %1353 = vset.pattern.permute.xlu0 0
  %1354 = vperm.xlu0 %1353, %v1316
  %v1355 = vpop.permute.xlu0 %1354
  %v1357 = vmul.f32 %v1301, %v1320
  %v1358 = vmul.f32 %v1302, %v1325
  %v1359 = vmul.f32 %v1303, %v1330
  %v1360 = vmul.f32 %v1304, %v1335
  %v1361 = vmul.f32 %v1305, %v1340
  %v1362 = vmul.f32 %v1306, %v1345
  %v1363 = vmul.f32 %v1307, %v1350
  %v1364 = vmul.f32 %v1308, %v1355
  %v1365 = vld [vmem:[%s4] sm:$0xff]
  %v1366 = vld [vmem:[%s4 + $0x8] sm:$0xff]
  %v1367 = vld [vmem:[%s4 + $0x10] sm:$0xff]
  %v1368 = vld [vmem:[%s4 + $0x18] sm:$0xff]
  %v1369 = vld [vmem:[%s4 + $0x20] sm:$0xff]
  %v1370 = vld [vmem:[%s4 + $0x28] sm:$0xff]
  %v1371 = vld [vmem:[%s4 + $0x30] sm:$0xff]
  %v1372 = vld [vmem:[%s4 + $0x38] sm:$0xff]
  %1374 = vset.pattern.permute.xlu0 0
  %1375 = vperm.xlu0 %1374, %v1365
  %v1376 = vpop.permute.xlu0 %1375
  %1379 = vset.pattern.permute.xlu0 0
  %1380 = vperm.xlu0 %1379, %v1366
  %v1381 = vpop.permute.xlu0 %1380
  %1384 = vset.pattern.permute.xlu0 0
  %1385 = vperm.xlu0 %1384, %v1367
  %v1386 = vpop.permute.xlu0 %1385
  %1389 = vset.pattern.permute.xlu0 0
  %1390 = vperm.xlu0 %1389, %v1368
  %v1391 = vpop.permute.xlu0 %1390
  %1394 = vset.pattern.permute.xlu0 0
  %1395 = vperm.xlu0 %1394, %v1369
  %v1396 = vpop.permute.xlu0 %1395
  %1399 = vset.pattern.permute.xlu0 0
  %1400 = vperm.xlu0 %1399, %v1370
  %v1401 = vpop.permute.xlu0 %1400
  %1404 = vset.pattern.permute.xlu0 0
  %1405 = vperm.xlu0 %1404, %v1371
  %v1406 = vpop.permute.xlu0 %1405
  %1409 = vset.pattern.permute.xlu0 0
  %1410 = vperm.xlu0 %1409, %v1372
  %v1411 = vpop.permute.xlu0 %1410
  %v1413 = vadd.f32 %v1357, %v1376
  %v1414 = vadd.f32 %v1358, %v1381
  %v1415 = vadd.f32 %v1359, %v1386
  %v1416 = vadd.f32 %v1360, %v1391
  %v1417 = vadd.f32 %v1361, %v1396
  %v1418 = vadd.f32 %v1362, %v1401
  %v1419 = vadd.f32 %v1363, %v1406
  %v1420 = vadd.f32 %v1364, %v1411
  %v1421 = vmax.f32 %v1413, 0.0
  %v1422 = vmax.f32 %v1414, 0.0
  %v1423 = vmax.f32 %v1415, 0.0
  %v1424 = vmax.f32 %v1416, 0.0
  %v1425 = vmax.f32 %v1417, 0.0
  %v1426 = vmax.f32 %v1418, 0.0
  %v1427 = vmax.f32 %v1419, 0.0
  %v1428 = vmax.f32 %v1420, 0.0
  %v1429 = vpack.c.bf16 %v1422, %v1421
  %v1430 = vpack.c.bf16 %v1424, %v1423
  %v1431 = vpack.c.bf16 %v1426, %v1425
  %v1432 = vpack.c.bf16 %v1428, %v1427
  %v1437 = vunpack.c.l.b16 %v1429
  %v1438 = vunpack.c.h.b16 %v1429
  %v1439 = vunpack.c.l.b16 %v1430
  %v1440 = vunpack.c.h.b16 %v1430
  %v1441 = vunpack.c.l.b16 %v1431
  %v1442 = vunpack.c.h.b16 %v1431
  %v1443 = vunpack.c.l.b16 %v1432
  %v1444 = vunpack.c.h.b16 %v1432
  %v1445 = vpack.c.b16 %v1437, %v1437
  %v1446 = vpack.c.b16 %v1438, %v1438
  %v1447 = vpack.c.b16 %v1439, %v1439
  %v1448 = vpack.c.b16 %v1440, %v1440
  %v1449 = vpack.c.b16 %v1441, %v1441
  %v1450 = vpack.c.b16 %v1442, %v1442
  %v1451 = vpack.c.b16 %v1443, %v1443
  %v1452 = vpack.c.b16 %v1444, %v1444
  %1461 = vst [vmem:[%s5] sm:$0xf] %v1445
  %1462 = vst [vmem:[%s5 + $0x4] sm:$0xf] %v1446
  %1463 = vst [vmem:[%s5 + $0x8] sm:$0xf] %v1447
  %1464 = vst [vmem:[%s5 + $0xc] sm:$0xf] %v1448
  %1465 = vst [vmem:[%s5 + $0x10] sm:$0xf] %v1449
  %1466 = vst [vmem:[%s5 + $0x14] sm:$0xf] %v1450
  %1467 = vst [vmem:[%s5 + $0x18] sm:$0xf] %v1451
  %1468 = vst [vmem:[%s5 + $0x1c] sm:$0xf] %v1452
  // Predicated region
  $region22: #{a_call__.6} parent=0 // pred_check
    _
  $region23: #{a_call__.6} parent=0 // pred_check_branch
    %1470 = sbr.rel (0) target = $region25
  $region24: #{a_call__.6} parent=0 // pred_region
    _
  $region25: #{a_call__.6} parent=0 // pred_fallthru
    _
  // Predicated region
  $region26: #{a_call__.6} parent=0 // pred_check
    _
  $region27: #{a_call__.6} parent=0 // pred_check_branch
    %1472 = sbr.rel (0) target = $region29
  $region28: #{a_call__.6} parent=0 // pred_region
    _
  $region29: #{a_call__.6} parent=0 // pred_fallthru
    _

// kernel: a_call__.7
$region0: #{a_call__.7}
  #allocation0 [shape = 'u32[]', space=smem, size = 0x4, offset = 0x4, fixed_abs, tag = 'smem constant byte address 0x4 - core index']
  #allocation1 [shape = 'u32[144,128]{1,0:T(1,128)}', space=vmem, size = 0x12000, scoped, tag = 'internal scratch']
  %s0 = inlined_call_operand.vmem [shape: bf16[32,576], index: 0, kind: input, shape index: {}]
  %s1 = inlined_call_operand.vmem [shape: bf16[576,512], index: 1, kind: input, shape index: {}]
  %s2 = inlined_call_operand.vmem [shape: f32[32,1], index: 2, kind: input, shape index: {}]
  %s3 = inlined_call_operand.vmem [shape: f32[32,1], index: 3, kind: input, shape index: {}]
  %s4 = inlined_call_operand.vmem [shape: f32[32,1], index: 4, kind: input, shape index: {}]
  %s5 = inlined_call_operand.vmem [shape: bf16[32,512], index: 5, kind: output, shape index: {}]
  %s6 = sld [smem:[#allocation0]]
  $region30: #{a_call__.7} parent=0
    _
  %s8 = ssub.s32 1, %s6
  %s9 = scalar_select 0, %s8, %s6
  // Predicated region
  $region2: #{a_call__.7} parent=0 // pred_check
    _
  $region3: #{a_call__.7} parent=0 // pred_check_branch
    %11 = sbr.rel (0) target = $region5
  $region4: #{a_call__.7} parent=0 // pred_region
    _
  $region5: #{a_call__.7} parent=0 // pred_fallthru
    _
  // Predicated region
  $region6: #{a_call__.7} parent=0 // pred_check
    _
  $region7: #{a_call__.7} parent=0 // pred_check_branch
    %13 = sbr.rel (0) target = $region9
  $region8: #{a_call__.7} parent=0 // pred_region
    _
  $region9: #{a_call__.7} parent=0 // pred_fallthru
    _
  // Predicated region
  $region10: #{a_call__.7} parent=0 // pred_check
    _
  $region11: #{a_call__.7} parent=0 // pred_check_branch
    %15 = sbr.rel (0) target = $region13
  $region12: #{a_call__.7} parent=0 // pred_region
    _
  $region13: #{a_call__.7} parent=0 // pred_fallthru
    _
  // Predicated region
  $region14: #{a_call__.7} parent=0 // pred_check
    _
  $region15: #{a_call__.7} parent=0 // pred_check_branch
    %17 = sbr.rel (0) target = $region17
  $region16: #{a_call__.7} parent=0 // pred_region
    _
  $region17: #{a_call__.7} parent=0 // pred_fallthru
    _
  // Predicated region
  $region18: #{a_call__.7} parent=0 // pred_check
    _
  $region19: #{a_call__.7} parent=0 // pred_check_branch
    %19 = sbr.rel (0) target = $region21
  $region20: #{a_call__.7} parent=0 // pred_region
    _
  $region21: #{a_call__.7} parent=0 // pred_fallthru
    _
  %v21 = vld [vmem:[%s0] sm:$0xff]
  %v22 = vld [vmem:[%s0 + $0x8] sm:$0xff]
  %v23 = vld [vmem:[%s0 + $0x10] sm:$0xf]
  %v24 = vld [vmem:[%s0 + $0x14] sm:$0xff]
  %v25 = vld [vmem:[%s0 + $0x1c] sm:$0xff]
  %v26 = vld [vmem:[%s0 + $0x24] sm:$0xf]
  %v27 = vld [vmem:[%s0 + $0x28] sm:$0xff]
  %v28 = vld [vmem:[%s0 + $0x30] sm:$0xff]
  %v29 = vld [vmem:[%s0 + $0x38] sm:$0xf]
  %v30 = vld [vmem:[%s0 + $0x3c] sm:$0xff]
  %v31 = vld [vmem:[%s0 + $0x44] sm:$0xff]
  %v32 = vld [vmem:[%s0 + $0x4c] sm:$0xf]
  %v33 = vld [vmem:[%s1] sm:$0xff]
  %v34 = vld [vmem:[%s1 + $0x8] sm:$0xff]
  %v35 = vld [vmem:[%s1 + $0x10] sm:$0xff]
  %v36 = vld [vmem:[%s1 + $0x18] sm:$0xff]
  %v37 = vld [vmem:[%s1 + $0x20] sm:$0xff]
  %v38 = vld [vmem:[%s1 + $0x28] sm:$0xff]
  %v39 = vld [vmem:[%s1 + $0x30] sm:$0xff]
  %v40 = vld [vmem:[%s1 + $0x38] sm:$0xff]
  %v41 = vld [vmem:[%s1 + $0x40] sm:$0xff]
  %v42 = vld [vmem:[%s1 + $0x48] sm:$0xff]
  %v43 = vld [vmem:[%s1 + $0x50] sm:$0xff]
  %v44 = vld [vmem:[%s1 + $0x58] sm:$0xff]
  %v45 = vld [vmem:[%s1 + $0x60] sm:$0xff]
  %v46 = vld [vmem:[%s1 + $0x68] sm:$0xff]
  %v47 = vld [vmem:[%s1 + $0x70] sm:$0xff]
  %v48 = vld [vmem:[%s1 + $0x78] sm:$0xff]
  %v49 = vld [vmem:[%s1 + $0x80] sm:$0xff]
  %v50 = vld [vmem:[%s1 + $0x88] sm:$0xff]
  %v51 = vld [vmem:[%s1 + $0x90] sm:$0xff]
  %v52 = vld [vmem:[%s1 + $0x98] sm:$0xff]
  %v53 = vld [vmem:[%s1 + $0xa0] sm:$0xff]
  %v54 = vld [vmem:[%s1 + $0xa8] sm:$0xff]
  %v55 = vld [vmem:[%s1 + $0xb0] sm:$0xff]
  %v56 = vld [vmem:[%s1 + $0xb8] sm:$0xff]
  %v57 = vld [vmem:[%s1 + $0xc0] sm:$0xff]
  %v58 = vld [vmem:[%s1 + $0xc8] sm:$0xff]
  %v59 = vld [vmem:[%s1 + $0xd0] sm:$0xff]
  %v60 = vld [vmem:[%s1 + $0xd8] sm:$0xff]
  %v61 = vld [vmem:[%s1 + $0xe0] sm:$0xff]
  %v62 = vld [vmem:[%s1 + $0xe8] sm:$0xff]
  %v63 = vld [vmem:[%s1 + $0xf0] sm:$0xff]
  %v64 = vld [vmem:[%s1 + $0xf8] sm:$0xff]
  %v65 = vld [vmem:[%s1 + $0x100] sm:$0xff]
  %v66 = vld [vmem:[%s1 + $0x108] sm:$0xff]
  %v67 = vld [vmem:[%s1 + $0x110] sm:$0xff]
  %v68 = vld [vmem:[%s1 + $0x118] sm:$0xff]
  %v69 = vld [vmem:[%s1 + $0x120] sm:$0xff]
  %v70 = vld [vmem:[%s1 + $0x128] sm:$0xff]
  %v71 = vld [vmem:[%s1 + $0x130] sm:$0xff]
  %v72 = vld [vmem:[%s1 + $0x138] sm:$0xff]
  %v73 = vld [vmem:[%s1 + $0x140] sm:$0xff]
  %v74 = vld [vmem:[%s1 + $0x148] sm:$0xff]
  %v75 = vld [vmem:[%s1 + $0x150] sm:$0xff]
  %v76 = vld [vmem:[%s1 + $0x158] sm:$0xff]
  %v77 = vld [vmem:[%s1 + $0x160] sm:$0xff]
  %v78 = vld [vmem:[%s1 + $0x168] sm:$0xff]
  %v79 = vld [vmem:[%s1 + $0x170] sm:$0xff]
  %v80 = vld [vmem:[%s1 + $0x178] sm:$0xff]
  %v81 = vld [vmem:[%s1 + $0x180] sm:$0xff]
  %v82 = vld [vmem:[%s1 + $0x188] sm:$0xff]
  %v83 = vld [vmem:[%s1 + $0x190] sm:$0xff]
  %v84 = vld [vmem:[%s1 + $0x198] sm:$0xff]
  %v85 = vld [vmem:[%s1 + $0x1a0] sm:$0xff]
  %v86 = vld [vmem:[%s1 + $0x1a8] sm:$0xff]
  %v87 = vld [vmem:[%s1 + $0x1b0] sm:$0xff]
  %v88 = vld [vmem:[%s1 + $0x1b8] sm:$0xff]
  %v89 = vld [vmem:[%s1 + $0x1c0] sm:$0xff]
  %v90 = vld [vmem:[%s1 + $0x1c8] sm:$0xff]
  %v91 = vld [vmem:[%s1 + $0x1d0] sm:$0xff]
  %v92 = vld [vmem:[%s1 + $0x1d8] sm:$0xff]
  %v93 = vld [vmem:[%s1 + $0x1e0] sm:$0xff]
  %v94 = vld [vmem:[%s1 + $0x1e8] sm:$0xff]
  %v95 = vld [vmem:[%s1 + $0x1f0] sm:$0xff]
  %v96 = vld [vmem:[%s1 + $0x1f8] sm:$0xff]
  %v97 = vld [vmem:[%s1 + $0x200] sm:$0xff]
  %v98 = vld [vmem:[%s1 + $0x208] sm:$0xff]
  %v99 = vld [vmem:[%s1 + $0x210] sm:$0xff]
  %v100 = vld [vmem:[%s1 + $0x218] sm:$0xff]
  %v101 = vld [vmem:[%s1 + $0x220] sm:$0xff]
  %v102 = vld [vmem:[%s1 + $0x228] sm:$0xff]
  %v103 = vld [vmem:[%s1 + $0x230] sm:$0xff]
  %v104 = vld [vmem:[%s1 + $0x238] sm:$0xff]
  %v105 = vld [vmem:[%s1 + $0x240] sm:$0xff]
  %v106 = vld [vmem:[%s1 + $0x248] sm:$0xff]
  %v107 = vld [vmem:[%s1 + $0x250] sm:$0xff]
  %v108 = vld [vmem:[%s1 + $0x258] sm:$0xff]
  %v109 = vld [vmem:[%s1 + $0x260] sm:$0xff]
  %v110 = vld [vmem:[%s1 + $0x268] sm:$0xff]
  %v111 = vld [vmem:[%s1 + $0x270] sm:$0xff]
  %v112 = vld [vmem:[%s1 + $0x278] sm:$0xff]
  %v113 = vld [vmem:[%s1 + $0x280] sm:$0xff]
  %v114 = vld [vmem:[%s1 + $0x288] sm:$0xff]
  %v115 = vld [vmem:[%s1 + $0x290] sm:$0xff]
  %v116 = vld [vmem:[%s1 + $0x298] sm:$0xff]
  %v117 = vld [vmem:[%s1 + $0x2a0] sm:$0xff]
  %v118 = vld [vmem:[%s1 + $0x2a8] sm:$0xff]
  %v119 = vld [vmem:[%s1 + $0x2b0] sm:$0xff]
  %v120 = vld [vmem:[%s1 + $0x2b8] sm:$0xff]
  %v121 = vld [vmem:[%s1 + $0x2c0] sm:$0xff]
  %v122 = vld [vmem:[%s1 + $0x2c8] sm:$0xff]
  %v123 = vld [vmem:[%s1 + $0x2d0] sm:$0xff]
  %v124 = vld [vmem:[%s1 + $0x2d8] sm:$0xff]
  %v125 = vld [vmem:[%s1 + $0x2e0] sm:$0xff]
  %v126 = vld [vmem:[%s1 + $0x2e8] sm:$0xff]
  %v127 = vld [vmem:[%s1 + $0x2f0] sm:$0xff]
  %v128 = vld [vmem:[%s1 + $0x2f8] sm:$0xff]
  %v129 = vld [vmem:[%s1 + $0x300] sm:$0xff]
  %v130 = vld [vmem:[%s1 + $0x308] sm:$0xff]
  %v131 = vld [vmem:[%s1 + $0x310] sm:$0xff]
  %v132 = vld [vmem:[%s1 + $0x318] sm:$0xff]
  %v133 = vld [vmem:[%s1 + $0x320] sm:$0xff]
  %v134 = vld [vmem:[%s1 + $0x328] sm:$0xff]
  %v135 = vld [vmem:[%s1 + $0x330] sm:$0xff]
  %v136 = vld [vmem:[%s1 + $0x338] sm:$0xff]
  %v137 = vld [vmem:[%s1 + $0x340] sm:$0xff]
  %v138 = vld [vmem:[%s1 + $0x348] sm:$0xff]
  %v139 = vld [vmem:[%s1 + $0x350] sm:$0xff]
  %v140 = vld [vmem:[%s1 + $0x358] sm:$0xff]
  %v141 = vld [vmem:[%s1 + $0x360] sm:$0xff]
  %v142 = vld [vmem:[%s1 + $0x368] sm:$0xff]
  %v143 = vld [vmem:[%s1 + $0x370] sm:$0xff]
  %v144 = vld [vmem:[%s1 + $0x378] sm:$0xff]
  %v145 = vld [vmem:[%s1 + $0x380] sm:$0xff]
  %v146 = vld [vmem:[%s1 + $0x388] sm:$0xff]
  %v147 = vld [vmem:[%s1 + $0x390] sm:$0xff]
  %v148 = vld [vmem:[%s1 + $0x398] sm:$0xff]
  %v149 = vld [vmem:[%s1 + $0x3a0] sm:$0xff]
  %v150 = vld [vmem:[%s1 + $0x3a8] sm:$0xff]
  %v151 = vld [vmem:[%s1 + $0x3b0] sm:$0xff]
  %v152 = vld [vmem:[%s1 + $0x3b8] sm:$0xff]
  %v153 = vld [vmem:[%s1 + $0x3c0] sm:$0xff]
  %v154 = vld [vmem:[%s1 + $0x3c8] sm:$0xff]
  %v155 = vld [vmem:[%s1 + $0x3d0] sm:$0xff]
  %v156 = vld [vmem:[%s1 + $0x3d8] sm:$0xff]
  %v157 = vld [vmem:[%s1 + $0x3e0] sm:$0xff]
  %v158 = vld [vmem:[%s1 + $0x3e8] sm:$0xff]
  %v159 = vld [vmem:[%s1 + $0x3f0] sm:$0xff]
  %v160 = vld [vmem:[%s1 + $0x3f8] sm:$0xff]
  %v161 = vld [vmem:[%s1 + $0x400] sm:$0xff]
  %v162 = vld [vmem:[%s1 + $0x408] sm:$0xff]
  %v163 = vld [vmem:[%s1 + $0x410] sm:$0xff]
  %v164 = vld [vmem:[%s1 + $0x418] sm:$0xff]
  %v165 = vld [vmem:[%s1 + $0x420] sm:$0xff]
  %v166 = vld [vmem:[%s1 + $0x428] sm:$0xff]
  %v167 = vld [vmem:[%s1 + $0x430] sm:$0xff]
  %v168 = vld [vmem:[%s1 + $0x438] sm:$0xff]
  %v169 = vld [vmem:[%s1 + $0x440] sm:$0xff]
  %v170 = vld [vmem:[%s1 + $0x448] sm:$0xff]
  %v171 = vld [vmem:[%s1 + $0x450] sm:$0xff]
  %v172 = vld [vmem:[%s1 + $0x458] sm:$0xff]
  %v173 = vld [vmem:[%s1 + $0x460] sm:$0xff]
  %v174 = vld [vmem:[%s1 + $0x468] sm:$0xff]
  %v175 = vld [vmem:[%s1 + $0x470] sm:$0xff]
  %v176 = vld [vmem:[%s1 + $0x478] sm:$0xff]
  %v177 = vld [vmem:[%s2] sm:$0xff]
  %v178 = vld [vmem:[%s2 + $0x8] sm:$0xff]
  %v179 = vld [vmem:[%s2 + $0x10] sm:$0xff]
  %v180 = vld [vmem:[%s2 + $0x18] sm:$0xff]
  %182 = vset.pattern.permute.xlu0 0
  %183 = vperm.xlu0 %182, %v177
  %v184 = vpop.permute.xlu0 %183
  %187 = vset.pattern.permute.xlu0 0
  %188 = vperm.xlu0 %187, %v178
  %v189 = vpop.permute.xlu0 %188
  %192 = vset.pattern.permute.xlu0 0
  %193 = vperm.xlu0 %192, %v179
  %v194 = vpop.permute.xlu0 %193
  %197 = vset.pattern.permute.xlu0 0
  %198 = vperm.xlu0 %197, %v180
  %v199 = vpop.permute.xlu0 %198
  %v213 = vunpack.c.l.b16 %v21
  %v214 = vunpack.c.h.b16 %v21
  %v215 = vunpack.c.l.b16 %v22
  %v216 = vunpack.c.h.b16 %v22
  %v217 = vunpack.c.l.b16 %v23
  %v218 = vunpack.c.l.b16 %v24
  %v219 = vunpack.c.h.b16 %v24
  %v220 = vunpack.c.l.b16 %v25
  %v221 = vunpack.c.h.b16 %v25
  %v222 = vunpack.c.l.b16 %v26
  %v223 = vunpack.c.l.b16 %v27
  %v224 = vunpack.c.h.b16 %v27
  %v225 = vunpack.c.l.b16 %v28
  %v226 = vunpack.c.h.b16 %v28
  %v227 = vunpack.c.l.b16 %v29
  %v228 = vunpack.c.l.b16 %v30
  %v229 = vunpack.c.h.b16 %v30
  %v230 = vunpack.c.l.b16 %v31
  %v231 = vunpack.c.h.b16 %v31
  %v232 = vunpack.c.l.b16 %v32
  %v233 = vpack.c.b16 %v218, %v213
  %v234 = vpack.c.b16 %v219, %v214
  %v235 = vpack.c.b16 %v220, %v215
  %v236 = vpack.c.b16 %v221, %v216
  %v237 = vpack.c.b16 %v222, %v217
  %v238 = vpack.c.b16 %v228, %v223
  %v239 = vpack.c.b16 %v229, %v224
  %v240 = vpack.c.b16 %v230, %v225
  %v241 = vpack.c.b16 %v231, %v226
  %v242 = vpack.c.b16 %v232, %v227
  %v395 = vunpack.c.l.b16 %v33
  %v396 = vunpack.c.h.b16 %v33
  %v397 = vunpack.c.l.b16 %v34
  %v398 = vunpack.c.h.b16 %v34
  %v399 = vunpack.c.l.b16 %v35
  %v400 = vunpack.c.h.b16 %v35
  %v401 = vunpack.c.l.b16 %v36
  %v402 = vunpack.c.h.b16 %v36
  %v403 = vunpack.c.l.b16 %v37
  %v404 = vunpack.c.h.b16 %v37
  %v405 = vunpack.c.l.b16 %v38
  %v406 = vunpack.c.h.b16 %v38
  %v407 = vunpack.c.l.b16 %v39
  %v408 = vunpack.c.h.b16 %v39
  %v409 = vunpack.c.l.b16 %v40
  %v410 = vunpack.c.h.b16 %v40
  %v411 = vunpack.c.l.b16 %v41
  %v412 = vunpack.c.h.b16 %v41
  %v413 = vunpack.c.l.b16 %v42
  %v414 = vunpack.c.h.b16 %v42
  %v415 = vunpack.c.l.b16 %v43
  %v416 = vunpack.c.h.b16 %v43
  %v417 = vunpack.c.l.b16 %v44
  %v418 = vunpack.c.h.b16 %v44
  %v419 = vunpack.c.l.b16 %v45
  %v420 = vunpack.c.h.b16 %v45
  %v421 = vunpack.c.l.b16 %v46
  %v422 = vunpack.c.h.b16 %v46
  %v423 = vunpack.c.l.b16 %v47
  %v424 = vunpack.c.h.b16 %v47
  %v425 = vunpack.c.l.b16 %v48
  %v426 = vunpack.c.h.b16 %v48
  %v427 = vunpack.c.l.b16 %v49
  %v428 = vunpack.c.h.b16 %v49
  %v429 = vunpack.c.l.b16 %v50
  %v430 = vunpack.c.h.b16 %v50
  %v431 = vunpack.c.l.b16 %v51
  %v432 = vunpack.c.h.b16 %v51
  %v433 = vunpack.c.l.b16 %v52
  %v434 = vunpack.c.h.b16 %v52
  %v435 = vunpack.c.l.b16 %v53
  %v436 = vunpack.c.h.b16 %v53
  %v437 = vunpack.c.l.b16 %v54
  %v438 = vunpack.c.h.b16 %v54
  %v439 = vunpack.c.l.b16 %v55
  %v440 = vunpack.c.h.b16 %v55
  %v441 = vunpack.c.l.b16 %v56
  %v442 = vunpack.c.h.b16 %v56
  %v443 = vunpack.c.l.b16 %v57
  %v444 = vunpack.c.h.b16 %v57
  %v445 = vunpack.c.l.b16 %v58
  %v446 = vunpack.c.h.b16 %v58
  %v447 = vunpack.c.l.b16 %v59
  %v448 = vunpack.c.h.b16 %v59
  %v449 = vunpack.c.l.b16 %v60
  %v450 = vunpack.c.h.b16 %v60
  %v451 = vunpack.c.l.b16 %v61
  %v452 = vunpack.c.h.b16 %v61
  %v453 = vunpack.c.l.b16 %v62
  %v454 = vunpack.c.h.b16 %v62
  %v455 = vunpack.c.l.b16 %v63
  %v456 = vunpack.c.h.b16 %v63
  %v457 = vunpack.c.l.b16 %v64
  %v458 = vunpack.c.h.b16 %v64
  %v459 = vunpack.c.l.b16 %v65
  %v460 = vunpack.c.h.b16 %v65
  %v461 = vunpack.c.l.b16 %v66
  %v462 = vunpack.c.h.b16 %v66
  %v463 = vunpack.c.l.b16 %v67
  %v464 = vunpack.c.h.b16 %v67
  %v465 = vunpack.c.l.b16 %v68
  %v466 = vunpack.c.h.b16 %v68
  %v467 = vunpack.c.l.b16 %v69
  %v468 = vunpack.c.h.b16 %v69
  %v469 = vunpack.c.l.b16 %v70
  %v470 = vunpack.c.h.b16 %v70
  %v471 = vunpack.c.l.b16 %v71
  %v472 = vunpack.c.h.b16 %v71
  %v473 = vunpack.c.l.b16 %v72
  %v474 = vunpack.c.h.b16 %v72
  %v475 = vunpack.c.l.b16 %v73
  %v476 = vunpack.c.h.b16 %v73
  %v477 = vunpack.c.l.b16 %v74
  %v478 = vunpack.c.h.b16 %v74
  %v479 = vunpack.c.l.b16 %v75
  %v480 = vunpack.c.h.b16 %v75
  %v481 = vunpack.c.l.b16 %v76
  %v482 = vunpack.c.h.b16 %v76
  %v483 = vunpack.c.l.b16 %v77
  %v484 = vunpack.c.h.b16 %v77
  %v485 = vunpack.c.l.b16 %v78
  %v486 = vunpack.c.h.b16 %v78
  %v487 = vunpack.c.l.b16 %v79
  %v488 = vunpack.c.h.b16 %v79
  %v489 = vunpack.c.l.b16 %v80
  %v490 = vunpack.c.h.b16 %v80
  %v491 = vunpack.c.l.b16 %v81
  %v492 = vunpack.c.h.b16 %v81
  %v493 = vunpack.c.l.b16 %v82
  %v494 = vunpack.c.h.b16 %v82
  %v495 = vunpack.c.l.b16 %v83
  %v496 = vunpack.c.h.b16 %v83
  %v497 = vunpack.c.l.b16 %v84
  %v498 = vunpack.c.h.b16 %v84
  %v499 = vunpack.c.l.b16 %v85
  %v500 = vunpack.c.h.b16 %v85
  %v501 = vunpack.c.l.b16 %v86
  %v502 = vunpack.c.h.b16 %v86
  %v503 = vunpack.c.l.b16 %v87
  %v504 = vunpack.c.h.b16 %v87
  %v505 = vunpack.c.l.b16 %v88
  %v506 = vunpack.c.h.b16 %v88
  %v507 = vunpack.c.l.b16 %v89
  %v508 = vunpack.c.h.b16 %v89
  %v509 = vunpack.c.l.b16 %v90
  %v510 = vunpack.c.h.b16 %v90
  %v511 = vunpack.c.l.b16 %v91
  %v512 = vunpack.c.h.b16 %v91
  %v513 = vunpack.c.l.b16 %v92
  %v514 = vunpack.c.h.b16 %v92
  %v515 = vunpack.c.l.b16 %v93
  %v516 = vunpack.c.h.b16 %v93
  %v517 = vunpack.c.l.b16 %v94
  %v518 = vunpack.c.h.b16 %v94
  %v519 = vunpack.c.l.b16 %v95
  %v520 = vunpack.c.h.b16 %v95
  %v521 = vunpack.c.l.b16 %v96
  %v522 = vunpack.c.h.b16 %v96
  %v523 = vunpack.c.l.b16 %v97
  %v524 = vunpack.c.h.b16 %v97
  %v525 = vunpack.c.l.b16 %v98
  %v526 = vunpack.c.h.b16 %v98
  %v527 = vunpack.c.l.b16 %v99
  %v528 = vunpack.c.h.b16 %v99
  %v529 = vunpack.c.l.b16 %v100
  %v530 = vunpack.c.h.b16 %v100
  %v531 = vunpack.c.l.b16 %v101
  %v532 = vunpack.c.h.b16 %v101
  %v533 = vunpack.c.l.b16 %v102
  %v534 = vunpack.c.h.b16 %v102
  %v535 = vunpack.c.l.b16 %v103
  %v536 = vunpack.c.h.b16 %v103
  %v537 = vunpack.c.l.b16 %v104
  %v538 = vunpack.c.h.b16 %v104
  %v539 = vunpack.c.l.b16 %v105
  %v540 = vunpack.c.h.b16 %v105
  %v541 = vunpack.c.l.b16 %v106
  %v542 = vunpack.c.h.b16 %v106
  %v543 = vunpack.c.l.b16 %v107
  %v544 = vunpack.c.h.b16 %v107
  %v545 = vunpack.c.l.b16 %v108
  %v546 = vunpack.c.h.b16 %v108
  %v547 = vunpack.c.l.b16 %v109
  %v548 = vunpack.c.h.b16 %v109
  %v549 = vunpack.c.l.b16 %v110
  %v550 = vunpack.c.h.b16 %v110
  %v551 = vunpack.c.l.b16 %v111
  %v552 = vunpack.c.h.b16 %v111
  %v553 = vunpack.c.l.b16 %v112
  %v554 = vunpack.c.h.b16 %v112
  %v555 = vunpack.c.l.b16 %v113
  %v556 = vunpack.c.h.b16 %v113
  %v557 = vunpack.c.l.b16 %v114
  %v558 = vunpack.c.h.b16 %v114
  %v559 = vunpack.c.l.b16 %v115
  %v560 = vunpack.c.h.b16 %v115
  %v561 = vunpack.c.l.b16 %v116
  %v562 = vunpack.c.h.b16 %v116
  %v563 = vunpack.c.l.b16 %v117
  %v564 = vunpack.c.h.b16 %v117
  %v565 = vunpack.c.l.b16 %v118
  %v566 = vunpack.c.h.b16 %v118
  %v567 = vunpack.c.l.b16 %v119
  %v568 = vunpack.c.h.b16 %v119
  %v569 = vunpack.c.l.b16 %v120
  %v570 = vunpack.c.h.b16 %v120
  %v571 = vunpack.c.l.b16 %v121
  %v572 = vunpack.c.h.b16 %v121
  %v573 = vunpack.c.l.b16 %v122
  %v574 = vunpack.c.h.b16 %v122
  %v575 = vunpack.c.l.b16 %v123
  %v576 = vunpack.c.h.b16 %v123
  %v577 = vunpack.c.l.b16 %v124
  %v578 = vunpack.c.h.b16 %v124
  %v579 = vunpack.c.l.b16 %v125
  %v580 = vunpack.c.h.b16 %v125
  %v581 = vunpack.c.l.b16 %v126
  %v582 = vunpack.c.h.b16 %v126
  %v583 = vunpack.c.l.b16 %v127
  %v584 = vunpack.c.h.b16 %v127
  %v585 = vunpack.c.l.b16 %v128
  %v586 = vunpack.c.h.b16 %v128
  %v587 = vunpack.c.l.b16 %v129
  %v588 = vunpack.c.h.b16 %v129
  %v589 = vunpack.c.l.b16 %v130
  %v590 = vunpack.c.h.b16 %v130
  %v591 = vunpack.c.l.b16 %v131
  %v592 = vunpack.c.h.b16 %v131
  %v593 = vunpack.c.l.b16 %v132
  %v594 = vunpack.c.h.b16 %v132
  %v595 = vunpack.c.l.b16 %v133
  %v596 = vunpack.c.h.b16 %v133
  %v597 = vunpack.c.l.b16 %v134
  %v598 = vunpack.c.h.b16 %v134
  %v599 = vunpack.c.l.b16 %v135
  %v600 = vunpack.c.h.b16 %v135
  %v601 = vunpack.c.l.b16 %v136
  %v602 = vunpack.c.h.b16 %v136
  %v603 = vunpack.c.l.b16 %v137
  %v604 = vunpack.c.h.b16 %v137
  %v605 = vunpack.c.l.b16 %v138
  %v606 = vunpack.c.h.b16 %v138
  %v607 = vunpack.c.l.b16 %v139
  %v608 = vunpack.c.h.b16 %v139
  %v609 = vunpack.c.l.b16 %v140
  %v610 = vunpack.c.h.b16 %v140
  %v611 = vunpack.c.l.b16 %v141
  %v612 = vunpack.c.h.b16 %v141
  %v613 = vunpack.c.l.b16 %v142
  %v614 = vunpack.c.h.b16 %v142
  %v615 = vunpack.c.l.b16 %v143
  %v616 = vunpack.c.h.b16 %v143
  %v617 = vunpack.c.l.b16 %v144
  %v618 = vunpack.c.h.b16 %v144
  %v619 = vunpack.c.l.b16 %v145
  %v620 = vunpack.c.h.b16 %v145
  %v621 = vunpack.c.l.b16 %v146
  %v622 = vunpack.c.h.b16 %v146
  %v623 = vunpack.c.l.b16 %v147
  %v624 = vunpack.c.h.b16 %v147
  %v625 = vunpack.c.l.b16 %v148
  %v626 = vunpack.c.h.b16 %v148
  %v627 = vunpack.c.l.b16 %v149
  %v628 = vunpack.c.h.b16 %v149
  %v629 = vunpack.c.l.b16 %v150
  %v630 = vunpack.c.h.b16 %v150
  %v631 = vunpack.c.l.b16 %v151
  %v632 = vunpack.c.h.b16 %v151
  %v633 = vunpack.c.l.b16 %v152
  %v634 = vunpack.c.h.b16 %v152
  %v635 = vunpack.c.l.b16 %v153
  %v636 = vunpack.c.h.b16 %v153
  %v637 = vunpack.c.l.b16 %v154
  %v638 = vunpack.c.h.b16 %v154
  %v639 = vunpack.c.l.b16 %v155
  %v640 = vunpack.c.h.b16 %v155
  %v641 = vunpack.c.l.b16 %v156
  %v642 = vunpack.c.h.b16 %v156
  %v643 = vunpack.c.l.b16 %v157
  %v644 = vunpack.c.h.b16 %v157
  %v645 = vunpack.c.l.b16 %v158
  %v646 = vunpack.c.h.b16 %v158
  %v647 = vunpack.c.l.b16 %v159
  %v648 = vunpack.c.h.b16 %v159
  %v649 = vunpack.c.l.b16 %v160
  %v650 = vunpack.c.h.b16 %v160
  %v651 = vunpack.c.l.b16 %v161
  %v652 = vunpack.c.h.b16 %v161
  %v653 = vunpack.c.l.b16 %v162
  %v654 = vunpack.c.h.b16 %v162
  %v655 = vunpack.c.l.b16 %v163
  %v656 = vunpack.c.h.b16 %v163
  %v657 = vunpack.c.l.b16 %v164
  %v658 = vunpack.c.h.b16 %v164
  %v659 = vunpack.c.l.b16 %v165
  %v660 = vunpack.c.h.b16 %v165
  %v661 = vunpack.c.l.b16 %v166
  %v662 = vunpack.c.h.b16 %v166
  %v663 = vunpack.c.l.b16 %v167
  %v664 = vunpack.c.h.b16 %v167
  %v665 = vunpack.c.l.b16 %v168
  %v666 = vunpack.c.h.b16 %v168
  %v667 = vunpack.c.l.b16 %v169
  %v668 = vunpack.c.h.b16 %v169
  %v669 = vunpack.c.l.b16 %v170
  %v670 = vunpack.c.h.b16 %v170
  %v671 = vunpack.c.l.b16 %v171
  %v672 = vunpack.c.h.b16 %v171
  %v673 = vunpack.c.l.b16 %v172
  %v674 = vunpack.c.h.b16 %v172
  %v675 = vunpack.c.l.b16 %v173
  %v676 = vunpack.c.h.b16 %v173
  %v677 = vunpack.c.l.b16 %v174
  %v678 = vunpack.c.h.b16 %v174
  %v679 = vunpack.c.l.b16 %v175
  %v680 = vunpack.c.h.b16 %v175
  %v681 = vunpack.c.l.b16 %v176
  %v682 = vunpack.c.h.b16 %v176
  %v683 = vpack.c.b16 %v399, %v395
  %v684 = vpack.c.b16 %v400, %v396
  %v685 = vpack.c.b16 %v401, %v397
  %v686 = vpack.c.b16 %v402, %v398
  %v687 = vpack.c.b16 %v407, %v403
  %v688 = vpack.c.b16 %v408, %v404
  %v689 = vpack.c.b16 %v409, %v405
  %v690 = vpack.c.b16 %v410, %v406
  %v691 = vpack.c.b16 %v415, %v411
  %v692 = vpack.c.b16 %v416, %v412
  %v693 = vpack.c.b16 %v417, %v413
  %v694 = vpack.c.b16 %v418, %v414
  %v695 = vpack.c.b16 %v423, %v419
  %v696 = vpack.c.b16 %v424, %v420
  %v697 = vpack.c.b16 %v425, %v421
  %v698 = vpack.c.b16 %v426, %v422
  %v699 = vpack.c.b16 %v431, %v427
  %v700 = vpack.c.b16 %v432, %v428
  %v701 = vpack.c.b16 %v433, %v429
  %v702 = vpack.c.b16 %v434, %v430
  %v703 = vpack.c.b16 %v439, %v435
  %v704 = vpack.c.b16 %v440, %v436
  %v705 = vpack.c.b16 %v441, %v437
  %v706 = vpack.c.b16 %v442, %v438
  %v707 = vpack.c.b16 %v447, %v443
  %v708 = vpack.c.b16 %v448, %v444
  %v709 = vpack.c.b16 %v449, %v445
  %v710 = vpack.c.b16 %v450, %v446
  %v711 = vpack.c.b16 %v455, %v451
  %v712 = vpack.c.b16 %v456, %v452
  %v713 = vpack.c.b16 %v457, %v453
  %v714 = vpack.c.b16 %v458, %v454
  %v715 = vpack.c.b16 %v463, %v459
  %v716 = vpack.c.b16 %v464, %v460
  %v717 = vpack.c.b16 %v465, %v461
  %v718 = vpack.c.b16 %v466, %v462
  %v719 = vpack.c.b16 %v471, %v467
  %v720 = vpack.c.b16 %v472, %v468
  %v721 = vpack.c.b16 %v473, %v469
  %v722 = vpack.c.b16 %v474, %v470
  %v723 = vpack.c.b16 %v479, %v475
  %v724 = vpack.c.b16 %v480, %v476
  %v725 = vpack.c.b16 %v481, %v477
  %v726 = vpack.c.b16 %v482, %v478
  %v727 = vpack.c.b16 %v487, %v483
  %v728 = vpack.c.b16 %v488, %v484
  %v729 = vpack.c.b16 %v489, %v485
  %v730 = vpack.c.b16 %v490, %v486
  %v731 = vpack.c.b16 %v495, %v491
  %v732 = vpack.c.b16 %v496, %v492
  %v733 = vpack.c.b16 %v497, %v493
  %v734 = vpack.c.b16 %v498, %v494
  %v735 = vpack.c.b16 %v503, %v499
  %v736 = vpack.c.b16 %v504, %v500
  %v737 = vpack.c.b16 %v505, %v501
  %v738 = vpack.c.b16 %v506, %v502
  %v739 = vpack.c.b16 %v511, %v507
  %v740 = vpack.c.b16 %v512, %v508
  %v741 = vpack.c.b16 %v513, %v509
  %v742 = vpack.c.b16 %v514, %v510
  %v743 = vpack.c.b16 %v519, %v515
  %v744 = vpack.c.b16 %v520, %v516
  %v745 = vpack.c.b16 %v521, %v517
  %v746 = vpack.c.b16 %v522, %v518
  %v747 = vpack.c.b16 %v527, %v523
  %v748 = vpack.c.b16 %v528, %v524
  %v749 = vpack.c.b16 %v529, %v525
  %v750 = vpack.c.b16 %v530, %v526
  %v751 = vpack.c.b16 %v535, %v531
  %v752 = vpack.c.b16 %v536, %v532
  %v753 = vpack.c.b16 %v537, %v533
  %v754 = vpack.c.b16 %v538, %v534
  %v755 = vpack.c.b16 %v543, %v539
  %v756 = vpack.c.b16 %v544, %v540
  %v757 = vpack.c.b16 %v545, %v541
  %v758 = vpack.c.b16 %v546, %v542
  %v759 = vpack.c.b16 %v551, %v547
  %v760 = vpack.c.b16 %v552, %v548
  %v761 = vpack.c.b16 %v553, %v549
  %v762 = vpack.c.b16 %v554, %v550
  %v763 = vpack.c.b16 %v559, %v555
  %v764 = vpack.c.b16 %v560, %v556
  %v765 = vpack.c.b16 %v561, %v557
  %v766 = vpack.c.b16 %v562, %v558
  %v767 = vpack.c.b16 %v567, %v563
  %v768 = vpack.c.b16 %v568, %v564
  %v769 = vpack.c.b16 %v569, %v565
  %v770 = vpack.c.b16 %v570, %v566
  %v771 = vpack.c.b16 %v575, %v571
  %v772 = vpack.c.b16 %v576, %v572
  %v773 = vpack.c.b16 %v577, %v573
  %v774 = vpack.c.b16 %v578, %v574
  %v775 = vpack.c.b16 %v583, %v579
  %v776 = vpack.c.b16 %v584, %v580
  %v777 = vpack.c.b16 %v585, %v581
  %v778 = vpack.c.b16 %v586, %v582
  %v779 = vpack.c.b16 %v591, %v587
  %v780 = vpack.c.b16 %v592, %v588
  %v781 = vpack.c.b16 %v593, %v589
  %v782 = vpack.c.b16 %v594, %v590
  %v783 = vpack.c.b16 %v599, %v595
  %v784 = vpack.c.b16 %v600, %v596
  %v785 = vpack.c.b16 %v601, %v597
  %v786 = vpack.c.b16 %v602, %v598
  %v787 = vpack.c.b16 %v607, %v603
  %v788 = vpack.c.b16 %v608, %v604
  %v789 = vpack.c.b16 %v609, %v605
  %v790 = vpack.c.b16 %v610, %v606
  %v791 = vpack.c.b16 %v615, %v611
  %v792 = vpack.c.b16 %v616, %v612
  %v793 = vpack.c.b16 %v617, %v613
  %v794 = vpack.c.b16 %v618, %v614
  %v795 = vpack.c.b16 %v623, %v619
  %v796 = vpack.c.b16 %v624, %v620
  %v797 = vpack.c.b16 %v625, %v621
  %v798 = vpack.c.b16 %v626, %v622
  %v799 = vpack.c.b16 %v631, %v627
  %v800 = vpack.c.b16 %v632, %v628
  %v801 = vpack.c.b16 %v633, %v629
  %v802 = vpack.c.b16 %v634, %v630
  %v803 = vpack.c.b16 %v639, %v635
  %v804 = vpack.c.b16 %v640, %v636
  %v805 = vpack.c.b16 %v641, %v637
  %v806 = vpack.c.b16 %v642, %v638
  %v807 = vpack.c.b16 %v647, %v643
  %v808 = vpack.c.b16 %v648, %v644
  %v809 = vpack.c.b16 %v649, %v645
  %v810 = vpack.c.b16 %v650, %v646
  %v811 = vpack.c.b16 %v655, %v651
  %v812 = vpack.c.b16 %v656, %v652
  %v813 = vpack.c.b16 %v657, %v653
  %v814 = vpack.c.b16 %v658, %v654
  %v815 = vpack.c.b16 %v663, %v659
  %v816 = vpack.c.b16 %v664, %v660
  %v817 = vpack.c.b16 %v665, %v661
  %v818 = vpack.c.b16 %v666, %v662
  %v819 = vpack.c.b16 %v671, %v667
  %v820 = vpack.c.b16 %v672, %v668
  %v821 = vpack.c.b16 %v673, %v669
  %v822 = vpack.c.b16 %v674, %v670
  %v823 = vpack.c.b16 %v679, %v675
  %v824 = vpack.c.b16 %v680, %v676
  %v825 = vpack.c.b16 %v681, %v677
  %v826 = vpack.c.b16 %v682, %v678
  %vm971 = vcmask 523264
  %v973 = vsel %vm971, %v237, 0
  %v976 = vsel %vm971, %v242, 0
  %978 = vmatprep.subr.bf16.mxu0 %v712
  %979 = vmatpush1.bf16.msra.mxu0 %v711
  %980 = vmatprep.subr.bf16.mxu0 %v708
  %981 = vmatpush1.bf16.msra.mxu0 %v707
  %982 = vmatprep.subr.bf16.mxu0 %v704
  %983 = vmatpush1.bf16.msra.mxu0 %v703
  %984 = vmatprep.subr.bf16.mxu0 %v700
  %985 = vmatpush1.bf16.msra.mxu0 %v699
  %986 = vmatprep.subr.bf16.mxu0 %v696
  %987 = vmatpush1.bf16.msra.mxu0 %v695
  %988 = vmatprep.subr.bf16.mxu0 %v692
  %989 = vmatpush1.bf16.msra.mxu0 %v691
  %990 = vmatprep.subr.bf16.mxu0 %v688
  %991 = vmatpush1.bf16.msra.mxu0 %v687
  %992 = vmatprep.subr.bf16.mxu0 %v684
  %993 = vmatpush1.bf16.msra.mxu0 %v683
  %994 = vmatprep.subr.bf16.mxu0 %v744
  %995 = vmatpush2.bf16.msra.mxu0 %v743
  %996 = vmatprep.subr.bf16.mxu0 %v740
  %997 = vmatpush2.bf16.msra.mxu0 %v739
  %998 = vmatprep.subr.bf16.mxu0 %v736
  %999 = vmatpush2.bf16.msra.mxu0 %v735
  %1000 = vmatprep.subr.bf16.mxu0 %v732
  %1001 = vmatpush2.bf16.msra.mxu0 %v731
  %1002 = vmatprep.subr.bf16.mxu0 %v728
  %1003 = vmatpush2.bf16.msra.mxu0 %v727
  %1004 = vmatprep.subr.bf16.mxu0 %v724
  %1005 = vmatpush2.bf16.msra.mxu0 %v723
  %1006 = vmatprep.subr.bf16.mxu0 %v720
  %1007 = vmatpush2.bf16.msra.mxu0 %v719
  %1008 = vmatprep.subr.bf16.mxu0 %v716
  %1009 = vmatpush2.bf16.msra.mxu0 %v715
  %1010 = vmatprep.mubr.bf16.mxu0 %v234
  %1011 = vmatmul.mubr.bf16.gmra.mxu0 %v233
  %v1012 = vpop.f32.mrf.mxu0
  %v1013 = vadd.f32 %v184, %v1012
  %v1014 = vpop.f32.mrf.mxu0
  %v1015 = vadd.f32 %v184, %v1014
  %v1016 = vpop.f32.mrf.mxu0
  %v1017 = vadd.f32 %v189, %v1016
  %v1018 = vpop.f32.mrf.mxu0
  %v1019 = vadd.f32 %v189, %v1018
  %1020 = vmatprep.mubr.bf16.mxu0 %v239
  %1021 = vmatmul.mubr.bf16.gmra.mxu0 %v238
  %v1022 = vpop.f32.mrf.mxu0
  %v1023 = vadd.f32 %v194, %v1022
  %v1024 = vpop.f32.mrf.mxu0
  %v1025 = vadd.f32 %v194, %v1024
  %v1026 = vpop.f32.mrf.mxu0
  %v1027 = vadd.f32 %v199, %v1026
  %v1028 = vpop.f32.mrf.mxu0
  %v1029 = vadd.f32 %v199, %v1028
  %1030 = vdwg.mxu0
  %1031 = vmatprep.subr.bf16.mxu0 %v776
  %1032 = vmatpush1.bf16.msra.mxu0 %v775
  %1033 = vmatprep.subr.bf16.mxu0 %v772
  %1034 = vmatpush1.bf16.msra.mxu0 %v771
  %1035 = vmatprep.subr.bf16.mxu0 %v768
  %1036 = vmatpush1.bf16.msra.mxu0 %v767
  %1037 = vmatprep.subr.bf16.mxu0 %v764
  %1038 = vmatpush1.bf16.msra.mxu0 %v763
  %1039 = vmatprep.subr.bf16.mxu0 %v760
  %1040 = vmatpush1.bf16.msra.mxu0 %v759
  %1041 = vmatprep.subr.bf16.mxu0 %v756
  %1042 = vmatpush1.bf16.msra.mxu0 %v755
  %1043 = vmatprep.subr.bf16.mxu0 %v752
  %1044 = vmatpush1.bf16.msra.mxu0 %v751
  %1045 = vmatprep.subr.bf16.mxu0 %v748
  %1046 = vmatpush1.bf16.msra.mxu0 %v747
  %1047 = vmatprep.subr.bf16.mxu0 %v808
  %1048 = vmatpush2.bf16.msra.mxu0 %v807
  %1049 = vmatprep.subr.bf16.mxu0 %v804
  %1050 = vmatpush2.bf16.msra.mxu0 %v803
  %1051 = vmatprep.subr.bf16.mxu0 %v800
  %1052 = vmatpush2.bf16.msra.mxu0 %v799
  %1053 = vmatprep.subr.bf16.mxu0 %v796
  %1054 = vmatpush2.bf16.msra.mxu0 %v795
  %1055 = vmatprep.subr.bf16.mxu0 %v792
  %1056 = vmatpush2.bf16.msra.mxu0 %v791
  %1057 = vmatprep.subr.bf16.mxu0 %v788
  %1058 = vmatpush2.bf16.msra.mxu0 %v787
  %1059 = vmatprep.subr.bf16.mxu0 %v784
  %1060 = vmatpush2.bf16.msra.mxu0 %v783
  %1061 = vmatprep.subr.bf16.mxu0 %v780
  %1062 = vmatpush2.bf16.msra.mxu0 %v779
  %1063 = vmatprep.mubr.bf16.mxu0 %v236
  %1064 = vmatmul.mubr.bf16.gmra.mxu0 %v235
  %v1065 = vpop.f32.mrf.mxu0
  %v1066 = vadd.f32 %v1013, %v1065
  %v1067 = vpop.f32.mrf.mxu0
  %v1068 = vadd.f32 %v1015, %v1067
  %v1069 = vpop.f32.mrf.mxu0
  %v1070 = vadd.f32 %v1017, %v1069
  %v1071 = vpop.f32.mrf.mxu0
  %v1072 = vadd.f32 %v1019, %v1071
  %1073 = vmatprep.mubr.bf16.mxu0 %v241
  %1074 = vmatmul.mubr.bf16.gmra.mxu0 %v240
  %v1075 = vpop.f32.mrf.mxu0
  %v1076 = vadd.f32 %v1023, %v1075
  %v1077 = vpop.f32.mrf.mxu0
  %v1078 = vadd.f32 %v1025, %v1077
  %v1079 = vpop.f32.mrf.mxu0
  %v1080 = vadd.f32 %v1027, %v1079
  %v1081 = vpop.f32.mrf.mxu0
  %v1082 = vadd.f32 %v1029, %v1081
  %1083 = vdwg.mxu0
  %1084 = vmatprep.subr.bf16.mxu0 0
  %1085 = vmatpush1.bf16.msra.mxu0 0
  %1086 = vmatprep.subr.bf16.mxu0 0
  %1087 = vmatpush1.bf16.msra.mxu0 0
  %1088 = vmatprep.subr.bf16.mxu0 0
  %1089 = vmatpush1.bf16.msra.mxu0 0
  %1090 = vmatprep.subr.bf16.mxu0 0
  %1091 = vmatpush1.bf16.msra.mxu0 0
  %1092 = vmatprep.subr.bf16.mxu0 %v824
  %1093 = vmatpush1.bf16.msra.mxu0 %v823
  %1094 = vmatprep.subr.bf16.mxu0 %v820
  %1095 = vmatpush1.bf16.msra.mxu0 %v819
  %1096 = vmatprep.subr.bf16.mxu0 %v816
  %1097 = vmatpush1.bf16.msra.mxu0 %v815
  %1098 = vmatprep.subr.bf16.mxu0 %v812
  %1099 = vmatpush1.bf16.msra.mxu0 %v811
  %1100 = vmatprep.subr.bf16.mxu0 0
  %1101 = vmatpush2.bf16.msra.mxu0 0
  %1102 = vmatprep.subr.bf16.mxu0 0
  %1103 = vmatpush2.bf16.msra.mxu0 0
  %1104 = vmatprep.subr.bf16.mxu0 0
  %1105 = vmatpush2.bf16.msra.mxu0 0
  %1106 = vmatprep.subr.bf16.mxu0 0
  %1107 = vmatpush2.bf16.msra.mxu0 0
  %1108 = vmatprep.subr.bf16.mxu0 0
  %1109 = vmatpush2.bf16.msra.mxu0 0
  %1110 = vmatprep.subr.bf16.mxu0 0
  %1111 = vmatpush2.bf16.msra.mxu0 0
  %1112 = vmatprep.subr.bf16.mxu0 0
  %1113 = vmatpush2.bf16.msra.mxu0 0
  %1114 = vmatprep.subr.bf16.mxu0 0
  %1115 = vmatpush2.bf16.msra.mxu0 0
  %1116 = vmatprep.mubr.bf16.mxu0 0
  %1117 = vmatmul.mubr.bf16.gmra.mxu0 %v973
  %v1118 = vpop.f32.mrf.mxu0
  %v1119 = vadd.f32 %v1066, %v1118
  %v1120 = vpop.f32.mrf.mxu0
  %v1121 = vadd.f32 %v1068, %v1120
  %v1122 = vpop.f32.mrf.mxu0
  %v1123 = vadd.f32 %v1070, %v1122
  %v1124 = vpop.f32.mrf.mxu0
  %v1125 = vadd.f32 %v1072, %v1124
  %1126 = vmatprep.mubr.bf16.mxu0 0
  %1127 = vmatmul.mubr.bf16.gmra.mxu0 %v976
  %v1128 = vpop.f32.mrf.mxu0
  %v1129 = vadd.f32 %v1076, %v1128
  %v1130 = vpop.f32.mrf.mxu0
  %v1131 = vadd.f32 %v1078, %v1130
  %v1132 = vpop.f32.mrf.mxu0
  %v1133 = vadd.f32 %v1080, %v1132
  %v1134 = vpop.f32.mrf.mxu0
  %v1135 = vadd.f32 %v1082, %v1134
  %1136 = vdwg.mxu0
  %1137 = vmatprep.subr.bf16.mxu0 %v714
  %1138 = vmatpush1.bf16.msra.mxu0 %v713
  %1139 = vmatprep.subr.bf16.mxu0 %v710
  %1140 = vmatpush1.bf16.msra.mxu0 %v709
  %1141 = vmatprep.subr.bf16.mxu0 %v706
  %1142 = vmatpush1.bf16.msra.mxu0 %v705
  %1143 = vmatprep.subr.bf16.mxu0 %v702
  %1144 = vmatpush1.bf16.msra.mxu0 %v701
  %1145 = vmatprep.subr.bf16.mxu0 %v698
  %1146 = vmatpush1.bf16.msra.mxu0 %v697
  %1147 = vmatprep.subr.bf16.mxu0 %v694
  %1148 = vmatpush1.bf16.msra.mxu0 %v693
  %1149 = vmatprep.subr.bf16.mxu0 %v690
  %1150 = vmatpush1.bf16.msra.mxu0 %v689
  %1151 = vmatprep.subr.bf16.mxu0 %v686
  %1152 = vmatpush1.bf16.msra.mxu0 %v685
  %1153 = vmatprep.subr.bf16.mxu0 %v746
  %1154 = vmatpush2.bf16.msra.mxu0 %v745
  %1155 = vmatprep.subr.bf16.mxu0 %v742
  %1156 = vmatpush2.bf16.msra.mxu0 %v741
  %1157 = vmatprep.subr.bf16.mxu0 %v738
  %1158 = vmatpush2.bf16.msra.mxu0 %v737
  %1159 = vmatprep.subr.bf16.mxu0 %v734
  %1160 = vmatpush2.bf16.msra.mxu0 %v733
  %1161 = vmatprep.subr.bf16.mxu0 %v730
  %1162 = vmatpush2.bf16.msra.mxu0 %v729
  %1163 = vmatprep.subr.bf16.mxu0 %v726
  %1164 = vmatpush2.bf16.msra.mxu0 %v725
  %1165 = vmatprep.subr.bf16.mxu0 %v722
  %1166 = vmatpush2.bf16.msra.mxu0 %v721
  %1167 = vmatprep.subr.bf16.mxu0 %v718
  %1168 = vmatpush2.bf16.msra.mxu0 %v717
  %1169 = vmatprep.mubr.bf16.mxu0 %v234
  %1170 = vmatmul.mubr.bf16.gmra.mxu0 %v233
  %v1171 = vpop.f32.mrf.mxu0
  %v1172 = vadd.f32 %v184, %v1171
  %v1173 = vpop.f32.mrf.mxu0
  %v1174 = vadd.f32 %v184, %v1173
  %v1175 = vpop.f32.mrf.mxu0
  %v1176 = vadd.f32 %v189, %v1175
  %v1177 = vpop.f32.mrf.mxu0
  %v1178 = vadd.f32 %v189, %v1177
  %1179 = vmatprep.mubr.bf16.mxu0 %v239
  %1180 = vmatmul.mubr.bf16.gmra.mxu0 %v238
  %v1181 = vpop.f32.mrf.mxu0
  %v1182 = vadd.f32 %v194, %v1181
  %v1183 = vpop.f32.mrf.mxu0
  %v1184 = vadd.f32 %v194, %v1183
  %v1185 = vpop.f32.mrf.mxu0
  %v1186 = vadd.f32 %v199, %v1185
  %v1187 = vpop.f32.mrf.mxu0
  %v1188 = vadd.f32 %v199, %v1187
  %1189 = vdwg.mxu0
  %1190 = vmatprep.subr.bf16.mxu0 %v778
  %1191 = vmatpush1.bf16.msra.mxu0 %v777
  %1192 = vmatprep.subr.bf16.mxu0 %v774
  %1193 = vmatpush1.bf16.msra.mxu0 %v773
  %1194 = vmatprep.subr.bf16.mxu0 %v770
  %1195 = vmatpush1.bf16.msra.mxu0 %v769
  %1196 = vmatprep.subr.bf16.mxu0 %v766
  %1197 = vmatpush1.bf16.msra.mxu0 %v765
  %1198 = vmatprep.subr.bf16.mxu0 %v762
  %1199 = vmatpush1.bf16.msra.mxu0 %v761
  %1200 = vmatprep.subr.bf16.mxu0 %v758
  %1201 = vmatpush1.bf16.msra.mxu0 %v757
  %1202 = vmatprep.subr.bf16.mxu0 %v754
  %1203 = vmatpush1.bf16.msra.mxu0 %v753
  %1204 = vmatprep.subr.bf16.mxu0 %v750
  %1205 = vmatpush1.bf16.msra.mxu0 %v749
  %1206 = vmatprep.subr.bf16.mxu0 %v810
  %1207 = vmatpush2.bf16.msra.mxu0 %v809
  %1208 = vmatprep.subr.bf16.mxu0 %v806
  %1209 = vmatpush2.bf16.msra.mxu0 %v805
  %1210 = vmatprep.subr.bf16.mxu0 %v802
  %1211 = vmatpush2.bf16.msra.mxu0 %v801
  %1212 = vmatprep.subr.bf16.mxu0 %v798
  %1213 = vmatpush2.bf16.msra.mxu0 %v797
  %1214 = vmatprep.subr.bf16.mxu0 %v794
  %1215 = vmatpush2.bf16.msra.mxu0 %v793
  %1216 = vmatprep.subr.bf16.mxu0 %v790
  %1217 = vmatpush2.bf16.msra.mxu0 %v789
  %1218 = vmatprep.subr.bf16.mxu0 %v786
  %1219 = vmatpush2.bf16.msra.mxu0 %v785
  %1220 = vmatprep.subr.bf16.mxu0 %v782
  %1221 = vmatpush2.bf16.msra.mxu0 %v781
  %1222 = vmatprep.mubr.bf16.mxu0 %v236
  %1223 = vmatmul.mubr.bf16.gmra.mxu0 %v235
  %v1224 = vpop.f32.mrf.mxu0
  %v1225 = vadd.f32 %v1172, %v1224
  %v1226 = vpop.f32.mrf.mxu0
  %v1227 = vadd.f32 %v1174, %v1226
  %v1228 = vpop.f32.mrf.mxu0
  %v1229 = vadd.f32 %v1176, %v1228
  %v1230 = vpop.f32.mrf.mxu0
  %v1231 = vadd.f32 %v1178, %v1230
  %1232 = vmatprep.mubr.bf16.mxu0 %v241
  %1233 = vmatmul.mubr.bf16.gmra.mxu0 %v240
  %v1234 = vpop.f32.mrf.mxu0
  %v1235 = vadd.f32 %v1182, %v1234
  %v1236 = vpop.f32.mrf.mxu0
  %v1237 = vadd.f32 %v1184, %v1236
  %v1238 = vpop.f32.mrf.mxu0
  %v1239 = vadd.f32 %v1186, %v1238
  %v1240 = vpop.f32.mrf.mxu0
  %v1241 = vadd.f32 %v1188, %v1240
  %1242 = vdwg.mxu0
  %1243 = vmatprep.subr.bf16.mxu0 0
  %1244 = vmatpush1.bf16.msra.mxu0 0
  %1245 = vmatprep.subr.bf16.mxu0 0
  %1246 = vmatpush1.bf16.msra.mxu0 0
  %1247 = vmatprep.subr.bf16.mxu0 0
  %1248 = vmatpush1.bf16.msra.mxu0 0
  %1249 = vmatprep.subr.bf16.mxu0 0
  %1250 = vmatpush1.bf16.msra.mxu0 0
  %1251 = vmatprep.subr.bf16.mxu0 %v826
  %1252 = vmatpush1.bf16.msra.mxu0 %v825
  %1253 = vmatprep.subr.bf16.mxu0 %v822
  %1254 = vmatpush1.bf16.msra.mxu0 %v821
  %1255 = vmatprep.subr.bf16.mxu0 %v818
  %1256 = vmatpush1.bf16.msra.mxu0 %v817
  %1257 = vmatprep.subr.bf16.mxu0 %v814
  %1258 = vmatpush1.bf16.msra.mxu0 %v813
  %1259 = vmatprep.subr.bf16.mxu0 0
  %1260 = vmatpush2.bf16.msra.mxu0 0
  %1261 = vmatprep.subr.bf16.mxu0 0
  %1262 = vmatpush2.bf16.msra.mxu0 0
  %1263 = vmatprep.subr.bf16.mxu0 0
  %1264 = vmatpush2.bf16.msra.mxu0 0
  %1265 = vmatprep.subr.bf16.mxu0 0
  %1266 = vmatpush2.bf16.msra.mxu0 0
  %1267 = vmatprep.subr.bf16.mxu0 0
  %1268 = vmatpush2.bf16.msra.mxu0 0
  %1269 = vmatprep.subr.bf16.mxu0 0
  %1270 = vmatpush2.bf16.msra.mxu0 0
  %1271 = vmatprep.subr.bf16.mxu0 0
  %1272 = vmatpush2.bf16.msra.mxu0 0
  %1273 = vmatprep.subr.bf16.mxu0 0
  %1274 = vmatpush2.bf16.msra.mxu0 0
  %1275 = vmatprep.mubr.bf16.mxu0 0
  %1276 = vmatmul.mubr.bf16.gmra.mxu0 %v973
  %v1277 = vpop.f32.mrf.mxu0
  %v1278 = vadd.f32 %v1225, %v1277
  %v1279 = vpop.f32.mrf.mxu0
  %v1280 = vadd.f32 %v1227, %v1279
  %v1281 = vpop.f32.mrf.mxu0
  %v1282 = vadd.f32 %v1229, %v1281
  %v1283 = vpop.f32.mrf.mxu0
  %v1284 = vadd.f32 %v1231, %v1283
  %1285 = vmatprep.mubr.bf16.mxu0 0
  %1286 = vmatmul.mubr.bf16.gmra.mxu0 %v976
  %v1287 = vpop.f32.mrf.mxu0
  %v1288 = vadd.f32 %v1235, %v1287
  %v1289 = vpop.f32.mrf.mxu0
  %v1290 = vadd.f32 %v1237, %v1289
  %v1291 = vpop.f32.mrf.mxu0
  %v1292 = vadd.f32 %v1239, %v1291
  %v1293 = vpop.f32.mrf.mxu0
  %v1294 = vadd.f32 %v1241, %v1293
  %1295 = vdwg.mxu0
  %v1296 = vlaneseq
  %v1297 = vand.u32 %v1296, 127
  %v1298 = vadd.s32 %v1297, 128
  %v1299 = vadd.s32 %v1297, 256
  %v1300 = vadd.s32 %v1297, 384
  %vm1301 = vcmp.lt.s32.totalorder %v1297, 450
  %vm1302 = vcmp.lt.s32.totalorder %v1298, 450
  %vm1303 = vcmp.lt.s32.totalorder %v1299, 450
  %vm1304 = vcmp.lt.s32.totalorder %v1300, 450
  %v1305 = vsel %vm1301, %v1119, 0.0
  %v1306 = vsel %vm1302, %v1121, 0.0
  %v1307 = vsel %vm1303, %v1278, 0.0
  %v1308 = vsel %vm1304, %v1280, 0.0
  %v1309 = vsel %vm1301, %v1123, 0.0
  %v1310 = vsel %vm1302, %v1125, 0.0
  %v1311 = vsel %vm1303, %v1282, 0.0
  %v1312 = vsel %vm1304, %v1284, 0.0
  %v1313 = vsel %vm1301, %v1129, 0.0
  %v1314 = vsel %vm1302, %v1131, 0.0
  %v1315 = vsel %vm1303, %v1288, 0.0
  %v1316 = vsel %vm1304, %v1290, 0.0
  %v1317 = vsel %vm1301, %v1133, 0.0
  %v1318 = vsel %vm1302, %v1135, 0.0
  %v1319 = vsel %vm1303, %v1292, 0.0
  %v1320 = vsel %vm1304, %v1294, 0.0
  %v1321 = vadd.f32 %v1305, %v1306
  %v1322 = vadd.f32 %v1321, %v1307
  %v1323 = vadd.f32 %v1322, %v1308
  %1324 = vadd.xlane.f32.xlu0 %v1323
  %v1325 = vpop.xlane.xlu0 %1324
  %v1326 = vadd.f32 %v1309, %v1310
  %v1327 = vadd.f32 %v1326, %v1311
  %v1328 = vadd.f32 %v1327, %v1312
  %1329 = vadd.xlane.f32.xlu0 %v1328
  %v1330 = vpop.xlane.xlu0 %1329
  %v1331 = vadd.f32 %v1313, %v1314
  %v1332 = vadd.f32 %v1331, %v1315
  %v1333 = vadd.f32 %v1332, %v1316
  %1334 = vadd.xlane.f32.xlu0 %v1333
  %v1335 = vpop.xlane.xlu0 %1334
  %v1336 = vadd.f32 %v1317, %v1318
  %v1337 = vadd.f32 %v1336, %v1319
  %v1338 = vadd.f32 %v1337, %v1320
  %1339 = vadd.xlane.f32.xlu0 %v1338
  %v1340 = vpop.xlane.xlu0 %1339
  %v1341 = vmul.f32 %v1325, 0.0022222223
  %v1342 = vmul.f32 %v1330, 0.0022222223
  %v1343 = vmul.f32 %v1335, 0.0022222223
  %v1344 = vmul.f32 %v1340, 0.0022222223
  %v1345 = vmul.f32 %v1305, %v1305
  %v1346 = vmul.f32 %v1306, %v1306
  %v1347 = vmul.f32 %v1307, %v1307
  %v1348 = vmul.f32 %v1308, %v1308
  %v1349 = vmul.f32 %v1309, %v1309
  %v1350 = vmul.f32 %v1310, %v1310
  %v1351 = vmul.f32 %v1311, %v1311
  %v1352 = vmul.f32 %v1312, %v1312
  %v1353 = vmul.f32 %v1313, %v1313
  %v1354 = vmul.f32 %v1314, %v1314
  %v1355 = vmul.f32 %v1315, %v1315
  %v1356 = vmul.f32 %v1316, %v1316
  %v1357 = vmul.f32 %v1317, %v1317
  %v1358 = vmul.f32 %v1318, %v1318
  %v1359 = vmul.f32 %v1319, %v1319
  %v1360 = vmul.f32 %v1320, %v1320
  %v1361 = vadd.f32 %v1345, %v1346
  %v1362 = vadd.f32 %v1361, %v1347
  %v1363 = vadd.f32 %v1362, %v1348
  %1364 = vadd.xlane.f32.xlu0 %v1363
  %v1365 = vpop.xlane.xlu0 %1364
  %v1366 = vadd.f32 %v1349, %v1350
  %v1367 = vadd.f32 %v1366, %v1351
  %v1368 = vadd.f32 %v1367, %v1352
  %1369 = vadd.xlane.f32.xlu0 %v1368
  %v1370 = vpop.xlane.xlu0 %1369
  %v1371 = vadd.f32 %v1353, %v1354
  %v1372 = vadd.f32 %v1371, %v1355
  %v1373 = vadd.f32 %v1372, %v1356
  %1374 = vadd.xlane.f32.xlu0 %v1373
  %v1375 = vpop.xlane.xlu0 %1374
  %v1376 = vadd.f32 %v1357, %v1358
  %v1377 = vadd.f32 %v1376, %v1359
  %v1378 = vadd.f32 %v1377, %v1360
  %1379 = vadd.xlane.f32.xlu0 %v1378
  %v1380 = vpop.xlane.xlu0 %1379
  %v1381 = vmul.f32 %v1365, 0.0022222223
  %v1382 = vmul.f32 %v1370, 0.0022222223
  %v1383 = vmul.f32 %v1375, 0.0022222223
  %v1384 = vmul.f32 %v1380, 0.0022222223
  %v1385 = vmul.f32 %v1341, %v1341
  %v1386 = vmul.f32 %v1342, %v1342
  %v1387 = vmul.f32 %v1343, %v1343
  %v1388 = vmul.f32 %v1344, %v1344
  %v1389 = vsub.f32 %v1381, %v1385
  %v1390 = vsub.f32 %v1382, %v1386
  %v1391 = vsub.f32 %v1383, %v1387
  %v1392 = vsub.f32 %v1384, %v1388
  %v1393 = vsub.f32 %v1119, %v1341
  %v1394 = vsub.f32 %v1121, %v1341
  %v1395 = vsub.f32 %v1278, %v1341
  %v1396 = vsub.f32 %v1280, %v1341
  %v1397 = vsub.f32 %v1123, %v1342
  %v1398 = vsub.f32 %v1125, %v1342
  %v1399 = vsub.f32 %v1282, %v1342
  %v1400 = vsub.f32 %v1284, %v1342
  %v1401 = vsub.f32 %v1129, %v1343
  %v1402 = vsub.f32 %v1131, %v1343
  %v1403 = vsub.f32 %v1288, %v1343
  %v1404 = vsub.f32 %v1290, %v1343
  %v1405 = vsub.f32 %v1133, %v1344
  %v1406 = vsub.f32 %v1135, %v1344
  %v1407 = vsub.f32 %v1292, %v1344
  %v1408 = vsub.f32 %v1294, %v1344
  %v1409 = vadd.f32 %v1389, 1e-05
  %v1410 = vadd.f32 %v1390, 1e-05
  %v1411 = vadd.f32 %v1391, 1e-05
  %v1412 = vadd.f32 %v1392, 1e-05
  %v1413 = vrsqrt.pop %v1409
  %v1414 = vrsqrt.pop %v1410
  %v1415 = vrsqrt.pop %v1411
  %v1416 = vrsqrt.pop %v1412
  %v1417 = vmul.f32 %v1393, %v1413
  %v1418 = vmul.f32 %v1394, %v1413
  %v1419 = vmul.f32 %v1395, %v1413
  %v1420 = vmul.f32 %v1396, %v1413
  %v1421 = vmul.f32 %v1397, %v1414
  %v1422 = vmul.f32 %v1398, %v1414
  %v1423 = vmul.f32 %v1399, %v1414
  %v1424 = vmul.f32 %v1400, %v1414
  %v1425 = vmul.f32 %v1401, %v1415
  %v1426 = vmul.f32 %v1402, %v1415
  %v1427 = vmul.f32 %v1403, %v1415
  %v1428 = vmul.f32 %v1404, %v1415
  %v1429 = vmul.f32 %v1405, %v1416
  %v1430 = vmul.f32 %v1406, %v1416
  %v1431 = vmul.f32 %v1407, %v1416
  %v1432 = vmul.f32 %v1408, %v1416
  %v1433 = vld [vmem:[%s3] sm:$0xff]
  %v1434 = vld [vmem:[%s3 + $0x8] sm:$0xff]
  %v1435 = vld [vmem:[%s3 + $0x10] sm:$0xff]
  %v1436 = vld [vmem:[%s3 + $0x18] sm:$0xff]
  %1438 = vset.pattern.permute.xlu0 0
  %1439 = vperm.xlu0 %1438, %v1433
  %v1440 = vpop.permute.xlu0 %1439
  %1443 = vset.pattern.permute.xlu0 0
  %1444 = vperm.xlu0 %1443, %v1434
  %v1445 = vpop.permute.xlu0 %1444
  %1448 = vset.pattern.permute.xlu0 0
  %1449 = vperm.xlu0 %1448, %v1435
  %v1450 = vpop.permute.xlu0 %1449
  %1453 = vset.pattern.permute.xlu0 0
  %1454 = vperm.xlu0 %1453, %v1436
  %v1455 = vpop.permute.xlu0 %1454
  %v1457 = vmul.f32 %v1417, %v1440
  %v1458 = vmul.f32 %v1418, %v1440
  %v1459 = vmul.f32 %v1419, %v1440
  %v1460 = vmul.f32 %v1420, %v1440
  %v1461 = vmul.f32 %v1421, %v1445
  %v1462 = vmul.f32 %v1422, %v1445
  %v1463 = vmul.f32 %v1423, %v1445
  %v1464 = vmul.f32 %v1424, %v1445
  %v1465 = vmul.f32 %v1425, %v1450
  %v1466 = vmul.f32 %v1426, %v1450
  %v1467 = vmul.f32 %v1427, %v1450
  %v1468 = vmul.f32 %v1428, %v1450
  %v1469 = vmul.f32 %v1429, %v1455
  %v1470 = vmul.f32 %v1430, %v1455
  %v1471 = vmul.f32 %v1431, %v1455
  %v1472 = vmul.f32 %v1432, %v1455
  %v1473 = vld [vmem:[%s4] sm:$0xff]
  %v1474 = vld [vmem:[%s4 + $0x8] sm:$0xff]
  %v1475 = vld [vmem:[%s4 + $0x10] sm:$0xff]
  %v1476 = vld [vmem:[%s4 + $0x18] sm:$0xff]
  %1478 = vset.pattern.permute.xlu0 0
  %1479 = vperm.xlu0 %1478, %v1473
  %v1480 = vpop.permute.xlu0 %1479
  %1483 = vset.pattern.permute.xlu0 0
  %1484 = vperm.xlu0 %1483, %v1474
  %v1485 = vpop.permute.xlu0 %1484
  %1488 = vset.pattern.permute.xlu0 0
  %1489 = vperm.xlu0 %1488, %v1475
  %v1490 = vpop.permute.xlu0 %1489
  %1493 = vset.pattern.permute.xlu0 0
  %1494 = vperm.xlu0 %1493, %v1476
  %v1495 = vpop.permute.xlu0 %1494
  %v1497 = vadd.f32 %v1457, %v1480
  %v1498 = vadd.f32 %v1458, %v1480
  %v1499 = vadd.f32 %v1459, %v1480
  %v1500 = vadd.f32 %v1460, %v1480
  %v1501 = vadd.f32 %v1461, %v1485
  %v1502 = vadd.f32 %v1462, %v1485
  %v1503 = vadd.f32 %v1463, %v1485
  %v1504 = vadd.f32 %v1464, %v1485
  %v1505 = vadd.f32 %v1465, %v1490
  %v1506 = vadd.f32 %v1466, %v1490
  %v1507 = vadd.f32 %v1467, %v1490
  %v1508 = vadd.f32 %v1468, %v1490
  %v1509 = vadd.f32 %v1469, %v1495
  %v1510 = vadd.f32 %v1470, %v1495
  %v1511 = vadd.f32 %v1471, %v1495
  %v1512 = vadd.f32 %v1472, %v1495
  %v1513 = vmax.f32 %v1497, 0.0
  %v1514 = vmax.f32 %v1498, 0.0
  %v1515 = vmax.f32 %v1499, 0.0
  %v1516 = vmax.f32 %v1500, 0.0
  %v1517 = vmax.f32 %v1501, 0.0
  %v1518 = vmax.f32 %v1502, 0.0
  %v1519 = vmax.f32 %v1503, 0.0
  %v1520 = vmax.f32 %v1504, 0.0
  %v1521 = vmax.f32 %v1505, 0.0
  %v1522 = vmax.f32 %v1506, 0.0
  %v1523 = vmax.f32 %v1507, 0.0
  %v1524 = vmax.f32 %v1508, 0.0
  %v1525 = vmax.f32 %v1509, 0.0
  %v1526 = vmax.f32 %v1510, 0.0
  %v1527 = vmax.f32 %v1511, 0.0
  %v1528 = vmax.f32 %v1512, 0.0
  %v1529 = vpack.c.bf16 %v1517, %v1513
  %v1530 = vpack.c.bf16 %v1518, %v1514
  %v1531 = vpack.c.bf16 %v1519, %v1515
  %v1532 = vpack.c.bf16 %v1520, %v1516
  %v1533 = vpack.c.bf16 %v1525, %v1521
  %v1534 = vpack.c.bf16 %v1526, %v1522
  %v1535 = vpack.c.bf16 %v1527, %v1523
  %v1536 = vpack.c.bf16 %v1528, %v1524
  %v1545 = vunpack.c.l.b16 %v1529
  %v1546 = vunpack.c.l.b16 %v1530
  %v1547 = vunpack.c.l.b16 %v1531
  %v1548 = vunpack.c.l.b16 %v1532
  %v1549 = vunpack.c.h.b16 %v1529
  %v1550 = vunpack.c.h.b16 %v1530
  %v1551 = vunpack.c.h.b16 %v1531
  %v1552 = vunpack.c.h.b16 %v1532
  %v1553 = vunpack.c.l.b16 %v1533
  %v1554 = vunpack.c.l.b16 %v1534
  %v1555 = vunpack.c.l.b16 %v1535
  %v1556 = vunpack.c.l.b16 %v1536
  %v1557 = vunpack.c.h.b16 %v1533
  %v1558 = vunpack.c.h.b16 %v1534
  %v1559 = vunpack.c.h.b16 %v1535
  %v1560 = vunpack.c.h.b16 %v1536
  %v1561 = vpack.c.b16 %v1546, %v1545
  %v1562 = vpack.c.b16 %v1548, %v1547
  %v1563 = vpack.c.b16 %v1550, %v1549
  %v1564 = vpack.c.b16 %v1552, %v1551
  %v1565 = vpack.c.b16 %v1554, %v1553
  %v1566 = vpack.c.b16 %v1556, %v1555
  %v1567 = vpack.c.b16 %v1558, %v1557
  %v1568 = vpack.c.b16 %v1560, %v1559
  %1577 = vst [vmem:[%s5] sm:$0xff] %v1561
  %1578 = vst [vmem:[%s5 + $0x8] sm:$0xff] %v1562
  %1579 = vst [vmem:[%s5 + $0x10] sm:$0xff] %v1563
  %1580 = vst [vmem:[%s5 + $0x18] sm:$0xff] %v1564
  %1581 = vst [vmem:[%s5 + $0x20] sm:$0xff] %v1565
  %1582 = vst [vmem:[%s5 + $0x28] sm:$0xff] %v1566
  %1583 = vst [vmem:[%s5 + $0x30] sm:$0xff] %v1567
  %1584 = vst [vmem:[%s5 + $0x38] sm:$0xff] %v1568
  // Predicated region
  $region22: #{a_call__.7} parent=0 // pred_check
    _
  $region23: #{a_call__.7} parent=0 // pred_check_branch
    %1586 = sbr.rel (0) target = $region25
  $region24: #{a_call__.7} parent=0 // pred_region
    _
  $region25: #{a_call__.7} parent=0 // pred_fallthru
    _
  // Predicated region
  $region26: #{a_call__.7} parent=0 // pred_check
    _
  $region27: #{a_call__.7} parent=0 // pred_check_branch
    %1588 = sbr.rel (0) target = $region29
  $region28: #{a_call__.7} parent=0 // pred_region
    _
  $region29: #{a_call__.7} parent=0 // pred_fallthru
    _

// kernel: a_call__.8
$region0: #{a_call__.8}
  #allocation0 [shape = 'u32[]', space=smem, size = 0x4, offset = 0x4, fixed_abs, tag = 'smem constant byte address 0x4 - core index']
  #allocation1 [shape = 'u32[144,128]{1,0:T(1,128)}', space=vmem, size = 0x12000, scoped, tag = 'internal scratch']
  %s0 = inlined_call_operand.vmem [shape: bf16[16,288], index: 0, kind: input, shape index: {}]
  %s1 = inlined_call_operand.vmem [shape: bf16[288,2048], index: 1, kind: input, shape index: {}]
  %s2 = inlined_call_operand.vmem [shape: f32[16,1], index: 2, kind: input, shape index: {}]
  %s3 = inlined_call_operand.vmem [shape: f32[16,1], index: 3, kind: input, shape index: {}]
  %s4 = inlined_call_operand.vmem [shape: f32[16,1], index: 4, kind: input, shape index: {}]
  %s5 = inlined_call_operand.vmem [shape: bf16[16,2048], index: 5, kind: output, shape index: {}]
  %s6 = sld [smem:[#allocation0]]
  $region30: #{a_call__.8} parent=0
    _
  %s8 = ssub.s32 1, %s6
  %s9 = scalar_select 0, %s8, %s6
  // Predicated region
  $region2: #{a_call__.8} parent=0 // pred_check
    _
  $region3: #{a_call__.8} parent=0 // pred_check_branch
    %11 = sbr.rel (0) target = $region5
  $region4: #{a_call__.8} parent=0 // pred_region
    _
  $region5: #{a_call__.8} parent=0 // pred_fallthru
    _
  // Predicated region
  $region6: #{a_call__.8} parent=0 // pred_check
    _
  $region7: #{a_call__.8} parent=0 // pred_check_branch
    %13 = sbr.rel (0) target = $region9
  $region8: #{a_call__.8} parent=0 // pred_region
    _
  $region9: #{a_call__.8} parent=0 // pred_fallthru
    _
  // Predicated region
  $region10: #{a_call__.8} parent=0 // pred_check
    _
  $region11: #{a_call__.8} parent=0 // pred_check_branch
    %15 = sbr.rel (0) target = $region13
  $region12: #{a_call__.8} parent=0 // pred_region
    _
  $region13: #{a_call__.8} parent=0 // pred_fallthru
    _
  // Predicated region
  $region14: #{a_call__.8} parent=0 // pred_check
    _
  $region15: #{a_call__.8} parent=0 // pred_check_branch
    %17 = sbr.rel (0) target = $region17
  $region16: #{a_call__.8} parent=0 // pred_region
    _
  $region17: #{a_call__.8} parent=0 // pred_fallthru
    _
  // Predicated region
  $region18: #{a_call__.8} parent=0 // pred_check
    _
  $region19: #{a_call__.8} parent=0 // pred_check_branch
    %19 = sbr.rel (0) target = $region21
  $region20: #{a_call__.8} parent=0 // pred_region
    _
  $region21: #{a_call__.8} parent=0 // pred_fallthru
    _
  %v21 = vld [vmem:[%s0] sm:$0xff]
  %v22 = vld [vmem:[%s0 + $0x8] sm:$0xf]
  %v23 = vld [vmem:[%s0 + $0xc] sm:$0xff]
  %v24 = vld [vmem:[%s0 + $0x14] sm:$0xf]
  %v25 = vld [vmem:[%s1] sm:$0xff]
  %v26 = vld [vmem:[%s1 + $0x8] sm:$0xff]
  %v27 = vld [vmem:[%s1 + $0x10] sm:$0xff]
  %v28 = vld [vmem:[%s1 + $0x18] sm:$0xff]
  %v29 = vld [vmem:[%s1 + $0x20] sm:$0xff]
  %v30 = vld [vmem:[%s1 + $0x28] sm:$0xff]
  %v31 = vld [vmem:[%s1 + $0x30] sm:$0xff]
  %v32 = vld [vmem:[%s1 + $0x38] sm:$0xff]
  %v33 = vld [vmem:[%s1 + $0x40] sm:$0xff]
  %v34 = vld [vmem:[%s1 + $0x48] sm:$0xff]
  %v35 = vld [vmem:[%s1 + $0x50] sm:$0xff]
  %v36 = vld [vmem:[%s1 + $0x58] sm:$0xff]
  %v37 = vld [vmem:[%s1 + $0x60] sm:$0xff]
  %v38 = vld [vmem:[%s1 + $0x68] sm:$0xff]
  %v39 = vld [vmem:[%s1 + $0x70] sm:$0xff]
  %v40 = vld [vmem:[%s1 + $0x78] sm:$0xff]
  %v41 = vld [vmem:[%s1 + $0x80] sm:$0xff]
  %v42 = vld [vmem:[%s1 + $0x88] sm:$0xff]
  %v43 = vld [vmem:[%s1 + $0x90] sm:$0xff]
  %v44 = vld [vmem:[%s1 + $0x98] sm:$0xff]
  %v45 = vld [vmem:[%s1 + $0xa0] sm:$0xff]
  %v46 = vld [vmem:[%s1 + $0xa8] sm:$0xff]
  %v47 = vld [vmem:[%s1 + $0xb0] sm:$0xff]
  %v48 = vld [vmem:[%s1 + $0xb8] sm:$0xff]
  %v49 = vld [vmem:[%s1 + $0xc0] sm:$0xff]
  %v50 = vld [vmem:[%s1 + $0xc8] sm:$0xff]
  %v51 = vld [vmem:[%s1 + $0xd0] sm:$0xff]
  %v52 = vld [vmem:[%s1 + $0xd8] sm:$0xff]
  %v53 = vld [vmem:[%s1 + $0xe0] sm:$0xff]
  %v54 = vld [vmem:[%s1 + $0xe8] sm:$0xff]
  %v55 = vld [vmem:[%s1 + $0xf0] sm:$0xff]
  %v56 = vld [vmem:[%s1 + $0xf8] sm:$0xff]
  %v57 = vld [vmem:[%s1 + $0x100] sm:$0xff]
  %v58 = vld [vmem:[%s1 + $0x108] sm:$0xff]
  %v59 = vld [vmem:[%s1 + $0x110] sm:$0xff]
  %v60 = vld [vmem:[%s1 + $0x118] sm:$0xff]
  %v61 = vld [vmem:[%s1 + $0x120] sm:$0xff]
  %v62 = vld [vmem:[%s1 + $0x128] sm:$0xff]
  %v63 = vld [vmem:[%s1 + $0x130] sm:$0xff]
  %v64 = vld [vmem:[%s1 + $0x138] sm:$0xff]
  %v65 = vld [vmem:[%s1 + $0x140] sm:$0xff]
  %v66 = vld [vmem:[%s1 + $0x148] sm:$0xff]
  %v67 = vld [vmem:[%s1 + $0x150] sm:$0xff]
  %v68 = vld [vmem:[%s1 + $0x158] sm:$0xff]
  %v69 = vld [vmem:[%s1 + $0x160] sm:$0xff]
  %v70 = vld [vmem:[%s1 + $0x168] sm:$0xff]
  %v71 = vld [vmem:[%s1 + $0x170] sm:$0xff]
  %v72 = vld [vmem:[%s1 + $0x178] sm:$0xff]
  %v73 = vld [vmem:[%s1 + $0x180] sm:$0xff]
  %v74 = vld [vmem:[%s1 + $0x188] sm:$0xff]
  %v75 = vld [vmem:[%s1 + $0x190] sm:$0xff]
  %v76 = vld [vmem:[%s1 + $0x198] sm:$0xff]
  %v77 = vld [vmem:[%s1 + $0x1a0] sm:$0xff]
  %v78 = vld [vmem:[%s1 + $0x1a8] sm:$0xff]
  %v79 = vld [vmem:[%s1 + $0x1b0] sm:$0xff]
  %v80 = vld [vmem:[%s1 + $0x1b8] sm:$0xff]
  %v81 = vld [vmem:[%s1 + $0x1c0] sm:$0xff]
  %v82 = vld [vmem:[%s1 + $0x1c8] sm:$0xff]
  %v83 = vld [vmem:[%s1 + $0x1d0] sm:$0xff]
  %v84 = vld [vmem:[%s1 + $0x1d8] sm:$0xff]
  %v85 = vld [vmem:[%s1 + $0x1e0] sm:$0xff]
  %v86 = vld [vmem:[%s1 + $0x1e8] sm:$0xff]
  %v87 = vld [vmem:[%s1 + $0x1f0] sm:$0xff]
  %v88 = vld [vmem:[%s1 + $0x1f8] sm:$0xff]
  %v89 = vld [vmem:[%s1 + $0x200] sm:$0xff]
  %v90 = vld [vmem:[%s1 + $0x208] sm:$0xff]
  %v91 = vld [vmem:[%s1 + $0x210] sm:$0xff]
  %v92 = vld [vmem:[%s1 + $0x218] sm:$0xff]
  %v93 = vld [vmem:[%s1 + $0x220] sm:$0xff]
  %v94 = vld [vmem:[%s1 + $0x228] sm:$0xff]
  %v95 = vld [vmem:[%s1 + $0x230] sm:$0xff]
  %v96 = vld [vmem:[%s1 + $0x238] sm:$0xff]
  %v97 = vld [vmem:[%s1 + $0x240] sm:$0xff]
  %v98 = vld [vmem:[%s1 + $0x248] sm:$0xff]
  %v99 = vld [vmem:[%s1 + $0x250] sm:$0xff]
  %v100 = vld [vmem:[%s1 + $0x258] sm:$0xff]
  %v101 = vld [vmem:[%s1 + $0x260] sm:$0xff]
  %v102 = vld [vmem:[%s1 + $0x268] sm:$0xff]
  %v103 = vld [vmem:[%s1 + $0x270] sm:$0xff]
  %v104 = vld [vmem:[%s1 + $0x278] sm:$0xff]
  %v105 = vld [vmem:[%s1 + $0x280] sm:$0xff]
  %v106 = vld [vmem:[%s1 + $0x288] sm:$0xff]
  %v107 = vld [vmem:[%s1 + $0x290] sm:$0xff]
  %v108 = vld [vmem:[%s1 + $0x298] sm:$0xff]
  %v109 = vld [vmem:[%s1 + $0x2a0] sm:$0xff]
  %v110 = vld [vmem:[%s1 + $0x2a8] sm:$0xff]
  %v111 = vld [vmem:[%s1 + $0x2b0] sm:$0xff]
  %v112 = vld [vmem:[%s1 + $0x2b8] sm:$0xff]
  %v113 = vld [vmem:[%s1 + $0x2c0] sm:$0xff]
  %v114 = vld [vmem:[%s1 + $0x2c8] sm:$0xff]
  %v115 = vld [vmem:[%s1 + $0x2d0] sm:$0xff]
  %v116 = vld [vmem:[%s1 + $0x2d8] sm:$0xff]
  %v117 = vld [vmem:[%s1 + $0x2e0] sm:$0xff]
  %v118 = vld [vmem:[%s1 + $0x2e8] sm:$0xff]
  %v119 = vld [vmem:[%s1 + $0x2f0] sm:$0xff]
  %v120 = vld [vmem:[%s1 + $0x2f8] sm:$0xff]
  %v121 = vld [vmem:[%s1 + $0x300] sm:$0xff]
  %v122 = vld [vmem:[%s1 + $0x308] sm:$0xff]
  %v123 = vld [vmem:[%s1 + $0x310] sm:$0xff]
  %v124 = vld [vmem:[%s1 + $0x318] sm:$0xff]
  %v125 = vld [vmem:[%s1 + $0x320] sm:$0xff]
  %v126 = vld [vmem:[%s1 + $0x328] sm:$0xff]
  %v127 = vld [vmem:[%s1 + $0x330] sm:$0xff]
  %v128 = vld [vmem:[%s1 + $0x338] sm:$0xff]
  %v129 = vld [vmem:[%s1 + $0x340] sm:$0xff]
  %v130 = vld [vmem:[%s1 + $0x348] sm:$0xff]
  %v131 = vld [vmem:[%s1 + $0x350] sm:$0xff]
  %v132 = vld [vmem:[%s1 + $0x358] sm:$0xff]
  %v133 = vld [vmem:[%s1 + $0x360] sm:$0xff]
  %v134 = vld [vmem:[%s1 + $0x368] sm:$0xff]
  %v135 = vld [vmem:[%s1 + $0x370] sm:$0xff]
  %v136 = vld [vmem:[%s1 + $0x378] sm:$0xff]
  %v137 = vld [vmem:[%s1 + $0x380] sm:$0xff]
  %v138 = vld [vmem:[%s1 + $0x388] sm:$0xff]
  %v139 = vld [vmem:[%s1 + $0x390] sm:$0xff]
  %v140 = vld [vmem:[%s1 + $0x398] sm:$0xff]
  %v141 = vld [vmem:[%s1 + $0x3a0] sm:$0xff]
  %v142 = vld [vmem:[%s1 + $0x3a8] sm:$0xff]
  %v143 = vld [vmem:[%s1 + $0x3b0] sm:$0xff]
  %v144 = vld [vmem:[%s1 + $0x3b8] sm:$0xff]
  %v145 = vld [vmem:[%s1 + $0x3c0] sm:$0xff]
  %v146 = vld [vmem:[%s1 + $0x3c8] sm:$0xff]
  %v147 = vld [vmem:[%s1 + $0x3d0] sm:$0xff]
  %v148 = vld [vmem:[%s1 + $0x3d8] sm:$0xff]
  %v149 = vld [vmem:[%s1 + $0x3e0] sm:$0xff]
  %v150 = vld [vmem:[%s1 + $0x3e8] sm:$0xff]
  %v151 = vld [vmem:[%s1 + $0x3f0] sm:$0xff]
  %v152 = vld [vmem:[%s1 + $0x3f8] sm:$0xff]
  %v153 = vld [vmem:[%s1 + $0x400] sm:$0xff]
  %v154 = vld [vmem:[%s1 + $0x408] sm:$0xff]
  %v155 = vld [vmem:[%s1 + $0x410] sm:$0xff]
  %v156 = vld [vmem:[%s1 + $0x418] sm:$0xff]
  %v157 = vld [vmem:[%s1 + $0x420] sm:$0xff]
  %v158 = vld [vmem:[%s1 + $0x428] sm:$0xff]
  %v159 = vld [vmem:[%s1 + $0x430] sm:$0xff]
  %v160 = vld [vmem:[%s1 + $0x438] sm:$0xff]
  %v161 = vld [vmem:[%s1 + $0x440] sm:$0xff]
  %v162 = vld [vmem:[%s1 + $0x448] sm:$0xff]
  %v163 = vld [vmem:[%s1 + $0x450] sm:$0xff]
  %v164 = vld [vmem:[%s1 + $0x458] sm:$0xff]
  %v165 = vld [vmem:[%s1 + $0x460] sm:$0xff]
  %v166 = vld [vmem:[%s1 + $0x468] sm:$0xff]
  %v167 = vld [vmem:[%s1 + $0x470] sm:$0xff]
  %v168 = vld [vmem:[%s1 + $0x478] sm:$0xff]
  %v169 = vld [vmem:[%s1 + $0x480] sm:$0xff]
  %v170 = vld [vmem:[%s1 + $0x488] sm:$0xff]
  %v171 = vld [vmem:[%s1 + $0x490] sm:$0xff]
  %v172 = vld [vmem:[%s1 + $0x498] sm:$0xff]
  %v173 = vld [vmem:[%s1 + $0x4a0] sm:$0xff]
  %v174 = vld [vmem:[%s1 + $0x4a8] sm:$0xff]
  %v175 = vld [vmem:[%s1 + $0x4b0] sm:$0xff]
  %v176 = vld [vmem:[%s1 + $0x4b8] sm:$0xff]
  %v177 = vld [vmem:[%s1 + $0x4c0] sm:$0xff]
  %v178 = vld [vmem:[%s1 + $0x4c8] sm:$0xff]
  %v179 = vld [vmem:[%s1 + $0x4d0] sm:$0xff]
  %v180 = vld [vmem:[%s1 + $0x4d8] sm:$0xff]
  %v181 = vld [vmem:[%s1 + $0x4e0] sm:$0xff]
  %v182 = vld [vmem:[%s1 + $0x4e8] sm:$0xff]
  %v183 = vld [vmem:[%s1 + $0x4f0] sm:$0xff]
  %v184 = vld [vmem:[%s1 + $0x4f8] sm:$0xff]
  %v185 = vld [vmem:[%s1 + $0x500] sm:$0xff]
  %v186 = vld [vmem:[%s1 + $0x508] sm:$0xff]
  %v187 = vld [vmem:[%s1 + $0x510] sm:$0xff]
  %v188 = vld [vmem:[%s1 + $0x518] sm:$0xff]
  %v189 = vld [vmem:[%s1 + $0x520] sm:$0xff]
  %v190 = vld [vmem:[%s1 + $0x528] sm:$0xff]
  %v191 = vld [vmem:[%s1 + $0x530] sm:$0xff]
  %v192 = vld [vmem:[%s1 + $0x538] sm:$0xff]
  %v193 = vld [vmem:[%s1 + $0x540] sm:$0xff]
  %v194 = vld [vmem:[%s1 + $0x548] sm:$0xff]
  %v195 = vld [vmem:[%s1 + $0x550] sm:$0xff]
  %v196 = vld [vmem:[%s1 + $0x558] sm:$0xff]
  %v197 = vld [vmem:[%s1 + $0x560] sm:$0xff]
  %v198 = vld [vmem:[%s1 + $0x568] sm:$0xff]
  %v199 = vld [vmem:[%s1 + $0x570] sm:$0xff]
  %v200 = vld [vmem:[%s1 + $0x578] sm:$0xff]
  %v201 = vld [vmem:[%s1 + $0x580] sm:$0xff]
  %v202 = vld [vmem:[%s1 + $0x588] sm:$0xff]
  %v203 = vld [vmem:[%s1 + $0x590] sm:$0xff]
  %v204 = vld [vmem:[%s1 + $0x598] sm:$0xff]
  %v205 = vld [vmem:[%s1 + $0x5a0] sm:$0xff]
  %v206 = vld [vmem:[%s1 + $0x5a8] sm:$0xff]
  %v207 = vld [vmem:[%s1 + $0x5b0] sm:$0xff]
  %v208 = vld [vmem:[%s1 + $0x5b8] sm:$0xff]
  %v209 = vld [vmem:[%s1 + $0x5c0] sm:$0xff]
  %v210 = vld [vmem:[%s1 + $0x5c8] sm:$0xff]
  %v211 = vld [vmem:[%s1 + $0x5d0] sm:$0xff]
  %v212 = vld [vmem:[%s1 + $0x5d8] sm:$0xff]
  %v213 = vld [vmem:[%s1 + $0x5e0] sm:$0xff]
  %v214 = vld [vmem:[%s1 + $0x5e8] sm:$0xff]
  %v215 = vld [vmem:[%s1 + $0x5f0] sm:$0xff]
  %v216 = vld [vmem:[%s1 + $0x5f8] sm:$0xff]
  %v217 = vld [vmem:[%s1 + $0x600] sm:$0xff]
  %v218 = vld [vmem:[%s1 + $0x608] sm:$0xff]
  %v219 = vld [vmem:[%s1 + $0x610] sm:$0xff]
  %v220 = vld [vmem:[%s1 + $0x618] sm:$0xff]
  %v221 = vld [vmem:[%s1 + $0x620] sm:$0xff]
  %v222 = vld [vmem:[%s1 + $0x628] sm:$0xff]
  %v223 = vld [vmem:[%s1 + $0x630] sm:$0xff]
  %v224 = vld [vmem:[%s1 + $0x638] sm:$0xff]
  %v225 = vld [vmem:[%s1 + $0x640] sm:$0xff]
  %v226 = vld [vmem:[%s1 + $0x648] sm:$0xff]
  %v227 = vld [vmem:[%s1 + $0x650] sm:$0xff]
  %v228 = vld [vmem:[%s1 + $0x658] sm:$0xff]
  %v229 = vld [vmem:[%s1 + $0x660] sm:$0xff]
  %v230 = vld [vmem:[%s1 + $0x668] sm:$0xff]
  %v231 = vld [vmem:[%s1 + $0x670] sm:$0xff]
  %v232 = vld [vmem:[%s1 + $0x678] sm:$0xff]
  %v233 = vld [vmem:[%s1 + $0x680] sm:$0xff]
  %v234 = vld [vmem:[%s1 + $0x688] sm:$0xff]
  %v235 = vld [vmem:[%s1 + $0x690] sm:$0xff]
  %v236 = vld [vmem:[%s1 + $0x698] sm:$0xff]
  %v237 = vld [vmem:[%s1 + $0x6a0] sm:$0xff]
  %v238 = vld [vmem:[%s1 + $0x6a8] sm:$0xff]
  %v239 = vld [vmem:[%s1 + $0x6b0] sm:$0xff]
  %v240 = vld [vmem:[%s1 + $0x6b8] sm:$0xff]
  %v241 = vld [vmem:[%s1 + $0x6c0] sm:$0xff]
  %v242 = vld [vmem:[%s1 + $0x6c8] sm:$0xff]
  %v243 = vld [vmem:[%s1 + $0x6d0] sm:$0xff]
  %v244 = vld [vmem:[%s1 + $0x6d8] sm:$0xff]
  %v245 = vld [vmem:[%s1 + $0x6e0] sm:$0xff]
  %v246 = vld [vmem:[%s1 + $0x6e8] sm:$0xff]
  %v247 = vld [vmem:[%s1 + $0x6f0] sm:$0xff]
  %v248 = vld [vmem:[%s1 + $0x6f8] sm:$0xff]
  %v249 = vld [vmem:[%s1 + $0x700] sm:$0xff]
  %v250 = vld [vmem:[%s1 + $0x708] sm:$0xff]
  %v251 = vld [vmem:[%s1 + $0x710] sm:$0xff]
  %v252 = vld [vmem:[%s1 + $0x718] sm:$0xff]
  %v253 = vld [vmem:[%s1 + $0x720] sm:$0xff]
  %v254 = vld [vmem:[%s1 + $0x728] sm:$0xff]
  %v255 = vld [vmem:[%s1 + $0x730] sm:$0xff]
  %v256 = vld [vmem:[%s1 + $0x738] sm:$0xff]
  %v257 = vld [vmem:[%s1 + $0x740] sm:$0xff]
  %v258 = vld [vmem:[%s1 + $0x748] sm:$0xff]
  %v259 = vld [vmem:[%s1 + $0x750] sm:$0xff]
  %v260 = vld [vmem:[%s1 + $0x758] sm:$0xff]
  %v261 = vld [vmem:[%s1 + $0x760] sm:$0xff]
  %v262 = vld [vmem:[%s1 + $0x768] sm:$0xff]
  %v263 = vld [vmem:[%s1 + $0x770] sm:$0xff]
  %v264 = vld [vmem:[%s1 + $0x778] sm:$0xff]
  %v265 = vld [vmem:[%s1 + $0x780] sm:$0xff]
  %v266 = vld [vmem:[%s1 + $0x788] sm:$0xff]
  %v267 = vld [vmem:[%s1 + $0x790] sm:$0xff]
  %v268 = vld [vmem:[%s1 + $0x798] sm:$0xff]
  %v269 = vld [vmem:[%s1 + $0x7a0] sm:$0xff]
  %v270 = vld [vmem:[%s1 + $0x7a8] sm:$0xff]
  %v271 = vld [vmem:[%s1 + $0x7b0] sm:$0xff]
  %v272 = vld [vmem:[%s1 + $0x7b8] sm:$0xff]
  %v273 = vld [vmem:[%s1 + $0x7c0] sm:$0xff]
  %v274 = vld [vmem:[%s1 + $0x7c8] sm:$0xff]
  %v275 = vld [vmem:[%s1 + $0x7d0] sm:$0xff]
  %v276 = vld [vmem:[%s1 + $0x7d8] sm:$0xff]
  %v277 = vld [vmem:[%s1 + $0x7e0] sm:$0xff]
  %v278 = vld [vmem:[%s1 + $0x7e8] sm:$0xff]
  %v279 = vld [vmem:[%s1 + $0x7f0] sm:$0xff]
  %v280 = vld [vmem:[%s1 + $0x7f8] sm:$0xff]
  %v281 = vld [vmem:[%s1 + $0x800] sm:$0xff]
  %v282 = vld [vmem:[%s1 + $0x808] sm:$0xff]
  %v283 = vld [vmem:[%s1 + $0x810] sm:$0xff]
  %v284 = vld [vmem:[%s1 + $0x818] sm:$0xff]
  %v285 = vld [vmem:[%s1 + $0x820] sm:$0xff]
  %v286 = vld [vmem:[%s1 + $0x828] sm:$0xff]
  %v287 = vld [vmem:[%s1 + $0x830] sm:$0xff]
  %v288 = vld [vmem:[%s1 + $0x838] sm:$0xff]
  %v289 = vld [vmem:[%s1 + $0x840] sm:$0xff]
  %v290 = vld [vmem:[%s1 + $0x848] sm:$0xff]
  %v291 = vld [vmem:[%s1 + $0x850] sm:$0xff]
  %v292 = vld [vmem:[%s1 + $0x858] sm:$0xff]
  %v293 = vld [vmem:[%s1 + $0x860] sm:$0xff]
  %v294 = vld [vmem:[%s1 + $0x868] sm:$0xff]
  %v295 = vld [vmem:[%s1 + $0x870] sm:$0xff]
  %v296 = vld [vmem:[%s1 + $0x878] sm:$0xff]
  %v297 = vld [vmem:[%s1 + $0x880] sm:$0xff]
  %v298 = vld [vmem:[%s1 + $0x888] sm:$0xff]
  %v299 = vld [vmem:[%s1 + $0x890] sm:$0xff]
  %v300 = vld [vmem:[%s1 + $0x898] sm:$0xff]
  %v301 = vld [vmem:[%s1 + $0x8a0] sm:$0xff]
  %v302 = vld [vmem:[%s1 + $0x8a8] sm:$0xff]
  %v303 = vld [vmem:[%s1 + $0x8b0] sm:$0xff]
  %v304 = vld [vmem:[%s1 + $0x8b8] sm:$0xff]
  %v305 = vld [vmem:[%s1 + $0x8c0] sm:$0xff]
  %v306 = vld [vmem:[%s1 + $0x8c8] sm:$0xff]
  %v307 = vld [vmem:[%s1 + $0x8d0] sm:$0xff]
  %v308 = vld [vmem:[%s1 + $0x8d8] sm:$0xff]
  %v309 = vld [vmem:[%s1 + $0x8e0] sm:$0xff]
  %v310 = vld [vmem:[%s1 + $0x8e8] sm:$0xff]
  %v311 = vld [vmem:[%s1 + $0x8f0] sm:$0xff]
  %v312 = vld [vmem:[%s1 + $0x8f8] sm:$0xff]
  %v313 = vld [vmem:[%s2] sm:$0xff]
  %v314 = vld [vmem:[%s2 + $0x8] sm:$0xff]
  %316 = vset.pattern.permute.xlu0 0
  %317 = vperm.xlu0 %316, %v313
  %v318 = vpop.permute.xlu0 %317
  %321 = vset.pattern.permute.xlu0 0
  %322 = vperm.xlu0 %321, %v314
  %v323 = vpop.permute.xlu0 %322
  %v329 = vunpack.c.l.b16 %v21
  %v330 = vunpack.c.h.b16 %v21
  %v331 = vunpack.c.l.b16 %v22
  %v332 = vunpack.c.l.b16 %v23
  %v333 = vunpack.c.h.b16 %v23
  %v334 = vunpack.c.l.b16 %v24
  %v335 = vpack.c.b16 %v332, %v329
  %v336 = vpack.c.b16 %v333, %v330
  %v337 = vpack.c.b16 %v334, %v331
  %v628 = vunpack.c.l.b16 %v25
  %v629 = vunpack.c.h.b16 %v25
  %v630 = vunpack.c.l.b16 %v26
  %v631 = vunpack.c.h.b16 %v26
  %v632 = vunpack.c.l.b16 %v27
  %v633 = vunpack.c.h.b16 %v27
  %v634 = vunpack.c.l.b16 %v28
  %v635 = vunpack.c.h.b16 %v28
  %v636 = vunpack.c.l.b16 %v29
  %v637 = vunpack.c.h.b16 %v29
  %v638 = vunpack.c.l.b16 %v30
  %v639 = vunpack.c.h.b16 %v30
  %v640 = vunpack.c.l.b16 %v31
  %v641 = vunpack.c.h.b16 %v31
  %v642 = vunpack.c.l.b16 %v32
  %v643 = vunpack.c.h.b16 %v32
  %v644 = vunpack.c.l.b16 %v33
  %v645 = vunpack.c.h.b16 %v33
  %v646 = vunpack.c.l.b16 %v34
  %v647 = vunpack.c.h.b16 %v34
  %v648 = vunpack.c.l.b16 %v35
  %v649 = vunpack.c.h.b16 %v35
  %v650 = vunpack.c.l.b16 %v36
  %v651 = vunpack.c.h.b16 %v36
  %v652 = vunpack.c.l.b16 %v37
  %v653 = vunpack.c.h.b16 %v37
  %v654 = vunpack.c.l.b16 %v38
  %v655 = vunpack.c.h.b16 %v38
  %v656 = vunpack.c.l.b16 %v39
  %v657 = vunpack.c.h.b16 %v39
  %v658 = vunpack.c.l.b16 %v40
  %v659 = vunpack.c.h.b16 %v40
  %v660 = vunpack.c.l.b16 %v41
  %v661 = vunpack.c.h.b16 %v41
  %v662 = vunpack.c.l.b16 %v42
  %v663 = vunpack.c.h.b16 %v42
  %v664 = vunpack.c.l.b16 %v43
  %v665 = vunpack.c.h.b16 %v43
  %v666 = vunpack.c.l.b16 %v44
  %v667 = vunpack.c.h.b16 %v44
  %v668 = vunpack.c.l.b16 %v45
  %v669 = vunpack.c.h.b16 %v45
  %v670 = vunpack.c.l.b16 %v46
  %v671 = vunpack.c.h.b16 %v46
  %v672 = vunpack.c.l.b16 %v47
  %v673 = vunpack.c.h.b16 %v47
  %v674 = vunpack.c.l.b16 %v48
  %v675 = vunpack.c.h.b16 %v48
  %v676 = vunpack.c.l.b16 %v49
  %v677 = vunpack.c.h.b16 %v49
  %v678 = vunpack.c.l.b16 %v50
  %v679 = vunpack.c.h.b16 %v50
  %v680 = vunpack.c.l.b16 %v51
  %v681 = vunpack.c.h.b16 %v51
  %v682 = vunpack.c.l.b16 %v52
  %v683 = vunpack.c.h.b16 %v52
  %v684 = vunpack.c.l.b16 %v53
  %v685 = vunpack.c.h.b16 %v53
  %v686 = vunpack.c.l.b16 %v54
  %v687 = vunpack.c.h.b16 %v54
  %v688 = vunpack.c.l.b16 %v55
  %v689 = vunpack.c.h.b16 %v55
  %v690 = vunpack.c.l.b16 %v56
  %v691 = vunpack.c.h.b16 %v56
  %v692 = vunpack.c.l.b16 %v57
  %v693 = vunpack.c.h.b16 %v57
  %v694 = vunpack.c.l.b16 %v58
  %v695 = vunpack.c.h.b16 %v58
  %v696 = vunpack.c.l.b16 %v59
  %v697 = vunpack.c.h.b16 %v59
  %v698 = vunpack.c.l.b16 %v60
  %v699 = vunpack.c.h.b16 %v60
  %v700 = vunpack.c.l.b16 %v61
  %v701 = vunpack.c.h.b16 %v61
  %v702 = vunpack.c.l.b16 %v62
  %v703 = vunpack.c.h.b16 %v62
  %v704 = vunpack.c.l.b16 %v63
  %v705 = vunpack.c.h.b16 %v63
  %v706 = vunpack.c.l.b16 %v64
  %v707 = vunpack.c.h.b16 %v64
  %v708 = vunpack.c.l.b16 %v65
  %v709 = vunpack.c.h.b16 %v65
  %v710 = vunpack.c.l.b16 %v66
  %v711 = vunpack.c.h.b16 %v66
  %v712 = vunpack.c.l.b16 %v67
  %v713 = vunpack.c.h.b16 %v67
  %v714 = vunpack.c.l.b16 %v68
  %v715 = vunpack.c.h.b16 %v68
  %v716 = vunpack.c.l.b16 %v69
  %v717 = vunpack.c.h.b16 %v69
  %v718 = vunpack.c.l.b16 %v70
  %v719 = vunpack.c.h.b16 %v70
  %v720 = vunpack.c.l.b16 %v71
  %v721 = vunpack.c.h.b16 %v71
  %v722 = vunpack.c.l.b16 %v72
  %v723 = vunpack.c.h.b16 %v72
  %v724 = vunpack.c.l.b16 %v73
  %v725 = vunpack.c.h.b16 %v73
  %v726 = vunpack.c.l.b16 %v74
  %v727 = vunpack.c.h.b16 %v74
  %v728 = vunpack.c.l.b16 %v75
  %v729 = vunpack.c.h.b16 %v75
  %v730 = vunpack.c.l.b16 %v76
  %v731 = vunpack.c.h.b16 %v76
  %v732 = vunpack.c.l.b16 %v77
  %v733 = vunpack.c.h.b16 %v77
  %v734 = vunpack.c.l.b16 %v78
  %v735 = vunpack.c.h.b16 %v78
  %v736 = vunpack.c.l.b16 %v79
  %v737 = vunpack.c.h.b16 %v79
  %v738 = vunpack.c.l.b16 %v80
  %v739 = vunpack.c.h.b16 %v80
  %v740 = vunpack.c.l.b16 %v81
  %v741 = vunpack.c.h.b16 %v81
  %v742 = vunpack.c.l.b16 %v82
  %v743 = vunpack.c.h.b16 %v82
  %v744 = vunpack.c.l.b16 %v83
  %v745 = vunpack.c.h.b16 %v83
  %v746 = vunpack.c.l.b16 %v84
  %v747 = vunpack.c.h.b16 %v84
  %v748 = vunpack.c.l.b16 %v85
  %v749 = vunpack.c.h.b16 %v85
  %v750 = vunpack.c.l.b16 %v86
  %v751 = vunpack.c.h.b16 %v86
  %v752 = vunpack.c.l.b16 %v87
  %v753 = vunpack.c.h.b16 %v87
  %v754 = vunpack.c.l.b16 %v88
  %v755 = vunpack.c.h.b16 %v88
  %v756 = vunpack.c.l.b16 %v89
  %v757 = vunpack.c.h.b16 %v89
  %v758 = vunpack.c.l.b16 %v90
  %v759 = vunpack.c.h.b16 %v90
  %v760 = vunpack.c.l.b16 %v91
  %v761 = vunpack.c.h.b16 %v91
  %v762 = vunpack.c.l.b16 %v92
  %v763 = vunpack.c.h.b16 %v92
  %v764 = vunpack.c.l.b16 %v93
  %v765 = vunpack.c.h.b16 %v93
  %v766 = vunpack.c.l.b16 %v94
  %v767 = vunpack.c.h.b16 %v94
  %v768 = vunpack.c.l.b16 %v95
  %v769 = vunpack.c.h.b16 %v95
  %v770 = vunpack.c.l.b16 %v96
  %v771 = vunpack.c.h.b16 %v96
  %v772 = vunpack.c.l.b16 %v97
  %v773 = vunpack.c.h.b16 %v97
  %v774 = vunpack.c.l.b16 %v98
  %v775 = vunpack.c.h.b16 %v98
  %v776 = vunpack.c.l.b16 %v99
  %v777 = vunpack.c.h.b16 %v99
  %v778 = vunpack.c.l.b16 %v100
  %v779 = vunpack.c.h.b16 %v100
  %v780 = vunpack.c.l.b16 %v101
  %v781 = vunpack.c.h.b16 %v101
  %v782 = vunpack.c.l.b16 %v102
  %v783 = vunpack.c.h.b16 %v102
  %v784 = vunpack.c.l.b16 %v103
  %v785 = vunpack.c.h.b16 %v103
  %v786 = vunpack.c.l.b16 %v104
  %v787 = vunpack.c.h.b16 %v104
  %v788 = vunpack.c.l.b16 %v105
  %v789 = vunpack.c.h.b16 %v105
  %v790 = vunpack.c.l.b16 %v106
  %v791 = vunpack.c.h.b16 %v106
  %v792 = vunpack.c.l.b16 %v107
  %v793 = vunpack.c.h.b16 %v107
  %v794 = vunpack.c.l.b16 %v108
  %v795 = vunpack.c.h.b16 %v108
  %v796 = vunpack.c.l.b16 %v109
  %v797 = vunpack.c.h.b16 %v109
  %v798 = vunpack.c.l.b16 %v110
  %v799 = vunpack.c.h.b16 %v110
  %v800 = vunpack.c.l.b16 %v111
  %v801 = vunpack.c.h.b16 %v111
  %v802 = vunpack.c.l.b16 %v112
  %v803 = vunpack.c.h.b16 %v112
  %v804 = vunpack.c.l.b16 %v113
  %v805 = vunpack.c.h.b16 %v113
  %v806 = vunpack.c.l.b16 %v114
  %v807 = vunpack.c.h.b16 %v114
  %v808 = vunpack.c.l.b16 %v115
  %v809 = vunpack.c.h.b16 %v115
  %v810 = vunpack.c.l.b16 %v116
  %v811 = vunpack.c.h.b16 %v116
  %v812 = vunpack.c.l.b16 %v117
  %v813 = vunpack.c.h.b16 %v117
  %v814 = vunpack.c.l.b16 %v118
  %v815 = vunpack.c.h.b16 %v118
  %v816 = vunpack.c.l.b16 %v119
  %v817 = vunpack.c.h.b16 %v119
  %v818 = vunpack.c.l.b16 %v120
  %v819 = vunpack.c.h.b16 %v120
  %v820 = vunpack.c.l.b16 %v121
  %v821 = vunpack.c.h.b16 %v121
  %v822 = vunpack.c.l.b16 %v122
  %v823 = vunpack.c.h.b16 %v122
  %v824 = vunpack.c.l.b16 %v123
  %v825 = vunpack.c.h.b16 %v123
  %v826 = vunpack.c.l.b16 %v124
  %v827 = vunpack.c.h.b16 %v124
  %v828 = vunpack.c.l.b16 %v125
  %v829 = vunpack.c.h.b16 %v125
  %v830 = vunpack.c.l.b16 %v126
  %v831 = vunpack.c.h.b16 %v126
  %v832 = vunpack.c.l.b16 %v127
  %v833 = vunpack.c.h.b16 %v127
  %v834 = vunpack.c.l.b16 %v128
  %v835 = vunpack.c.h.b16 %v128
  %v836 = vunpack.c.l.b16 %v129
  %v837 = vunpack.c.h.b16 %v129
  %v838 = vunpack.c.l.b16 %v130
  %v839 = vunpack.c.h.b16 %v130
  %v840 = vunpack.c.l.b16 %v131
  %v841 = vunpack.c.h.b16 %v131
  %v842 = vunpack.c.l.b16 %v132
  %v843 = vunpack.c.h.b16 %v132
  %v844 = vunpack.c.l.b16 %v133
  %v845 = vunpack.c.h.b16 %v133
  %v846 = vunpack.c.l.b16 %v134
  %v847 = vunpack.c.h.b16 %v134
  %v848 = vunpack.c.l.b16 %v135
  %v849 = vunpack.c.h.b16 %v135
  %v850 = vunpack.c.l.b16 %v136
  %v851 = vunpack.c.h.b16 %v136
  %v852 = vunpack.c.l.b16 %v137
  %v853 = vunpack.c.h.b16 %v137
  %v854 = vunpack.c.l.b16 %v138
  %v855 = vunpack.c.h.b16 %v138
  %v856 = vunpack.c.l.b16 %v139
  %v857 = vunpack.c.h.b16 %v139
  %v858 = vunpack.c.l.b16 %v140
  %v859 = vunpack.c.h.b16 %v140
  %v860 = vunpack.c.l.b16 %v141
  %v861 = vunpack.c.h.b16 %v141
  %v862 = vunpack.c.l.b16 %v142
  %v863 = vunpack.c.h.b16 %v142
  %v864 = vunpack.c.l.b16 %v143
  %v865 = vunpack.c.h.b16 %v143
  %v866 = vunpack.c.l.b16 %v144
  %v867 = vunpack.c.h.b16 %v144
  %v868 = vunpack.c.l.b16 %v145
  %v869 = vunpack.c.h.b16 %v145
  %v870 = vunpack.c.l.b16 %v146
  %v871 = vunpack.c.h.b16 %v146
  %v872 = vunpack.c.l.b16 %v147
  %v873 = vunpack.c.h.b16 %v147
  %v874 = vunpack.c.l.b16 %v148
  %v875 = vunpack.c.h.b16 %v148
  %v876 = vunpack.c.l.b16 %v149
  %v877 = vunpack.c.h.b16 %v149
  %v878 = vunpack.c.l.b16 %v150
  %v879 = vunpack.c.h.b16 %v150
  %v880 = vunpack.c.l.b16 %v151
  %v881 = vunpack.c.h.b16 %v151
  %v882 = vunpack.c.l.b16 %v152
  %v883 = vunpack.c.h.b16 %v152
  %v884 = vunpack.c.l.b16 %v153
  %v885 = vunpack.c.h.b16 %v153
  %v886 = vunpack.c.l.b16 %v154
  %v887 = vunpack.c.h.b16 %v154
  %v888 = vunpack.c.l.b16 %v155
  %v889 = vunpack.c.h.b16 %v155
  %v890 = vunpack.c.l.b16 %v156
  %v891 = vunpack.c.h.b16 %v156
  %v892 = vunpack.c.l.b16 %v157
  %v893 = vunpack.c.h.b16 %v157
  %v894 = vunpack.c.l.b16 %v158
  %v895 = vunpack.c.h.b16 %v158
  %v896 = vunpack.c.l.b16 %v159
  %v897 = vunpack.c.h.b16 %v159
  %v898 = vunpack.c.l.b16 %v160
  %v899 = vunpack.c.h.b16 %v160
  %v900 = vunpack.c.l.b16 %v161
  %v901 = vunpack.c.h.b16 %v161
  %v902 = vunpack.c.l.b16 %v162
  %v903 = vunpack.c.h.b16 %v162
  %v904 = vunpack.c.l.b16 %v163
  %v905 = vunpack.c.h.b16 %v163
  %v906 = vunpack.c.l.b16 %v164
  %v907 = vunpack.c.h.b16 %v164
  %v908 = vunpack.c.l.b16 %v165
  %v909 = vunpack.c.h.b16 %v165
  %v910 = vunpack.c.l.b16 %v166
  %v911 = vunpack.c.h.b16 %v166
  %v912 = vunpack.c.l.b16 %v167
  %v913 = vunpack.c.h.b16 %v167
  %v914 = vunpack.c.l.b16 %v168
  %v915 = vunpack.c.h.b16 %v168
  %v916 = vunpack.c.l.b16 %v169
  %v917 = vunpack.c.h.b16 %v169
  %v918 = vunpack.c.l.b16 %v170
  %v919 = vunpack.c.h.b16 %v170
  %v920 = vunpack.c.l.b16 %v171
  %v921 = vunpack.c.h.b16 %v171
  %v922 = vunpack.c.l.b16 %v172
  %v923 = vunpack.c.h.b16 %v172
  %v924 = vunpack.c.l.b16 %v173
  %v925 = vunpack.c.h.b16 %v173
  %v926 = vunpack.c.l.b16 %v174
  %v927 = vunpack.c.h.b16 %v174
  %v928 = vunpack.c.l.b16 %v175
  %v929 = vunpack.c.h.b16 %v175
  %v930 = vunpack.c.l.b16 %v176
  %v931 = vunpack.c.h.b16 %v176
  %v932 = vunpack.c.l.b16 %v177
  %v933 = vunpack.c.h.b16 %v177
  %v934 = vunpack.c.l.b16 %v178
  %v935 = vunpack.c.h.b16 %v178
  %v936 = vunpack.c.l.b16 %v179
  %v937 = vunpack.c.h.b16 %v179
  %v938 = vunpack.c.l.b16 %v180
  %v939 = vunpack.c.h.b16 %v180
  %v940 = vunpack.c.l.b16 %v181
  %v941 = vunpack.c.h.b16 %v181
  %v942 = vunpack.c.l.b16 %v182
  %v943 = vunpack.c.h.b16 %v182
  %v944 = vunpack.c.l.b16 %v183
  %v945 = vunpack.c.h.b16 %v183
  %v946 = vunpack.c.l.b16 %v184
  %v947 = vunpack.c.h.b16 %v184
  %v948 = vunpack.c.l.b16 %v185
  %v949 = vunpack.c.h.b16 %v185
  %v950 = vunpack.c.l.b16 %v186
  %v951 = vunpack.c.h.b16 %v186
  %v952 = vunpack.c.l.b16 %v187
  %v953 = vunpack.c.h.b16 %v187
  %v954 = vunpack.c.l.b16 %v188
  %v955 = vunpack.c.h.b16 %v188
  %v956 = vunpack.c.l.b16 %v189
  %v957 = vunpack.c.h.b16 %v189
  %v958 = vunpack.c.l.b16 %v190
  %v959 = vunpack.c.h.b16 %v190
  %v960 = vunpack.c.l.b16 %v191
  %v961 = vunpack.c.h.b16 %v191
  %v962 = vunpack.c.l.b16 %v192
  %v963 = vunpack.c.h.b16 %v192
  %v964 = vunpack.c.l.b16 %v193
  %v965 = vunpack.c.h.b16 %v193
  %v966 = vunpack.c.l.b16 %v194
  %v967 = vunpack.c.h.b16 %v194
  %v968 = vunpack.c.l.b16 %v195
  %v969 = vunpack.c.h.b16 %v195
  %v970 = vunpack.c.l.b16 %v196
  %v971 = vunpack.c.h.b16 %v196
  %v972 = vunpack.c.l.b16 %v197
  %v973 = vunpack.c.h.b16 %v197
  %v974 = vunpack.c.l.b16 %v198
  %v975 = vunpack.c.h.b16 %v198
  %v976 = vunpack.c.l.b16 %v199
  %v977 = vunpack.c.h.b16 %v199
  %v978 = vunpack.c.l.b16 %v200
  %v979 = vunpack.c.h.b16 %v200
  %v980 = vunpack.c.l.b16 %v201
  %v981 = vunpack.c.h.b16 %v201
  %v982 = vunpack.c.l.b16 %v202
  %v983 = vunpack.c.h.b16 %v202
  %v984 = vunpack.c.l.b16 %v203
  %v985 = vunpack.c.h.b16 %v203
  %v986 = vunpack.c.l.b16 %v204
  %v987 = vunpack.c.h.b16 %v204
  %v988 = vunpack.c.l.b16 %v205
  %v989 = vunpack.c.h.b16 %v205
  %v990 = vunpack.c.l.b16 %v206
  %v991 = vunpack.c.h.b16 %v206
  %v992 = vunpack.c.l.b16 %v207
  %v993 = vunpack.c.h.b16 %v207
  %v994 = vunpack.c.l.b16 %v208
  %v995 = vunpack.c.h.b16 %v208
  %v996 = vunpack.c.l.b16 %v209
  %v997 = vunpack.c.h.b16 %v209
  %v998 = vunpack.c.l.b16 %v210
  %v999 = vunpack.c.h.b16 %v210
  %v1000 = vunpack.c.l.b16 %v211
  %v1001 = vunpack.c.h.b16 %v211
  %v1002 = vunpack.c.l.b16 %v212
  %v1003 = vunpack.c.h.b16 %v212
  %v1004 = vunpack.c.l.b16 %v213
  %v1005 = vunpack.c.h.b16 %v213
  %v1006 = vunpack.c.l.b16 %v214
  %v1007 = vunpack.c.h.b16 %v214
  %v1008 = vunpack.c.l.b16 %v215
  %v1009 = vunpack.c.h.b16 %v215
  %v1010 = vunpack.c.l.b16 %v216
  %v1011 = vunpack.c.h.b16 %v216
  %v1012 = vunpack.c.l.b16 %v217
  %v1013 = vunpack.c.h.b16 %v217
  %v1014 = vunpack.c.l.b16 %v218
  %v1015 = vunpack.c.h.b16 %v218
  %v1016 = vunpack.c.l.b16 %v219
  %v1017 = vunpack.c.h.b16 %v219
  %v1018 = vunpack.c.l.b16 %v220
  %v1019 = vunpack.c.h.b16 %v220
  %v1020 = vunpack.c.l.b16 %v221
  %v1021 = vunpack.c.h.b16 %v221
  %v1022 = vunpack.c.l.b16 %v222
  %v1023 = vunpack.c.h.b16 %v222
  %v1024 = vunpack.c.l.b16 %v223
  %v1025 = vunpack.c.h.b16 %v223
  %v1026 = vunpack.c.l.b16 %v224
  %v1027 = vunpack.c.h.b16 %v224
  %v1028 = vunpack.c.l.b16 %v225
  %v1029 = vunpack.c.h.b16 %v225
  %v1030 = vunpack.c.l.b16 %v226
  %v1031 = vunpack.c.h.b16 %v226
  %v1032 = vunpack.c.l.b16 %v227
  %v1033 = vunpack.c.h.b16 %v227
  %v1034 = vunpack.c.l.b16 %v228
  %v1035 = vunpack.c.h.b16 %v228
  %v1036 = vunpack.c.l.b16 %v229
  %v1037 = vunpack.c.h.b16 %v229
  %v1038 = vunpack.c.l.b16 %v230
  %v1039 = vunpack.c.h.b16 %v230
  %v1040 = vunpack.c.l.b16 %v231
  %v1041 = vunpack.c.h.b16 %v231
  %v1042 = vunpack.c.l.b16 %v232
  %v1043 = vunpack.c.h.b16 %v232
  %v1044 = vunpack.c.l.b16 %v233
  %v1045 = vunpack.c.h.b16 %v233
  %v1046 = vunpack.c.l.b16 %v234
  %v1047 = vunpack.c.h.b16 %v234
  %v1048 = vunpack.c.l.b16 %v235
  %v1049 = vunpack.c.h.b16 %v235
  %v1050 = vunpack.c.l.b16 %v236
  %v1051 = vunpack.c.h.b16 %v236
  %v1052 = vunpack.c.l.b16 %v237
  %v1053 = vunpack.c.h.b16 %v237
  %v1054 = vunpack.c.l.b16 %v238
  %v1055 = vunpack.c.h.b16 %v238
  %v1056 = vunpack.c.l.b16 %v239
  %v1057 = vunpack.c.h.b16 %v239
  %v1058 = vunpack.c.l.b16 %v240
  %v1059 = vunpack.c.h.b16 %v240
  %v1060 = vunpack.c.l.b16 %v241
  %v1061 = vunpack.c.h.b16 %v241
  %v1062 = vunpack.c.l.b16 %v242
  %v1063 = vunpack.c.h.b16 %v242
  %v1064 = vunpack.c.l.b16 %v243
  %v1065 = vunpack.c.h.b16 %v243
  %v1066 = vunpack.c.l.b16 %v244
  %v1067 = vunpack.c.h.b16 %v244
  %v1068 = vunpack.c.l.b16 %v245
  %v1069 = vunpack.c.h.b16 %v245
  %v1070 = vunpack.c.l.b16 %v246
  %v1071 = vunpack.c.h.b16 %v246
  %v1072 = vunpack.c.l.b16 %v247
  %v1073 = vunpack.c.h.b16 %v247
  %v1074 = vunpack.c.l.b16 %v248
  %v1075 = vunpack.c.h.b16 %v248
  %v1076 = vunpack.c.l.b16 %v249
  %v1077 = vunpack.c.h.b16 %v249
  %v1078 = vunpack.c.l.b16 %v250
  %v1079 = vunpack.c.h.b16 %v250
  %v1080 = vunpack.c.l.b16 %v251
  %v1081 = vunpack.c.h.b16 %v251
  %v1082 = vunpack.c.l.b16 %v252
  %v1083 = vunpack.c.h.b16 %v252
  %v1084 = vunpack.c.l.b16 %v253
  %v1085 = vunpack.c.h.b16 %v253
  %v1086 = vunpack.c.l.b16 %v254
  %v1087 = vunpack.c.h.b16 %v254
  %v1088 = vunpack.c.l.b16 %v255
  %v1089 = vunpack.c.h.b16 %v255
  %v1090 = vunpack.c.l.b16 %v256
  %v1091 = vunpack.c.h.b16 %v256
  %v1092 = vunpack.c.l.b16 %v257
  %v1093 = vunpack.c.h.b16 %v257
  %v1094 = vunpack.c.l.b16 %v258
  %v1095 = vunpack.c.h.b16 %v258
  %v1096 = vunpack.c.l.b16 %v259
  %v1097 = vunpack.c.h.b16 %v259
  %v1098 = vunpack.c.l.b16 %v260
  %v1099 = vunpack.c.h.b16 %v260
  %v1100 = vunpack.c.l.b16 %v261
  %v1101 = vunpack.c.h.b16 %v261
  %v1102 = vunpack.c.l.b16 %v262
  %v1103 = vunpack.c.h.b16 %v262
  %v1104 = vunpack.c.l.b16 %v263
  %v1105 = vunpack.c.h.b16 %v263
  %v1106 = vunpack.c.l.b16 %v264
  %v1107 = vunpack.c.h.b16 %v264
  %v1108 = vunpack.c.l.b16 %v265
  %v1109 = vunpack.c.h.b16 %v265
  %v1110 = vunpack.c.l.b16 %v266
  %v1111 = vunpack.c.h.b16 %v266
  %v1112 = vunpack.c.l.b16 %v267
  %v1113 = vunpack.c.h.b16 %v267
  %v1114 = vunpack.c.l.b16 %v268
  %v1115 = vunpack.c.h.b16 %v268
  %v1116 = vunpack.c.l.b16 %v269
  %v1117 = vunpack.c.h.b16 %v269
  %v1118 = vunpack.c.l.b16 %v270
  %v1119 = vunpack.c.h.b16 %v270
  %v1120 = vunpack.c.l.b16 %v271
  %v1121 = vunpack.c.h.b16 %v271
  %v1122 = vunpack.c.l.b16 %v272
  %v1123 = vunpack.c.h.b16 %v272
  %v1124 = vunpack.c.l.b16 %v273
  %v1125 = vunpack.c.h.b16 %v273
  %v1126 = vunpack.c.l.b16 %v274
  %v1127 = vunpack.c.h.b16 %v274
  %v1128 = vunpack.c.l.b16 %v275
  %v1129 = vunpack.c.h.b16 %v275
  %v1130 = vunpack.c.l.b16 %v276
  %v1131 = vunpack.c.h.b16 %v276
  %v1132 = vunpack.c.l.b16 %v277
  %v1133 = vunpack.c.h.b16 %v277
  %v1134 = vunpack.c.l.b16 %v278
  %v1135 = vunpack.c.h.b16 %v278
  %v1136 = vunpack.c.l.b16 %v279
  %v1137 = vunpack.c.h.b16 %v279
  %v1138 = vunpack.c.l.b16 %v280
  %v1139 = vunpack.c.h.b16 %v280
  %v1140 = vunpack.c.l.b16 %v281
  %v1141 = vunpack.c.h.b16 %v281
  %v1142 = vunpack.c.l.b16 %v282
  %v1143 = vunpack.c.h.b16 %v282
  %v1144 = vunpack.c.l.b16 %v283
  %v1145 = vunpack.c.h.b16 %v283
  %v1146 = vunpack.c.l.b16 %v284
  %v1147 = vunpack.c.h.b16 %v284
  %v1148 = vunpack.c.l.b16 %v285
  %v1149 = vunpack.c.h.b16 %v285
  %v1150 = vunpack.c.l.b16 %v286
  %v1151 = vunpack.c.h.b16 %v286
  %v1152 = vunpack.c.l.b16 %v287
  %v1153 = vunpack.c.h.b16 %v287
  %v1154 = vunpack.c.l.b16 %v288
  %v1155 = vunpack.c.h.b16 %v288
  %v1156 = vunpack.c.l.b16 %v289
  %v1157 = vunpack.c.h.b16 %v289
  %v1158 = vunpack.c.l.b16 %v290
  %v1159 = vunpack.c.h.b16 %v290
  %v1160 = vunpack.c.l.b16 %v291
  %v1161 = vunpack.c.h.b16 %v291
  %v1162 = vunpack.c.l.b16 %v292
  %v1163 = vunpack.c.h.b16 %v292
  %v1164 = vunpack.c.l.b16 %v293
  %v1165 = vunpack.c.h.b16 %v293
  %v1166 = vunpack.c.l.b16 %v294
  %v1167 = vunpack.c.h.b16 %v294
  %v1168 = vunpack.c.l.b16 %v295
  %v1169 = vunpack.c.h.b16 %v295
  %v1170 = vunpack.c.l.b16 %v296
  %v1171 = vunpack.c.h.b16 %v296
  %v1172 = vunpack.c.l.b16 %v297
  %v1173 = vunpack.c.h.b16 %v297
  %v1174 = vunpack.c.l.b16 %v298
  %v1175 = vunpack.c.h.b16 %v298
  %v1176 = vunpack.c.l.b16 %v299
  %v1177 = vunpack.c.h.b16 %v299
  %v1178 = vunpack.c.l.b16 %v300
  %v1179 = vunpack.c.h.b16 %v300
  %v1180 = vunpack.c.l.b16 %v301
  %v1181 = vunpack.c.h.b16 %v301
  %v1182 = vunpack.c.l.b16 %v302
  %v1183 = vunpack.c.h.b16 %v302
  %v1184 = vunpack.c.l.b16 %v303
  %v1185 = vunpack.c.h.b16 %v303
  %v1186 = vunpack.c.l.b16 %v304
  %v1187 = vunpack.c.h.b16 %v304
  %v1188 = vunpack.c.l.b16 %v305
  %v1189 = vunpack.c.h.b16 %v305
  %v1190 = vunpack.c.l.b16 %v306
  %v1191 = vunpack.c.h.b16 %v306
  %v1192 = vunpack.c.l.b16 %v307
  %v1193 = vunpack.c.h.b16 %v307
  %v1194 = vunpack.c.l.b16 %v308
  %v1195 = vunpack.c.h.b16 %v308
  %v1196 = vunpack.c.l.b16 %v309
  %v1197 = vunpack.c.h.b16 %v309
  %v1198 = vunpack.c.l.b16 %v310
  %v1199 = vunpack.c.h.b16 %v310
  %v1200 = vunpack.c.l.b16 %v311
  %v1201 = vunpack.c.h.b16 %v311
  %v1202 = vunpack.c.l.b16 %v312
  %v1203 = vunpack.c.h.b16 %v312
  %v1204 = vpack.c.b16 %v644, %v628
  %v1205 = vpack.c.b16 %v645, %v629
  %v1206 = vpack.c.b16 %v646, %v630
  %v1207 = vpack.c.b16 %v647, %v631
  %v1208 = vpack.c.b16 %v648, %v632
  %v1209 = vpack.c.b16 %v649, %v633
  %v1210 = vpack.c.b16 %v650, %v634
  %v1211 = vpack.c.b16 %v651, %v635
  %v1212 = vpack.c.b16 %v652, %v636
  %v1213 = vpack.c.b16 %v653, %v637
  %v1214 = vpack.c.b16 %v654, %v638
  %v1215 = vpack.c.b16 %v655, %v639
  %v1216 = vpack.c.b16 %v656, %v640
  %v1217 = vpack.c.b16 %v657, %v641
  %v1218 = vpack.c.b16 %v658, %v642
  %v1219 = vpack.c.b16 %v659, %v643
  %v1220 = vpack.c.b16 %v676, %v660
  %v1221 = vpack.c.b16 %v677, %v661
  %v1222 = vpack.c.b16 %v678, %v662
  %v1223 = vpack.c.b16 %v679, %v663
  %v1224 = vpack.c.b16 %v680, %v664
  %v1225 = vpack.c.b16 %v681, %v665
  %v1226 = vpack.c.b16 %v682, %v666
  %v1227 = vpack.c.b16 %v683, %v667
  %v1228 = vpack.c.b16 %v684, %v668
  %v1229 = vpack.c.b16 %v685, %v669
  %v1230 = vpack.c.b16 %v686, %v670
  %v1231 = vpack.c.b16 %v687, %v671
  %v1232 = vpack.c.b16 %v688, %v672
  %v1233 = vpack.c.b16 %v689, %v673
  %v1234 = vpack.c.b16 %v690, %v674
  %v1235 = vpack.c.b16 %v691, %v675
  %v1236 = vpack.c.b16 %v708, %v692
  %v1237 = vpack.c.b16 %v709, %v693
  %v1238 = vpack.c.b16 %v710, %v694
  %v1239 = vpack.c.b16 %v711, %v695
  %v1240 = vpack.c.b16 %v712, %v696
  %v1241 = vpack.c.b16 %v713, %v697
  %v1242 = vpack.c.b16 %v714, %v698
  %v1243 = vpack.c.b16 %v715, %v699
  %v1244 = vpack.c.b16 %v716, %v700
  %v1245 = vpack.c.b16 %v717, %v701
  %v1246 = vpack.c.b16 %v718, %v702
  %v1247 = vpack.c.b16 %v719, %v703
  %v1248 = vpack.c.b16 %v720, %v704
  %v1249 = vpack.c.b16 %v721, %v705
  %v1250 = vpack.c.b16 %v722, %v706
  %v1251 = vpack.c.b16 %v723, %v707
  %v1252 = vpack.c.b16 %v740, %v724
  %v1253 = vpack.c.b16 %v741, %v725
  %v1254 = vpack.c.b16 %v742, %v726
  %v1255 = vpack.c.b16 %v743, %v727
  %v1256 = vpack.c.b16 %v744, %v728
  %v1257 = vpack.c.b16 %v745, %v729
  %v1258 = vpack.c.b16 %v746, %v730
  %v1259 = vpack.c.b16 %v747, %v731
  %v1260 = vpack.c.b16 %v748, %v732
  %v1261 = vpack.c.b16 %v749, %v733
  %v1262 = vpack.c.b16 %v750, %v734
  %v1263 = vpack.c.b16 %v751, %v735
  %v1264 = vpack.c.b16 %v752, %v736
  %v1265 = vpack.c.b16 %v753, %v737
  %v1266 = vpack.c.b16 %v754, %v738
  %v1267 = vpack.c.b16 %v755, %v739
  %v1268 = vpack.c.b16 %v772, %v756
  %v1269 = vpack.c.b16 %v773, %v757
  %v1270 = vpack.c.b16 %v774, %v758
  %v1271 = vpack.c.b16 %v775, %v759
  %v1272 = vpack.c.b16 %v776, %v760
  %v1273 = vpack.c.b16 %v777, %v761
  %v1274 = vpack.c.b16 %v778, %v762
  %v1275 = vpack.c.b16 %v779, %v763
  %v1276 = vpack.c.b16 %v780, %v764
  %v1277 = vpack.c.b16 %v781, %v765
  %v1278 = vpack.c.b16 %v782, %v766
  %v1279 = vpack.c.b16 %v783, %v767
  %v1280 = vpack.c.b16 %v784, %v768
  %v1281 = vpack.c.b16 %v785, %v769
  %v1282 = vpack.c.b16 %v786, %v770
  %v1283 = vpack.c.b16 %v787, %v771
  %v1284 = vpack.c.b16 %v804, %v788
  %v1285 = vpack.c.b16 %v805, %v789
  %v1286 = vpack.c.b16 %v806, %v790
  %v1287 = vpack.c.b16 %v807, %v791
  %v1288 = vpack.c.b16 %v808, %v792
  %v1289 = vpack.c.b16 %v809, %v793
  %v1290 = vpack.c.b16 %v810, %v794
  %v1291 = vpack.c.b16 %v811, %v795
  %v1292 = vpack.c.b16 %v812, %v796
  %v1293 = vpack.c.b16 %v813, %v797
  %v1294 = vpack.c.b16 %v814, %v798
  %v1295 = vpack.c.b16 %v815, %v799
  %v1296 = vpack.c.b16 %v816, %v800
  %v1297 = vpack.c.b16 %v817, %v801
  %v1298 = vpack.c.b16 %v818, %v802
  %v1299 = vpack.c.b16 %v819, %v803
  %v1300 = vpack.c.b16 %v836, %v820
  %v1301 = vpack.c.b16 %v837, %v821
  %v1302 = vpack.c.b16 %v838, %v822
  %v1303 = vpack.c.b16 %v839, %v823
  %v1304 = vpack.c.b16 %v840, %v824
  %v1305 = vpack.c.b16 %v841, %v825
  %v1306 = vpack.c.b16 %v842, %v826
  %v1307 = vpack.c.b16 %v843, %v827
  %v1308 = vpack.c.b16 %v844, %v828
  %v1309 = vpack.c.b16 %v845, %v829
  %v1310 = vpack.c.b16 %v846, %v830
  %v1311 = vpack.c.b16 %v847, %v831
  %v1312 = vpack.c.b16 %v848, %v832
  %v1313 = vpack.c.b16 %v849, %v833
  %v1314 = vpack.c.b16 %v850, %v834
  %v1315 = vpack.c.b16 %v851, %v835
  %v1316 = vpack.c.b16 %v868, %v852
  %v1317 = vpack.c.b16 %v869, %v853
  %v1318 = vpack.c.b16 %v870, %v854
  %v1319 = vpack.c.b16 %v871, %v855
  %v1320 = vpack.c.b16 %v872, %v856
  %v1321 = vpack.c.b16 %v873, %v857
  %v1322 = vpack.c.b16 %v874, %v858
  %v1323 = vpack.c.b16 %v875, %v859
  %v1324 = vpack.c.b16 %v876, %v860
  %v1325 = vpack.c.b16 %v877, %v861
  %v1326 = vpack.c.b16 %v878, %v862
  %v1327 = vpack.c.b16 %v879, %v863
  %v1328 = vpack.c.b16 %v880, %v864
  %v1329 = vpack.c.b16 %v881, %v865
  %v1330 = vpack.c.b16 %v882, %v866
  %v1331 = vpack.c.b16 %v883, %v867
  %v1332 = vpack.c.b16 %v900, %v884
  %v1333 = vpack.c.b16 %v901, %v885
  %v1334 = vpack.c.b16 %v902, %v886
  %v1335 = vpack.c.b16 %v903, %v887
  %v1336 = vpack.c.b16 %v904, %v888
  %v1337 = vpack.c.b16 %v905, %v889
  %v1338 = vpack.c.b16 %v906, %v890
  %v1339 = vpack.c.b16 %v907, %v891
  %v1340 = vpack.c.b16 %v908, %v892
  %v1341 = vpack.c.b16 %v909, %v893
  %v1342 = vpack.c.b16 %v910, %v894
  %v1343 = vpack.c.b16 %v911, %v895
  %v1344 = vpack.c.b16 %v912, %v896
  %v1345 = vpack.c.b16 %v913, %v897
  %v1346 = vpack.c.b16 %v914, %v898
  %v1347 = vpack.c.b16 %v915, %v899
  %v1348 = vpack.c.b16 %v932, %v916
  %v1349 = vpack.c.b16 %v933, %v917
  %v1350 = vpack.c.b16 %v934, %v918
  %v1351 = vpack.c.b16 %v935, %v919
  %v1352 = vpack.c.b16 %v936, %v920
  %v1353 = vpack.c.b16 %v937, %v921
  %v1354 = vpack.c.b16 %v938, %v922
  %v1355 = vpack.c.b16 %v939, %v923
  %v1356 = vpack.c.b16 %v940, %v924
  %v1357 = vpack.c.b16 %v941, %v925
  %v1358 = vpack.c.b16 %v942, %v926
  %v1359 = vpack.c.b16 %v943, %v927
  %v1360 = vpack.c.b16 %v944, %v928
  %v1361 = vpack.c.b16 %v945, %v929
  %v1362 = vpack.c.b16 %v946, %v930
  %v1363 = vpack.c.b16 %v947, %v931
  %v1364 = vpack.c.b16 %v964, %v948
  %v1365 = vpack.c.b16 %v965, %v949
  %v1366 = vpack.c.b16 %v966, %v950
  %v1367 = vpack.c.b16 %v967, %v951
  %v1368 = vpack.c.b16 %v968, %v952
  %v1369 = vpack.c.b16 %v969, %v953
  %v1370 = vpack.c.b16 %v970, %v954
  %v1371 = vpack.c.b16 %v971, %v955
  %v1372 = vpack.c.b16 %v972, %v956
  %v1373 = vpack.c.b16 %v973, %v957
  %v1374 = vpack.c.b16 %v974, %v958
  %v1375 = vpack.c.b16 %v975, %v959
  %v1376 = vpack.c.b16 %v976, %v960
  %v1377 = vpack.c.b16 %v977, %v961
  %v1378 = vpack.c.b16 %v978, %v962
  %v1379 = vpack.c.b16 %v979, %v963
  %v1380 = vpack.c.b16 %v996, %v980
  %v1381 = vpack.c.b16 %v997, %v981
  %v1382 = vpack.c.b16 %v998, %v982
  %v1383 = vpack.c.b16 %v999, %v983
  %v1384 = vpack.c.b16 %v1000, %v984
  %v1385 = vpack.c.b16 %v1001, %v985
  %v1386 = vpack.c.b16 %v1002, %v986
  %v1387 = vpack.c.b16 %v1003, %v987
  %v1388 = vpack.c.b16 %v1004, %v988
  %v1389 = vpack.c.b16 %v1005, %v989
  %v1390 = vpack.c.b16 %v1006, %v990
  %v1391 = vpack.c.b16 %v1007, %v991
  %v1392 = vpack.c.b16 %v1008, %v992
  %v1393 = vpack.c.b16 %v1009, %v993
  %v1394 = vpack.c.b16 %v1010, %v994
  %v1395 = vpack.c.b16 %v1011, %v995
  %v1396 = vpack.c.b16 %v1028, %v1012
  %v1397 = vpack.c.b16 %v1029, %v1013
  %v1398 = vpack.c.b16 %v1030, %v1014
  %v1399 = vpack.c.b16 %v1031, %v1015
  %v1400 = vpack.c.b16 %v1032, %v1016
  %v1401 = vpack.c.b16 %v1033, %v1017
  %v1402 = vpack.c.b16 %v1034, %v1018
  %v1403 = vpack.c.b16 %v1035, %v1019
  %v1404 = vpack.c.b16 %v1036, %v1020
  %v1405 = vpack.c.b16 %v1037, %v1021
  %v1406 = vpack.c.b16 %v1038, %v1022
  %v1407 = vpack.c.b16 %v1039, %v1023
  %v1408 = vpack.c.b16 %v1040, %v1024
  %v1409 = vpack.c.b16 %v1041, %v1025
  %v1410 = vpack.c.b16 %v1042, %v1026
  %v1411 = vpack.c.b16 %v1043, %v1027
  %v1412 = vpack.c.b16 %v1060, %v1044
  %v1413 = vpack.c.b16 %v1061, %v1045
  %v1414 = vpack.c.b16 %v1062, %v1046
  %v1415 = vpack.c.b16 %v1063, %v1047
  %v1416 = vpack.c.b16 %v1064, %v1048
  %v1417 = vpack.c.b16 %v1065, %v1049
  %v1418 = vpack.c.b16 %v1066, %v1050
  %v1419 = vpack.c.b16 %v1067, %v1051
  %v1420 = vpack.c.b16 %v1068, %v1052
  %v1421 = vpack.c.b16 %v1069, %v1053
  %v1422 = vpack.c.b16 %v1070, %v1054
  %v1423 = vpack.c.b16 %v1071, %v1055
  %v1424 = vpack.c.b16 %v1072, %v1056
  %v1425 = vpack.c.b16 %v1073, %v1057
  %v1426 = vpack.c.b16 %v1074, %v1058
  %v1427 = vpack.c.b16 %v1075, %v1059
  %v1428 = vpack.c.b16 %v1092, %v1076
  %v1429 = vpack.c.b16 %v1093, %v1077
  %v1430 = vpack.c.b16 %v1094, %v1078
  %v1431 = vpack.c.b16 %v1095, %v1079
  %v1432 = vpack.c.b16 %v1096, %v1080
  %v1433 = vpack.c.b16 %v1097, %v1081
  %v1434 = vpack.c.b16 %v1098, %v1082
  %v1435 = vpack.c.b16 %v1099, %v1083
  %v1436 = vpack.c.b16 %v1100, %v1084
  %v1437 = vpack.c.b16 %v1101, %v1085
  %v1438 = vpack.c.b16 %v1102, %v1086
  %v1439 = vpack.c.b16 %v1103, %v1087
  %v1440 = vpack.c.b16 %v1104, %v1088
  %v1441 = vpack.c.b16 %v1105, %v1089
  %v1442 = vpack.c.b16 %v1106, %v1090
  %v1443 = vpack.c.b16 %v1107, %v1091
  %v1444 = vpack.c.b16 %v1124, %v1108
  %v1445 = vpack.c.b16 %v1125, %v1109
  %v1446 = vpack.c.b16 %v1126, %v1110
  %v1447 = vpack.c.b16 %v1127, %v1111
  %v1448 = vpack.c.b16 %v1128, %v1112
  %v1449 = vpack.c.b16 %v1129, %v1113
  %v1450 = vpack.c.b16 %v1130, %v1114
  %v1451 = vpack.c.b16 %v1131, %v1115
  %v1452 = vpack.c.b16 %v1132, %v1116
  %v1453 = vpack.c.b16 %v1133, %v1117
  %v1454 = vpack.c.b16 %v1134, %v1118
  %v1455 = vpack.c.b16 %v1135, %v1119
  %v1456 = vpack.c.b16 %v1136, %v1120
  %v1457 = vpack.c.b16 %v1137, %v1121
  %v1458 = vpack.c.b16 %v1138, %v1122
  %v1459 = vpack.c.b16 %v1139, %v1123
  %v1460 = vpack.c.b16 %v1156, %v1140
  %v1461 = vpack.c.b16 %v1157, %v1141
  %v1462 = vpack.c.b16 %v1158, %v1142
  %v1463 = vpack.c.b16 %v1159, %v1143
  %v1464 = vpack.c.b16 %v1160, %v1144
  %v1465 = vpack.c.b16 %v1161, %v1145
  %v1466 = vpack.c.b16 %v1162, %v1146
  %v1467 = vpack.c.b16 %v1163, %v1147
  %v1468 = vpack.c.b16 %v1164, %v1148
  %v1469 = vpack.c.b16 %v1165, %v1149
  %v1470 = vpack.c.b16 %v1166, %v1150
  %v1471 = vpack.c.b16 %v1167, %v1151
  %v1472 = vpack.c.b16 %v1168, %v1152
  %v1473 = vpack.c.b16 %v1169, %v1153
  %v1474 = vpack.c.b16 %v1170, %v1154
  %v1475 = vpack.c.b16 %v1171, %v1155
  %v1476 = vpack.c.b16 %v1188, %v1172
  %v1477 = vpack.c.b16 %v1189, %v1173
  %v1478 = vpack.c.b16 %v1190, %v1174
  %v1479 = vpack.c.b16 %v1191, %v1175
  %v1480 = vpack.c.b16 %v1192, %v1176
  %v1481 = vpack.c.b16 %v1193, %v1177
  %v1482 = vpack.c.b16 %v1194, %v1178
  %v1483 = vpack.c.b16 %v1195, %v1179
  %v1484 = vpack.c.b16 %v1196, %v1180
  %v1485 = vpack.c.b16 %v1197, %v1181
  %v1486 = vpack.c.b16 %v1198, %v1182
  %v1487 = vpack.c.b16 %v1199, %v1183
  %v1488 = vpack.c.b16 %v1200, %v1184
  %v1489 = vpack.c.b16 %v1201, %v1185
  %v1490 = vpack.c.b16 %v1202, %v1186
  %v1491 = vpack.c.b16 %v1203, %v1187
  %vm1780 = vcmask 261120
  %v1782 = vsel %vm1780, %v337, 0
  %1784 = vmatprep.subr.bf16.mxu0 %v1317
  %1785 = vmatpush1.bf16.msra.mxu0 %v1316
  %1786 = vmatprep.subr.bf16.mxu0 %v1301
  %1787 = vmatpush1.bf16.msra.mxu0 %v1300
  %1788 = vmatprep.subr.bf16.mxu0 %v1285
  %1789 = vmatpush1.bf16.msra.mxu0 %v1284
  %1790 = vmatprep.subr.bf16.mxu0 %v1269
  %1791 = vmatpush1.bf16.msra.mxu0 %v1268
  %1792 = vmatprep.subr.bf16.mxu0 %v1253
  %1793 = vmatpush1.bf16.msra.mxu0 %v1252
  %1794 = vmatprep.subr.bf16.mxu0 %v1237
  %1795 = vmatpush1.bf16.msra.mxu0 %v1236
  %1796 = vmatprep.subr.bf16.mxu0 %v1221
  %1797 = vmatpush1.bf16.msra.mxu0 %v1220
  %1798 = vmatprep.subr.bf16.mxu0 %v1205
  %1799 = vmatpush1.bf16.msra.mxu0 %v1204
  %1800 = vmatprep.subr.bf16.mxu0 %v1445
  %1801 = vmatpush2.bf16.msra.mxu0 %v1444
  %1802 = vmatprep.subr.bf16.mxu0 %v1429
  %1803 = vmatpush2.bf16.msra.mxu0 %v1428
  %1804 = vmatprep.subr.bf16.mxu0 %v1413
  %1805 = vmatpush2.bf16.msra.mxu0 %v1412
  %1806 = vmatprep.subr.bf16.mxu0 %v1397
  %1807 = vmatpush2.bf16.msra.mxu0 %v1396
  %1808 = vmatprep.subr.bf16.mxu0 %v1381
  %1809 = vmatpush2.bf16.msra.mxu0 %v1380
  %1810 = vmatprep.subr.bf16.mxu0 %v1365
  %1811 = vmatpush2.bf16.msra.mxu0 %v1364
  %1812 = vmatprep.subr.bf16.mxu0 %v1349
  %1813 = vmatpush2.bf16.msra.mxu0 %v1348
  %1814 = vmatprep.subr.bf16.mxu0 %v1333
  %1815 = vmatpush2.bf16.msra.mxu0 %v1332
  %1816 = vmatprep.mubr.bf16.mxu0 %v336
  %1817 = vmatmul.mubr.bf16.gmra.mxu0 %v335
  %v1818 = vpop.f32.mrf.mxu0
  %v1819 = vadd.f32 %v318, %v1818
  %v1820 = vpop.f32.mrf.mxu0
  %v1821 = vadd.f32 %v318, %v1820
  %v1822 = vpop.f32.mrf.mxu0
  %v1823 = vadd.f32 %v323, %v1822
  %v1824 = vpop.f32.mrf.mxu0
  %v1825 = vadd.f32 %v323, %v1824
  %1826 = vdwg.mxu0
  %1827 = vmatprep.subr.bf16.mxu0 0
  %1828 = vmatpush1.bf16.msra.mxu0 0
  %1829 = vmatprep.subr.bf16.mxu0 0
  %1830 = vmatpush1.bf16.msra.mxu0 0
  %1831 = vmatprep.subr.bf16.mxu0 0
  %1832 = vmatpush1.bf16.msra.mxu0 0
  %1833 = vmatprep.subr.bf16.mxu0 0
  %1834 = vmatpush1.bf16.msra.mxu0 0
  %1835 = vmatprep.subr.bf16.mxu0 0
  %1836 = vmatpush1.bf16.msra.mxu0 0
  %1837 = vmatprep.subr.bf16.mxu0 0
  %1838 = vmatpush1.bf16.msra.mxu0 0
  %1839 = vmatprep.subr.bf16.mxu0 %v1477
  %1840 = vmatpush1.bf16.msra.mxu0 %v1476
  %1841 = vmatprep.subr.bf16.mxu0 %v1461
  %1842 = vmatpush1.bf16.msra.mxu0 %v1460
  %1843 = vmatprep.subr.bf16.mxu0 0
  %1844 = vmatpush2.bf16.msra.mxu0 0
  %1845 = vmatprep.subr.bf16.mxu0 0
  %1846 = vmatpush2.bf16.msra.mxu0 0
  %1847 = vmatprep.subr.bf16.mxu0 0
  %1848 = vmatpush2.bf16.msra.mxu0 0
  %1849 = vmatprep.subr.bf16.mxu0 0
  %1850 = vmatpush2.bf16.msra.mxu0 0
  %1851 = vmatprep.subr.bf16.mxu0 0
  %1852 = vmatpush2.bf16.msra.mxu0 0
  %1853 = vmatprep.subr.bf16.mxu0 0
  %1854 = vmatpush2.bf16.msra.mxu0 0
  %1855 = vmatprep.subr.bf16.mxu0 0
  %1856 = vmatpush2.bf16.msra.mxu0 0
  %1857 = vmatprep.subr.bf16.mxu0 0
  %1858 = vmatpush2.bf16.msra.mxu0 0
  %1859 = vmatprep.mubr.bf16.mxu0 0
  %1860 = vmatmul.mubr.bf16.gmra.mxu0 %v1782
  %v1861 = vpop.f32.mrf.mxu0
  %v1862 = vadd.f32 %v1819, %v1861
  %v1863 = vpop.f32.mrf.mxu0
  %v1864 = vadd.f32 %v1821, %v1863
  %v1865 = vpop.f32.mrf.mxu0
  %v1866 = vadd.f32 %v1823, %v1865
  %v1867 = vpop.f32.mrf.mxu0
  %v1868 = vadd.f32 %v1825, %v1867
  %1869 = vdwg.mxu0
  %1870 = vmatprep.subr.bf16.mxu0 %v1319
  %1871 = vmatpush1.bf16.msra.mxu0 %v1318
  %1872 = vmatprep.subr.bf16.mxu0 %v1303
  %1873 = vmatpush1.bf16.msra.mxu0 %v1302
  %1874 = vmatprep.subr.bf16.mxu0 %v1287
  %1875 = vmatpush1.bf16.msra.mxu0 %v1286
  %1876 = vmatprep.subr.bf16.mxu0 %v1271
  %1877 = vmatpush1.bf16.msra.mxu0 %v1270
  %1878 = vmatprep.subr.bf16.mxu0 %v1255
  %1879 = vmatpush1.bf16.msra.mxu0 %v1254
  %1880 = vmatprep.subr.bf16.mxu0 %v1239
  %1881 = vmatpush1.bf16.msra.mxu0 %v1238
  %1882 = vmatprep.subr.bf16.mxu0 %v1223
  %1883 = vmatpush1.bf16.msra.mxu0 %v1222
  %1884 = vmatprep.subr.bf16.mxu0 %v1207
  %1885 = vmatpush1.bf16.msra.mxu0 %v1206
  %1886 = vmatprep.subr.bf16.mxu0 %v1447
  %1887 = vmatpush2.bf16.msra.mxu0 %v1446
  %1888 = vmatprep.subr.bf16.mxu0 %v1431
  %1889 = vmatpush2.bf16.msra.mxu0 %v1430
  %1890 = vmatprep.subr.bf16.mxu0 %v1415
  %1891 = vmatpush2.bf16.msra.mxu0 %v1414
  %1892 = vmatprep.subr.bf16.mxu0 %v1399
  %1893 = vmatpush2.bf16.msra.mxu0 %v1398
  %1894 = vmatprep.subr.bf16.mxu0 %v1383
  %1895 = vmatpush2.bf16.msra.mxu0 %v1382
  %1896 = vmatprep.subr.bf16.mxu0 %v1367
  %1897 = vmatpush2.bf16.msra.mxu0 %v1366
  %1898 = vmatprep.subr.bf16.mxu0 %v1351
  %1899 = vmatpush2.bf16.msra.mxu0 %v1350
  %1900 = vmatprep.subr.bf16.mxu0 %v1335
  %1901 = vmatpush2.bf16.msra.mxu0 %v1334
  %1902 = vmatprep.mubr.bf16.mxu0 %v336
  %1903 = vmatmul.mubr.bf16.gmra.mxu0 %v335
  %v1904 = vpop.f32.mrf.mxu0
  %v1905 = vadd.f32 %v318, %v1904
  %v1906 = vpop.f32.mrf.mxu0
  %v1907 = vadd.f32 %v318, %v1906
  %v1908 = vpop.f32.mrf.mxu0
  %v1909 = vadd.f32 %v323, %v1908
  %v1910 = vpop.f32.mrf.mxu0
  %v1911 = vadd.f32 %v323, %v1910
  %1912 = vdwg.mxu0
  %1913 = vmatprep.subr.bf16.mxu0 0
  %1914 = vmatpush1.bf16.msra.mxu0 0
  %1915 = vmatprep.subr.bf16.mxu0 0
  %1916 = vmatpush1.bf16.msra.mxu0 0
  %1917 = vmatprep.subr.bf16.mxu0 0
  %1918 = vmatpush1.bf16.msra.mxu0 0
  %1919 = vmatprep.subr.bf16.mxu0 0
  %1920 = vmatpush1.bf16.msra.mxu0 0
  %1921 = vmatprep.subr.bf16.mxu0 0
  %1922 = vmatpush1.bf16.msra.mxu0 0
  %1923 = vmatprep.subr.bf16.mxu0 0
  %1924 = vmatpush1.bf16.msra.mxu0 0
  %1925 = vmatprep.subr.bf16.mxu0 %v1479
  %1926 = vmatpush1.bf16.msra.mxu0 %v1478
  %1927 = vmatprep.subr.bf16.mxu0 %v1463
  %1928 = vmatpush1.bf16.msra.mxu0 %v1462
  %1929 = vmatprep.subr.bf16.mxu0 0
  %1930 = vmatpush2.bf16.msra.mxu0 0
  %1931 = vmatprep.subr.bf16.mxu0 0
  %1932 = vmatpush2.bf16.msra.mxu0 0
  %1933 = vmatprep.subr.bf16.mxu0 0
  %1934 = vmatpush2.bf16.msra.mxu0 0
  %1935 = vmatprep.subr.bf16.mxu0 0
  %1936 = vmatpush2.bf16.msra.mxu0 0
  %1937 = vmatprep.subr.bf16.mxu0 0
  %1938 = vmatpush2.bf16.msra.mxu0 0
  %1939 = vmatprep.subr.bf16.mxu0 0
  %1940 = vmatpush2.bf16.msra.mxu0 0
  %1941 = vmatprep.subr.bf16.mxu0 0
  %1942 = vmatpush2.bf16.msra.mxu0 0
  %1943 = vmatprep.subr.bf16.mxu0 0
  %1944 = vmatpush2.bf16.msra.mxu0 0
  %1945 = vmatprep.mubr.bf16.mxu0 0
  %1946 = vmatmul.mubr.bf16.gmra.mxu0 %v1782
  %v1947 = vpop.f32.mrf.mxu0
  %v1948 = vadd.f32 %v1905, %v1947
  %v1949 = vpop.f32.mrf.mxu0
  %v1950 = vadd.f32 %v1907, %v1949
  %v1951 = vpop.f32.mrf.mxu0
  %v1952 = vadd.f32 %v1909, %v1951
  %v1953 = vpop.f32.mrf.mxu0
  %v1954 = vadd.f32 %v1911, %v1953
  %1955 = vdwg.mxu0
  %1956 = vmatprep.subr.bf16.mxu0 %v1321
  %1957 = vmatpush1.bf16.msra.mxu0 %v1320
  %1958 = vmatprep.subr.bf16.mxu0 %v1305
  %1959 = vmatpush1.bf16.msra.mxu0 %v1304
  %1960 = vmatprep.subr.bf16.mxu0 %v1289
  %1961 = vmatpush1.bf16.msra.mxu0 %v1288
  %1962 = vmatprep.subr.bf16.mxu0 %v1273
  %1963 = vmatpush1.bf16.msra.mxu0 %v1272
  %1964 = vmatprep.subr.bf16.mxu0 %v1257
  %1965 = vmatpush1.bf16.msra.mxu0 %v1256
  %1966 = vmatprep.subr.bf16.mxu0 %v1241
  %1967 = vmatpush1.bf16.msra.mxu0 %v1240
  %1968 = vmatprep.subr.bf16.mxu0 %v1225
  %1969 = vmatpush1.bf16.msra.mxu0 %v1224
  %1970 = vmatprep.subr.bf16.mxu0 %v1209
  %1971 = vmatpush1.bf16.msra.mxu0 %v1208
  %1972 = vmatprep.subr.bf16.mxu0 %v1449
  %1973 = vmatpush2.bf16.msra.mxu0 %v1448
  %1974 = vmatprep.subr.bf16.mxu0 %v1433
  %1975 = vmatpush2.bf16.msra.mxu0 %v1432
  %1976 = vmatprep.subr.bf16.mxu0 %v1417
  %1977 = vmatpush2.bf16.msra.mxu0 %v1416
  %1978 = vmatprep.subr.bf16.mxu0 %v1401
  %1979 = vmatpush2.bf16.msra.mxu0 %v1400
  %1980 = vmatprep.subr.bf16.mxu0 %v1385
  %1981 = vmatpush2.bf16.msra.mxu0 %v1384
  %1982 = vmatprep.subr.bf16.mxu0 %v1369
  %1983 = vmatpush2.bf16.msra.mxu0 %v1368
  %1984 = vmatprep.subr.bf16.mxu0 %v1353
  %1985 = vmatpush2.bf16.msra.mxu0 %v1352
  %1986 = vmatprep.subr.bf16.mxu0 %v1337
  %1987 = vmatpush2.bf16.msra.mxu0 %v1336
  %1988 = vmatprep.mubr.bf16.mxu0 %v336
  %1989 = vmatmul.mubr.bf16.gmra.mxu0 %v335
  %v1990 = vpop.f32.mrf.mxu0
  %v1991 = vadd.f32 %v318, %v1990
  %v1992 = vpop.f32.mrf.mxu0
  %v1993 = vadd.f32 %v318, %v1992
  %v1994 = vpop.f32.mrf.mxu0
  %v1995 = vadd.f32 %v323, %v1994
  %v1996 = vpop.f32.mrf.mxu0
  %v1997 = vadd.f32 %v323, %v1996
  %1998 = vdwg.mxu0
  %1999 = vmatprep.subr.bf16.mxu0 0
  %2000 = vmatpush1.bf16.msra.mxu0 0
  %2001 = vmatprep.subr.bf16.mxu0 0
  %2002 = vmatpush1.bf16.msra.mxu0 0
  %2003 = vmatprep.subr.bf16.mxu0 0
  %2004 = vmatpush1.bf16.msra.mxu0 0
  %2005 = vmatprep.subr.bf16.mxu0 0
  %2006 = vmatpush1.bf16.msra.mxu0 0
  %2007 = vmatprep.subr.bf16.mxu0 0
  %2008 = vmatpush1.bf16.msra.mxu0 0
  %2009 = vmatprep.subr.bf16.mxu0 0
  %2010 = vmatpush1.bf16.msra.mxu0 0
  %2011 = vmatprep.subr.bf16.mxu0 %v1481
  %2012 = vmatpush1.bf16.msra.mxu0 %v1480
  %2013 = vmatprep.subr.bf16.mxu0 %v1465
  %2014 = vmatpush1.bf16.msra.mxu0 %v1464
  %2015 = vmatprep.subr.bf16.mxu0 0
  %2016 = vmatpush2.bf16.msra.mxu0 0
  %2017 = vmatprep.subr.bf16.mxu0 0
  %2018 = vmatpush2.bf16.msra.mxu0 0
  %2019 = vmatprep.subr.bf16.mxu0 0
  %2020 = vmatpush2.bf16.msra.mxu0 0
  %2021 = vmatprep.subr.bf16.mxu0 0
  %2022 = vmatpush2.bf16.msra.mxu0 0
  %2023 = vmatprep.subr.bf16.mxu0 0
  %2024 = vmatpush2.bf16.msra.mxu0 0
  %2025 = vmatprep.subr.bf16.mxu0 0
  %2026 = vmatpush2.bf16.msra.mxu0 0
  %2027 = vmatprep.subr.bf16.mxu0 0
  %2028 = vmatpush2.bf16.msra.mxu0 0
  %2029 = vmatprep.subr.bf16.mxu0 0
  %2030 = vmatpush2.bf16.msra.mxu0 0
  %2031 = vmatprep.mubr.bf16.mxu0 0
  %2032 = vmatmul.mubr.bf16.gmra.mxu0 %v1782
  %v2033 = vpop.f32.mrf.mxu0
  %v2034 = vadd.f32 %v1991, %v2033
  %v2035 = vpop.f32.mrf.mxu0
  %v2036 = vadd.f32 %v1993, %v2035
  %v2037 = vpop.f32.mrf.mxu0
  %v2038 = vadd.f32 %v1995, %v2037
  %v2039 = vpop.f32.mrf.mxu0
  %v2040 = vadd.f32 %v1997, %v2039
  %2041 = vdwg.mxu0
  %2042 = vmatprep.subr.bf16.mxu0 %v1323
  %2043 = vmatpush1.bf16.msra.mxu0 %v1322
  %2044 = vmatprep.subr.bf16.mxu0 %v1307
  %2045 = vmatpush1.bf16.msra.mxu0 %v1306
  %2046 = vmatprep.subr.bf16.mxu0 %v1291
  %2047 = vmatpush1.bf16.msra.mxu0 %v1290
  %2048 = vmatprep.subr.bf16.mxu0 %v1275
  %2049 = vmatpush1.bf16.msra.mxu0 %v1274
  %2050 = vmatprep.subr.bf16.mxu0 %v1259
  %2051 = vmatpush1.bf16.msra.mxu0 %v1258
  %2052 = vmatprep.subr.bf16.mxu0 %v1243
  %2053 = vmatpush1.bf16.msra.mxu0 %v1242
  %2054 = vmatprep.subr.bf16.mxu0 %v1227
  %2055 = vmatpush1.bf16.msra.mxu0 %v1226
  %2056 = vmatprep.subr.bf16.mxu0 %v1211
  %2057 = vmatpush1.bf16.msra.mxu0 %v1210
  %2058 = vmatprep.subr.bf16.mxu0 %v1451
  %2059 = vmatpush2.bf16.msra.mxu0 %v1450
  %2060 = vmatprep.subr.bf16.mxu0 %v1435
  %2061 = vmatpush2.bf16.msra.mxu0 %v1434
  %2062 = vmatprep.subr.bf16.mxu0 %v1419
  %2063 = vmatpush2.bf16.msra.mxu0 %v1418
  %2064 = vmatprep.subr.bf16.mxu0 %v1403
  %2065 = vmatpush2.bf16.msra.mxu0 %v1402
  %2066 = vmatprep.subr.bf16.mxu0 %v1387
  %2067 = vmatpush2.bf16.msra.mxu0 %v1386
  %2068 = vmatprep.subr.bf16.mxu0 %v1371
  %2069 = vmatpush2.bf16.msra.mxu0 %v1370
  %2070 = vmatprep.subr.bf16.mxu0 %v1355
  %2071 = vmatpush2.bf16.msra.mxu0 %v1354
  %2072 = vmatprep.subr.bf16.mxu0 %v1339
  %2073 = vmatpush2.bf16.msra.mxu0 %v1338
  %2074 = vmatprep.mubr.bf16.mxu0 %v336
  %2075 = vmatmul.mubr.bf16.gmra.mxu0 %v335
  %v2076 = vpop.f32.mrf.mxu0
  %v2077 = vadd.f32 %v318, %v2076
  %v2078 = vpop.f32.mrf.mxu0
  %v2079 = vadd.f32 %v318, %v2078
  %v2080 = vpop.f32.mrf.mxu0
  %v2081 = vadd.f32 %v323, %v2080
  %v2082 = vpop.f32.mrf.mxu0
  %v2083 = vadd.f32 %v323, %v2082
  %2084 = vdwg.mxu0
  %2085 = vmatprep.subr.bf16.mxu0 0
  %2086 = vmatpush1.bf16.msra.mxu0 0
  %2087 = vmatprep.subr.bf16.mxu0 0
  %2088 = vmatpush1.bf16.msra.mxu0 0
  %2089 = vmatprep.subr.bf16.mxu0 0
  %2090 = vmatpush1.bf16.msra.mxu0 0
  %2091 = vmatprep.subr.bf16.mxu0 0
  %2092 = vmatpush1.bf16.msra.mxu0 0
  %2093 = vmatprep.subr.bf16.mxu0 0
  %2094 = vmatpush1.bf16.msra.mxu0 0
  %2095 = vmatprep.subr.bf16.mxu0 0
  %2096 = vmatpush1.bf16.msra.mxu0 0
  %2097 = vmatprep.subr.bf16.mxu0 %v1483
  %2098 = vmatpush1.bf16.msra.mxu0 %v1482
  %2099 = vmatprep.subr.bf16.mxu0 %v1467
  %2100 = vmatpush1.bf16.msra.mxu0 %v1466
  %2101 = vmatprep.subr.bf16.mxu0 0
  %2102 = vmatpush2.bf16.msra.mxu0 0
  %2103 = vmatprep.subr.bf16.mxu0 0
  %2104 = vmatpush2.bf16.msra.mxu0 0
  %2105 = vmatprep.subr.bf16.mxu0 0
  %2106 = vmatpush2.bf16.msra.mxu0 0
  %2107 = vmatprep.subr.bf16.mxu0 0
  %2108 = vmatpush2.bf16.msra.mxu0 0
  %2109 = vmatprep.subr.bf16.mxu0 0
  %2110 = vmatpush2.bf16.msra.mxu0 0
  %2111 = vmatprep.subr.bf16.mxu0 0
  %2112 = vmatpush2.bf16.msra.mxu0 0
  %2113 = vmatprep.subr.bf16.mxu0 0
  %2114 = vmatpush2.bf16.msra.mxu0 0
  %2115 = vmatprep.subr.bf16.mxu0 0
  %2116 = vmatpush2.bf16.msra.mxu0 0
  %2117 = vmatprep.mubr.bf16.mxu0 0
  %2118 = vmatmul.mubr.bf16.gmra.mxu0 %v1782
  %v2119 = vpop.f32.mrf.mxu0
  %v2120 = vadd.f32 %v2077, %v2119
  %v2121 = vpop.f32.mrf.mxu0
  %v2122 = vadd.f32 %v2079, %v2121
  %v2123 = vpop.f32.mrf.mxu0
  %v2124 = vadd.f32 %v2081, %v2123
  %v2125 = vpop.f32.mrf.mxu0
  %v2126 = vadd.f32 %v2083, %v2125
  %2127 = vdwg.mxu0
  %2128 = vmatprep.subr.bf16.mxu0 %v1325
  %2129 = vmatpush1.bf16.msra.mxu0 %v1324
  %2130 = vmatprep.subr.bf16.mxu0 %v1309
  %2131 = vmatpush1.bf16.msra.mxu0 %v1308
  %2132 = vmatprep.subr.bf16.mxu0 %v1293
  %2133 = vmatpush1.bf16.msra.mxu0 %v1292
  %2134 = vmatprep.subr.bf16.mxu0 %v1277
  %2135 = vmatpush1.bf16.msra.mxu0 %v1276
  %2136 = vmatprep.subr.bf16.mxu0 %v1261
  %2137 = vmatpush1.bf16.msra.mxu0 %v1260
  %2138 = vmatprep.subr.bf16.mxu0 %v1245
  %2139 = vmatpush1.bf16.msra.mxu0 %v1244
  %2140 = vmatprep.subr.bf16.mxu0 %v1229
  %2141 = vmatpush1.bf16.msra.mxu0 %v1228
  %2142 = vmatprep.subr.bf16.mxu0 %v1213
  %2143 = vmatpush1.bf16.msra.mxu0 %v1212
  %2144 = vmatprep.subr.bf16.mxu0 %v1453
  %2145 = vmatpush2.bf16.msra.mxu0 %v1452
  %2146 = vmatprep.subr.bf16.mxu0 %v1437
  %2147 = vmatpush2.bf16.msra.mxu0 %v1436
  %2148 = vmatprep.subr.bf16.mxu0 %v1421
  %2149 = vmatpush2.bf16.msra.mxu0 %v1420
  %2150 = vmatprep.subr.bf16.mxu0 %v1405
  %2151 = vmatpush2.bf16.msra.mxu0 %v1404
  %2152 = vmatprep.subr.bf16.mxu0 %v1389
  %2153 = vmatpush2.bf16.msra.mxu0 %v1388
  %2154 = vmatprep.subr.bf16.mxu0 %v1373
  %2155 = vmatpush2.bf16.msra.mxu0 %v1372
  %2156 = vmatprep.subr.bf16.mxu0 %v1357
  %2157 = vmatpush2.bf16.msra.mxu0 %v1356
  %2158 = vmatprep.subr.bf16.mxu0 %v1341
  %2159 = vmatpush2.bf16.msra.mxu0 %v1340
  %2160 = vmatprep.mubr.bf16.mxu0 %v336
  %2161 = vmatmul.mubr.bf16.gmra.mxu0 %v335
  %v2162 = vpop.f32.mrf.mxu0
  %v2163 = vadd.f32 %v318, %v2162
  %v2164 = vpop.f32.mrf.mxu0
  %v2165 = vadd.f32 %v318, %v2164
  %v2166 = vpop.f32.mrf.mxu0
  %v2167 = vadd.f32 %v323, %v2166
  %v2168 = vpop.f32.mrf.mxu0
  %v2169 = vadd.f32 %v323, %v2168
  %2170 = vdwg.mxu0
  %2171 = vmatprep.subr.bf16.mxu0 0
  %2172 = vmatpush1.bf16.msra.mxu0 0
  %2173 = vmatprep.subr.bf16.mxu0 0
  %2174 = vmatpush1.bf16.msra.mxu0 0
  %2175 = vmatprep.subr.bf16.mxu0 0
  %2176 = vmatpush1.bf16.msra.mxu0 0
  %2177 = vmatprep.subr.bf16.mxu0 0
  %2178 = vmatpush1.bf16.msra.mxu0 0
  %2179 = vmatprep.subr.bf16.mxu0 0
  %2180 = vmatpush1.bf16.msra.mxu0 0
  %2181 = vmatprep.subr.bf16.mxu0 0
  %2182 = vmatpush1.bf16.msra.mxu0 0
  %2183 = vmatprep.subr.bf16.mxu0 %v1485
  %2184 = vmatpush1.bf16.msra.mxu0 %v1484
  %2185 = vmatprep.subr.bf16.mxu0 %v1469
  %2186 = vmatpush1.bf16.msra.mxu0 %v1468
  %2187 = vmatprep.subr.bf16.mxu0 0
  %2188 = vmatpush2.bf16.msra.mxu0 0
  %2189 = vmatprep.subr.bf16.mxu0 0
  %2190 = vmatpush2.bf16.msra.mxu0 0
  %2191 = vmatprep.subr.bf16.mxu0 0
  %2192 = vmatpush2.bf16.msra.mxu0 0
  %2193 = vmatprep.subr.bf16.mxu0 0
  %2194 = vmatpush2.bf16.msra.mxu0 0
  %2195 = vmatprep.subr.bf16.mxu0 0
  %2196 = vmatpush2.bf16.msra.mxu0 0
  %2197 = vmatprep.subr.bf16.mxu0 0
  %2198 = vmatpush2.bf16.msra.mxu0 0
  %2199 = vmatprep.subr.bf16.mxu0 0
  %2200 = vmatpush2.bf16.msra.mxu0 0
  %2201 = vmatprep.subr.bf16.mxu0 0
  %2202 = vmatpush2.bf16.msra.mxu0 0
  %2203 = vmatprep.mubr.bf16.mxu0 0
  %2204 = vmatmul.mubr.bf16.gmra.mxu0 %v1782
  %v2205 = vpop.f32.mrf.mxu0
  %v2206 = vadd.f32 %v2163, %v2205
  %v2207 = vpop.f32.mrf.mxu0
  %v2208 = vadd.f32 %v2165, %v2207
  %v2209 = vpop.f32.mrf.mxu0
  %v2210 = vadd.f32 %v2167, %v2209
  %v2211 = vpop.f32.mrf.mxu0
  %v2212 = vadd.f32 %v2169, %v2211
  %2213 = vdwg.mxu0
  %2214 = vmatprep.subr.bf16.mxu0 %v1327
  %2215 = vmatpush1.bf16.msra.mxu0 %v1326
  %2216 = vmatprep.subr.bf16.mxu0 %v1311
  %2217 = vmatpush1.bf16.msra.mxu0 %v1310
  %2218 = vmatprep.subr.bf16.mxu0 %v1295
  %2219 = vmatpush1.bf16.msra.mxu0 %v1294
  %2220 = vmatprep.subr.bf16.mxu0 %v1279
  %2221 = vmatpush1.bf16.msra.mxu0 %v1278
  %2222 = vmatprep.subr.bf16.mxu0 %v1263
  %2223 = vmatpush1.bf16.msra.mxu0 %v1262
  %2224 = vmatprep.subr.bf16.mxu0 %v1247
  %2225 = vmatpush1.bf16.msra.mxu0 %v1246
  %2226 = vmatprep.subr.bf16.mxu0 %v1231
  %2227 = vmatpush1.bf16.msra.mxu0 %v1230
  %2228 = vmatprep.subr.bf16.mxu0 %v1215
  %2229 = vmatpush1.bf16.msra.mxu0 %v1214
  %2230 = vmatprep.subr.bf16.mxu0 %v1455
  %2231 = vmatpush2.bf16.msra.mxu0 %v1454
  %2232 = vmatprep.subr.bf16.mxu0 %v1439
  %2233 = vmatpush2.bf16.msra.mxu0 %v1438
  %2234 = vmatprep.subr.bf16.mxu0 %v1423
  %2235 = vmatpush2.bf16.msra.mxu0 %v1422
  %2236 = vmatprep.subr.bf16.mxu0 %v1407
  %2237 = vmatpush2.bf16.msra.mxu0 %v1406
  %2238 = vmatprep.subr.bf16.mxu0 %v1391
  %2239 = vmatpush2.bf16.msra.mxu0 %v1390
  %2240 = vmatprep.subr.bf16.mxu0 %v1375
  %2241 = vmatpush2.bf16.msra.mxu0 %v1374
  %2242 = vmatprep.subr.bf16.mxu0 %v1359
  %2243 = vmatpush2.bf16.msra.mxu0 %v1358
  %2244 = vmatprep.subr.bf16.mxu0 %v1343
  %2245 = vmatpush2.bf16.msra.mxu0 %v1342
  %2246 = vmatprep.mubr.bf16.mxu0 %v336
  %2247 = vmatmul.mubr.bf16.gmra.mxu0 %v335
  %v2248 = vpop.f32.mrf.mxu0
  %v2249 = vadd.f32 %v318, %v2248
  %v2250 = vpop.f32.mrf.mxu0
  %v2251 = vadd.f32 %v318, %v2250
  %v2252 = vpop.f32.mrf.mxu0
  %v2253 = vadd.f32 %v323, %v2252
  %v2254 = vpop.f32.mrf.mxu0
  %v2255 = vadd.f32 %v323, %v2254
  %2256 = vdwg.mxu0
  %2257 = vmatprep.subr.bf16.mxu0 0
  %2258 = vmatpush1.bf16.msra.mxu0 0
  %2259 = vmatprep.subr.bf16.mxu0 0
  %2260 = vmatpush1.bf16.msra.mxu0 0
  %2261 = vmatprep.subr.bf16.mxu0 0
  %2262 = vmatpush1.bf16.msra.mxu0 0
  %2263 = vmatprep.subr.bf16.mxu0 0
  %2264 = vmatpush1.bf16.msra.mxu0 0
  %2265 = vmatprep.subr.bf16.mxu0 0
  %2266 = vmatpush1.bf16.msra.mxu0 0
  %2267 = vmatprep.subr.bf16.mxu0 0
  %2268 = vmatpush1.bf16.msra.mxu0 0
  %2269 = vmatprep.subr.bf16.mxu0 %v1487
  %2270 = vmatpush1.bf16.msra.mxu0 %v1486
  %2271 = vmatprep.subr.bf16.mxu0 %v1471
  %2272 = vmatpush1.bf16.msra.mxu0 %v1470
  %2273 = vmatprep.subr.bf16.mxu0 0
  %2274 = vmatpush2.bf16.msra.mxu0 0
  %2275 = vmatprep.subr.bf16.mxu0 0
  %2276 = vmatpush2.bf16.msra.mxu0 0
  %2277 = vmatprep.subr.bf16.mxu0 0
  %2278 = vmatpush2.bf16.msra.mxu0 0
  %2279 = vmatprep.subr.bf16.mxu0 0
  %2280 = vmatpush2.bf16.msra.mxu0 0
  %2281 = vmatprep.subr.bf16.mxu0 0
  %2282 = vmatpush2.bf16.msra.mxu0 0
  %2283 = vmatprep.subr.bf16.mxu0 0
  %2284 = vmatpush2.bf16.msra.mxu0 0
  %2285 = vmatprep.subr.bf16.mxu0 0
  %2286 = vmatpush2.bf16.msra.mxu0 0
  %2287 = vmatprep.subr.bf16.mxu0 0
  %2288 = vmatpush2.bf16.msra.mxu0 0
  %2289 = vmatprep.mubr.bf16.mxu0 0
  %2290 = vmatmul.mubr.bf16.gmra.mxu0 %v1782
  %v2291 = vpop.f32.mrf.mxu0
  %v2292 = vadd.f32 %v2249, %v2291
  %v2293 = vpop.f32.mrf.mxu0
  %v2294 = vadd.f32 %v2251, %v2293
  %v2295 = vpop.f32.mrf.mxu0
  %v2296 = vadd.f32 %v2253, %v2295
  %v2297 = vpop.f32.mrf.mxu0
  %v2298 = vadd.f32 %v2255, %v2297
  %2299 = vdwg.mxu0
  %2300 = vmatprep.subr.bf16.mxu0 %v1329
  %2301 = vmatpush1.bf16.msra.mxu0 %v1328
  %2302 = vmatprep.subr.bf16.mxu0 %v1313
  %2303 = vmatpush1.bf16.msra.mxu0 %v1312
  %2304 = vmatprep.subr.bf16.mxu0 %v1297
  %2305 = vmatpush1.bf16.msra.mxu0 %v1296
  %2306 = vmatprep.subr.bf16.mxu0 %v1281
  %2307 = vmatpush1.bf16.msra.mxu0 %v1280
  %2308 = vmatprep.subr.bf16.mxu0 %v1265
  %2309 = vmatpush1.bf16.msra.mxu0 %v1264
  %2310 = vmatprep.subr.bf16.mxu0 %v1249
  %2311 = vmatpush1.bf16.msra.mxu0 %v1248
  %2312 = vmatprep.subr.bf16.mxu0 %v1233
  %2313 = vmatpush1.bf16.msra.mxu0 %v1232
  %2314 = vmatprep.subr.bf16.mxu0 %v1217
  %2315 = vmatpush1.bf16.msra.mxu0 %v1216
  %2316 = vmatprep.subr.bf16.mxu0 %v1457
  %2317 = vmatpush2.bf16.msra.mxu0 %v1456
  %2318 = vmatprep.subr.bf16.mxu0 %v1441
  %2319 = vmatpush2.bf16.msra.mxu0 %v1440
  %2320 = vmatprep.subr.bf16.mxu0 %v1425
  %2321 = vmatpush2.bf16.msra.mxu0 %v1424
  %2322 = vmatprep.subr.bf16.mxu0 %v1409
  %2323 = vmatpush2.bf16.msra.mxu0 %v1408
  %2324 = vmatprep.subr.bf16.mxu0 %v1393
  %2325 = vmatpush2.bf16.msra.mxu0 %v1392
  %2326 = vmatprep.subr.bf16.mxu0 %v1377
  %2327 = vmatpush2.bf16.msra.mxu0 %v1376
  %2328 = vmatprep.subr.bf16.mxu0 %v1361
  %2329 = vmatpush2.bf16.msra.mxu0 %v1360
  %2330 = vmatprep.subr.bf16.mxu0 %v1345
  %2331 = vmatpush2.bf16.msra.mxu0 %v1344
  %2332 = vmatprep.mubr.bf16.mxu0 %v336
  %2333 = vmatmul.mubr.bf16.gmra.mxu0 %v335
  %v2334 = vpop.f32.mrf.mxu0
  %v2335 = vadd.f32 %v318, %v2334
  %v2336 = vpop.f32.mrf.mxu0
  %v2337 = vadd.f32 %v318, %v2336
  %v2338 = vpop.f32.mrf.mxu0
  %v2339 = vadd.f32 %v323, %v2338
  %v2340 = vpop.f32.mrf.mxu0
  %v2341 = vadd.f32 %v323, %v2340
  %2342 = vdwg.mxu0
  %2343 = vmatprep.subr.bf16.mxu0 0
  %2344 = vmatpush1.bf16.msra.mxu0 0
  %2345 = vmatprep.subr.bf16.mxu0 0
  %2346 = vmatpush1.bf16.msra.mxu0 0
  %2347 = vmatprep.subr.bf16.mxu0 0
  %2348 = vmatpush1.bf16.msra.mxu0 0
  %2349 = vmatprep.subr.bf16.mxu0 0
  %2350 = vmatpush1.bf16.msra.mxu0 0
  %2351 = vmatprep.subr.bf16.mxu0 0
  %2352 = vmatpush1.bf16.msra.mxu0 0
  %2353 = vmatprep.subr.bf16.mxu0 0
  %2354 = vmatpush1.bf16.msra.mxu0 0
  %2355 = vmatprep.subr.bf16.mxu0 %v1489
  %2356 = vmatpush1.bf16.msra.mxu0 %v1488
  %2357 = vmatprep.subr.bf16.mxu0 %v1473
  %2358 = vmatpush1.bf16.msra.mxu0 %v1472
  %2359 = vmatprep.subr.bf16.mxu0 0
  %2360 = vmatpush2.bf16.msra.mxu0 0
  %2361 = vmatprep.subr.bf16.mxu0 0
  %2362 = vmatpush2.bf16.msra.mxu0 0
  %2363 = vmatprep.subr.bf16.mxu0 0
  %2364 = vmatpush2.bf16.msra.mxu0 0
  %2365 = vmatprep.subr.bf16.mxu0 0
  %2366 = vmatpush2.bf16.msra.mxu0 0
  %2367 = vmatprep.subr.bf16.mxu0 0
  %2368 = vmatpush2.bf16.msra.mxu0 0
  %2369 = vmatprep.subr.bf16.mxu0 0
  %2370 = vmatpush2.bf16.msra.mxu0 0
  %2371 = vmatprep.subr.bf16.mxu0 0
  %2372 = vmatpush2.bf16.msra.mxu0 0
  %2373 = vmatprep.subr.bf16.mxu0 0
  %2374 = vmatpush2.bf16.msra.mxu0 0
  %2375 = vmatprep.mubr.bf16.mxu0 0
  %2376 = vmatmul.mubr.bf16.gmra.mxu0 %v1782
  %v2377 = vpop.f32.mrf.mxu0
  %v2378 = vadd.f32 %v2335, %v2377
  %v2379 = vpop.f32.mrf.mxu0
  %v2380 = vadd.f32 %v2337, %v2379
  %v2381 = vpop.f32.mrf.mxu0
  %v2382 = vadd.f32 %v2339, %v2381
  %v2383 = vpop.f32.mrf.mxu0
  %v2384 = vadd.f32 %v2341, %v2383
  %2385 = vdwg.mxu0
  %2386 = vmatprep.subr.bf16.mxu0 %v1331
  %2387 = vmatpush1.bf16.msra.mxu0 %v1330
  %2388 = vmatprep.subr.bf16.mxu0 %v1315
  %2389 = vmatpush1.bf16.msra.mxu0 %v1314
  %2390 = vmatprep.subr.bf16.mxu0 %v1299
  %2391 = vmatpush1.bf16.msra.mxu0 %v1298
  %2392 = vmatprep.subr.bf16.mxu0 %v1283
  %2393 = vmatpush1.bf16.msra.mxu0 %v1282
  %2394 = vmatprep.subr.bf16.mxu0 %v1267
  %2395 = vmatpush1.bf16.msra.mxu0 %v1266
  %2396 = vmatprep.subr.bf16.mxu0 %v1251
  %2397 = vmatpush1.bf16.msra.mxu0 %v1250
  %2398 = vmatprep.subr.bf16.mxu0 %v1235
  %2399 = vmatpush1.bf16.msra.mxu0 %v1234
  %2400 = vmatprep.subr.bf16.mxu0 %v1219
  %2401 = vmatpush1.bf16.msra.mxu0 %v1218
  %2402 = vmatprep.subr.bf16.mxu0 %v1459
  %2403 = vmatpush2.bf16.msra.mxu0 %v1458
  %2404 = vmatprep.subr.bf16.mxu0 %v1443
  %2405 = vmatpush2.bf16.msra.mxu0 %v1442
  %2406 = vmatprep.subr.bf16.mxu0 %v1427
  %2407 = vmatpush2.bf16.msra.mxu0 %v1426
  %2408 = vmatprep.subr.bf16.mxu0 %v1411
  %2409 = vmatpush2.bf16.msra.mxu0 %v1410
  %2410 = vmatprep.subr.bf16.mxu0 %v1395
  %2411 = vmatpush2.bf16.msra.mxu0 %v1394
  %2412 = vmatprep.subr.bf16.mxu0 %v1379
  %2413 = vmatpush2.bf16.msra.mxu0 %v1378
  %2414 = vmatprep.subr.bf16.mxu0 %v1363
  %2415 = vmatpush2.bf16.msra.mxu0 %v1362
  %2416 = vmatprep.subr.bf16.mxu0 %v1347
  %2417 = vmatpush2.bf16.msra.mxu0 %v1346
  %2418 = vmatprep.mubr.bf16.mxu0 %v336
  %2419 = vmatmul.mubr.bf16.gmra.mxu0 %v335
  %v2420 = vpop.f32.mrf.mxu0
  %v2421 = vadd.f32 %v318, %v2420
  %v2422 = vpop.f32.mrf.mxu0
  %v2423 = vadd.f32 %v318, %v2422
  %v2424 = vpop.f32.mrf.mxu0
  %v2425 = vadd.f32 %v323, %v2424
  %v2426 = vpop.f32.mrf.mxu0
  %v2427 = vadd.f32 %v323, %v2426
  %2428 = vdwg.mxu0
  %2429 = vmatprep.subr.bf16.mxu0 0
  %2430 = vmatpush1.bf16.msra.mxu0 0
  %2431 = vmatprep.subr.bf16.mxu0 0
  %2432 = vmatpush1.bf16.msra.mxu0 0
  %2433 = vmatprep.subr.bf16.mxu0 0
  %2434 = vmatpush1.bf16.msra.mxu0 0
  %2435 = vmatprep.subr.bf16.mxu0 0
  %2436 = vmatpush1.bf16.msra.mxu0 0
  %2437 = vmatprep.subr.bf16.mxu0 0
  %2438 = vmatpush1.bf16.msra.mxu0 0
  %2439 = vmatprep.subr.bf16.mxu0 0
  %2440 = vmatpush1.bf16.msra.mxu0 0
  %2441 = vmatprep.subr.bf16.mxu0 %v1491
  %2442 = vmatpush1.bf16.msra.mxu0 %v1490
  %2443 = vmatprep.subr.bf16.mxu0 %v1475
  %2444 = vmatpush1.bf16.msra.mxu0 %v1474
  %2445 = vmatprep.subr.bf16.mxu0 0
  %2446 = vmatpush2.bf16.msra.mxu0 0
  %2447 = vmatprep.subr.bf16.mxu0 0
  %2448 = vmatpush2.bf16.msra.mxu0 0
  %2449 = vmatprep.subr.bf16.mxu0 0
  %2450 = vmatpush2.bf16.msra.mxu0 0
  %2451 = vmatprep.subr.bf16.mxu0 0
  %2452 = vmatpush2.bf16.msra.mxu0 0
  %2453 = vmatprep.subr.bf16.mxu0 0
  %2454 = vmatpush2.bf16.msra.mxu0 0
  %2455 = vmatprep.subr.bf16.mxu0 0
  %2456 = vmatpush2.bf16.msra.mxu0 0
  %2457 = vmatprep.subr.bf16.mxu0 0
  %2458 = vmatpush2.bf16.msra.mxu0 0
  %2459 = vmatprep.subr.bf16.mxu0 0
  %2460 = vmatpush2.bf16.msra.mxu0 0
  %2461 = vmatprep.mubr.bf16.mxu0 0
  %2462 = vmatmul.mubr.bf16.gmra.mxu0 %v1782
  %v2463 = vpop.f32.mrf.mxu0
  %v2464 = vadd.f32 %v2421, %v2463
  %v2465 = vpop.f32.mrf.mxu0
  %v2466 = vadd.f32 %v2423, %v2465
  %v2467 = vpop.f32.mrf.mxu0
  %v2468 = vadd.f32 %v2425, %v2467
  %v2469 = vpop.f32.mrf.mxu0
  %v2470 = vadd.f32 %v2427, %v2469
  %2471 = vdwg.mxu0
  %v2472 = vlaneseq
  %v2473 = vand.u32 %v2472, 127
  %v2474 = vadd.s32 %v2473, 128
  %v2475 = vadd.s32 %v2473, 256
  %v2476 = vadd.s32 %v2473, 384
  %v2477 = vadd.s32 %v2473, 512
  %v2478 = vadd.s32 %v2473, 640
  %v2479 = vadd.s32 %v2473, 768
  %v2480 = vadd.s32 %v2473, 896
  %v2481 = vadd.s32 %v2473, 1024
  %v2482 = vadd.s32 %v2473, 1152
  %v2483 = vadd.s32 %v2473, 1280
  %v2484 = vadd.s32 %v2473, 1408
  %v2485 = vadd.s32 %v2473, 1536
  %v2486 = vadd.s32 %v2473, 1664
  %v2487 = vadd.s32 %v2473, 1792
  %v2488 = vadd.s32 %v2473, 1920
  %vm2489 = vcmp.lt.s32.totalorder %v2473, 1922
  %vm2490 = vcmp.lt.s32.totalorder %v2474, 1922
  %vm2491 = vcmp.lt.s32.totalorder %v2475, 1922
  %vm2492 = vcmp.lt.s32.totalorder %v2476, 1922
  %vm2493 = vcmp.lt.s32.totalorder %v2477, 1922
  %vm2494 = vcmp.lt.s32.totalorder %v2478, 1922
  %vm2495 = vcmp.lt.s32.totalorder %v2479, 1922
  %vm2496 = vcmp.lt.s32.totalorder %v2480, 1922
  %vm2497 = vcmp.lt.s32.totalorder %v2481, 1922
  %vm2498 = vcmp.lt.s32.totalorder %v2482, 1922
  %vm2499 = vcmp.lt.s32.totalorder %v2483, 1922
  %vm2500 = vcmp.lt.s32.totalorder %v2484, 1922
  %vm2501 = vcmp.lt.s32.totalorder %v2485, 1922
  %vm2502 = vcmp.lt.s32.totalorder %v2486, 1922
  %vm2503 = vcmp.lt.s32.totalorder %v2487, 1922
  %vm2504 = vcmp.lt.s32.totalorder %v2488, 1922
  %v2505 = vsel %vm2489, %v1862, 0.0
  %v2506 = vsel %vm2490, %v1864, 0.0
  %v2507 = vsel %vm2491, %v1948, 0.0
  %v2508 = vsel %vm2492, %v1950, 0.0
  %v2509 = vsel %vm2493, %v2034, 0.0
  %v2510 = vsel %vm2494, %v2036, 0.0
  %v2511 = vsel %vm2495, %v2120, 0.0
  %v2512 = vsel %vm2496, %v2122, 0.0
  %v2513 = vsel %vm2497, %v2206, 0.0
  %v2514 = vsel %vm2498, %v2208, 0.0
  %v2515 = vsel %vm2499, %v2292, 0.0
  %v2516 = vsel %vm2500, %v2294, 0.0
  %v2517 = vsel %vm2501, %v2378, 0.0
  %v2518 = vsel %vm2502, %v2380, 0.0
  %v2519 = vsel %vm2503, %v2464, 0.0
  %v2520 = vsel %vm2504, %v2466, 0.0
  %v2521 = vsel %vm2489, %v1866, 0.0
  %v2522 = vsel %vm2490, %v1868, 0.0
  %v2523 = vsel %vm2491, %v1952, 0.0
  %v2524 = vsel %vm2492, %v1954, 0.0
  %v2525 = vsel %vm2493, %v2038, 0.0
  %v2526 = vsel %vm2494, %v2040, 0.0
  %v2527 = vsel %vm2495, %v2124, 0.0
  %v2528 = vsel %vm2496, %v2126, 0.0
  %v2529 = vsel %vm2497, %v2210, 0.0
  %v2530 = vsel %vm2498, %v2212, 0.0
  %v2531 = vsel %vm2499, %v2296, 0.0
  %v2532 = vsel %vm2500, %v2298, 0.0
  %v2533 = vsel %vm2501, %v2382, 0.0
  %v2534 = vsel %vm2502, %v2384, 0.0
  %v2535 = vsel %vm2503, %v2468, 0.0
  %v2536 = vsel %vm2504, %v2470, 0.0
  %v2537 = vadd.f32 %v2505, %v2506
  %v2538 = vadd.f32 %v2537, %v2507
  %v2539 = vadd.f32 %v2538, %v2508
  %v2540 = vadd.f32 %v2539, %v2509
  %v2541 = vadd.f32 %v2540, %v2510
  %v2542 = vadd.f32 %v2541, %v2511
  %v2543 = vadd.f32 %v2542, %v2512
  %v2544 = vadd.f32 %v2543, %v2513
  %v2545 = vadd.f32 %v2544, %v2514
  %v2546 = vadd.f32 %v2545, %v2515
  %v2547 = vadd.f32 %v2546, %v2516
  %v2548 = vadd.f32 %v2547, %v2517
  %v2549 = vadd.f32 %v2548, %v2518
  %v2550 = vadd.f32 %v2549, %v2519
  %v2551 = vadd.f32 %v2550, %v2520
  %2552 = vadd.xlane.f32.xlu0 %v2551
  %v2553 = vpop.xlane.xlu0 %2552
  %v2554 = vadd.f32 %v2521, %v2522
  %v2555 = vadd.f32 %v2554, %v2523
  %v2556 = vadd.f32 %v2555, %v2524
  %v2557 = vadd.f32 %v2556, %v2525
  %v2558 = vadd.f32 %v2557, %v2526
  %v2559 = vadd.f32 %v2558, %v2527
  %v2560 = vadd.f32 %v2559, %v2528
  %v2561 = vadd.f32 %v2560, %v2529
  %v2562 = vadd.f32 %v2561, %v2530
  %v2563 = vadd.f32 %v2562, %v2531
  %v2564 = vadd.f32 %v2563, %v2532
  %v2565 = vadd.f32 %v2564, %v2533
  %v2566 = vadd.f32 %v2565, %v2534
  %v2567 = vadd.f32 %v2566, %v2535
  %v2568 = vadd.f32 %v2567, %v2536
  %2569 = vadd.xlane.f32.xlu0 %v2568
  %v2570 = vpop.xlane.xlu0 %2569
  %v2571 = vmul.f32 %v2553, 0.0005202914
  %v2572 = vmul.f32 %v2570, 0.0005202914
  %v2573 = vmul.f32 %v2505, %v2505
  %v2574 = vmul.f32 %v2506, %v2506
  %v2575 = vmul.f32 %v2507, %v2507
  %v2576 = vmul.f32 %v2508, %v2508
  %v2577 = vmul.f32 %v2509, %v2509
  %v2578 = vmul.f32 %v2510, %v2510
  %v2579 = vmul.f32 %v2511, %v2511
  %v2580 = vmul.f32 %v2512, %v2512
  %v2581 = vmul.f32 %v2513, %v2513
  %v2582 = vmul.f32 %v2514, %v2514
  %v2583 = vmul.f32 %v2515, %v2515
  %v2584 = vmul.f32 %v2516, %v2516
  %v2585 = vmul.f32 %v2517, %v2517
  %v2586 = vmul.f32 %v2518, %v2518
  %v2587 = vmul.f32 %v2519, %v2519
  %v2588 = vmul.f32 %v2520, %v2520
  %v2589 = vmul.f32 %v2521, %v2521
  %v2590 = vmul.f32 %v2522, %v2522
  %v2591 = vmul.f32 %v2523, %v2523
  %v2592 = vmul.f32 %v2524, %v2524
  %v2593 = vmul.f32 %v2525, %v2525
  %v2594 = vmul.f32 %v2526, %v2526
  %v2595 = vmul.f32 %v2527, %v2527
  %v2596 = vmul.f32 %v2528, %v2528
  %v2597 = vmul.f32 %v2529, %v2529
  %v2598 = vmul.f32 %v2530, %v2530
  %v2599 = vmul.f32 %v2531, %v2531
  %v2600 = vmul.f32 %v2532, %v2532
  %v2601 = vmul.f32 %v2533, %v2533
  %v2602 = vmul.f32 %v2534, %v2534
  %v2603 = vmul.f32 %v2535, %v2535
  %v2604 = vmul.f32 %v2536, %v2536
  %v2605 = vadd.f32 %v2573, %v2574
  %v2606 = vadd.f32 %v2605, %v2575
  %v2607 = vadd.f32 %v2606, %v2576
  %v2608 = vadd.f32 %v2607, %v2577
  %v2609 = vadd.f32 %v2608, %v2578
  %v2610 = vadd.f32 %v2609, %v2579
  %v2611 = vadd.f32 %v2610, %v2580
  %v2612 = vadd.f32 %v2611, %v2581
  %v2613 = vadd.f32 %v2612, %v2582
  %v2614 = vadd.f32 %v2613, %v2583
  %v2615 = vadd.f32 %v2614, %v2584
  %v2616 = vadd.f32 %v2615, %v2585
  %v2617 = vadd.f32 %v2616, %v2586
  %v2618 = vadd.f32 %v2617, %v2587
  %v2619 = vadd.f32 %v2618, %v2588
  %2620 = vadd.xlane.f32.xlu0 %v2619
  %v2621 = vpop.xlane.xlu0 %2620
  %v2622 = vadd.f32 %v2589, %v2590
  %v2623 = vadd.f32 %v2622, %v2591
  %v2624 = vadd.f32 %v2623, %v2592
  %v2625 = vadd.f32 %v2624, %v2593
  %v2626 = vadd.f32 %v2625, %v2594
  %v2627 = vadd.f32 %v2626, %v2595
  %v2628 = vadd.f32 %v2627, %v2596
  %v2629 = vadd.f32 %v2628, %v2597
  %v2630 = vadd.f32 %v2629, %v2598
  %v2631 = vadd.f32 %v2630, %v2599
  %v2632 = vadd.f32 %v2631, %v2600
  %v2633 = vadd.f32 %v2632, %v2601
  %v2634 = vadd.f32 %v2633, %v2602
  %v2635 = vadd.f32 %v2634, %v2603
  %v2636 = vadd.f32 %v2635, %v2604
  %2637 = vadd.xlane.f32.xlu0 %v2636
  %v2638 = vpop.xlane.xlu0 %2637
  %v2639 = vmul.f32 %v2621, 0.0005202914
  %v2640 = vmul.f32 %v2638, 0.0005202914
  %v2641 = vmul.f32 %v2571, %v2571
  %v2642 = vmul.f32 %v2572, %v2572
  %v2643 = vsub.f32 %v2639, %v2641
  %v2644 = vsub.f32 %v2640, %v2642
  %v2645 = vsub.f32 %v1862, %v2571
  %v2646 = vsub.f32 %v1864, %v2571
  %v2647 = vsub.f32 %v1948, %v2571
  %v2648 = vsub.f32 %v1950, %v2571
  %v2649 = vsub.f32 %v2034, %v2571
  %v2650 = vsub.f32 %v2036, %v2571
  %v2651 = vsub.f32 %v2120, %v2571
  %v2652 = vsub.f32 %v2122, %v2571
  %v2653 = vsub.f32 %v2206, %v2571
  %v2654 = vsub.f32 %v2208, %v2571
  %v2655 = vsub.f32 %v2292, %v2571
  %v2656 = vsub.f32 %v2294, %v2571
  %v2657 = vsub.f32 %v2378, %v2571
  %v2658 = vsub.f32 %v2380, %v2571
  %v2659 = vsub.f32 %v2464, %v2571
  %v2660 = vsub.f32 %v2466, %v2571
  %v2661 = vsub.f32 %v1866, %v2572
  %v2662 = vsub.f32 %v1868, %v2572
  %v2663 = vsub.f32 %v1952, %v2572
  %v2664 = vsub.f32 %v1954, %v2572
  %v2665 = vsub.f32 %v2038, %v2572
  %v2666 = vsub.f32 %v2040, %v2572
  %v2667 = vsub.f32 %v2124, %v2572
  %v2668 = vsub.f32 %v2126, %v2572
  %v2669 = vsub.f32 %v2210, %v2572
  %v2670 = vsub.f32 %v2212, %v2572
  %v2671 = vsub.f32 %v2296, %v2572
  %v2672 = vsub.f32 %v2298, %v2572
  %v2673 = vsub.f32 %v2382, %v2572
  %v2674 = vsub.f32 %v2384, %v2572
  %v2675 = vsub.f32 %v2468, %v2572
  %v2676 = vsub.f32 %v2470, %v2572
  %v2677 = vadd.f32 %v2643, 1e-05
  %v2678 = vadd.f32 %v2644, 1e-05
  %v2679 = vrsqrt.pop %v2677
  %v2680 = vrsqrt.pop %v2678
  %v2681 = vmul.f32 %v2645, %v2679
  %v2682 = vmul.f32 %v2646, %v2679
  %v2683 = vmul.f32 %v2647, %v2679
  %v2684 = vmul.f32 %v2648, %v2679
  %v2685 = vmul.f32 %v2649, %v2679
  %v2686 = vmul.f32 %v2650, %v2679
  %v2687 = vmul.f32 %v2651, %v2679
  %v2688 = vmul.f32 %v2652, %v2679
  %v2689 = vmul.f32 %v2653, %v2679
  %v2690 = vmul.f32 %v2654, %v2679
  %v2691 = vmul.f32 %v2655, %v2679
  %v2692 = vmul.f32 %v2656, %v2679
  %v2693 = vmul.f32 %v2657, %v2679
  %v2694 = vmul.f32 %v2658, %v2679
  %v2695 = vmul.f32 %v2659, %v2679
  %v2696 = vmul.f32 %v2660, %v2679
  %v2697 = vmul.f32 %v2661, %v2680
  %v2698 = vmul.f32 %v2662, %v2680
  %v2699 = vmul.f32 %v2663, %v2680
  %v2700 = vmul.f32 %v2664, %v2680
  %v2701 = vmul.f32 %v2665, %v2680
  %v2702 = vmul.f32 %v2666, %v2680
  %v2703 = vmul.f32 %v2667, %v2680
  %v2704 = vmul.f32 %v2668, %v2680
  %v2705 = vmul.f32 %v2669, %v2680
  %v2706 = vmul.f32 %v2670, %v2680
  %v2707 = vmul.f32 %v2671, %v2680
  %v2708 = vmul.f32 %v2672, %v2680
  %v2709 = vmul.f32 %v2673, %v2680
  %v2710 = vmul.f32 %v2674, %v2680
  %v2711 = vmul.f32 %v2675, %v2680
  %v2712 = vmul.f32 %v2676, %v2680
  %v2713 = vld [vmem:[%s3] sm:$0xff]
  %v2714 = vld [vmem:[%s3 + $0x8] sm:$0xff]
  %2716 = vset.pattern.permute.xlu0 0
  %2717 = vperm.xlu0 %2716, %v2713
  %v2718 = vpop.permute.xlu0 %2717
  %2721 = vset.pattern.permute.xlu0 0
  %2722 = vperm.xlu0 %2721, %v2714
  %v2723 = vpop.permute.xlu0 %2722
  %v2725 = vmul.f32 %v2681, %v2718
  %v2726 = vmul.f32 %v2682, %v2718
  %v2727 = vmul.f32 %v2683, %v2718
  %v2728 = vmul.f32 %v2684, %v2718
  %v2729 = vmul.f32 %v2685, %v2718
  %v2730 = vmul.f32 %v2686, %v2718
  %v2731 = vmul.f32 %v2687, %v2718
  %v2732 = vmul.f32 %v2688, %v2718
  %v2733 = vmul.f32 %v2689, %v2718
  %v2734 = vmul.f32 %v2690, %v2718
  %v2735 = vmul.f32 %v2691, %v2718
  %v2736 = vmul.f32 %v2692, %v2718
  %v2737 = vmul.f32 %v2693, %v2718
  %v2738 = vmul.f32 %v2694, %v2718
  %v2739 = vmul.f32 %v2695, %v2718
  %v2740 = vmul.f32 %v2696, %v2718
  %v2741 = vmul.f32 %v2697, %v2723
  %v2742 = vmul.f32 %v2698, %v2723
  %v2743 = vmul.f32 %v2699, %v2723
  %v2744 = vmul.f32 %v2700, %v2723
  %v2745 = vmul.f32 %v2701, %v2723
  %v2746 = vmul.f32 %v2702, %v2723
  %v2747 = vmul.f32 %v2703, %v2723
  %v2748 = vmul.f32 %v2704, %v2723
  %v2749 = vmul.f32 %v2705, %v2723
  %v2750 = vmul.f32 %v2706, %v2723
  %v2751 = vmul.f32 %v2707, %v2723
  %v2752 = vmul.f32 %v2708, %v2723
  %v2753 = vmul.f32 %v2709, %v2723
  %v2754 = vmul.f32 %v2710, %v2723
  %v2755 = vmul.f32 %v2711, %v2723
  %v2756 = vmul.f32 %v2712, %v2723
  %v2757 = vld [vmem:[%s4] sm:$0xff]
  %v2758 = vld [vmem:[%s4 + $0x8] sm:$0xff]
  %2760 = vset.pattern.permute.xlu0 0
  %2761 = vperm.xlu0 %2760, %v2757
  %v2762 = vpop.permute.xlu0 %2761
  %2765 = vset.pattern.permute.xlu0 0
  %2766 = vperm.xlu0 %2765, %v2758
  %v2767 = vpop.permute.xlu0 %2766
  %v2769 = vadd.f32 %v2725, %v2762
  %v2770 = vadd.f32 %v2726, %v2762
  %v2771 = vadd.f32 %v2727, %v2762
  %v2772 = vadd.f32 %v2728, %v2762
  %v2773 = vadd.f32 %v2729, %v2762
  %v2774 = vadd.f32 %v2730, %v2762
  %v2775 = vadd.f32 %v2731, %v2762
  %v2776 = vadd.f32 %v2732, %v2762
  %v2777 = vadd.f32 %v2733, %v2762
  %v2778 = vadd.f32 %v2734, %v2762
  %v2779 = vadd.f32 %v2735, %v2762
  %v2780 = vadd.f32 %v2736, %v2762
  %v2781 = vadd.f32 %v2737, %v2762
  %v2782 = vadd.f32 %v2738, %v2762
  %v2783 = vadd.f32 %v2739, %v2762
  %v2784 = vadd.f32 %v2740, %v2762
  %v2785 = vadd.f32 %v2741, %v2767
  %v2786 = vadd.f32 %v2742, %v2767
  %v2787 = vadd.f32 %v2743, %v2767
  %v2788 = vadd.f32 %v2744, %v2767
  %v2789 = vadd.f32 %v2745, %v2767
  %v2790 = vadd.f32 %v2746, %v2767
  %v2791 = vadd.f32 %v2747, %v2767
  %v2792 = vadd.f32 %v2748, %v2767
  %v2793 = vadd.f32 %v2749, %v2767
  %v2794 = vadd.f32 %v2750, %v2767
  %v2795 = vadd.f32 %v2751, %v2767
  %v2796 = vadd.f32 %v2752, %v2767
  %v2797 = vadd.f32 %v2753, %v2767
  %v2798 = vadd.f32 %v2754, %v2767
  %v2799 = vadd.f32 %v2755, %v2767
  %v2800 = vadd.f32 %v2756, %v2767
  %v2801 = vmax.f32 %v2769, 0.0
  %v2802 = vmax.f32 %v2770, 0.0
  %v2803 = vmax.f32 %v2771, 0.0
  %v2804 = vmax.f32 %v2772, 0.0
  %v2805 = vmax.f32 %v2773, 0.0
  %v2806 = vmax.f32 %v2774, 0.0
  %v2807 = vmax.f32 %v2775, 0.0
  %v2808 = vmax.f32 %v2776, 0.0
  %v2809 = vmax.f32 %v2777, 0.0
  %v2810 = vmax.f32 %v2778, 0.0
  %v2811 = vmax.f32 %v2779, 0.0
  %v2812 = vmax.f32 %v2780, 0.0
  %v2813 = vmax.f32 %v2781, 0.0
  %v2814 = vmax.f32 %v2782, 0.0
  %v2815 = vmax.f32 %v2783, 0.0
  %v2816 = vmax.f32 %v2784, 0.0
  %v2817 = vmax.f32 %v2785, 0.0
  %v2818 = vmax.f32 %v2786, 0.0
  %v2819 = vmax.f32 %v2787, 0.0
  %v2820 = vmax.f32 %v2788, 0.0
  %v2821 = vmax.f32 %v2789, 0.0
  %v2822 = vmax.f32 %v2790, 0.0
  %v2823 = vmax.f32 %v2791, 0.0
  %v2824 = vmax.f32 %v2792, 0.0
  %v2825 = vmax.f32 %v2793, 0.0
  %v2826 = vmax.f32 %v2794, 0.0
  %v2827 = vmax.f32 %v2795, 0.0
  %v2828 = vmax.f32 %v2796, 0.0
  %v2829 = vmax.f32 %v2797, 0.0
  %v2830 = vmax.f32 %v2798, 0.0
  %v2831 = vmax.f32 %v2799, 0.0
  %v2832 = vmax.f32 %v2800, 0.0
  %v2833 = vpack.c.bf16 %v2817, %v2801
  %v2834 = vpack.c.bf16 %v2818, %v2802
  %v2835 = vpack.c.bf16 %v2819, %v2803
  %v2836 = vpack.c.bf16 %v2820, %v2804
  %v2837 = vpack.c.bf16 %v2821, %v2805
  %v2838 = vpack.c.bf16 %v2822, %v2806
  %v2839 = vpack.c.bf16 %v2823, %v2807
  %v2840 = vpack.c.bf16 %v2824, %v2808
  %v2841 = vpack.c.bf16 %v2825, %v2809
  %v2842 = vpack.c.bf16 %v2826, %v2810
  %v2843 = vpack.c.bf16 %v2827, %v2811
  %v2844 = vpack.c.bf16 %v2828, %v2812
  %v2845 = vpack.c.bf16 %v2829, %v2813
  %v2846 = vpack.c.bf16 %v2830, %v2814
  %v2847 = vpack.c.bf16 %v2831, %v2815
  %v2848 = vpack.c.bf16 %v2832, %v2816
  %v2865 = vunpack.c.l.b16 %v2833
  %v2866 = vunpack.c.l.b16 %v2834
  %v2867 = vunpack.c.l.b16 %v2835
  %v2868 = vunpack.c.l.b16 %v2836
  %v2869 = vunpack.c.l.b16 %v2837
  %v2870 = vunpack.c.l.b16 %v2838
  %v2871 = vunpack.c.l.b16 %v2839
  %v2872 = vunpack.c.l.b16 %v2840
  %v2873 = vunpack.c.l.b16 %v2841
  %v2874 = vunpack.c.l.b16 %v2842
  %v2875 = vunpack.c.l.b16 %v2843
  %v2876 = vunpack.c.l.b16 %v2844
  %v2877 = vunpack.c.l.b16 %v2845
  %v2878 = vunpack.c.l.b16 %v2846
  %v2879 = vunpack.c.l.b16 %v2847
  %v2880 = vunpack.c.l.b16 %v2848
  %v2881 = vunpack.c.h.b16 %v2833
  %v2882 = vunpack.c.h.b16 %v2834
  %v2883 = vunpack.c.h.b16 %v2835
  %v2884 = vunpack.c.h.b16 %v2836
  %v2885 = vunpack.c.h.b16 %v2837
  %v2886 = vunpack.c.h.b16 %v2838
  %v2887 = vunpack.c.h.b16 %v2839
  %v2888 = vunpack.c.h.b16 %v2840
  %v2889 = vunpack.c.h.b16 %v2841
  %v2890 = vunpack.c.h.b16 %v2842
  %v2891 = vunpack.c.h.b16 %v2843
  %v2892 = vunpack.c.h.b16 %v2844
  %v2893 = vunpack.c.h.b16 %v2845
  %v2894 = vunpack.c.h.b16 %v2846
  %v2895 = vunpack.c.h.b16 %v2847
  %v2896 = vunpack.c.h.b16 %v2848
  %v2897 = vpack.c.b16 %v2866, %v2865
  %v2898 = vpack.c.b16 %v2868, %v2867
  %v2899 = vpack.c.b16 %v2870, %v2869
  %v2900 = vpack.c.b16 %v2872, %v2871
  %v2901 = vpack.c.b16 %v2874, %v2873
  %v2902 = vpack.c.b16 %v2876, %v2875
  %v2903 = vpack.c.b16 %v2878, %v2877
  %v2904 = vpack.c.b16 %v2880, %v2879
  %v2905 = vpack.c.b16 %v2882, %v2881
  %v2906 = vpack.c.b16 %v2884, %v2883
  %v2907 = vpack.c.b16 %v2886, %v2885
  %v2908 = vpack.c.b16 %v2888, %v2887
  %v2909 = vpack.c.b16 %v2890, %v2889
  %v2910 = vpack.c.b16 %v2892, %v2891
  %v2911 = vpack.c.b16 %v2894, %v2893
  %v2912 = vpack.c.b16 %v2896, %v2895
  %2929 = vst [vmem:[%s5] sm:$0xff] %v2897
  %2930 = vst [vmem:[%s5 + $0x8] sm:$0xff] %v2898
  %2931 = vst [vmem:[%s5 + $0x10] sm:$0xff] %v2899
  %2932 = vst [vmem:[%s5 + $0x18] sm:$0xff] %v2900
  %2933 = vst [vmem:[%s5 + $0x20] sm:$0xff] %v2901
  %2934 = vst [vmem:[%s5 + $0x28] sm:$0xff] %v2902
  %2935 = vst [vmem:[%s5 + $0x30] sm:$0xff] %v2903
  %2936 = vst [vmem:[%s5 + $0x38] sm:$0xff] %v2904
  %2937 = vst [vmem:[%s5 + $0x40] sm:$0xff] %v2905
  %2938 = vst [vmem:[%s5 + $0x48] sm:$0xff] %v2906
  %2939 = vst [vmem:[%s5 + $0x50] sm:$0xff] %v2907
  %2940 = vst [vmem:[%s5 + $0x58] sm:$0xff] %v2908
  %2941 = vst [vmem:[%s5 + $0x60] sm:$0xff] %v2909
  %2942 = vst [vmem:[%s5 + $0x68] sm:$0xff] %v2910
  %2943 = vst [vmem:[%s5 + $0x70] sm:$0xff] %v2911
  %2944 = vst [vmem:[%s5 + $0x78] sm:$0xff] %v2912
  // Predicated region
  $region22: #{a_call__.8} parent=0 // pred_check
    _
  $region23: #{a_call__.8} parent=0 // pred_check_branch
    %2946 = sbr.rel (0) target = $region25
  $region24: #{a_call__.8} parent=0 // pred_region
    _
  $region25: #{a_call__.8} parent=0 // pred_fallthru
    _
  // Predicated region
  $region26: #{a_call__.8} parent=0 // pred_check
    _
  $region27: #{a_call__.8} parent=0 // pred_check_branch
    %2948 = sbr.rel (0) target = $region29
  $region28: #{a_call__.8} parent=0 // pred_region
    _
  $region29: #{a_call__.8} parent=0 // pred_fallthru
    _

// kernel: a_call__.9
$region0: #{a_call__.9}
  #allocation0 [shape = 'u32[]', space=smem, size = 0x4, offset = 0x4, fixed_abs, tag = 'smem constant byte address 0x4 - core index']
  #allocation1 [shape = 'u32[144,128]{1,0:T(1,128)}', space=vmem, size = 0x12000, scoped, tag = 'internal scratch']
  %s0 = inlined_call_operand.vmem [shape: bf16[3,256], index: 0, kind: input, shape index: {}]
  %s1 = inlined_call_operand.vmem [shape: bf16[256,8192], index: 1, kind: input, shape index: {}]
  %s2 = inlined_call_operand.vmem [shape: f32[3,1], index: 2, kind: input, shape index: {}]
  %s3 = inlined_call_operand.vmem [shape: f32[3,8192], index: 3, kind: output, shape index: {}]
  %s4 = sld [smem:[#allocation0]]
  $region68: #{a_call__.9} parent=0
    _
  %s6 = ssub.s32 1, %s4
  %s7 = scalar_select 0, %s6, %s4
  $region1: #{a_call__.9} parent=0
    #allocation2 [shape = 'u8[2097152]{0}', space=vmem, size = 0x200000, scoped, tag = 'input window, operand 1']
    loop: start=0, step=1, limit=6
    $region2: #{a_call__.9} parent=1 // loop_pre_header
      _
    $region3: #{a_call__.9} parent=1 // loop_header
      %s9 = sphi 0, %s13
      %p10 = scmp.ge.s32.totalorder %s9, 6
      %s17 = sphi 0, %s17
      %s19 = sphi 0, %s17
      %s20 = sphi 0, %s19
      %s34 = sphi 0, %s20
      %s40 = sphi 0, %s42
      %s43 = sphi 0, %s40
      %s44 = sphi 0, %s43
      %s60 = sphi 0, %s44
      %s64 = sphi 0, %s64
      %s66 = sphi 0, %s64
      %s67 = sphi 0, %s66
      %s81 = sphi 0, %s67
      %s87 = sphi 0, %s89
      %s90 = sphi 0, %s87
      %s91 = sphi 0, %s90
      %s107 = sphi 0, %s91
    $region4: #{a_call__.9} parent=1 // loop_header_branch
      %12 = sbr.rel (%p10) target = $region8
    $region5: #{a_call__.9} parent=1 // loop_body
      %s14 = ssub.s32 %s9, 1
      %s15 = ssub.s32 %s9, 2
      %s16 = sadd.s32 %s9, 1
      %s18 = sadd.s32 %s17, 1
      %p21 = scmp.eq.s32.totalorder %s9, 3
      %p22 = scmp.ne.s32.totalorder %s17, %s19
      %p23 = scmp.eq.s32.totalorder %s9, 0
      %p24 = por %p22, %p23
      %p25 = scmp.ne.s32.totalorder %s17, %s19
      %p26 = scmp.eq.s32.totalorder %s14, 3
      %p27 = por %p25, %p26
      %p28 = scmp.ne.s32.totalorder %s19, %s20
      %p29 = scmp.eq.s32.totalorder %s14, 0
      %p30 = por %p28, %p29
      %p31 = scmp.ne.s32.totalorder %s19, %s20
      %p32 = scmp.eq.s32.totalorder %s15, 3
      %p33 = por %p31, %p32
      %p35 = scmp.ne.s32.totalorder %s20, %s34
      %p36 = scmp.eq.s32.totalorder %s15, 0
      %p37 = por %p35, %p36
      %s38 = ssub.s32 %s9, %s16
      %p39 = scmp.eq.s32.totalorder %s38, 0
      %s41 = sadd.s32 %s40, 1
      %s42 = scalar_select %p39, %s40, %s41
      %p45 = pneg %p39
      %p46 = scmp.eq.s32.totalorder %s9, 3
      %p47 = por %p45, %p46
      %p48 = scmp.ne.s32.totalorder %s40, %s43
      %p49 = scmp.eq.s32.totalorder %s9, 0
      %p50 = por %p48, %p49
      %p51 = scmp.ne.s32.totalorder %s40, %s43
      %p52 = scmp.eq.s32.totalorder %s14, 3
      %p53 = por %p51, %p52
      %p54 = scmp.ne.s32.totalorder %s43, %s44
      %p55 = scmp.eq.s32.totalorder %s14, 0
      %p56 = por %p54, %p55
      %p57 = scmp.ne.s32.totalorder %s43, %s44
      %p58 = scmp.eq.s32.totalorder %s15, 3
      %p59 = por %p57, %p58
      %p61 = scmp.ne.s32.totalorder %s44, %s60
      %p62 = scmp.eq.s32.totalorder %s15, 0
      %p63 = por %p61, %p62
      %s65 = sadd.s32 %s64, 1
      %p68 = scmp.eq.s32.totalorder %s9, 3
      %p69 = scmp.ne.s32.totalorder %s64, %s66
      %p70 = scmp.eq.s32.totalorder %s9, 0
      %p71 = por %p69, %p70
      %p72 = scmp.ne.s32.totalorder %s64, %s66
      %p73 = scmp.eq.s32.totalorder %s14, 3
      %p74 = por %p72, %p73
      %p75 = scmp.ne.s32.totalorder %s66, %s67
      %p76 = scmp.eq.s32.totalorder %s14, 0
      %p77 = por %p75, %p76
      %p78 = scmp.ne.s32.totalorder %s66, %s67
      %p79 = scmp.eq.s32.totalorder %s15, 3
      %p80 = por %p78, %p79
      %p82 = scmp.ne.s32.totalorder %s67, %s81
      %p83 = scmp.eq.s32.totalorder %s15, 0
      %p84 = por %p82, %p83
      %s85 = ssub.s32 %s9, %s16
      %p86 = scmp.eq.s32.totalorder %s85, 0
      %s88 = sadd.s32 %s87, 1
      %s89 = scalar_select %p86, %s87, %s88
      %p92 = pneg %p86
      %p93 = scmp.eq.s32.totalorder %s9, 3
      %p94 = por %p92, %p93
      %p95 = scmp.ne.s32.totalorder %s87, %s90
      %p96 = scmp.eq.s32.totalorder %s9, 0
      %p97 = por %p95, %p96
      %p98 = scmp.ne.s32.totalorder %s87, %s90
      %p99 = scmp.eq.s32.totalorder %s14, 3
      %p100 = por %p98, %p99
      %p101 = scmp.ne.s32.totalorder %s90, %s91
      %p102 = scmp.eq.s32.totalorder %s14, 0
      %p103 = por %p101, %p102
      %p104 = scmp.ne.s32.totalorder %s90, %s91
      %p105 = scmp.eq.s32.totalorder %s15, 3
      %p106 = por %p104, %p105
      %p108 = scmp.ne.s32.totalorder %s91, %s107
      %p109 = scmp.eq.s32.totalorder %s15, 0
      %p110 = por %p108, %p109
      %p111 = scmp.le.s32.totalorder 1, %s9
      %p112 = scmp.lt.s32.totalorder %s9, 5
      %p113 = pnand %p111, %p112
      %p114 = pneg %p113
      // Predicated region
      $region9: #{a_call__.9} parent=5 // pred_check
        _
      $region10: #{a_call__.9} parent=5 // pred_check_branch
        %116 = sbr.rel (%p113) target = $region12
      $region11: #{a_call__.9} parent=5 // pred_region
        %s117 = ssub.s32 %s9, 1
        // Predicated region
        $region13: #{a_call__.9} parent=11 // pred_check
          %p118 = pneg %p30
        $region14: #{a_call__.9} parent=11 // pred_check_branch
          %120 = sbr.rel (%p118) target = $region16
        $region15: #{a_call__.9} parent=11 // pred_region
          _
        $region16: #{a_call__.9} parent=11 // pred_fallthru
          _
        // Predicated region
        $region17: #{a_call__.9} parent=11 // pred_check
          %p121 = pneg %p77
        $region18: #{a_call__.9} parent=11 // pred_check_branch
          %123 = sbr.rel (%p121) target = $region20
        $region19: #{a_call__.9} parent=11 // pred_region
          _
        $region20: #{a_call__.9} parent=11 // pred_fallthru
          _
      $region12: #{a_call__.9} parent=5 // pred_fallthru
        _
      %p124 = scmp.lt.s32.totalorder %s9, 4
      // Predicated region
      $region21: #{a_call__.9} parent=5 // pred_check
        %p125 = pneg %p124
      $region22: #{a_call__.9} parent=5 // pred_check_branch
        %127 = sbr.rel (%p125) target = $region24
      $region23: #{a_call__.9} parent=5 // pred_region
        // Predicated region
        $region25: #{a_call__.9} parent=23 // pred_check
          %p128 = pneg %p50
        $region26: #{a_call__.9} parent=23 // pred_check_branch
          %130 = sbr.rel (%p128) target = $region28
        $region27: #{a_call__.9} parent=23 // pred_region
          %s131 = sand.u32 %s40, 1
          %s132 = sand.u32 %s40, 1
          %s133 = smul.addr %s132, 2048
          %s134 = scalar_lea.vmem [#allocation2], %s133
          %s135 = smul.u32 16, %s9
          %s136 = smul.addr %s135, 4
          %s137 = scalar_lea.vmem %s1, %s136
          // Predicated region
          $region29: #{a_call__.9} parent=27 // pred_check
            _
          $region30: #{a_call__.9} parent=27 // pred_check_branch
            %139 = sbr.rel (0) target = $region32
          $region31: #{a_call__.9} parent=27 // pred_region
            // Predicated region
            $region33: #{a_call__.9} parent=31 // pred_check
              _
            $region34: #{a_call__.9} parent=31 // pred_check_branch
              %141 = sbr.rel (0) target = $region36
            $region35: #{a_call__.9} parent=31 // pred_region
              loop: start=0, step=1, limit=1
              $region37: #{a_call__.9} parent=35 // loop_pre_header
                _
              $region38: #{a_call__.9} parent=35 // loop_header
                %s143 = sphi 0, %s147
                %p144 = scmp.ge.s32.totalorder %s143, 1
                %s148 = sphi %s137, %s137
                %s149 = sphi %s134, %s134
              $region39: #{a_call__.9} parent=35 // loop_header_branch
                %146 = sbr.rel (%p144) target = $region43
              $region40: #{a_call__.9} parent=35 // loop_body
                %v150 = vld [vmem:[%s148] sm:$0xff]
                %151 = vst [vmem:[%s149] sm:$0xff] %v150
                %v152 = vld [vmem:[%s148 + $0x8] sm:$0xff]
                %153 = vst [vmem:[%s149 + $0x8] sm:$0xff] %v152
                %v154 = vld [vmem:[%s148 + $0x10] sm:$0xff]
                %155 = vst [vmem:[%s149 + $0x10] sm:$0xff] %v154
                %v156 = vld [vmem:[%s148 + $0x18] sm:$0xff]
                %157 = vst [vmem:[%s149 + $0x18] sm:$0xff] %v156
                %v158 = vld [vmem:[%s148 + $0x20] sm:$0xff]
                %159 = vst [vmem:[%s149 + $0x20] sm:$0xff] %v158
                %v160 = vld [vmem:[%s148 + $0x28] sm:$0xff]
                %161 = vst [vmem:[%s149 + $0x28] sm:$0xff] %v160
                %v162 = vld [vmem:[%s148 + $0x30] sm:$0xff]
                %163 = vst [vmem:[%s149 + $0x30] sm:$0xff] %v162
                %v164 = vld [vmem:[%s148 + $0x38] sm:$0xff]
                %165 = vst [vmem:[%s149 + $0x38] sm:$0xff] %v164
                %v166 = vld [vmem:[%s148 + $0x100] sm:$0xff]
                %167 = vst [vmem:[%s149 + $0x40] sm:$0xff] %v166
                %v168 = vld [vmem:[%s148 + $0x108] sm:$0xff]
                %169 = vst [vmem:[%s149 + $0x48] sm:$0xff] %v168
                %v170 = vld [vmem:[%s148 + $0x110] sm:$0xff]
                %171 = vst [vmem:[%s149 + $0x50] sm:$0xff] %v170
                %v172 = vld [vmem:[%s148 + $0x118] sm:$0xff]
                %173 = vst [vmem:[%s149 + $0x58] sm:$0xff] %v172
                %v174 = vld [vmem:[%s148 + $0x120] sm:$0xff]
                %175 = vst [vmem:[%s149 + $0x60] sm:$0xff] %v174
                %v176 = vld [vmem:[%s148 + $0x128] sm:$0xff]
                %177 = vst [vmem:[%s149 + $0x68] sm:$0xff] %v176
                %v178 = vld [vmem:[%s148 + $0x130] sm:$0xff]
                %179 = vst [vmem:[%s149 + $0x70] sm:$0xff] %v178
                %v180 = vld [vmem:[%s148 + $0x138] sm:$0xff]
                %181 = vst [vmem:[%s149 + $0x78] sm:$0xff] %v180
                %v182 = vld [vmem:[%s148 + $0x200] sm:$0xff]
                %183 = vst [vmem:[%s149 + $0x80] sm:$0xff] %v182
                %v184 = vld [vmem:[%s148 + $0x208] sm:$0xff]
                %185 = vst [vmem:[%s149 + $0x88] sm:$0xff] %v184
                %v186 = vld [vmem:[%s148 + $0x210] sm:$0xff]
                %187 = vst [vmem:[%s149 + $0x90] sm:$0xff] %v186
                %v188 = vld [vmem:[%s148 + $0x218] sm:$0xff]
                %189 = vst [vmem:[%s149 + $0x98] sm:$0xff] %v188
                %v190 = vld [vmem:[%s148 + $0x220] sm:$0xff]
                %191 = vst [vmem:[%s149 + $0xa0] sm:$0xff] %v190
                %v192 = vld [vmem:[%s148 + $0x228] sm:$0xff]
                %193 = vst [vmem:[%s149 + $0xa8] sm:$0xff] %v192
                %v194 = vld [vmem:[%s148 + $0x230] sm:$0xff]
                %195 = vst [vmem:[%s149 + $0xb0] sm:$0xff] %v194
                %v196 = vld [vmem:[%s148 + $0x238] sm:$0xff]
                %197 = vst [vmem:[%s149 + $0xb8] sm:$0xff] %v196
                %v198 = vld [vmem:[%s148 + $0x300] sm:$0xff]
                %199 = vst [vmem:[%s149 + $0xc0] sm:$0xff] %v198
                %v200 = vld [vmem:[%s148 + $0x308] sm:$0xff]
                %201 = vst [vmem:[%s149 + $0xc8] sm:$0xff] %v200
                %v202 = vld [vmem:[%s148 + $0x310] sm:$0xff]
                %203 = vst [vmem:[%s149 + $0xd0] sm:$0xff] %v202
                %v204 = vld [vmem:[%s148 + $0x318] sm:$0xff]
                %205 = vst [vmem:[%s149 + $0xd8] sm:$0xff] %v204
                %v206 = vld [vmem:[%s148 + $0x320] sm:$0xff]
                %207 = vst [vmem:[%s149 + $0xe0] sm:$0xff] %v206
                %v208 = vld [vmem:[%s148 + $0x328] sm:$0xff]
                %209 = vst [vmem:[%s149 + $0xe8] sm:$0xff] %v208
                %v210 = vld [vmem:[%s148 + $0x330] sm:$0xff]
                %211 = vst [vmem:[%s149 + $0xf0] sm:$0xff] %v210
                %v212 = vld [vmem:[%s148 + $0x338] sm:$0xff]
                %213 = vst [vmem:[%s149 + $0xf8] sm:$0xff] %v212
                %v214 = vld [vmem:[%s148 + $0x400] sm:$0xff]
                %215 = vst [vmem:[%s149 + $0x100] sm:$0xff] %v214
                %v216 = vld [vmem:[%s148 + $0x408] sm:$0xff]
                %217 = vst [vmem:[%s149 + $0x108] sm:$0xff] %v216
                %v218 = vld [vmem:[%s148 + $0x410] sm:$0xff]
                %219 = vst [vmem:[%s149 + $0x110] sm:$0xff] %v218
                %v220 = vld [vmem:[%s148 + $0x418] sm:$0xff]
                %221 = vst [vmem:[%s149 + $0x118] sm:$0xff] %v220
                %v222 = vld [vmem:[%s148 + $0x420] sm:$0xff]
                %223 = vst [vmem:[%s149 + $0x120] sm:$0xff] %v222
                %v224 = vld [vmem:[%s148 + $0x428] sm:$0xff]
                %225 = vst [vmem:[%s149 + $0x128] sm:$0xff] %v224
                %v226 = vld [vmem:[%s148 + $0x430] sm:$0xff]
                %227 = vst [vmem:[%s149 + $0x130] sm:$0xff] %v226
                %v228 = vld [vmem:[%s148 + $0x438] sm:$0xff]
                %229 = vst [vmem:[%s149 + $0x138] sm:$0xff] %v228
                %v230 = vld [vmem:[%s148 + $0x500] sm:$0xff]
                %231 = vst [vmem:[%s149 + $0x140] sm:$0xff] %v230
                %v232 = vld [vmem:[%s148 + $0x508] sm:$0xff]
                %233 = vst [vmem:[%s149 + $0x148] sm:$0xff] %v232
                %v234 = vld [vmem:[%s148 + $0x510] sm:$0xff]
                %235 = vst [vmem:[%s149 + $0x150] sm:$0xff] %v234
                %v236 = vld [vmem:[%s148 + $0x518] sm:$0xff]
                %237 = vst [vmem:[%s149 + $0x158] sm:$0xff] %v236
                %v238 = vld [vmem:[%s148 + $0x520] sm:$0xff]
                %239 = vst [vmem:[%s149 + $0x160] sm:$0xff] %v238
                %v240 = vld [vmem:[%s148 + $0x528] sm:$0xff]
                %241 = vst [vmem:[%s149 + $0x168] sm:$0xff] %v240
                %v242 = vld [vmem:[%s148 + $0x530] sm:$0xff]
                %243 = vst [vmem:[%s149 + $0x170] sm:$0xff] %v242
                %v244 = vld [vmem:[%s148 + $0x538] sm:$0xff]
                %245 = vst [vmem:[%s149 + $0x178] sm:$0xff] %v244
                %v246 = vld [vmem:[%s148 + $0x600] sm:$0xff]
                %247 = vst [vmem:[%s149 + $0x180] sm:$0xff] %v246
                %v248 = vld [vmem:[%s148 + $0x608] sm:$0xff]
                %249 = vst [vmem:[%s149 + $0x188] sm:$0xff] %v248
                %v250 = vld [vmem:[%s148 + $0x610] sm:$0xff]
                %251 = vst [vmem:[%s149 + $0x190] sm:$0xff] %v250
                %v252 = vld [vmem:[%s148 + $0x618] sm:$0xff]
                %253 = vst [vmem:[%s149 + $0x198] sm:$0xff] %v252
                %v254 = vld [vmem:[%s148 + $0x620] sm:$0xff]
                %255 = vst [vmem:[%s149 + $0x1a0] sm:$0xff] %v254
                %v256 = vld [vmem:[%s148 + $0x628] sm:$0xff]
                %257 = vst [vmem:[%s149 + $0x1a8] sm:$0xff] %v256
                %v258 = vld [vmem:[%s148 + $0x630] sm:$0xff]
                %259 = vst [vmem:[%s149 + $0x1b0] sm:$0xff] %v258
                %v260 = vld [vmem:[%s148 + $0x638] sm:$0xff]
                %261 = vst [vmem:[%s149 + $0x1b8] sm:$0xff] %v260
                %v262 = vld [vmem:[%s148 + $0x700] sm:$0xff]
                %263 = vst [vmem:[%s149 + $0x1c0] sm:$0xff] %v262
                %v264 = vld [vmem:[%s148 + $0x708] sm:$0xff]
                %265 = vst [vmem:[%s149 + $0x1c8] sm:$0xff] %v264
                %v266 = vld [vmem:[%s148 + $0x710] sm:$0xff]
                %267 = vst [vmem:[%s149 + $0x1d0] sm:$0xff] %v266
                %v268 = vld [vmem:[%s148 + $0x718] sm:$0xff]
                %269 = vst [vmem:[%s149 + $0x1d8] sm:$0xff] %v268
                %v270 = vld [vmem:[%s148 + $0x720] sm:$0xff]
                %271 = vst [vmem:[%s149 + $0x1e0] sm:$0xff] %v270
                %v272 = vld [vmem:[%s148 + $0x728] sm:$0xff]
                %273 = vst [vmem:[%s149 + $0x1e8] sm:$0xff] %v272
                %v274 = vld [vmem:[%s148 + $0x730] sm:$0xff]
                %275 = vst [vmem:[%s149 + $0x1f0] sm:$0xff] %v274
                %v276 = vld [vmem:[%s148 + $0x738] sm:$0xff]
                %277 = vst [vmem:[%s149 + $0x1f8] sm:$0xff] %v276
                %v278 = vld [vmem:[%s148 + $0x800] sm:$0xff]
                %279 = vst [vmem:[%s149 + $0x200] sm:$0xff] %v278
                %v280 = vld [vmem:[%s148 + $0x808] sm:$0xff]
                %281 = vst [vmem:[%s149 + $0x208] sm:$0xff] %v280
                %v282 = vld [vmem:[%s148 + $0x810] sm:$0xff]
                %283 = vst [vmem:[%s149 + $0x210] sm:$0xff] %v282
                %v284 = vld [vmem:[%s148 + $0x818] sm:$0xff]
                %285 = vst [vmem:[%s149 + $0x218] sm:$0xff] %v284
                %v286 = vld [vmem:[%s148 + $0x820] sm:$0xff]
                %287 = vst [vmem:[%s149 + $0x220] sm:$0xff] %v286
                %v288 = vld [vmem:[%s148 + $0x828] sm:$0xff]
                %289 = vst [vmem:[%s149 + $0x228] sm:$0xff] %v288
                %v290 = vld [vmem:[%s148 + $0x830] sm:$0xff]
                %291 = vst [vmem:[%s149 + $0x230] sm:$0xff] %v290
                %v292 = vld [vmem:[%s148 + $0x838] sm:$0xff]
                %293 = vst [vmem:[%s149 + $0x238] sm:$0xff] %v292
                %v294 = vld [vmem:[%s148 + $0x900] sm:$0xff]
                %295 = vst [vmem:[%s149 + $0x240] sm:$0xff] %v294
                %v296 = vld [vmem:[%s148 + $0x908] sm:$0xff]
                %297 = vst [vmem:[%s149 + $0x248] sm:$0xff] %v296
                %v298 = vld [vmem:[%s148 + $0x910] sm:$0xff]
                %299 = vst [vmem:[%s149 + $0x250] sm:$0xff] %v298
                %v300 = vld [vmem:[%s148 + $0x918] sm:$0xff]
                %301 = vst [vmem:[%s149 + $0x258] sm:$0xff] %v300
                %v302 = vld [vmem:[%s148 + $0x920] sm:$0xff]
                %303 = vst [vmem:[%s149 + $0x260] sm:$0xff] %v302
                %v304 = vld [vmem:[%s148 + $0x928] sm:$0xff]
                %305 = vst [vmem:[%s149 + $0x268] sm:$0xff] %v304
                %v306 = vld [vmem:[%s148 + $0x930] sm:$0xff]
                %307 = vst [vmem:[%s149 + $0x270] sm:$0xff] %v306
                %v308 = vld [vmem:[%s148 + $0x938] sm:$0xff]
                %309 = vst [vmem:[%s149 + $0x278] sm:$0xff] %v308
                %v310 = vld [vmem:[%s148 + $0xa00] sm:$0xff]
                %311 = vst [vmem:[%s149 + $0x280] sm:$0xff] %v310
                %v312 = vld [vmem:[%s148 + $0xa08] sm:$0xff]
                %313 = vst [vmem:[%s149 + $0x288] sm:$0xff] %v312
                %v314 = vld [vmem:[%s148 + $0xa10] sm:$0xff]
                %315 = vst [vmem:[%s149 + $0x290] sm:$0xff] %v314
                %v316 = vld [vmem:[%s148 + $0xa18] sm:$0xff]
                %317 = vst [vmem:[%s149 + $0x298] sm:$0xff] %v316
                %v318 = vld [vmem:[%s148 + $0xa20] sm:$0xff]
                %319 = vst [vmem:[%s149 + $0x2a0] sm:$0xff] %v318
                %v320 = vld [vmem:[%s148 + $0xa28] sm:$0xff]
                %321 = vst [vmem:[%s149 + $0x2a8] sm:$0xff] %v320
                %v322 = vld [vmem:[%s148 + $0xa30] sm:$0xff]
                %323 = vst [vmem:[%s149 + $0x2b0] sm:$0xff] %v322
                %v324 = vld [vmem:[%s148 + $0xa38] sm:$0xff]
                %325 = vst [vmem:[%s149 + $0x2b8] sm:$0xff] %v324
                %v326 = vld [vmem:[%s148 + $0xb00] sm:$0xff]
                %327 = vst [vmem:[%s149 + $0x2c0] sm:$0xff] %v326
                %v328 = vld [vmem:[%s148 + $0xb08] sm:$0xff]
                %329 = vst [vmem:[%s149 + $0x2c8] sm:$0xff] %v328
                %v330 = vld [vmem:[%s148 + $0xb10] sm:$0xff]
                %331 = vst [vmem:[%s149 + $0x2d0] sm:$0xff] %v330
                %v332 = vld [vmem:[%s148 + $0xb18] sm:$0xff]
                %333 = vst [vmem:[%s149 + $0x2d8] sm:$0xff] %v332
                %v334 = vld [vmem:[%s148 + $0xb20] sm:$0xff]
                %335 = vst [vmem:[%s149 + $0x2e0] sm:$0xff] %v334
                %v336 = vld [vmem:[%s148 + $0xb28] sm:$0xff]
                %337 = vst [vmem:[%s149 + $0x2e8] sm:$0xff] %v336
                %v338 = vld [vmem:[%s148 + $0xb30] sm:$0xff]
                %339 = vst [vmem:[%s149 + $0x2f0] sm:$0xff] %v338
                %v340 = vld [vmem:[%s148 + $0xb38] sm:$0xff]
                %341 = vst [vmem:[%s149 + $0x2f8] sm:$0xff] %v340
                %v342 = vld [vmem:[%s148 + $0xc00] sm:$0xff]
                %343 = vst [vmem:[%s149 + $0x300] sm:$0xff] %v342
                %v344 = vld [vmem:[%s148 + $0xc08] sm:$0xff]
                %345 = vst [vmem:[%s149 + $0x308] sm:$0xff] %v344
                %v346 = vld [vmem:[%s148 + $0xc10] sm:$0xff]
                %347 = vst [vmem:[%s149 + $0x310] sm:$0xff] %v346
                %v348 = vld [vmem:[%s148 + $0xc18] sm:$0xff]
                %349 = vst [vmem:[%s149 + $0x318] sm:$0xff] %v348
                %v350 = vld [vmem:[%s148 + $0xc20] sm:$0xff]
                %351 = vst [vmem:[%s149 + $0x320] sm:$0xff] %v350
                %v352 = vld [vmem:[%s148 + $0xc28] sm:$0xff]
                %353 = vst [vmem:[%s149 + $0x328] sm:$0xff] %v352
                %v354 = vld [vmem:[%s148 + $0xc30] sm:$0xff]
                %355 = vst [vmem:[%s149 + $0x330] sm:$0xff] %v354
                %v356 = vld [vmem:[%s148 + $0xc38] sm:$0xff]
                %357 = vst [vmem:[%s149 + $0x338] sm:$0xff] %v356
                %v358 = vld [vmem:[%s148 + $0xd00] sm:$0xff]
                %359 = vst [vmem:[%s149 + $0x340] sm:$0xff] %v358
                %v360 = vld [vmem:[%s148 + $0xd08] sm:$0xff]
                %361 = vst [vmem:[%s149 + $0x348] sm:$0xff] %v360
                %v362 = vld [vmem:[%s148 + $0xd10] sm:$0xff]
                %363 = vst [vmem:[%s149 + $0x350] sm:$0xff] %v362
                %v364 = vld [vmem:[%s148 + $0xd18] sm:$0xff]
                %365 = vst [vmem:[%s149 + $0x358] sm:$0xff] %v364
                %v366 = vld [vmem:[%s148 + $0xd20] sm:$0xff]
                %367 = vst [vmem:[%s149 + $0x360] sm:$0xff] %v366
                %v368 = vld [vmem:[%s148 + $0xd28] sm:$0xff]
                %369 = vst [vmem:[%s149 + $0x368] sm:$0xff] %v368
                %v370 = vld [vmem:[%s148 + $0xd30] sm:$0xff]
                %371 = vst [vmem:[%s149 + $0x370] sm:$0xff] %v370
                %v372 = vld [vmem:[%s148 + $0xd38] sm:$0xff]
                %373 = vst [vmem:[%s149 + $0x378] sm:$0xff] %v372
                %v374 = vld [vmem:[%s148 + $0xe00] sm:$0xff]
                %375 = vst [vmem:[%s149 + $0x380] sm:$0xff] %v374
                %v376 = vld [vmem:[%s148 + $0xe08] sm:$0xff]
                %377 = vst [vmem:[%s149 + $0x388] sm:$0xff] %v376
                %v378 = vld [vmem:[%s148 + $0xe10] sm:$0xff]
                %379 = vst [vmem:[%s149 + $0x390] sm:$0xff] %v378
                %v380 = vld [vmem:[%s148 + $0xe18] sm:$0xff]
                %381 = vst [vmem:[%s149 + $0x398] sm:$0xff] %v380
                %v382 = vld [vmem:[%s148 + $0xe20] sm:$0xff]
                %383 = vst [vmem:[%s149 + $0x3a0] sm:$0xff] %v382
                %v384 = vld [vmem:[%s148 + $0xe28] sm:$0xff]
                %385 = vst [vmem:[%s149 + $0x3a8] sm:$0xff] %v384
                %v386 = vld [vmem:[%s148 + $0xe30] sm:$0xff]
                %387 = vst [vmem:[%s149 + $0x3b0] sm:$0xff] %v386
                %v388 = vld [vmem:[%s148 + $0xe38] sm:$0xff]
                %389 = vst [vmem:[%s149 + $0x3b8] sm:$0xff] %v388
                %v390 = vld [vmem:[%s148 + $0xf00] sm:$0xff]
                %391 = vst [vmem:[%s149 + $0x3c0] sm:$0xff] %v390
                %v392 = vld [vmem:[%s148 + $0xf08] sm:$0xff]
                %393 = vst [vmem:[%s149 + $0x3c8] sm:$0xff] %v392
                %v394 = vld [vmem:[%s148 + $0xf10] sm:$0xff]
                %395 = vst [vmem:[%s149 + $0x3d0] sm:$0xff] %v394
                %v396 = vld [vmem:[%s148 + $0xf18] sm:$0xff]
                %397 = vst [vmem:[%s149 + $0x3d8] sm:$0xff] %v396
                %v398 = vld [vmem:[%s148 + $0xf20] sm:$0xff]
                %399 = vst [vmem:[%s149 + $0x3e0] sm:$0xff] %v398
                %v400 = vld [vmem:[%s148 + $0xf28] sm:$0xff]
                %401 = vst [vmem:[%s149 + $0x3e8] sm:$0xff] %v400
                %v402 = vld [vmem:[%s148 + $0xf30] sm:$0xff]
                %403 = vst [vmem:[%s149 + $0x3f0] sm:$0xff] %v402
                %v404 = vld [vmem:[%s148 + $0xf38] sm:$0xff]
                %405 = vst [vmem:[%s149 + $0x3f8] sm:$0xff] %v404
                %v406 = vld [vmem:[%s148 + $0x1000] sm:$0xff]
                %407 = vst [vmem:[%s149 + $0x400] sm:$0xff] %v406
                %v408 = vld [vmem:[%s148 + $0x1008] sm:$0xff]
                %409 = vst [vmem:[%s149 + $0x408] sm:$0xff] %v408
                %v410 = vld [vmem:[%s148 + $0x1010] sm:$0xff]
                %411 = vst [vmem:[%s149 + $0x410] sm:$0xff] %v410
                %v412 = vld [vmem:[%s148 + $0x1018] sm:$0xff]
                %413 = vst [vmem:[%s149 + $0x418] sm:$0xff] %v412
                %v414 = vld [vmem:[%s148 + $0x1020] sm:$0xff]
                %415 = vst [vmem:[%s149 + $0x420] sm:$0xff] %v414
                %v416 = vld [vmem:[%s148 + $0x1028] sm:$0xff]
                %417 = vst [vmem:[%s149 + $0x428] sm:$0xff] %v416
                %v418 = vld [vmem:[%s148 + $0x1030] sm:$0xff]
                %419 = vst [vmem:[%s149 + $0x430] sm:$0xff] %v418
                %v420 = vld [vmem:[%s148 + $0x1038] sm:$0xff]
                %421 = vst [vmem:[%s149 + $0x438] sm:$0xff] %v420
                %v422 = vld [vmem:[%s148 + $0x1100] sm:$0xff]
                %423 = vst [vmem:[%s149 + $0x440] sm:$0xff] %v422
                %v424 = vld [vmem:[%s148 + $0x1108] sm:$0xff]
                %425 = vst [vmem:[%s149 + $0x448] sm:$0xff] %v424
                %v426 = vld [vmem:[%s148 + $0x1110] sm:$0xff]
                %427 = vst [vmem:[%s149 + $0x450] sm:$0xff] %v426
                %v428 = vld [vmem:[%s148 + $0x1118] sm:$0xff]
                %429 = vst [vmem:[%s149 + $0x458] sm:$0xff] %v428
                %v430 = vld [vmem:[%s148 + $0x1120] sm:$0xff]
                %431 = vst [vmem:[%s149 + $0x460] sm:$0xff] %v430
                %v432 = vld [vmem:[%s148 + $0x1128] sm:$0xff]
                %433 = vst [vmem:[%s149 + $0x468] sm:$0xff] %v432
                %v434 = vld [vmem:[%s148 + $0x1130] sm:$0xff]
                %435 = vst [vmem:[%s149 + $0x470] sm:$0xff] %v434
                %v436 = vld [vmem:[%s148 + $0x1138] sm:$0xff]
                %437 = vst [vmem:[%s149 + $0x478] sm:$0xff] %v436
                %v438 = vld [vmem:[%s148 + $0x1200] sm:$0xff]
                %439 = vst [vmem:[%s149 + $0x480] sm:$0xff] %v438
                %v440 = vld [vmem:[%s148 + $0x1208] sm:$0xff]
                %441 = vst [vmem:[%s149 + $0x488] sm:$0xff] %v440
                %v442 = vld [vmem:[%s148 + $0x1210] sm:$0xff]
                %443 = vst [vmem:[%s149 + $0x490] sm:$0xff] %v442
                %v444 = vld [vmem:[%s148 + $0x1218] sm:$0xff]
                %445 = vst [vmem:[%s149 + $0x498] sm:$0xff] %v444
                %v446 = vld [vmem:[%s148 + $0x1220] sm:$0xff]
                %447 = vst [vmem:[%s149 + $0x4a0] sm:$0xff] %v446
                %v448 = vld [vmem:[%s148 + $0x1228] sm:$0xff]
                %449 = vst [vmem:[%s149 + $0x4a8] sm:$0xff] %v448
                %v450 = vld [vmem:[%s148 + $0x1230] sm:$0xff]
                %451 = vst [vmem:[%s149 + $0x4b0] sm:$0xff] %v450
                %v452 = vld [vmem:[%s148 + $0x1238] sm:$0xff]
                %453 = vst [vmem:[%s149 + $0x4b8] sm:$0xff] %v452
                %v454 = vld [vmem:[%s148 + $0x1300] sm:$0xff]
                %455 = vst [vmem:[%s149 + $0x4c0] sm:$0xff] %v454
                %v456 = vld [vmem:[%s148 + $0x1308] sm:$0xff]
                %457 = vst [vmem:[%s149 + $0x4c8] sm:$0xff] %v456
                %v458 = vld [vmem:[%s148 + $0x1310] sm:$0xff]
                %459 = vst [vmem:[%s149 + $0x4d0] sm:$0xff] %v458
                %v460 = vld [vmem:[%s148 + $0x1318] sm:$0xff]
                %461 = vst [vmem:[%s149 + $0x4d8] sm:$0xff] %v460
                %v462 = vld [vmem:[%s148 + $0x1320] sm:$0xff]
                %463 = vst [vmem:[%s149 + $0x4e0] sm:$0xff] %v462
                %v464 = vld [vmem:[%s148 + $0x1328] sm:$0xff]
                %465 = vst [vmem:[%s149 + $0x4e8] sm:$0xff] %v464
                %v466 = vld [vmem:[%s148 + $0x1330] sm:$0xff]
                %467 = vst [vmem:[%s149 + $0x4f0] sm:$0xff] %v466
                %v468 = vld [vmem:[%s148 + $0x1338] sm:$0xff]
                %469 = vst [vmem:[%s149 + $0x4f8] sm:$0xff] %v468
                %v470 = vld [vmem:[%s148 + $0x1400] sm:$0xff]
                %471 = vst [vmem:[%s149 + $0x500] sm:$0xff] %v470
                %v472 = vld [vmem:[%s148 + $0x1408] sm:$0xff]
                %473 = vst [vmem:[%s149 + $0x508] sm:$0xff] %v472
                %v474 = vld [vmem:[%s148 + $0x1410] sm:$0xff]
                %475 = vst [vmem:[%s149 + $0x510] sm:$0xff] %v474
                %v476 = vld [vmem:[%s148 + $0x1418] sm:$0xff]
                %477 = vst [vmem:[%s149 + $0x518] sm:$0xff] %v476
                %v478 = vld [vmem:[%s148 + $0x1420] sm:$0xff]
                %479 = vst [vmem:[%s149 + $0x520] sm:$0xff] %v478
                %v480 = vld [vmem:[%s148 + $0x1428] sm:$0xff]
                %481 = vst [vmem:[%s149 + $0x528] sm:$0xff] %v480
                %v482 = vld [vmem:[%s148 + $0x1430] sm:$0xff]
                %483 = vst [vmem:[%s149 + $0x530] sm:$0xff] %v482
                %v484 = vld [vmem:[%s148 + $0x1438] sm:$0xff]
                %485 = vst [vmem:[%s149 + $0x538] sm:$0xff] %v484
                %v486 = vld [vmem:[%s148 + $0x1500] sm:$0xff]
                %487 = vst [vmem:[%s149 + $0x540] sm:$0xff] %v486
                %v488 = vld [vmem:[%s148 + $0x1508] sm:$0xff]
                %489 = vst [vmem:[%s149 + $0x548] sm:$0xff] %v488
                %v490 = vld [vmem:[%s148 + $0x1510] sm:$0xff]
                %491 = vst [vmem:[%s149 + $0x550] sm:$0xff] %v490
                %v492 = vld [vmem:[%s148 + $0x1518] sm:$0xff]
                %493 = vst [vmem:[%s149 + $0x558] sm:$0xff] %v492
                %v494 = vld [vmem:[%s148 + $0x1520] sm:$0xff]
                %495 = vst [vmem:[%s149 + $0x560] sm:$0xff] %v494
                %v496 = vld [vmem:[%s148 + $0x1528] sm:$0xff]
                %497 = vst [vmem:[%s149 + $0x568] sm:$0xff] %v496
                %v498 = vld [vmem:[%s148 + $0x1530] sm:$0xff]
                %499 = vst [vmem:[%s149 + $0x570] sm:$0xff] %v498
                %v500 = vld [vmem:[%s148 + $0x1538] sm:$0xff]
                %501 = vst [vmem:[%s149 + $0x578] sm:$0xff] %v500
                %v502 = vld [vmem:[%s148 + $0x1600] sm:$0xff]
                %503 = vst [vmem:[%s149 + $0x580] sm:$0xff] %v502
                %v504 = vld [vmem:[%s148 + $0x1608] sm:$0xff]
                %505 = vst [vmem:[%s149 + $0x588] sm:$0xff] %v504
                %v506 = vld [vmem:[%s148 + $0x1610] sm:$0xff]
                %507 = vst [vmem:[%s149 + $0x590] sm:$0xff] %v506
                %v508 = vld [vmem:[%s148 + $0x1618] sm:$0xff]
                %509 = vst [vmem:[%s149 + $0x598] sm:$0xff] %v508
                %v510 = vld [vmem:[%s148 + $0x1620] sm:$0xff]
                %511 = vst [vmem:[%s149 + $0x5a0] sm:$0xff] %v510
                %v512 = vld [vmem:[%s148 + $0x1628] sm:$0xff]
                %513 = vst [vmem:[%s149 + $0x5a8] sm:$0xff] %v512
                %v514 = vld [vmem:[%s148 + $0x1630] sm:$0xff]
                %515 = vst [vmem:[%s149 + $0x5b0] sm:$0xff] %v514
                %v516 = vld [vmem:[%s148 + $0x1638] sm:$0xff]
                %517 = vst [vmem:[%s149 + $0x5b8] sm:$0xff] %v516
                %v518 = vld [vmem:[%s148 + $0x1700] sm:$0xff]
                %519 = vst [vmem:[%s149 + $0x5c0] sm:$0xff] %v518
                %v520 = vld [vmem:[%s148 + $0x1708] sm:$0xff]
                %521 = vst [vmem:[%s149 + $0x5c8] sm:$0xff] %v520
                %v522 = vld [vmem:[%s148 + $0x1710] sm:$0xff]
                %523 = vst [vmem:[%s149 + $0x5d0] sm:$0xff] %v522
                %v524 = vld [vmem:[%s148 + $0x1718] sm:$0xff]
                %525 = vst [vmem:[%s149 + $0x5d8] sm:$0xff] %v524
                %v526 = vld [vmem:[%s148 + $0x1720] sm:$0xff]
                %527 = vst [vmem:[%s149 + $0x5e0] sm:$0xff] %v526
                %v528 = vld [vmem:[%s148 + $0x1728] sm:$0xff]
                %529 = vst [vmem:[%s149 + $0x5e8] sm:$0xff] %v528
                %v530 = vld [vmem:[%s148 + $0x1730] sm:$0xff]
                %531 = vst [vmem:[%s149 + $0x5f0] sm:$0xff] %v530
                %v532 = vld [vmem:[%s148 + $0x1738] sm:$0xff]
                %533 = vst [vmem:[%s149 + $0x5f8] sm:$0xff] %v532
                %v534 = vld [vmem:[%s148 + $0x1800] sm:$0xff]
                %535 = vst [vmem:[%s149 + $0x600] sm:$0xff] %v534
                %v536 = vld [vmem:[%s148 + $0x1808] sm:$0xff]
                %537 = vst [vmem:[%s149 + $0x608] sm:$0xff] %v536
                %v538 = vld [vmem:[%s148 + $0x1810] sm:$0xff]
                %539 = vst [vmem:[%s149 + $0x610] sm:$0xff] %v538
                %v540 = vld [vmem:[%s148 + $0x1818] sm:$0xff]
                %541 = vst [vmem:[%s149 + $0x618] sm:$0xff] %v540
                %v542 = vld [vmem:[%s148 + $0x1820] sm:$0xff]
                %543 = vst [vmem:[%s149 + $0x620] sm:$0xff] %v542
                %v544 = vld [vmem:[%s148 + $0x1828] sm:$0xff]
                %545 = vst [vmem:[%s149 + $0x628] sm:$0xff] %v544
                %v546 = vld [vmem:[%s148 + $0x1830] sm:$0xff]
                %547 = vst [vmem:[%s149 + $0x630] sm:$0xff] %v546
                %v548 = vld [vmem:[%s148 + $0x1838] sm:$0xff]
                %549 = vst [vmem:[%s149 + $0x638] sm:$0xff] %v548
                %v550 = vld [vmem:[%s148 + $0x1900] sm:$0xff]
                %551 = vst [vmem:[%s149 + $0x640] sm:$0xff] %v550
                %v552 = vld [vmem:[%s148 + $0x1908] sm:$0xff]
                %553 = vst [vmem:[%s149 + $0x648] sm:$0xff] %v552
                %v554 = vld [vmem:[%s148 + $0x1910] sm:$0xff]
                %555 = vst [vmem:[%s149 + $0x650] sm:$0xff] %v554
                %v556 = vld [vmem:[%s148 + $0x1918] sm:$0xff]
                %557 = vst [vmem:[%s149 + $0x658] sm:$0xff] %v556
                %v558 = vld [vmem:[%s148 + $0x1920] sm:$0xff]
                %559 = vst [vmem:[%s149 + $0x660] sm:$0xff] %v558
                %v560 = vld [vmem:[%s148 + $0x1928] sm:$0xff]
                %561 = vst [vmem:[%s149 + $0x668] sm:$0xff] %v560
                %v562 = vld [vmem:[%s148 + $0x1930] sm:$0xff]
                %563 = vst [vmem:[%s149 + $0x670] sm:$0xff] %v562
                %v564 = vld [vmem:[%s148 + $0x1938] sm:$0xff]
                %565 = vst [vmem:[%s149 + $0x678] sm:$0xff] %v564
                %v566 = vld [vmem:[%s148 + $0x1a00] sm:$0xff]
                %567 = vst [vmem:[%s149 + $0x680] sm:$0xff] %v566
                %v568 = vld [vmem:[%s148 + $0x1a08] sm:$0xff]
                %569 = vst [vmem:[%s149 + $0x688] sm:$0xff] %v568
                %v570 = vld [vmem:[%s148 + $0x1a10] sm:$0xff]
                %571 = vst [vmem:[%s149 + $0x690] sm:$0xff] %v570
                %v572 = vld [vmem:[%s148 + $0x1a18] sm:$0xff]
                %573 = vst [vmem:[%s149 + $0x698] sm:$0xff] %v572
                %v574 = vld [vmem:[%s148 + $0x1a20] sm:$0xff]
                %575 = vst [vmem:[%s149 + $0x6a0] sm:$0xff] %v574
                %v576 = vld [vmem:[%s148 + $0x1a28] sm:$0xff]
                %577 = vst [vmem:[%s149 + $0x6a8] sm:$0xff] %v576
                %v578 = vld [vmem:[%s148 + $0x1a30] sm:$0xff]
                %579 = vst [vmem:[%s149 + $0x6b0] sm:$0xff] %v578
                %v580 = vld [vmem:[%s148 + $0x1a38] sm:$0xff]
                %581 = vst [vmem:[%s149 + $0x6b8] sm:$0xff] %v580
                %v582 = vld [vmem:[%s148 + $0x1b00] sm:$0xff]
                %583 = vst [vmem:[%s149 + $0x6c0] sm:$0xff] %v582
                %v584 = vld [vmem:[%s148 + $0x1b08] sm:$0xff]
                %585 = vst [vmem:[%s149 + $0x6c8] sm:$0xff] %v584
                %v586 = vld [vmem:[%s148 + $0x1b10] sm:$0xff]
                %587 = vst [vmem:[%s149 + $0x6d0] sm:$0xff] %v586
                %v588 = vld [vmem:[%s148 + $0x1b18] sm:$0xff]
                %589 = vst [vmem:[%s149 + $0x6d8] sm:$0xff] %v588
                %v590 = vld [vmem:[%s148 + $0x1b20] sm:$0xff]
                %591 = vst [vmem:[%s149 + $0x6e0] sm:$0xff] %v590
                %v592 = vld [vmem:[%s148 + $0x1b28] sm:$0xff]
                %593 = vst [vmem:[%s149 + $0x6e8] sm:$0xff] %v592
                %v594 = vld [vmem:[%s148 + $0x1b30] sm:$0xff]
                %595 = vst [vmem:[%s149 + $0x6f0] sm:$0xff] %v594
                %v596 = vld [vmem:[%s148 + $0x1b38] sm:$0xff]
                %597 = vst [vmem:[%s149 + $0x6f8] sm:$0xff] %v596
                %v598 = vld [vmem:[%s148 + $0x1c00] sm:$0xff]
                %599 = vst [vmem:[%s149 + $0x700] sm:$0xff] %v598
                %v600 = vld [vmem:[%s148 + $0x1c08] sm:$0xff]
                %601 = vst [vmem:[%s149 + $0x708] sm:$0xff] %v600
                %v602 = vld [vmem:[%s148 + $0x1c10] sm:$0xff]
                %603 = vst [vmem:[%s149 + $0x710] sm:$0xff] %v602
                %v604 = vld [vmem:[%s148 + $0x1c18] sm:$0xff]
                %605 = vst [vmem:[%s149 + $0x718] sm:$0xff] %v604
                %v606 = vld [vmem:[%s148 + $0x1c20] sm:$0xff]
                %607 = vst [vmem:[%s149 + $0x720] sm:$0xff] %v606
                %v608 = vld [vmem:[%s148 + $0x1c28] sm:$0xff]
                %609 = vst [vmem:[%s149 + $0x728] sm:$0xff] %v608
                %v610 = vld [vmem:[%s148 + $0x1c30] sm:$0xff]
                %611 = vst [vmem:[%s149 + $0x730] sm:$0xff] %v610
                %v612 = vld [vmem:[%s148 + $0x1c38] sm:$0xff]
                %613 = vst [vmem:[%s149 + $0x738] sm:$0xff] %v612
                %v614 = vld [vmem:[%s148 + $0x1d00] sm:$0xff]
                %615 = vst [vmem:[%s149 + $0x740] sm:$0xff] %v614
                %v616 = vld [vmem:[%s148 + $0x1d08] sm:$0xff]
                %617 = vst [vmem:[%s149 + $0x748] sm:$0xff] %v616
                %v618 = vld [vmem:[%s148 + $0x1d10] sm:$0xff]
                %619 = vst [vmem:[%s149 + $0x750] sm:$0xff] %v618
                %v620 = vld [vmem:[%s148 + $0x1d18] sm:$0xff]
                %621 = vst [vmem:[%s149 + $0x758] sm:$0xff] %v620
                %v622 = vld [vmem:[%s148 + $0x1d20] sm:$0xff]
                %623 = vst [vmem:[%s149 + $0x760] sm:$0xff] %v622
                %v624 = vld [vmem:[%s148 + $0x1d28] sm:$0xff]
                %625 = vst [vmem:[%s149 + $0x768] sm:$0xff] %v624
                %v626 = vld [vmem:[%s148 + $0x1d30] sm:$0xff]
                %627 = vst [vmem:[%s149 + $0x770] sm:$0xff] %v626
                %v628 = vld [vmem:[%s148 + $0x1d38] sm:$0xff]
                %629 = vst [vmem:[%s149 + $0x778] sm:$0xff] %v628
                %v630 = vld [vmem:[%s148 + $0x1e00] sm:$0xff]
                %631 = vst [vmem:[%s149 + $0x780] sm:$0xff] %v630
                %v632 = vld [vmem:[%s148 + $0x1e08] sm:$0xff]
                %633 = vst [vmem:[%s149 + $0x788] sm:$0xff] %v632
                %v634 = vld [vmem:[%s148 + $0x1e10] sm:$0xff]
                %635 = vst [vmem:[%s149 + $0x790] sm:$0xff] %v634
                %v636 = vld [vmem:[%s148 + $0x1e18] sm:$0xff]
                %637 = vst [vmem:[%s149 + $0x798] sm:$0xff] %v636
                %v638 = vld [vmem:[%s148 + $0x1e20] sm:$0xff]
                %639 = vst [vmem:[%s149 + $0x7a0] sm:$0xff] %v638
                %v640 = vld [vmem:[%s148 + $0x1e28] sm:$0xff]
                %641 = vst [vmem:[%s149 + $0x7a8] sm:$0xff] %v640
                %v642 = vld [vmem:[%s148 + $0x1e30] sm:$0xff]
                %643 = vst [vmem:[%s149 + $0x7b0] sm:$0xff] %v642
                %v644 = vld [vmem:[%s148 + $0x1e38] sm:$0xff]
                %645 = vst [vmem:[%s149 + $0x7b8] sm:$0xff] %v644
                %v646 = vld [vmem:[%s148 + $0x1f00] sm:$0xff]
                %647 = vst [vmem:[%s149 + $0x7c0] sm:$0xff] %v646
                %v648 = vld [vmem:[%s148 + $0x1f08] sm:$0xff]
                %649 = vst [vmem:[%s149 + $0x7c8] sm:$0xff] %v648
                %v650 = vld [vmem:[%s148 + $0x1f10] sm:$0xff]
                %651 = vst [vmem:[%s149 + $0x7d0] sm:$0xff] %v650
                %v652 = vld [vmem:[%s148 + $0x1f18] sm:$0xff]
                %653 = vst [vmem:[%s149 + $0x7d8] sm:$0xff] %v652
                %v654 = vld [vmem:[%s148 + $0x1f20] sm:$0xff]
                %655 = vst [vmem:[%s149 + $0x7e0] sm:$0xff] %v654
                %v656 = vld [vmem:[%s148 + $0x1f28] sm:$0xff]
                %657 = vst [vmem:[%s149 + $0x7e8] sm:$0xff] %v656
                %v658 = vld [vmem:[%s148 + $0x1f30] sm:$0xff]
                %659 = vst [vmem:[%s149 + $0x7f0] sm:$0xff] %v658
                %v660 = vld [vmem:[%s148 + $0x1f38] sm:$0xff]
                %661 = vst [vmem:[%s149 + $0x7f8] sm:$0xff] %v660
              $region41: #{a_call__.9} parent=35 // loop_footer
                %s147 = sadd.s32 1, %s143
              $region42: #{a_call__.9} parent=35 // loop_footer_branch
                %142 = sbr.rel target = $region38
              $region43: #{a_call__.9} parent=35 // loop_exit
                _
            $region36: #{a_call__.9} parent=31 // pred_fallthru
              _
            // Predicated region
            $region44: #{a_call__.9} parent=31 // pred_check
              _
            $region45: #{a_call__.9} parent=31 // pred_check_branch
              %663 = sbr.rel target = $region47
            $region46: #{a_call__.9} parent=31 // pred_region
              _
            $region47: #{a_call__.9} parent=31 // pred_fallthru
              _
          $region32: #{a_call__.9} parent=27 // pred_fallthru
            _
          %664 = vnop
        $region28: #{a_call__.9} parent=23 // pred_fallthru
          _
      $region24: #{a_call__.9} parent=5 // pred_fallthru
        _
      %p665 = scmp.le.s32.totalorder 1, %s9
      %p666 = scmp.lt.s32.totalorder %s9, 5
      %p667 = pnand %p665, %p666
      %p668 = pneg %p667
      // Predicated region
      $region48: #{a_call__.9} parent=5 // pred_check
        _
      $region49: #{a_call__.9} parent=5 // pred_check_branch
        %670 = sbr.rel (%p667) target = $region51
      $region50: #{a_call__.9} parent=5 // pred_region
        %s671 = ssub.s32 %s9, 1
        %s672 = sand.u32 %s43, 1
        %s673 = sand.u32 %s43, 1
        %s674 = smul.addr %s673, 2048
        %s675 = scalar_lea.vmem [#allocation2], %s674
        // Predicated region
        $region52: #{a_call__.9} parent=50 // pred_check
          %p676 = pneg %p56
        $region53: #{a_call__.9} parent=50 // pred_check_branch
          %678 = sbr.rel (%p676) target = $region55
        $region54: #{a_call__.9} parent=50 // pred_region
          _
        $region55: #{a_call__.9} parent=50 // pred_fallthru
          _
        %p679 = pneg %p30
        %p680 = pneg %p27
        %s681 = sand.u32 %s43, 1
        %s682 = sand.u32 %s43, 1
        %s683 = smul.addr %s682, 2048
        %s684 = scalar_lea.vmem [#allocation2], %s683
        %p685 = pneg %p56
        %p686 = pneg %p53
        %p687 = pneg %p77
        %p688 = pneg %p74
        %p689 = pneg %p103
        %p690 = pneg %p100
        %s691 = smul.u32 16, %s14
        %p692 = scmp.lt.s32.totalorder %s691, 63
        %s693 = scalar_select %p692, %s691, 63
        %s694 = smul.addr %s693, 4
        %s695 = scalar_lea.vmem %s3, %s694
        %s696 = smul.u32 16, %s14
        %s697 = smul.u32 16, %s14
        %p698 = scmp.lt.s32.totalorder %s697, 63
        %s699 = scalar_select %p698, %s697, 63
        %s700 = smul.addr %s699, 4
        %s701 = scalar_lea.vmem %s3, %s700
        %s702 = smul.u32 16, %s14
        %v703 = vld [vmem:[%s0] sm:$0xf]
        %v704 = vld [vmem:[%s675] sm:$0xff]
        %v705 = vld [vmem:[%s675 + $0x8] sm:$0xff]
        %v706 = vld [vmem:[%s675 + $0x10] sm:$0xff]
        %v707 = vld [vmem:[%s675 + $0x18] sm:$0xff]
        %v708 = vld [vmem:[%s675 + $0x20] sm:$0xff]
        %v709 = vld [vmem:[%s675 + $0x28] sm:$0xff]
        %v710 = vld [vmem:[%s675 + $0x30] sm:$0xff]
        %v711 = vld [vmem:[%s675 + $0x38] sm:$0xff]
        %v712 = vld [vmem:[%s675 + $0x40] sm:$0xff]
        %v713 = vld [vmem:[%s675 + $0x48] sm:$0xff]
        %v714 = vld [vmem:[%s675 + $0x50] sm:$0xff]
        %v715 = vld [vmem:[%s675 + $0x58] sm:$0xff]
        %v716 = vld [vmem:[%s675 + $0x60] sm:$0xff]
        %v717 = vld [vmem:[%s675 + $0x68] sm:$0xff]
        %v718 = vld [vmem:[%s675 + $0x70] sm:$0xff]
        %v719 = vld [vmem:[%s675 + $0x78] sm:$0xff]
        %v720 = vld [vmem:[%s675 + $0x80] sm:$0xff]
        %v721 = vld [vmem:[%s675 + $0x88] sm:$0xff]
        %v722 = vld [vmem:[%s675 + $0x90] sm:$0xff]
        %v723 = vld [vmem:[%s675 + $0x98] sm:$0xff]
        %v724 = vld [vmem:[%s675 + $0xa0] sm:$0xff]
        %v725 = vld [vmem:[%s675 + $0xa8] sm:$0xff]
        %v726 = vld [vmem:[%s675 + $0xb0] sm:$0xff]
        %v727 = vld [vmem:[%s675 + $0xb8] sm:$0xff]
        %v728 = vld [vmem:[%s675 + $0xc0] sm:$0xff]
        %v729 = vld [vmem:[%s675 + $0xc8] sm:$0xff]
        %v730 = vld [vmem:[%s675 + $0xd0] sm:$0xff]
        %v731 = vld [vmem:[%s675 + $0xd8] sm:$0xff]
        %v732 = vld [vmem:[%s675 + $0xe0] sm:$0xff]
        %v733 = vld [vmem:[%s675 + $0xe8] sm:$0xff]
        %v734 = vld [vmem:[%s675 + $0xf0] sm:$0xff]
        %v735 = vld [vmem:[%s675 + $0xf8] sm:$0xff]
        %v736 = vld [vmem:[%s675 + $0x100] sm:$0xff]
        %v737 = vld [vmem:[%s675 + $0x108] sm:$0xff]
        %v738 = vld [vmem:[%s675 + $0x110] sm:$0xff]
        %v739 = vld [vmem:[%s675 + $0x118] sm:$0xff]
        %v740 = vld [vmem:[%s675 + $0x120] sm:$0xff]
        %v741 = vld [vmem:[%s675 + $0x128] sm:$0xff]
        %v742 = vld [vmem:[%s675 + $0x130] sm:$0xff]
        %v743 = vld [vmem:[%s675 + $0x138] sm:$0xff]
        %v744 = vld [vmem:[%s675 + $0x140] sm:$0xff]
        %v745 = vld [vmem:[%s675 + $0x148] sm:$0xff]
        %v746 = vld [vmem:[%s675 + $0x150] sm:$0xff]
        %v747 = vld [vmem:[%s675 + $0x158] sm:$0xff]
        %v748 = vld [vmem:[%s675 + $0x160] sm:$0xff]
        %v749 = vld [vmem:[%s675 + $0x168] sm:$0xff]
        %v750 = vld [vmem:[%s675 + $0x170] sm:$0xff]
        %v751 = vld [vmem:[%s675 + $0x178] sm:$0xff]
        %v752 = vld [vmem:[%s675 + $0x180] sm:$0xff]
        %v753 = vld [vmem:[%s675 + $0x188] sm:$0xff]
        %v754 = vld [vmem:[%s675 + $0x190] sm:$0xff]
        %v755 = vld [vmem:[%s675 + $0x198] sm:$0xff]
        %v756 = vld [vmem:[%s675 + $0x1a0] sm:$0xff]
        %v757 = vld [vmem:[%s675 + $0x1a8] sm:$0xff]
        %v758 = vld [vmem:[%s675 + $0x1b0] sm:$0xff]
        %v759 = vld [vmem:[%s675 + $0x1b8] sm:$0xff]
        %v760 = vld [vmem:[%s675 + $0x1c0] sm:$0xff]
        %v761 = vld [vmem:[%s675 + $0x1c8] sm:$0xff]
        %v762 = vld [vmem:[%s675 + $0x1d0] sm:$0xff]
        %v763 = vld [vmem:[%s675 + $0x1d8] sm:$0xff]
        %v764 = vld [vmem:[%s675 + $0x1e0] sm:$0xff]
        %v765 = vld [vmem:[%s675 + $0x1e8] sm:$0xff]
        %v766 = vld [vmem:[%s675 + $0x1f0] sm:$0xff]
        %v767 = vld [vmem:[%s675 + $0x1f8] sm:$0xff]
        %v768 = vld [vmem:[%s675 + $0x200] sm:$0xff]
        %v769 = vld [vmem:[%s675 + $0x208] sm:$0xff]
        %v770 = vld [vmem:[%s675 + $0x210] sm:$0xff]
        %v771 = vld [vmem:[%s675 + $0x218] sm:$0xff]
        %v772 = vld [vmem:[%s675 + $0x220] sm:$0xff]
        %v773 = vld [vmem:[%s675 + $0x228] sm:$0xff]
        %v774 = vld [vmem:[%s675 + $0x230] sm:$0xff]
        %v775 = vld [vmem:[%s675 + $0x238] sm:$0xff]
        %v776 = vld [vmem:[%s675 + $0x240] sm:$0xff]
        %v777 = vld [vmem:[%s675 + $0x248] sm:$0xff]
        %v778 = vld [vmem:[%s675 + $0x250] sm:$0xff]
        %v779 = vld [vmem:[%s675 + $0x258] sm:$0xff]
        %v780 = vld [vmem:[%s675 + $0x260] sm:$0xff]
        %v781 = vld [vmem:[%s675 + $0x268] sm:$0xff]
        %v782 = vld [vmem:[%s675 + $0x270] sm:$0xff]
        %v783 = vld [vmem:[%s675 + $0x278] sm:$0xff]
        %v784 = vld [vmem:[%s675 + $0x280] sm:$0xff]
        %v785 = vld [vmem:[%s675 + $0x288] sm:$0xff]
        %v786 = vld [vmem:[%s675 + $0x290] sm:$0xff]
        %v787 = vld [vmem:[%s675 + $0x298] sm:$0xff]
        %v788 = vld [vmem:[%s675 + $0x2a0] sm:$0xff]
        %v789 = vld [vmem:[%s675 + $0x2a8] sm:$0xff]
        %v790 = vld [vmem:[%s675 + $0x2b0] sm:$0xff]
        %v791 = vld [vmem:[%s675 + $0x2b8] sm:$0xff]
        %v792 = vld [vmem:[%s675 + $0x2c0] sm:$0xff]
        %v793 = vld [vmem:[%s675 + $0x2c8] sm:$0xff]
        %v794 = vld [vmem:[%s675 + $0x2d0] sm:$0xff]
        %v795 = vld [vmem:[%s675 + $0x2d8] sm:$0xff]
        %v796 = vld [vmem:[%s675 + $0x2e0] sm:$0xff]
        %v797 = vld [vmem:[%s675 + $0x2e8] sm:$0xff]
        %v798 = vld [vmem:[%s675 + $0x2f0] sm:$0xff]
        %v799 = vld [vmem:[%s675 + $0x2f8] sm:$0xff]
        %v800 = vld [vmem:[%s675 + $0x300] sm:$0xff]
        %v801 = vld [vmem:[%s675 + $0x308] sm:$0xff]
        %v802 = vld [vmem:[%s675 + $0x310] sm:$0xff]
        %v803 = vld [vmem:[%s675 + $0x318] sm:$0xff]
        %v804 = vld [vmem:[%s675 + $0x320] sm:$0xff]
        %v805 = vld [vmem:[%s675 + $0x328] sm:$0xff]
        %v806 = vld [vmem:[%s675 + $0x330] sm:$0xff]
        %v807 = vld [vmem:[%s675 + $0x338] sm:$0xff]
        %v808 = vld [vmem:[%s675 + $0x340] sm:$0xff]
        %v809 = vld [vmem:[%s675 + $0x348] sm:$0xff]
        %v810 = vld [vmem:[%s675 + $0x350] sm:$0xff]
        %v811 = vld [vmem:[%s675 + $0x358] sm:$0xff]
        %v812 = vld [vmem:[%s675 + $0x360] sm:$0xff]
        %v813 = vld [vmem:[%s675 + $0x368] sm:$0xff]
        %v814 = vld [vmem:[%s675 + $0x370] sm:$0xff]
        %v815 = vld [vmem:[%s675 + $0x378] sm:$0xff]
        %v816 = vld [vmem:[%s675 + $0x380] sm:$0xff]
        %v817 = vld [vmem:[%s675 + $0x388] sm:$0xff]
        %v818 = vld [vmem:[%s675 + $0x390] sm:$0xff]
        %v819 = vld [vmem:[%s675 + $0x398] sm:$0xff]
        %v820 = vld [vmem:[%s675 + $0x3a0] sm:$0xff]
        %v821 = vld [vmem:[%s675 + $0x3a8] sm:$0xff]
        %v822 = vld [vmem:[%s675 + $0x3b0] sm:$0xff]
        %v823 = vld [vmem:[%s675 + $0x3b8] sm:$0xff]
        %v824 = vld [vmem:[%s675 + $0x3c0] sm:$0xff]
        %v825 = vld [vmem:[%s675 + $0x3c8] sm:$0xff]
        %v826 = vld [vmem:[%s675 + $0x3d0] sm:$0xff]
        %v827 = vld [vmem:[%s675 + $0x3d8] sm:$0xff]
        %v828 = vld [vmem:[%s675 + $0x3e0] sm:$0xff]
        %v829 = vld [vmem:[%s675 + $0x3e8] sm:$0xff]
        %v830 = vld [vmem:[%s675 + $0x3f0] sm:$0xff]
        %v831 = vld [vmem:[%s675 + $0x3f8] sm:$0xff]
        %v832 = vld [vmem:[%s675 + $0x400] sm:$0xff]
        %v833 = vld [vmem:[%s675 + $0x408] sm:$0xff]
        %v834 = vld [vmem:[%s675 + $0x410] sm:$0xff]
        %v835 = vld [vmem:[%s675 + $0x418] sm:$0xff]
        %v836 = vld [vmem:[%s675 + $0x420] sm:$0xff]
        %v837 = vld [vmem:[%s675 + $0x428] sm:$0xff]
        %v838 = vld [vmem:[%s675 + $0x430] sm:$0xff]
        %v839 = vld [vmem:[%s675 + $0x438] sm:$0xff]
        %v840 = vld [vmem:[%s675 + $0x440] sm:$0xff]
        %v841 = vld [vmem:[%s675 + $0x448] sm:$0xff]
        %v842 = vld [vmem:[%s675 + $0x450] sm:$0xff]
        %v843 = vld [vmem:[%s675 + $0x458] sm:$0xff]
        %v844 = vld [vmem:[%s675 + $0x460] sm:$0xff]
        %v845 = vld [vmem:[%s675 + $0x468] sm:$0xff]
        %v846 = vld [vmem:[%s675 + $0x470] sm:$0xff]
        %v847 = vld [vmem:[%s675 + $0x478] sm:$0xff]
        %v848 = vld [vmem:[%s675 + $0x480] sm:$0xff]
        %v849 = vld [vmem:[%s675 + $0x488] sm:$0xff]
        %v850 = vld [vmem:[%s675 + $0x490] sm:$0xff]
        %v851 = vld [vmem:[%s675 + $0x498] sm:$0xff]
        %v852 = vld [vmem:[%s675 + $0x4a0] sm:$0xff]
        %v853 = vld [vmem:[%s675 + $0x4a8] sm:$0xff]
        %v854 = vld [vmem:[%s675 + $0x4b0] sm:$0xff]
        %v855 = vld [vmem:[%s675 + $0x4b8] sm:$0xff]
        %v856 = vld [vmem:[%s675 + $0x4c0] sm:$0xff]
        %v857 = vld [vmem:[%s675 + $0x4c8] sm:$0xff]
        %v858 = vld [vmem:[%s675 + $0x4d0] sm:$0xff]
        %v859 = vld [vmem:[%s675 + $0x4d8] sm:$0xff]
        %v860 = vld [vmem:[%s675 + $0x4e0] sm:$0xff]
        %v861 = vld [vmem:[%s675 + $0x4e8] sm:$0xff]
        %v862 = vld [vmem:[%s675 + $0x4f0] sm:$0xff]
        %v863 = vld [vmem:[%s675 + $0x4f8] sm:$0xff]
        %v864 = vld [vmem:[%s675 + $0x500] sm:$0xff]
        %v865 = vld [vmem:[%s675 + $0x508] sm:$0xff]
        %v866 = vld [vmem:[%s675 + $0x510] sm:$0xff]
        %v867 = vld [vmem:[%s675 + $0x518] sm:$0xff]
        %v868 = vld [vmem:[%s675 + $0x520] sm:$0xff]
        %v869 = vld [vmem:[%s675 + $0x528] sm:$0xff]
        %v870 = vld [vmem:[%s675 + $0x530] sm:$0xff]
        %v871 = vld [vmem:[%s675 + $0x538] sm:$0xff]
        %v872 = vld [vmem:[%s675 + $0x540] sm:$0xff]
        %v873 = vld [vmem:[%s675 + $0x548] sm:$0xff]
        %v874 = vld [vmem:[%s675 + $0x550] sm:$0xff]
        %v875 = vld [vmem:[%s675 + $0x558] sm:$0xff]
        %v876 = vld [vmem:[%s675 + $0x560] sm:$0xff]
        %v877 = vld [vmem:[%s675 + $0x568] sm:$0xff]
        %v878 = vld [vmem:[%s675 + $0x570] sm:$0xff]
        %v879 = vld [vmem:[%s675 + $0x578] sm:$0xff]
        %v880 = vld [vmem:[%s675 + $0x580] sm:$0xff]
        %v881 = vld [vmem:[%s675 + $0x588] sm:$0xff]
        %v882 = vld [vmem:[%s675 + $0x590] sm:$0xff]
        %v883 = vld [vmem:[%s675 + $0x598] sm:$0xff]
        %v884 = vld [vmem:[%s675 + $0x5a0] sm:$0xff]
        %v885 = vld [vmem:[%s675 + $0x5a8] sm:$0xff]
        %v886 = vld [vmem:[%s675 + $0x5b0] sm:$0xff]
        %v887 = vld [vmem:[%s675 + $0x5b8] sm:$0xff]
        %v888 = vld [vmem:[%s675 + $0x5c0] sm:$0xff]
        %v889 = vld [vmem:[%s675 + $0x5c8] sm:$0xff]
        %v890 = vld [vmem:[%s675 + $0x5d0] sm:$0xff]
        %v891 = vld [vmem:[%s675 + $0x5d8] sm:$0xff]
        %v892 = vld [vmem:[%s675 + $0x5e0] sm:$0xff]
        %v893 = vld [vmem:[%s675 + $0x5e8] sm:$0xff]
        %v894 = vld [vmem:[%s675 + $0x5f0] sm:$0xff]
        %v895 = vld [vmem:[%s675 + $0x5f8] sm:$0xff]
        %v896 = vld [vmem:[%s675 + $0x600] sm:$0xff]
        %v897 = vld [vmem:[%s675 + $0x608] sm:$0xff]
        %v898 = vld [vmem:[%s675 + $0x610] sm:$0xff]
        %v899 = vld [vmem:[%s675 + $0x618] sm:$0xff]
        %v900 = vld [vmem:[%s675 + $0x620] sm:$0xff]
        %v901 = vld [vmem:[%s675 + $0x628] sm:$0xff]
        %v902 = vld [vmem:[%s675 + $0x630] sm:$0xff]
        %v903 = vld [vmem:[%s675 + $0x638] sm:$0xff]
        %v904 = vld [vmem:[%s675 + $0x640] sm:$0xff]
        %v905 = vld [vmem:[%s675 + $0x648] sm:$0xff]
        %v906 = vld [vmem:[%s675 + $0x650] sm:$0xff]
        %v907 = vld [vmem:[%s675 + $0x658] sm:$0xff]
        %v908 = vld [vmem:[%s675 + $0x660] sm:$0xff]
        %v909 = vld [vmem:[%s675 + $0x668] sm:$0xff]
        %v910 = vld [vmem:[%s675 + $0x670] sm:$0xff]
        %v911 = vld [vmem:[%s675 + $0x678] sm:$0xff]
        %v912 = vld [vmem:[%s675 + $0x680] sm:$0xff]
        %v913 = vld [vmem:[%s675 + $0x688] sm:$0xff]
        %v914 = vld [vmem:[%s675 + $0x690] sm:$0xff]
        %v915 = vld [vmem:[%s675 + $0x698] sm:$0xff]
        %v916 = vld [vmem:[%s675 + $0x6a0] sm:$0xff]
        %v917 = vld [vmem:[%s675 + $0x6a8] sm:$0xff]
        %v918 = vld [vmem:[%s675 + $0x6b0] sm:$0xff]
        %v919 = vld [vmem:[%s675 + $0x6b8] sm:$0xff]
        %v920 = vld [vmem:[%s675 + $0x6c0] sm:$0xff]
        %v921 = vld [vmem:[%s675 + $0x6c8] sm:$0xff]
        %v922 = vld [vmem:[%s675 + $0x6d0] sm:$0xff]
        %v923 = vld [vmem:[%s675 + $0x6d8] sm:$0xff]
        %v924 = vld [vmem:[%s675 + $0x6e0] sm:$0xff]
        %v925 = vld [vmem:[%s675 + $0x6e8] sm:$0xff]
        %v926 = vld [vmem:[%s675 + $0x6f0] sm:$0xff]
        %v927 = vld [vmem:[%s675 + $0x6f8] sm:$0xff]
        %v928 = vld [vmem:[%s675 + $0x700] sm:$0xff]
        %v929 = vld [vmem:[%s675 + $0x708] sm:$0xff]
        %v930 = vld [vmem:[%s675 + $0x710] sm:$0xff]
        %v931 = vld [vmem:[%s675 + $0x718] sm:$0xff]
        %v932 = vld [vmem:[%s675 + $0x720] sm:$0xff]
        %v933 = vld [vmem:[%s675 + $0x728] sm:$0xff]
        %v934 = vld [vmem:[%s675 + $0x730] sm:$0xff]
        %v935 = vld [vmem:[%s675 + $0x738] sm:$0xff]
        %v936 = vld [vmem:[%s675 + $0x740] sm:$0xff]
        %v937 = vld [vmem:[%s675 + $0x748] sm:$0xff]
        %v938 = vld [vmem:[%s675 + $0x750] sm:$0xff]
        %v939 = vld [vmem:[%s675 + $0x758] sm:$0xff]
        %v940 = vld [vmem:[%s675 + $0x760] sm:$0xff]
        %v941 = vld [vmem:[%s675 + $0x768] sm:$0xff]
        %v942 = vld [vmem:[%s675 + $0x770] sm:$0xff]
        %v943 = vld [vmem:[%s675 + $0x778] sm:$0xff]
        %v944 = vld [vmem:[%s675 + $0x780] sm:$0xff]
        %v945 = vld [vmem:[%s675 + $0x788] sm:$0xff]
        %v946 = vld [vmem:[%s675 + $0x790] sm:$0xff]
        %v947 = vld [vmem:[%s675 + $0x798] sm:$0xff]
        %v948 = vld [vmem:[%s675 + $0x7a0] sm:$0xff]
        %v949 = vld [vmem:[%s675 + $0x7a8] sm:$0xff]
        %v950 = vld [vmem:[%s675 + $0x7b0] sm:$0xff]
        %v951 = vld [vmem:[%s675 + $0x7b8] sm:$0xff]
        %v952 = vld [vmem:[%s675 + $0x7c0] sm:$0xff]
        %v953 = vld [vmem:[%s675 + $0x7c8] sm:$0xff]
        %v954 = vld [vmem:[%s675 + $0x7d0] sm:$0xff]
        %v955 = vld [vmem:[%s675 + $0x7d8] sm:$0xff]
        %v956 = vld [vmem:[%s675 + $0x7e0] sm:$0xff]
        %v957 = vld [vmem:[%s675 + $0x7e8] sm:$0xff]
        %v958 = vld [vmem:[%s675 + $0x7f0] sm:$0xff]
        %v959 = vld [vmem:[%s675 + $0x7f8] sm:$0xff]
        %v960 = vld [vmem:[%s2] sm:$0x7]
        %962 = vset.pattern.permute.xlu0 0
        %963 = vperm.xlu0 %962, %v960
        %v964 = vpop.permute.xlu0 %963
        %v968 = vunpack.c.l.s4 1983009808
        %v969 = vunpack.c.0.s8 %v968
        %v970 = vlaneseq
        %v971 = vshrl.u32 %v970, 7
        %v972 = vsub.s32 %v969, %v971
        %v973 = vrot.slane %v703, %v972
        %v974 = vcombine.high %v973, %v973
        %v1233 = vunpack.c.l.b16 %v704
        %v1234 = vunpack.c.h.b16 %v704
        %v1235 = vunpack.c.l.b16 %v705
        %v1236 = vunpack.c.h.b16 %v705
        %v1237 = vunpack.c.l.b16 %v706
        %v1238 = vunpack.c.h.b16 %v706
        %v1239 = vunpack.c.l.b16 %v707
        %v1240 = vunpack.c.h.b16 %v707
        %v1241 = vunpack.c.l.b16 %v708
        %v1242 = vunpack.c.h.b16 %v708
        %v1243 = vunpack.c.l.b16 %v709
        %v1244 = vunpack.c.h.b16 %v709
        %v1245 = vunpack.c.l.b16 %v710
        %v1246 = vunpack.c.h.b16 %v710
        %v1247 = vunpack.c.l.b16 %v711
        %v1248 = vunpack.c.h.b16 %v711
        %v1249 = vunpack.c.l.b16 %v712
        %v1250 = vunpack.c.h.b16 %v712
        %v1251 = vunpack.c.l.b16 %v713
        %v1252 = vunpack.c.h.b16 %v713
        %v1253 = vunpack.c.l.b16 %v714
        %v1254 = vunpack.c.h.b16 %v714
        %v1255 = vunpack.c.l.b16 %v715
        %v1256 = vunpack.c.h.b16 %v715
        %v1257 = vunpack.c.l.b16 %v716
        %v1258 = vunpack.c.h.b16 %v716
        %v1259 = vunpack.c.l.b16 %v717
        %v1260 = vunpack.c.h.b16 %v717
        %v1261 = vunpack.c.l.b16 %v718
        %v1262 = vunpack.c.h.b16 %v718
        %v1263 = vunpack.c.l.b16 %v719
        %v1264 = vunpack.c.h.b16 %v719
        %v1265 = vunpack.c.l.b16 %v720
        %v1266 = vunpack.c.h.b16 %v720
        %v1267 = vunpack.c.l.b16 %v721
        %v1268 = vunpack.c.h.b16 %v721
        %v1269 = vunpack.c.l.b16 %v722
        %v1270 = vunpack.c.h.b16 %v722
        %v1271 = vunpack.c.l.b16 %v723
        %v1272 = vunpack.c.h.b16 %v723
        %v1273 = vunpack.c.l.b16 %v724
        %v1274 = vunpack.c.h.b16 %v724
        %v1275 = vunpack.c.l.b16 %v725
        %v1276 = vunpack.c.h.b16 %v725
        %v1277 = vunpack.c.l.b16 %v726
        %v1278 = vunpack.c.h.b16 %v726
        %v1279 = vunpack.c.l.b16 %v727
        %v1280 = vunpack.c.h.b16 %v727
        %v1281 = vunpack.c.l.b16 %v728
        %v1282 = vunpack.c.h.b16 %v728
        %v1283 = vunpack.c.l.b16 %v729
        %v1284 = vunpack.c.h.b16 %v729
        %v1285 = vunpack.c.l.b16 %v730
        %v1286 = vunpack.c.h.b16 %v730
        %v1287 = vunpack.c.l.b16 %v731
        %v1288 = vunpack.c.h.b16 %v731
        %v1289 = vunpack.c.l.b16 %v732
        %v1290 = vunpack.c.h.b16 %v732
        %v1291 = vunpack.c.l.b16 %v733
        %v1292 = vunpack.c.h.b16 %v733
        %v1293 = vunpack.c.l.b16 %v734
        %v1294 = vunpack.c.h.b16 %v734
        %v1295 = vunpack.c.l.b16 %v735
        %v1296 = vunpack.c.h.b16 %v735
        %v1297 = vunpack.c.l.b16 %v736
        %v1298 = vunpack.c.h.b16 %v736
        %v1299 = vunpack.c.l.b16 %v737
        %v1300 = vunpack.c.h.b16 %v737
        %v1301 = vunpack.c.l.b16 %v738
        %v1302 = vunpack.c.h.b16 %v738
        %v1303 = vunpack.c.l.b16 %v739
        %v1304 = vunpack.c.h.b16 %v739
        %v1305 = vunpack.c.l.b16 %v740
        %v1306 = vunpack.c.h.b16 %v740
        %v1307 = vunpack.c.l.b16 %v741
        %v1308 = vunpack.c.h.b16 %v741
        %v1309 = vunpack.c.l.b16 %v742
        %v1310 = vunpack.c.h.b16 %v742
        %v1311 = vunpack.c.l.b16 %v743
        %v1312 = vunpack.c.h.b16 %v743
        %v1313 = vunpack.c.l.b16 %v744
        %v1314 = vunpack.c.h.b16 %v744
        %v1315 = vunpack.c.l.b16 %v745
        %v1316 = vunpack.c.h.b16 %v745
        %v1317 = vunpack.c.l.b16 %v746
        %v1318 = vunpack.c.h.b16 %v746
        %v1319 = vunpack.c.l.b16 %v747
        %v1320 = vunpack.c.h.b16 %v747
        %v1321 = vunpack.c.l.b16 %v748
        %v1322 = vunpack.c.h.b16 %v748
        %v1323 = vunpack.c.l.b16 %v749
        %v1324 = vunpack.c.h.b16 %v749
        %v1325 = vunpack.c.l.b16 %v750
        %v1326 = vunpack.c.h.b16 %v750
        %v1327 = vunpack.c.l.b16 %v751
        %v1328 = vunpack.c.h.b16 %v751
        %v1329 = vunpack.c.l.b16 %v752
        %v1330 = vunpack.c.h.b16 %v752
        %v1331 = vunpack.c.l.b16 %v753
        %v1332 = vunpack.c.h.b16 %v753
        %v1333 = vunpack.c.l.b16 %v754
        %v1334 = vunpack.c.h.b16 %v754
        %v1335 = vunpack.c.l.b16 %v755
        %v1336 = vunpack.c.h.b16 %v755
        %v1337 = vunpack.c.l.b16 %v756
        %v1338 = vunpack.c.h.b16 %v756
        %v1339 = vunpack.c.l.b16 %v757
        %v1340 = vunpack.c.h.b16 %v757
        %v1341 = vunpack.c.l.b16 %v758
        %v1342 = vunpack.c.h.b16 %v758
        %v1343 = vunpack.c.l.b16 %v759
        %v1344 = vunpack.c.h.b16 %v759
        %v1345 = vunpack.c.l.b16 %v760
        %v1346 = vunpack.c.h.b16 %v760
        %v1347 = vunpack.c.l.b16 %v761
        %v1348 = vunpack.c.h.b16 %v761
        %v1349 = vunpack.c.l.b16 %v762
        %v1350 = vunpack.c.h.b16 %v762
        %v1351 = vunpack.c.l.b16 %v763
        %v1352 = vunpack.c.h.b16 %v763
        %v1353 = vunpack.c.l.b16 %v764
        %v1354 = vunpack.c.h.b16 %v764
        %v1355 = vunpack.c.l.b16 %v765
        %v1356 = vunpack.c.h.b16 %v765
        %v1357 = vunpack.c.l.b16 %v766
        %v1358 = vunpack.c.h.b16 %v766
        %v1359 = vunpack.c.l.b16 %v767
        %v1360 = vunpack.c.h.b16 %v767
        %v1361 = vunpack.c.l.b16 %v768
        %v1362 = vunpack.c.h.b16 %v768
        %v1363 = vunpack.c.l.b16 %v769
        %v1364 = vunpack.c.h.b16 %v769
        %v1365 = vunpack.c.l.b16 %v770
        %v1366 = vunpack.c.h.b16 %v770
        %v1367 = vunpack.c.l.b16 %v771
        %v1368 = vunpack.c.h.b16 %v771
        %v1369 = vunpack.c.l.b16 %v772
        %v1370 = vunpack.c.h.b16 %v772
        %v1371 = vunpack.c.l.b16 %v773
        %v1372 = vunpack.c.h.b16 %v773
        %v1373 = vunpack.c.l.b16 %v774
        %v1374 = vunpack.c.h.b16 %v774
        %v1375 = vunpack.c.l.b16 %v775
        %v1376 = vunpack.c.h.b16 %v775
        %v1377 = vunpack.c.l.b16 %v776
        %v1378 = vunpack.c.h.b16 %v776
        %v1379 = vunpack.c.l.b16 %v777
        %v1380 = vunpack.c.h.b16 %v777
        %v1381 = vunpack.c.l.b16 %v778
        %v1382 = vunpack.c.h.b16 %v778
        %v1383 = vunpack.c.l.b16 %v779
        %v1384 = vunpack.c.h.b16 %v779
        %v1385 = vunpack.c.l.b16 %v780
        %v1386 = vunpack.c.h.b16 %v780
        %v1387 = vunpack.c.l.b16 %v781
        %v1388 = vunpack.c.h.b16 %v781
        %v1389 = vunpack.c.l.b16 %v782
        %v1390 = vunpack.c.h.b16 %v782
        %v1391 = vunpack.c.l.b16 %v783
        %v1392 = vunpack.c.h.b16 %v783
        %v1393 = vunpack.c.l.b16 %v784
        %v1394 = vunpack.c.h.b16 %v784
        %v1395 = vunpack.c.l.b16 %v785
        %v1396 = vunpack.c.h.b16 %v785
        %v1397 = vunpack.c.l.b16 %v786
        %v1398 = vunpack.c.h.b16 %v786
        %v1399 = vunpack.c.l.b16 %v787
        %v1400 = vunpack.c.h.b16 %v787
        %v1401 = vunpack.c.l.b16 %v788
        %v1402 = vunpack.c.h.b16 %v788
        %v1403 = vunpack.c.l.b16 %v789
        %v1404 = vunpack.c.h.b16 %v789
        %v1405 = vunpack.c.l.b16 %v790
        %v1406 = vunpack.c.h.b16 %v790
        %v1407 = vunpack.c.l.b16 %v791
        %v1408 = vunpack.c.h.b16 %v791
        %v1409 = vunpack.c.l.b16 %v792
        %v1410 = vunpack.c.h.b16 %v792
        %v1411 = vunpack.c.l.b16 %v793
        %v1412 = vunpack.c.h.b16 %v793
        %v1413 = vunpack.c.l.b16 %v794
        %v1414 = vunpack.c.h.b16 %v794
        %v1415 = vunpack.c.l.b16 %v795
        %v1416 = vunpack.c.h.b16 %v795
        %v1417 = vunpack.c.l.b16 %v796
        %v1418 = vunpack.c.h.b16 %v796
        %v1419 = vunpack.c.l.b16 %v797
        %v1420 = vunpack.c.h.b16 %v797
        %v1421 = vunpack.c.l.b16 %v798
        %v1422 = vunpack.c.h.b16 %v798
        %v1423 = vunpack.c.l.b16 %v799
        %v1424 = vunpack.c.h.b16 %v799
        %v1425 = vunpack.c.l.b16 %v800
        %v1426 = vunpack.c.h.b16 %v800
        %v1427 = vunpack.c.l.b16 %v801
        %v1428 = vunpack.c.h.b16 %v801
        %v1429 = vunpack.c.l.b16 %v802
        %v1430 = vunpack.c.h.b16 %v802
        %v1431 = vunpack.c.l.b16 %v803
        %v1432 = vunpack.c.h.b16 %v803
        %v1433 = vunpack.c.l.b16 %v804
        %v1434 = vunpack.c.h.b16 %v804
        %v1435 = vunpack.c.l.b16 %v805
        %v1436 = vunpack.c.h.b16 %v805
        %v1437 = vunpack.c.l.b16 %v806
        %v1438 = vunpack.c.h.b16 %v806
        %v1439 = vunpack.c.l.b16 %v807
        %v1440 = vunpack.c.h.b16 %v807
        %v1441 = vunpack.c.l.b16 %v808
        %v1442 = vunpack.c.h.b16 %v808
        %v1443 = vunpack.c.l.b16 %v809
        %v1444 = vunpack.c.h.b16 %v809
        %v1445 = vunpack.c.l.b16 %v810
        %v1446 = vunpack.c.h.b16 %v810
        %v1447 = vunpack.c.l.b16 %v811
        %v1448 = vunpack.c.h.b16 %v811
        %v1449 = vunpack.c.l.b16 %v812
        %v1450 = vunpack.c.h.b16 %v812
        %v1451 = vunpack.c.l.b16 %v813
        %v1452 = vunpack.c.h.b16 %v813
        %v1453 = vunpack.c.l.b16 %v814
        %v1454 = vunpack.c.h.b16 %v814
        %v1455 = vunpack.c.l.b16 %v815
        %v1456 = vunpack.c.h.b16 %v815
        %v1457 = vunpack.c.l.b16 %v816
        %v1458 = vunpack.c.h.b16 %v816
        %v1459 = vunpack.c.l.b16 %v817
        %v1460 = vunpack.c.h.b16 %v817
        %v1461 = vunpack.c.l.b16 %v818
        %v1462 = vunpack.c.h.b16 %v818
        %v1463 = vunpack.c.l.b16 %v819
        %v1464 = vunpack.c.h.b16 %v819
        %v1465 = vunpack.c.l.b16 %v820
        %v1466 = vunpack.c.h.b16 %v820
        %v1467 = vunpack.c.l.b16 %v821
        %v1468 = vunpack.c.h.b16 %v821
        %v1469 = vunpack.c.l.b16 %v822
        %v1470 = vunpack.c.h.b16 %v822
        %v1471 = vunpack.c.l.b16 %v823
        %v1472 = vunpack.c.h.b16 %v823
        %v1473 = vunpack.c.l.b16 %v824
        %v1474 = vunpack.c.h.b16 %v824
        %v1475 = vunpack.c.l.b16 %v825
        %v1476 = vunpack.c.h.b16 %v825
        %v1477 = vunpack.c.l.b16 %v826
        %v1478 = vunpack.c.h.b16 %v826
        %v1479 = vunpack.c.l.b16 %v827
        %v1480 = vunpack.c.h.b16 %v827
        %v1481 = vunpack.c.l.b16 %v828
        %v1482 = vunpack.c.h.b16 %v828
        %v1483 = vunpack.c.l.b16 %v829
        %v1484 = vunpack.c.h.b16 %v829
        %v1485 = vunpack.c.l.b16 %v830
        %v1486 = vunpack.c.h.b16 %v830
        %v1487 = vunpack.c.l.b16 %v831
        %v1488 = vunpack.c.h.b16 %v831
        %v1489 = vunpack.c.l.b16 %v832
        %v1490 = vunpack.c.h.b16 %v832
        %v1491 = vunpack.c.l.b16 %v833
        %v1492 = vunpack.c.h.b16 %v833
        %v1493 = vunpack.c.l.b16 %v834
        %v1494 = vunpack.c.h.b16 %v834
        %v1495 = vunpack.c.l.b16 %v835
        %v1496 = vunpack.c.h.b16 %v835
        %v1497 = vunpack.c.l.b16 %v836
        %v1498 = vunpack.c.h.b16 %v836
        %v1499 = vunpack.c.l.b16 %v837
        %v1500 = vunpack.c.h.b16 %v837
        %v1501 = vunpack.c.l.b16 %v838
        %v1502 = vunpack.c.h.b16 %v838
        %v1503 = vunpack.c.l.b16 %v839
        %v1504 = vunpack.c.h.b16 %v839
        %v1505 = vunpack.c.l.b16 %v840
        %v1506 = vunpack.c.h.b16 %v840
        %v1507 = vunpack.c.l.b16 %v841
        %v1508 = vunpack.c.h.b16 %v841
        %v1509 = vunpack.c.l.b16 %v842
        %v1510 = vunpack.c.h.b16 %v842
        %v1511 = vunpack.c.l.b16 %v843
        %v1512 = vunpack.c.h.b16 %v843
        %v1513 = vunpack.c.l.b16 %v844
        %v1514 = vunpack.c.h.b16 %v844
        %v1515 = vunpack.c.l.b16 %v845
        %v1516 = vunpack.c.h.b16 %v845
        %v1517 = vunpack.c.l.b16 %v846
        %v1518 = vunpack.c.h.b16 %v846
        %v1519 = vunpack.c.l.b16 %v847
        %v1520 = vunpack.c.h.b16 %v847
        %v1521 = vunpack.c.l.b16 %v848
        %v1522 = vunpack.c.h.b16 %v848
        %v1523 = vunpack.c.l.b16 %v849
        %v1524 = vunpack.c.h.b16 %v849
        %v1525 = vunpack.c.l.b16 %v850
        %v1526 = vunpack.c.h.b16 %v850
        %v1527 = vunpack.c.l.b16 %v851
        %v1528 = vunpack.c.h.b16 %v851
        %v1529 = vunpack.c.l.b16 %v852
        %v1530 = vunpack.c.h.b16 %v852
        %v1531 = vunpack.c.l.b16 %v853
        %v1532 = vunpack.c.h.b16 %v853
        %v1533 = vunpack.c.l.b16 %v854
        %v1534 = vunpack.c.h.b16 %v854
        %v1535 = vunpack.c.l.b16 %v855
        %v1536 = vunpack.c.h.b16 %v855
        %v1537 = vunpack.c.l.b16 %v856
        %v1538 = vunpack.c.h.b16 %v856
        %v1539 = vunpack.c.l.b16 %v857
        %v1540 = vunpack.c.h.b16 %v857
        %v1541 = vunpack.c.l.b16 %v858
        %v1542 = vunpack.c.h.b16 %v858
        %v1543 = vunpack.c.l.b16 %v859
        %v1544 = vunpack.c.h.b16 %v859
        %v1545 = vunpack.c.l.b16 %v860
        %v1546 = vunpack.c.h.b16 %v860
        %v1547 = vunpack.c.l.b16 %v861
        %v1548 = vunpack.c.h.b16 %v861
        %v1549 = vunpack.c.l.b16 %v862
        %v1550 = vunpack.c.h.b16 %v862
        %v1551 = vunpack.c.l.b16 %v863
        %v1552 = vunpack.c.h.b16 %v863
        %v1553 = vunpack.c.l.b16 %v864
        %v1554 = vunpack.c.h.b16 %v864
        %v1555 = vunpack.c.l.b16 %v865
        %v1556 = vunpack.c.h.b16 %v865
        %v1557 = vunpack.c.l.b16 %v866
        %v1558 = vunpack.c.h.b16 %v866
        %v1559 = vunpack.c.l.b16 %v867
        %v1560 = vunpack.c.h.b16 %v867
        %v1561 = vunpack.c.l.b16 %v868
        %v1562 = vunpack.c.h.b16 %v868
        %v1563 = vunpack.c.l.b16 %v869
        %v1564 = vunpack.c.h.b16 %v869
        %v1565 = vunpack.c.l.b16 %v870
        %v1566 = vunpack.c.h.b16 %v870
        %v1567 = vunpack.c.l.b16 %v871
        %v1568 = vunpack.c.h.b16 %v871
        %v1569 = vunpack.c.l.b16 %v872
        %v1570 = vunpack.c.h.b16 %v872
        %v1571 = vunpack.c.l.b16 %v873
        %v1572 = vunpack.c.h.b16 %v873
        %v1573 = vunpack.c.l.b16 %v874
        %v1574 = vunpack.c.h.b16 %v874
        %v1575 = vunpack.c.l.b16 %v875
        %v1576 = vunpack.c.h.b16 %v875
        %v1577 = vunpack.c.l.b16 %v876
        %v1578 = vunpack.c.h.b16 %v876
        %v1579 = vunpack.c.l.b16 %v877
        %v1580 = vunpack.c.h.b16 %v877
        %v1581 = vunpack.c.l.b16 %v878
        %v1582 = vunpack.c.h.b16 %v878
        %v1583 = vunpack.c.l.b16 %v879
        %v1584 = vunpack.c.h.b16 %v879
        %v1585 = vunpack.c.l.b16 %v880
        %v1586 = vunpack.c.h.b16 %v880
        %v1587 = vunpack.c.l.b16 %v881
        %v1588 = vunpack.c.h.b16 %v881
        %v1589 = vunpack.c.l.b16 %v882
        %v1590 = vunpack.c.h.b16 %v882
        %v1591 = vunpack.c.l.b16 %v883
        %v1592 = vunpack.c.h.b16 %v883
        %v1593 = vunpack.c.l.b16 %v884
        %v1594 = vunpack.c.h.b16 %v884
        %v1595 = vunpack.c.l.b16 %v885
        %v1596 = vunpack.c.h.b16 %v885
        %v1597 = vunpack.c.l.b16 %v886
        %v1598 = vunpack.c.h.b16 %v886
        %v1599 = vunpack.c.l.b16 %v887
        %v1600 = vunpack.c.h.b16 %v887
        %v1601 = vunpack.c.l.b16 %v888
        %v1602 = vunpack.c.h.b16 %v888
        %v1603 = vunpack.c.l.b16 %v889
        %v1604 = vunpack.c.h.b16 %v889
        %v1605 = vunpack.c.l.b16 %v890
        %v1606 = vunpack.c.h.b16 %v890
        %v1607 = vunpack.c.l.b16 %v891
        %v1608 = vunpack.c.h.b16 %v891
        %v1609 = vunpack.c.l.b16 %v892
        %v1610 = vunpack.c.h.b16 %v892
        %v1611 = vunpack.c.l.b16 %v893
        %v1612 = vunpack.c.h.b16 %v893
        %v1613 = vunpack.c.l.b16 %v894
        %v1614 = vunpack.c.h.b16 %v894
        %v1615 = vunpack.c.l.b16 %v895
        %v1616 = vunpack.c.h.b16 %v895
        %v1617 = vunpack.c.l.b16 %v896
        %v1618 = vunpack.c.h.b16 %v896
        %v1619 = vunpack.c.l.b16 %v897
        %v1620 = vunpack.c.h.b16 %v897
        %v1621 = vunpack.c.l.b16 %v898
        %v1622 = vunpack.c.h.b16 %v898
        %v1623 = vunpack.c.l.b16 %v899
        %v1624 = vunpack.c.h.b16 %v899
        %v1625 = vunpack.c.l.b16 %v900
        %v1626 = vunpack.c.h.b16 %v900
        %v1627 = vunpack.c.l.b16 %v901
        %v1628 = vunpack.c.h.b16 %v901
        %v1629 = vunpack.c.l.b16 %v902
        %v1630 = vunpack.c.h.b16 %v902
        %v1631 = vunpack.c.l.b16 %v903
        %v1632 = vunpack.c.h.b16 %v903
        %v1633 = vunpack.c.l.b16 %v904
        %v1634 = vunpack.c.h.b16 %v904
        %v1635 = vunpack.c.l.b16 %v905
        %v1636 = vunpack.c.h.b16 %v905
        %v1637 = vunpack.c.l.b16 %v906
        %v1638 = vunpack.c.h.b16 %v906
        %v1639 = vunpack.c.l.b16 %v907
        %v1640 = vunpack.c.h.b16 %v907
        %v1641 = vunpack.c.l.b16 %v908
        %v1642 = vunpack.c.h.b16 %v908
        %v1643 = vunpack.c.l.b16 %v909
        %v1644 = vunpack.c.h.b16 %v909
        %v1645 = vunpack.c.l.b16 %v910
        %v1646 = vunpack.c.h.b16 %v910
        %v1647 = vunpack.c.l.b16 %v911
        %v1648 = vunpack.c.h.b16 %v911
        %v1649 = vunpack.c.l.b16 %v912
        %v1650 = vunpack.c.h.b16 %v912
        %v1651 = vunpack.c.l.b16 %v913
        %v1652 = vunpack.c.h.b16 %v913
        %v1653 = vunpack.c.l.b16 %v914
        %v1654 = vunpack.c.h.b16 %v914
        %v1655 = vunpack.c.l.b16 %v915
        %v1656 = vunpack.c.h.b16 %v915
        %v1657 = vunpack.c.l.b16 %v916
        %v1658 = vunpack.c.h.b16 %v916
        %v1659 = vunpack.c.l.b16 %v917
        %v1660 = vunpack.c.h.b16 %v917
        %v1661 = vunpack.c.l.b16 %v918
        %v1662 = vunpack.c.h.b16 %v918
        %v1663 = vunpack.c.l.b16 %v919
        %v1664 = vunpack.c.h.b16 %v919
        %v1665 = vunpack.c.l.b16 %v920
        %v1666 = vunpack.c.h.b16 %v920
        %v1667 = vunpack.c.l.b16 %v921
        %v1668 = vunpack.c.h.b16 %v921
        %v1669 = vunpack.c.l.b16 %v922
        %v1670 = vunpack.c.h.b16 %v922
        %v1671 = vunpack.c.l.b16 %v923
        %v1672 = vunpack.c.h.b16 %v923
        %v1673 = vunpack.c.l.b16 %v924
        %v1674 = vunpack.c.h.b16 %v924
        %v1675 = vunpack.c.l.b16 %v925
        %v1676 = vunpack.c.h.b16 %v925
        %v1677 = vunpack.c.l.b16 %v926
        %v1678 = vunpack.c.h.b16 %v926
        %v1679 = vunpack.c.l.b16 %v927
        %v1680 = vunpack.c.h.b16 %v927
        %v1681 = vunpack.c.l.b16 %v928
        %v1682 = vunpack.c.h.b16 %v928
        %v1683 = vunpack.c.l.b16 %v929
        %v1684 = vunpack.c.h.b16 %v929
        %v1685 = vunpack.c.l.b16 %v930
        %v1686 = vunpack.c.h.b16 %v930
        %v1687 = vunpack.c.l.b16 %v931
        %v1688 = vunpack.c.h.b16 %v931
        %v1689 = vunpack.c.l.b16 %v932
        %v1690 = vunpack.c.h.b16 %v932
        %v1691 = vunpack.c.l.b16 %v933
        %v1692 = vunpack.c.h.b16 %v933
        %v1693 = vunpack.c.l.b16 %v934
        %v1694 = vunpack.c.h.b16 %v934
        %v1695 = vunpack.c.l.b16 %v935
        %v1696 = vunpack.c.h.b16 %v935
        %v1697 = vunpack.c.l.b16 %v936
        %v1698 = vunpack.c.h.b16 %v936
        %v1699 = vunpack.c.l.b16 %v937
        %v1700 = vunpack.c.h.b16 %v937
        %v1701 = vunpack.c.l.b16 %v938
        %v1702 = vunpack.c.h.b16 %v938
        %v1703 = vunpack.c.l.b16 %v939
        %v1704 = vunpack.c.h.b16 %v939
        %v1705 = vunpack.c.l.b16 %v940
        %v1706 = vunpack.c.h.b16 %v940
        %v1707 = vunpack.c.l.b16 %v941
        %v1708 = vunpack.c.h.b16 %v941
        %v1709 = vunpack.c.l.b16 %v942
        %v1710 = vunpack.c.h.b16 %v942
        %v1711 = vunpack.c.l.b16 %v943
        %v1712 = vunpack.c.h.b16 %v943
        %v1713 = vunpack.c.l.b16 %v944
        %v1714 = vunpack.c.h.b16 %v944
        %v1715 = vunpack.c.l.b16 %v945
        %v1716 = vunpack.c.h.b16 %v945
        %v1717 = vunpack.c.l.b16 %v946
        %v1718 = vunpack.c.h.b16 %v946
        %v1719 = vunpack.c.l.b16 %v947
        %v1720 = vunpack.c.h.b16 %v947
        %v1721 = vunpack.c.l.b16 %v948
        %v1722 = vunpack.c.h.b16 %v948
        %v1723 = vunpack.c.l.b16 %v949
        %v1724 = vunpack.c.h.b16 %v949
        %v1725 = vunpack.c.l.b16 %v950
        %v1726 = vunpack.c.h.b16 %v950
        %v1727 = vunpack.c.l.b16 %v951
        %v1728 = vunpack.c.h.b16 %v951
        %v1729 = vunpack.c.l.b16 %v952
        %v1730 = vunpack.c.h.b16 %v952
        %v1731 = vunpack.c.l.b16 %v953
        %v1732 = vunpack.c.h.b16 %v953
        %v1733 = vunpack.c.l.b16 %v954
        %v1734 = vunpack.c.h.b16 %v954
        %v1735 = vunpack.c.l.b16 %v955
        %v1736 = vunpack.c.h.b16 %v955
        %v1737 = vunpack.c.l.b16 %v956
        %v1738 = vunpack.c.h.b16 %v956
        %v1739 = vunpack.c.l.b16 %v957
        %v1740 = vunpack.c.h.b16 %v957
        %v1741 = vunpack.c.l.b16 %v958
        %v1742 = vunpack.c.h.b16 %v958
        %v1743 = vunpack.c.l.b16 %v959
        %v1744 = vunpack.c.h.b16 %v959
        %v1745 = vpack.c.b16 %v1249, %v1233
        %v1746 = vpack.c.b16 %v1250, %v1234
        %v1747 = vpack.c.b16 %v1251, %v1235
        %v1748 = vpack.c.b16 %v1252, %v1236
        %v1749 = vpack.c.b16 %v1253, %v1237
        %v1750 = vpack.c.b16 %v1254, %v1238
        %v1751 = vpack.c.b16 %v1255, %v1239
        %v1752 = vpack.c.b16 %v1256, %v1240
        %v1753 = vpack.c.b16 %v1257, %v1241
        %v1754 = vpack.c.b16 %v1258, %v1242
        %v1755 = vpack.c.b16 %v1259, %v1243
        %v1756 = vpack.c.b16 %v1260, %v1244
        %v1757 = vpack.c.b16 %v1261, %v1245
        %v1758 = vpack.c.b16 %v1262, %v1246
        %v1759 = vpack.c.b16 %v1263, %v1247
        %v1760 = vpack.c.b16 %v1264, %v1248
        %v1761 = vpack.c.b16 %v1281, %v1265
        %v1762 = vpack.c.b16 %v1282, %v1266
        %v1763 = vpack.c.b16 %v1283, %v1267
        %v1764 = vpack.c.b16 %v1284, %v1268
        %v1765 = vpack.c.b16 %v1285, %v1269
        %v1766 = vpack.c.b16 %v1286, %v1270
        %v1767 = vpack.c.b16 %v1287, %v1271
        %v1768 = vpack.c.b16 %v1288, %v1272
        %v1769 = vpack.c.b16 %v1289, %v1273
        %v1770 = vpack.c.b16 %v1290, %v1274
        %v1771 = vpack.c.b16 %v1291, %v1275
        %v1772 = vpack.c.b16 %v1292, %v1276
        %v1773 = vpack.c.b16 %v1293, %v1277
        %v1774 = vpack.c.b16 %v1294, %v1278
        %v1775 = vpack.c.b16 %v1295, %v1279
        %v1776 = vpack.c.b16 %v1296, %v1280
        %v1777 = vpack.c.b16 %v1313, %v1297
        %v1778 = vpack.c.b16 %v1314, %v1298
        %v1779 = vpack.c.b16 %v1315, %v1299
        %v1780 = vpack.c.b16 %v1316, %v1300
        %v1781 = vpack.c.b16 %v1317, %v1301
        %v1782 = vpack.c.b16 %v1318, %v1302
        %v1783 = vpack.c.b16 %v1319, %v1303
        %v1784 = vpack.c.b16 %v1320, %v1304
        %v1785 = vpack.c.b16 %v1321, %v1305
        %v1786 = vpack.c.b16 %v1322, %v1306
        %v1787 = vpack.c.b16 %v1323, %v1307
        %v1788 = vpack.c.b16 %v1324, %v1308
        %v1789 = vpack.c.b16 %v1325, %v1309
        %v1790 = vpack.c.b16 %v1326, %v1310
        %v1791 = vpack.c.b16 %v1327, %v1311
        %v1792 = vpack.c.b16 %v1328, %v1312
        %v1793 = vpack.c.b16 %v1345, %v1329
        %v1794 = vpack.c.b16 %v1346, %v1330
        %v1795 = vpack.c.b16 %v1347, %v1331
        %v1796 = vpack.c.b16 %v1348, %v1332
        %v1797 = vpack.c.b16 %v1349, %v1333
        %v1798 = vpack.c.b16 %v1350, %v1334
        %v1799 = vpack.c.b16 %v1351, %v1335
        %v1800 = vpack.c.b16 %v1352, %v1336
        %v1801 = vpack.c.b16 %v1353, %v1337
        %v1802 = vpack.c.b16 %v1354, %v1338
        %v1803 = vpack.c.b16 %v1355, %v1339
        %v1804 = vpack.c.b16 %v1356, %v1340
        %v1805 = vpack.c.b16 %v1357, %v1341
        %v1806 = vpack.c.b16 %v1358, %v1342
        %v1807 = vpack.c.b16 %v1359, %v1343
        %v1808 = vpack.c.b16 %v1360, %v1344
        %v1809 = vpack.c.b16 %v1377, %v1361
        %v1810 = vpack.c.b16 %v1378, %v1362
        %v1811 = vpack.c.b16 %v1379, %v1363
        %v1812 = vpack.c.b16 %v1380, %v1364
        %v1813 = vpack.c.b16 %v1381, %v1365
        %v1814 = vpack.c.b16 %v1382, %v1366
        %v1815 = vpack.c.b16 %v1383, %v1367
        %v1816 = vpack.c.b16 %v1384, %v1368
        %v1817 = vpack.c.b16 %v1385, %v1369
        %v1818 = vpack.c.b16 %v1386, %v1370
        %v1819 = vpack.c.b16 %v1387, %v1371
        %v1820 = vpack.c.b16 %v1388, %v1372
        %v1821 = vpack.c.b16 %v1389, %v1373
        %v1822 = vpack.c.b16 %v1390, %v1374
        %v1823 = vpack.c.b16 %v1391, %v1375
        %v1824 = vpack.c.b16 %v1392, %v1376
        %v1825 = vpack.c.b16 %v1409, %v1393
        %v1826 = vpack.c.b16 %v1410, %v1394
        %v1827 = vpack.c.b16 %v1411, %v1395
        %v1828 = vpack.c.b16 %v1412, %v1396
        %v1829 = vpack.c.b16 %v1413, %v1397
        %v1830 = vpack.c.b16 %v1414, %v1398
        %v1831 = vpack.c.b16 %v1415, %v1399
        %v1832 = vpack.c.b16 %v1416, %v1400
        %v1833 = vpack.c.b16 %v1417, %v1401
        %v1834 = vpack.c.b16 %v1418, %v1402
        %v1835 = vpack.c.b16 %v1419, %v1403
        %v1836 = vpack.c.b16 %v1420, %v1404
        %v1837 = vpack.c.b16 %v1421, %v1405
        %v1838 = vpack.c.b16 %v1422, %v1406
        %v1839 = vpack.c.b16 %v1423, %v1407
        %v1840 = vpack.c.b16 %v1424, %v1408
        %v1841 = vpack.c.b16 %v1441, %v1425
        %v1842 = vpack.c.b16 %v1442, %v1426
        %v1843 = vpack.c.b16 %v1443, %v1427
        %v1844 = vpack.c.b16 %v1444, %v1428
        %v1845 = vpack.c.b16 %v1445, %v1429
        %v1846 = vpack.c.b16 %v1446, %v1430
        %v1847 = vpack.c.b16 %v1447, %v1431
        %v1848 = vpack.c.b16 %v1448, %v1432
        %v1849 = vpack.c.b16 %v1449, %v1433
        %v1850 = vpack.c.b16 %v1450, %v1434
        %v1851 = vpack.c.b16 %v1451, %v1435
        %v1852 = vpack.c.b16 %v1452, %v1436
        %v1853 = vpack.c.b16 %v1453, %v1437
        %v1854 = vpack.c.b16 %v1454, %v1438
        %v1855 = vpack.c.b16 %v1455, %v1439
        %v1856 = vpack.c.b16 %v1456, %v1440
        %v1857 = vpack.c.b16 %v1473, %v1457
        %v1858 = vpack.c.b16 %v1474, %v1458
        %v1859 = vpack.c.b16 %v1475, %v1459
        %v1860 = vpack.c.b16 %v1476, %v1460
        %v1861 = vpack.c.b16 %v1477, %v1461
        %v1862 = vpack.c.b16 %v1478, %v1462
        %v1863 = vpack.c.b16 %v1479, %v1463
        %v1864 = vpack.c.b16 %v1480, %v1464
        %v1865 = vpack.c.b16 %v1481, %v1465
        %v1866 = vpack.c.b16 %v1482, %v1466
        %v1867 = vpack.c.b16 %v1483, %v1467
        %v1868 = vpack.c.b16 %v1484, %v1468
        %v1869 = vpack.c.b16 %v1485, %v1469
        %v1870 = vpack.c.b16 %v1486, %v1470
        %v1871 = vpack.c.b16 %v1487, %v1471
        %v1872 = vpack.c.b16 %v1488, %v1472
        %v1873 = vpack.c.b16 %v1505, %v1489
        %v1874 = vpack.c.b16 %v1506, %v1490
        %v1875 = vpack.c.b16 %v1507, %v1491
        %v1876 = vpack.c.b16 %v1508, %v1492
        %v1877 = vpack.c.b16 %v1509, %v1493
        %v1878 = vpack.c.b16 %v1510, %v1494
        %v1879 = vpack.c.b16 %v1511, %v1495
        %v1880 = vpack.c.b16 %v1512, %v1496
        %v1881 = vpack.c.b16 %v1513, %v1497
        %v1882 = vpack.c.b16 %v1514, %v1498
        %v1883 = vpack.c.b16 %v1515, %v1499
        %v1884 = vpack.c.b16 %v1516, %v1500
        %v1885 = vpack.c.b16 %v1517, %v1501
        %v1886 = vpack.c.b16 %v1518, %v1502
        %v1887 = vpack.c.b16 %v1519, %v1503
        %v1888 = vpack.c.b16 %v1520, %v1504
        %v1889 = vpack.c.b16 %v1537, %v1521
        %v1890 = vpack.c.b16 %v1538, %v1522
        %v1891 = vpack.c.b16 %v1539, %v1523
        %v1892 = vpack.c.b16 %v1540, %v1524
        %v1893 = vpack.c.b16 %v1541, %v1525
        %v1894 = vpack.c.b16 %v1542, %v1526
        %v1895 = vpack.c.b16 %v1543, %v1527
        %v1896 = vpack.c.b16 %v1544, %v1528
        %v1897 = vpack.c.b16 %v1545, %v1529
        %v1898 = vpack.c.b16 %v1546, %v1530
        %v1899 = vpack.c.b16 %v1547, %v1531
        %v1900 = vpack.c.b16 %v1548, %v1532
        %v1901 = vpack.c.b16 %v1549, %v1533
        %v1902 = vpack.c.b16 %v1550, %v1534
        %v1903 = vpack.c.b16 %v1551, %v1535
        %v1904 = vpack.c.b16 %v1552, %v1536
        %v1905 = vpack.c.b16 %v1569, %v1553
        %v1906 = vpack.c.b16 %v1570, %v1554
        %v1907 = vpack.c.b16 %v1571, %v1555
        %v1908 = vpack.c.b16 %v1572, %v1556
        %v1909 = vpack.c.b16 %v1573, %v1557
        %v1910 = vpack.c.b16 %v1574, %v1558
        %v1911 = vpack.c.b16 %v1575, %v1559
        %v1912 = vpack.c.b16 %v1576, %v1560
        %v1913 = vpack.c.b16 %v1577, %v1561
        %v1914 = vpack.c.b16 %v1578, %v1562
        %v1915 = vpack.c.b16 %v1579, %v1563
        %v1916 = vpack.c.b16 %v1580, %v1564
        %v1917 = vpack.c.b16 %v1581, %v1565
        %v1918 = vpack.c.b16 %v1582, %v1566
        %v1919 = vpack.c.b16 %v1583, %v1567
        %v1920 = vpack.c.b16 %v1584, %v1568
        %v1921 = vpack.c.b16 %v1601, %v1585
        %v1922 = vpack.c.b16 %v1602, %v1586
        %v1923 = vpack.c.b16 %v1603, %v1587
        %v1924 = vpack.c.b16 %v1604, %v1588
        %v1925 = vpack.c.b16 %v1605, %v1589
        %v1926 = vpack.c.b16 %v1606, %v1590
        %v1927 = vpack.c.b16 %v1607, %v1591
        %v1928 = vpack.c.b16 %v1608, %v1592
        %v1929 = vpack.c.b16 %v1609, %v1593
        %v1930 = vpack.c.b16 %v1610, %v1594
        %v1931 = vpack.c.b16 %v1611, %v1595
        %v1932 = vpack.c.b16 %v1612, %v1596
        %v1933 = vpack.c.b16 %v1613, %v1597
        %v1934 = vpack.c.b16 %v1614, %v1598
        %v1935 = vpack.c.b16 %v1615, %v1599
        %v1936 = vpack.c.b16 %v1616, %v1600
        %v1937 = vpack.c.b16 %v1633, %v1617
        %v1938 = vpack.c.b16 %v1634, %v1618
        %v1939 = vpack.c.b16 %v1635, %v1619
        %v1940 = vpack.c.b16 %v1636, %v1620
        %v1941 = vpack.c.b16 %v1637, %v1621
        %v1942 = vpack.c.b16 %v1638, %v1622
        %v1943 = vpack.c.b16 %v1639, %v1623
        %v1944 = vpack.c.b16 %v1640, %v1624
        %v1945 = vpack.c.b16 %v1641, %v1625
        %v1946 = vpack.c.b16 %v1642, %v1626
        %v1947 = vpack.c.b16 %v1643, %v1627
        %v1948 = vpack.c.b16 %v1644, %v1628
        %v1949 = vpack.c.b16 %v1645, %v1629
        %v1950 = vpack.c.b16 %v1646, %v1630
        %v1951 = vpack.c.b16 %v1647, %v1631
        %v1952 = vpack.c.b16 %v1648, %v1632
        %v1953 = vpack.c.b16 %v1665, %v1649
        %v1954 = vpack.c.b16 %v1666, %v1650
        %v1955 = vpack.c.b16 %v1667, %v1651
        %v1956 = vpack.c.b16 %v1668, %v1652
        %v1957 = vpack.c.b16 %v1669, %v1653
        %v1958 = vpack.c.b16 %v1670, %v1654
        %v1959 = vpack.c.b16 %v1671, %v1655
        %v1960 = vpack.c.b16 %v1672, %v1656
        %v1961 = vpack.c.b16 %v1673, %v1657
        %v1962 = vpack.c.b16 %v1674, %v1658
        %v1963 = vpack.c.b16 %v1675, %v1659
        %v1964 = vpack.c.b16 %v1676, %v1660
        %v1965 = vpack.c.b16 %v1677, %v1661
        %v1966 = vpack.c.b16 %v1678, %v1662
        %v1967 = vpack.c.b16 %v1679, %v1663
        %v1968 = vpack.c.b16 %v1680, %v1664
        %v1969 = vpack.c.b16 %v1697, %v1681
        %v1970 = vpack.c.b16 %v1698, %v1682
        %v1971 = vpack.c.b16 %v1699, %v1683
        %v1972 = vpack.c.b16 %v1700, %v1684
        %v1973 = vpack.c.b16 %v1701, %v1685
        %v1974 = vpack.c.b16 %v1702, %v1686
        %v1975 = vpack.c.b16 %v1703, %v1687
        %v1976 = vpack.c.b16 %v1704, %v1688
        %v1977 = vpack.c.b16 %v1705, %v1689
        %v1978 = vpack.c.b16 %v1706, %v1690
        %v1979 = vpack.c.b16 %v1707, %v1691
        %v1980 = vpack.c.b16 %v1708, %v1692
        %v1981 = vpack.c.b16 %v1709, %v1693
        %v1982 = vpack.c.b16 %v1710, %v1694
        %v1983 = vpack.c.b16 %v1711, %v1695
        %v1984 = vpack.c.b16 %v1712, %v1696
        %v1985 = vpack.c.b16 %v1729, %v1713
        %v1986 = vpack.c.b16 %v1730, %v1714
        %v1987 = vpack.c.b16 %v1731, %v1715
        %v1988 = vpack.c.b16 %v1732, %v1716
        %v1989 = vpack.c.b16 %v1733, %v1717
        %v1990 = vpack.c.b16 %v1734, %v1718
        %v1991 = vpack.c.b16 %v1735, %v1719
        %v1992 = vpack.c.b16 %v1736, %v1720
        %v1993 = vpack.c.b16 %v1737, %v1721
        %v1994 = vpack.c.b16 %v1738, %v1722
        %v1995 = vpack.c.b16 %v1739, %v1723
        %v1996 = vpack.c.b16 %v1740, %v1724
        %v1997 = vpack.c.b16 %v1741, %v1725
        %v1998 = vpack.c.b16 %v1742, %v1726
        %v1999 = vpack.c.b16 %v1743, %v1727
        %v2000 = vpack.c.b16 %v1744, %v1728
        %2257 = vmatprep.subr.bf16.mxu0 %v1858
        %2258 = vmatpush1.bf16.msra.mxu0 %v1857
        %2259 = vmatprep.subr.bf16.mxu0 %v1842
        %2260 = vmatpush1.bf16.msra.mxu0 %v1841
        %2261 = vmatprep.subr.bf16.mxu0 %v1826
        %2262 = vmatpush1.bf16.msra.mxu0 %v1825
        %2263 = vmatprep.subr.bf16.mxu0 %v1810
        %2264 = vmatpush1.bf16.msra.mxu0 %v1809
        %2265 = vmatprep.subr.bf16.mxu0 %v1794
        %2266 = vmatpush1.bf16.msra.mxu0 %v1793
        %2267 = vmatprep.subr.bf16.mxu0 %v1778
        %2268 = vmatpush1.bf16.msra.mxu0 %v1777
        %2269 = vmatprep.subr.bf16.mxu0 %v1762
        %2270 = vmatpush1.bf16.msra.mxu0 %v1761
        %2271 = vmatprep.subr.bf16.mxu0 %v1746
        %2272 = vmatpush1.bf16.msra.mxu0 %v1745
        %2273 = vmatprep.subr.bf16.mxu0 %v1986
        %2274 = vmatpush2.bf16.msra.mxu0 %v1985
        %2275 = vmatprep.subr.bf16.mxu0 %v1970
        %2276 = vmatpush2.bf16.msra.mxu0 %v1969
        %2277 = vmatprep.subr.bf16.mxu0 %v1954
        %2278 = vmatpush2.bf16.msra.mxu0 %v1953
        %2279 = vmatprep.subr.bf16.mxu0 %v1938
        %2280 = vmatpush2.bf16.msra.mxu0 %v1937
        %2281 = vmatprep.subr.bf16.mxu0 %v1922
        %2282 = vmatpush2.bf16.msra.mxu0 %v1921
        %2283 = vmatprep.subr.bf16.mxu0 %v1906
        %2284 = vmatpush2.bf16.msra.mxu0 %v1905
        %2285 = vmatprep.subr.bf16.mxu0 %v1890
        %2286 = vmatpush2.bf16.msra.mxu0 %v1889
        %2287 = vmatprep.subr.bf16.mxu0 %v1874
        %2288 = vmatpush2.bf16.msra.mxu0 %v1873
        %2289 = vmatprep.mubr.bf16.mxu0 %v974
        %2290 = vmatmul.mubr.bf16.gmra.mxu0 %v973
        %v2291 = vpop.f32.mrf.mxu0
        %v2292 = vadd.f32 %v964, %v2291
        %v2293 = vpop.f32.mrf.mxu0
        %v2294 = vadd.f32 %v964, %v2293
        %v2295 = vpop.f32.mrf.mxu0
        %v2296 = vpop.f32.mrf.mxu0
        %2297 = vdwg.mxu0
        %2298 = vmatprep.subr.bf16.mxu0 %v1860
        %2299 = vmatpush1.bf16.msra.mxu0 %v1859
        %2300 = vmatprep.subr.bf16.mxu0 %v1844
        %2301 = vmatpush1.bf16.msra.mxu0 %v1843
        %2302 = vmatprep.subr.bf16.mxu0 %v1828
        %2303 = vmatpush1.bf16.msra.mxu0 %v1827
        %2304 = vmatprep.subr.bf16.mxu0 %v1812
        %2305 = vmatpush1.bf16.msra.mxu0 %v1811
        %2306 = vmatprep.subr.bf16.mxu0 %v1796
        %2307 = vmatpush1.bf16.msra.mxu0 %v1795
        %2308 = vmatprep.subr.bf16.mxu0 %v1780
        %2309 = vmatpush1.bf16.msra.mxu0 %v1779
        %2310 = vmatprep.subr.bf16.mxu0 %v1764
        %2311 = vmatpush1.bf16.msra.mxu0 %v1763
        %2312 = vmatprep.subr.bf16.mxu0 %v1748
        %2313 = vmatpush1.bf16.msra.mxu0 %v1747
        %2314 = vmatprep.subr.bf16.mxu0 %v1988
        %2315 = vmatpush2.bf16.msra.mxu0 %v1987
        %2316 = vmatprep.subr.bf16.mxu0 %v1972
        %2317 = vmatpush2.bf16.msra.mxu0 %v1971
        %2318 = vmatprep.subr.bf16.mxu0 %v1956
        %2319 = vmatpush2.bf16.msra.mxu0 %v1955
        %2320 = vmatprep.subr.bf16.mxu0 %v1940
        %2321 = vmatpush2.bf16.msra.mxu0 %v1939
        %2322 = vmatprep.subr.bf16.mxu0 %v1924
        %2323 = vmatpush2.bf16.msra.mxu0 %v1923
        %2324 = vmatprep.subr.bf16.mxu0 %v1908
        %2325 = vmatpush2.bf16.msra.mxu0 %v1907
        %2326 = vmatprep.subr.bf16.mxu0 %v1892
        %2327 = vmatpush2.bf16.msra.mxu0 %v1891
        %2328 = vmatprep.subr.bf16.mxu0 %v1876
        %2329 = vmatpush2.bf16.msra.mxu0 %v1875
        %2330 = vmatprep.mubr.bf16.mxu0 %v974
        %2331 = vmatmul.mubr.bf16.gmra.mxu0 %v973
        %v2332 = vpop.f32.mrf.mxu0
        %v2333 = vadd.f32 %v964, %v2332
        %v2334 = vpop.f32.mrf.mxu0
        %v2335 = vadd.f32 %v964, %v2334
        %v2336 = vpop.f32.mrf.mxu0
        %v2337 = vpop.f32.mrf.mxu0
        %2338 = vdwg.mxu0
        %2339 = vmatprep.subr.bf16.mxu0 %v1862
        %2340 = vmatpush1.bf16.msra.mxu0 %v1861
        %2341 = vmatprep.subr.bf16.mxu0 %v1846
        %2342 = vmatpush1.bf16.msra.mxu0 %v1845
        %2343 = vmatprep.subr.bf16.mxu0 %v1830
        %2344 = vmatpush1.bf16.msra.mxu0 %v1829
        %2345 = vmatprep.subr.bf16.mxu0 %v1814
        %2346 = vmatpush1.bf16.msra.mxu0 %v1813
        %2347 = vmatprep.subr.bf16.mxu0 %v1798
        %2348 = vmatpush1.bf16.msra.mxu0 %v1797
        %2349 = vmatprep.subr.bf16.mxu0 %v1782
        %2350 = vmatpush1.bf16.msra.mxu0 %v1781
        %2351 = vmatprep.subr.bf16.mxu0 %v1766
        %2352 = vmatpush1.bf16.msra.mxu0 %v1765
        %2353 = vmatprep.subr.bf16.mxu0 %v1750
        %2354 = vmatpush1.bf16.msra.mxu0 %v1749
        %2355 = vmatprep.subr.bf16.mxu0 %v1990
        %2356 = vmatpush2.bf16.msra.mxu0 %v1989
        %2357 = vmatprep.subr.bf16.mxu0 %v1974
        %2358 = vmatpush2.bf16.msra.mxu0 %v1973
        %2359 = vmatprep.subr.bf16.mxu0 %v1958
        %2360 = vmatpush2.bf16.msra.mxu0 %v1957
        %2361 = vmatprep.subr.bf16.mxu0 %v1942
        %2362 = vmatpush2.bf16.msra.mxu0 %v1941
        %2363 = vmatprep.subr.bf16.mxu0 %v1926
        %2364 = vmatpush2.bf16.msra.mxu0 %v1925
        %2365 = vmatprep.subr.bf16.mxu0 %v1910
        %2366 = vmatpush2.bf16.msra.mxu0 %v1909
        %2367 = vmatprep.subr.bf16.mxu0 %v1894
        %2368 = vmatpush2.bf16.msra.mxu0 %v1893
        %2369 = vmatprep.subr.bf16.mxu0 %v1878
        %2370 = vmatpush2.bf16.msra.mxu0 %v1877
        %2371 = vmatprep.mubr.bf16.mxu0 %v974
        %2372 = vmatmul.mubr.bf16.gmra.mxu0 %v973
        %v2373 = vpop.f32.mrf.mxu0
        %v2374 = vadd.f32 %v964, %v2373
        %v2375 = vpop.f32.mrf.mxu0
        %v2376 = vadd.f32 %v964, %v2375
        %v2377 = vpop.f32.mrf.mxu0
        %v2378 = vpop.f32.mrf.mxu0
        %2379 = vdwg.mxu0
        %2380 = vmatprep.subr.bf16.mxu0 %v1864
        %2381 = vmatpush1.bf16.msra.mxu0 %v1863
        %2382 = vmatprep.subr.bf16.mxu0 %v1848
        %2383 = vmatpush1.bf16.msra.mxu0 %v1847
        %2384 = vmatprep.subr.bf16.mxu0 %v1832
        %2385 = vmatpush1.bf16.msra.mxu0 %v1831
        %2386 = vmatprep.subr.bf16.mxu0 %v1816
        %2387 = vmatpush1.bf16.msra.mxu0 %v1815
        %2388 = vmatprep.subr.bf16.mxu0 %v1800
        %2389 = vmatpush1.bf16.msra.mxu0 %v1799
        %2390 = vmatprep.subr.bf16.mxu0 %v1784
        %2391 = vmatpush1.bf16.msra.mxu0 %v1783
        %2392 = vmatprep.subr.bf16.mxu0 %v1768
        %2393 = vmatpush1.bf16.msra.mxu0 %v1767
        %2394 = vmatprep.subr.bf16.mxu0 %v1752
        %2395 = vmatpush1.bf16.msra.mxu0 %v1751
        %2396 = vmatprep.subr.bf16.mxu0 %v1992
        %2397 = vmatpush2.bf16.msra.mxu0 %v1991
        %2398 = vmatprep.subr.bf16.mxu0 %v1976
        %2399 = vmatpush2.bf16.msra.mxu0 %v1975
        %2400 = vmatprep.subr.bf16.mxu0 %v1960
        %2401 = vmatpush2.bf16.msra.mxu0 %v1959
        %2402 = vmatprep.subr.bf16.mxu0 %v1944
        %2403 = vmatpush2.bf16.msra.mxu0 %v1943
        %2404 = vmatprep.subr.bf16.mxu0 %v1928
        %2405 = vmatpush2.bf16.msra.mxu0 %v1927
        %2406 = vmatprep.subr.bf16.mxu0 %v1912
        %2407 = vmatpush2.bf16.msra.mxu0 %v1911
        %2408 = vmatprep.subr.bf16.mxu0 %v1896
        %2409 = vmatpush2.bf16.msra.mxu0 %v1895
        %2410 = vmatprep.subr.bf16.mxu0 %v1880
        %2411 = vmatpush2.bf16.msra.mxu0 %v1879
        %2412 = vmatprep.mubr.bf16.mxu0 %v974
        %2413 = vmatmul.mubr.bf16.gmra.mxu0 %v973
        %v2414 = vpop.f32.mrf.mxu0
        %v2415 = vadd.f32 %v964, %v2414
        %v2416 = vpop.f32.mrf.mxu0
        %v2417 = vadd.f32 %v964, %v2416
        %v2418 = vpop.f32.mrf.mxu0
        %v2419 = vpop.f32.mrf.mxu0
        %2420 = vdwg.mxu0
        %2421 = vmatprep.subr.bf16.mxu0 %v1866
        %2422 = vmatpush1.bf16.msra.mxu0 %v1865
        %2423 = vmatprep.subr.bf16.mxu0 %v1850
        %2424 = vmatpush1.bf16.msra.mxu0 %v1849
        %2425 = vmatprep.subr.bf16.mxu0 %v1834
        %2426 = vmatpush1.bf16.msra.mxu0 %v1833
        %2427 = vmatprep.subr.bf16.mxu0 %v1818
        %2428 = vmatpush1.bf16.msra.mxu0 %v1817
        %2429 = vmatprep.subr.bf16.mxu0 %v1802
        %2430 = vmatpush1.bf16.msra.mxu0 %v1801
        %2431 = vmatprep.subr.bf16.mxu0 %v1786
        %2432 = vmatpush1.bf16.msra.mxu0 %v1785
        %2433 = vmatprep.subr.bf16.mxu0 %v1770
        %2434 = vmatpush1.bf16.msra.mxu0 %v1769
        %2435 = vmatprep.subr.bf16.mxu0 %v1754
        %2436 = vmatpush1.bf16.msra.mxu0 %v1753
        %2437 = vmatprep.subr.bf16.mxu0 %v1994
        %2438 = vmatpush2.bf16.msra.mxu0 %v1993
        %2439 = vmatprep.subr.bf16.mxu0 %v1978
        %2440 = vmatpush2.bf16.msra.mxu0 %v1977
        %2441 = vmatprep.subr.bf16.mxu0 %v1962
        %2442 = vmatpush2.bf16.msra.mxu0 %v1961
        %2443 = vmatprep.subr.bf16.mxu0 %v1946
        %2444 = vmatpush2.bf16.msra.mxu0 %v1945
        %2445 = vmatprep.subr.bf16.mxu0 %v1930
        %2446 = vmatpush2.bf16.msra.mxu0 %v1929
        %2447 = vmatprep.subr.bf16.mxu0 %v1914
        %2448 = vmatpush2.bf16.msra.mxu0 %v1913
        %2449 = vmatprep.subr.bf16.mxu0 %v1898
        %2450 = vmatpush2.bf16.msra.mxu0 %v1897
        %2451 = vmatprep.subr.bf16.mxu0 %v1882
        %2452 = vmatpush2.bf16.msra.mxu0 %v1881
        %2453 = vmatprep.mubr.bf16.mxu0 %v974
        %2454 = vmatmul.mubr.bf16.gmra.mxu0 %v973
        %v2455 = vpop.f32.mrf.mxu0
        %v2456 = vadd.f32 %v964, %v2455
        %v2457 = vpop.f32.mrf.mxu0
        %v2458 = vadd.f32 %v964, %v2457
        %v2459 = vpop.f32.mrf.mxu0
        %v2460 = vpop.f32.mrf.mxu0
        %2461 = vdwg.mxu0
        %2462 = vmatprep.subr.bf16.mxu0 %v1868
        %2463 = vmatpush1.bf16.msra.mxu0 %v1867
        %2464 = vmatprep.subr.bf16.mxu0 %v1852
        %2465 = vmatpush1.bf16.msra.mxu0 %v1851
        %2466 = vmatprep.subr.bf16.mxu0 %v1836
        %2467 = vmatpush1.bf16.msra.mxu0 %v1835
        %2468 = vmatprep.subr.bf16.mxu0 %v1820
        %2469 = vmatpush1.bf16.msra.mxu0 %v1819
        %2470 = vmatprep.subr.bf16.mxu0 %v1804
        %2471 = vmatpush1.bf16.msra.mxu0 %v1803
        %2472 = vmatprep.subr.bf16.mxu0 %v1788
        %2473 = vmatpush1.bf16.msra.mxu0 %v1787
        %2474 = vmatprep.subr.bf16.mxu0 %v1772
        %2475 = vmatpush1.bf16.msra.mxu0 %v1771
        %2476 = vmatprep.subr.bf16.mxu0 %v1756
        %2477 = vmatpush1.bf16.msra.mxu0 %v1755
        %2478 = vmatprep.subr.bf16.mxu0 %v1996
        %2479 = vmatpush2.bf16.msra.mxu0 %v1995
        %2480 = vmatprep.subr.bf16.mxu0 %v1980
        %2481 = vmatpush2.bf16.msra.mxu0 %v1979
        %2482 = vmatprep.subr.bf16.mxu0 %v1964
        %2483 = vmatpush2.bf16.msra.mxu0 %v1963
        %2484 = vmatprep.subr.bf16.mxu0 %v1948
        %2485 = vmatpush2.bf16.msra.mxu0 %v1947
        %2486 = vmatprep.subr.bf16.mxu0 %v1932
        %2487 = vmatpush2.bf16.msra.mxu0 %v1931
        %2488 = vmatprep.subr.bf16.mxu0 %v1916
        %2489 = vmatpush2.bf16.msra.mxu0 %v1915
        %2490 = vmatprep.subr.bf16.mxu0 %v1900
        %2491 = vmatpush2.bf16.msra.mxu0 %v1899
        %2492 = vmatprep.subr.bf16.mxu0 %v1884
        %2493 = vmatpush2.bf16.msra.mxu0 %v1883
        %2494 = vmatprep.mubr.bf16.mxu0 %v974
        %2495 = vmatmul.mubr.bf16.gmra.mxu0 %v973
        %v2496 = vpop.f32.mrf.mxu0
        %v2497 = vadd.f32 %v964, %v2496
        %v2498 = vpop.f32.mrf.mxu0
        %v2499 = vadd.f32 %v964, %v2498
        %v2500 = vpop.f32.mrf.mxu0
        %v2501 = vpop.f32.mrf.mxu0
        %2502 = vdwg.mxu0
        %2503 = vmatprep.subr.bf16.mxu0 %v1870
        %2504 = vmatpush1.bf16.msra.mxu0 %v1869
        %2505 = vmatprep.subr.bf16.mxu0 %v1854
        %2506 = vmatpush1.bf16.msra.mxu0 %v1853
        %2507 = vmatprep.subr.bf16.mxu0 %v1838
        %2508 = vmatpush1.bf16.msra.mxu0 %v1837
        %2509 = vmatprep.subr.bf16.mxu0 %v1822
        %2510 = vmatpush1.bf16.msra.mxu0 %v1821
        %2511 = vmatprep.subr.bf16.mxu0 %v1806
        %2512 = vmatpush1.bf16.msra.mxu0 %v1805
        %2513 = vmatprep.subr.bf16.mxu0 %v1790
        %2514 = vmatpush1.bf16.msra.mxu0 %v1789
        %2515 = vmatprep.subr.bf16.mxu0 %v1774
        %2516 = vmatpush1.bf16.msra.mxu0 %v1773
        %2517 = vmatprep.subr.bf16.mxu0 %v1758
        %2518 = vmatpush1.bf16.msra.mxu0 %v1757
        %2519 = vmatprep.subr.bf16.mxu0 %v1998
        %2520 = vmatpush2.bf16.msra.mxu0 %v1997
        %2521 = vmatprep.subr.bf16.mxu0 %v1982
        %2522 = vmatpush2.bf16.msra.mxu0 %v1981
        %2523 = vmatprep.subr.bf16.mxu0 %v1966
        %2524 = vmatpush2.bf16.msra.mxu0 %v1965
        %2525 = vmatprep.subr.bf16.mxu0 %v1950
        %2526 = vmatpush2.bf16.msra.mxu0 %v1949
        %2527 = vmatprep.subr.bf16.mxu0 %v1934
        %2528 = vmatpush2.bf16.msra.mxu0 %v1933
        %2529 = vmatprep.subr.bf16.mxu0 %v1918
        %2530 = vmatpush2.bf16.msra.mxu0 %v1917
        %2531 = vmatprep.subr.bf16.mxu0 %v1902
        %2532 = vmatpush2.bf16.msra.mxu0 %v1901
        %2533 = vmatprep.subr.bf16.mxu0 %v1886
        %2534 = vmatpush2.bf16.msra.mxu0 %v1885
        %2535 = vmatprep.mubr.bf16.mxu0 %v974
        %2536 = vmatmul.mubr.bf16.gmra.mxu0 %v973
        %v2537 = vpop.f32.mrf.mxu0
        %v2538 = vadd.f32 %v964, %v2537
        %v2539 = vpop.f32.mrf.mxu0
        %v2540 = vadd.f32 %v964, %v2539
        %v2541 = vpop.f32.mrf.mxu0
        %v2542 = vpop.f32.mrf.mxu0
        %2543 = vdwg.mxu0
        %2544 = vmatprep.subr.bf16.mxu0 %v1872
        %2545 = vmatpush1.bf16.msra.mxu0 %v1871
        %2546 = vmatprep.subr.bf16.mxu0 %v1856
        %2547 = vmatpush1.bf16.msra.mxu0 %v1855
        %2548 = vmatprep.subr.bf16.mxu0 %v1840
        %2549 = vmatpush1.bf16.msra.mxu0 %v1839
        %2550 = vmatprep.subr.bf16.mxu0 %v1824
        %2551 = vmatpush1.bf16.msra.mxu0 %v1823
        %2552 = vmatprep.subr.bf16.mxu0 %v1808
        %2553 = vmatpush1.bf16.msra.mxu0 %v1807
        %2554 = vmatprep.subr.bf16.mxu0 %v1792
        %2555 = vmatpush1.bf16.msra.mxu0 %v1791
        %2556 = vmatprep.subr.bf16.mxu0 %v1776
        %2557 = vmatpush1.bf16.msra.mxu0 %v1775
        %2558 = vmatprep.subr.bf16.mxu0 %v1760
        %2559 = vmatpush1.bf16.msra.mxu0 %v1759
        %2560 = vmatprep.subr.bf16.mxu0 %v2000
        %2561 = vmatpush2.bf16.msra.mxu0 %v1999
        %2562 = vmatprep.subr.bf16.mxu0 %v1984
        %2563 = vmatpush2.bf16.msra.mxu0 %v1983
        %2564 = vmatprep.subr.bf16.mxu0 %v1968
        %2565 = vmatpush2.bf16.msra.mxu0 %v1967
        %2566 = vmatprep.subr.bf16.mxu0 %v1952
        %2567 = vmatpush2.bf16.msra.mxu0 %v1951
        %2568 = vmatprep.subr.bf16.mxu0 %v1936
        %2569 = vmatpush2.bf16.msra.mxu0 %v1935
        %2570 = vmatprep.subr.bf16.mxu0 %v1920
        %2571 = vmatpush2.bf16.msra.mxu0 %v1919
        %2572 = vmatprep.subr.bf16.mxu0 %v1904
        %2573 = vmatpush2.bf16.msra.mxu0 %v1903
        %2574 = vmatprep.subr.bf16.mxu0 %v1888
        %2575 = vmatpush2.bf16.msra.mxu0 %v1887
        %2576 = vmatprep.mubr.bf16.mxu0 %v974
        %2577 = vmatmul.mubr.bf16.gmra.mxu0 %v973
        %v2578 = vpop.f32.mrf.mxu0
        %v2579 = vadd.f32 %v964, %v2578
        %v2580 = vpop.f32.mrf.mxu0
        %v2581 = vadd.f32 %v964, %v2580
        %v2582 = vpop.f32.mrf.mxu0
        %v2583 = vpop.f32.mrf.mxu0
        %2584 = vdwg.mxu0
        %v2585 = vtanh.pop %v2292
        %v2586 = vtanh.pop %v2294
        %v2587 = vtanh.pop %v2333
        %v2588 = vtanh.pop %v2335
        %v2589 = vtanh.pop %v2374
        %v2590 = vtanh.pop %v2376
        %v2591 = vtanh.pop %v2415
        %v2592 = vtanh.pop %v2417
        %v2593 = vtanh.pop %v2456
        %v2594 = vtanh.pop %v2458
        %v2595 = vtanh.pop %v2497
        %v2596 = vtanh.pop %v2499
        %v2597 = vtanh.pop %v2538
        %v2598 = vtanh.pop %v2540
        %v2599 = vtanh.pop %v2579
        %v2600 = vtanh.pop %v2581
        %v2617 = vcombine.low %v2585, %v2586
        %v2618 = vcombine.low %v2587, %v2588
        %v2619 = vcombine.low %v2589, %v2590
        %v2620 = vcombine.low %v2591, %v2592
        %v2621 = vcombine.low %v2593, %v2594
        %v2622 = vcombine.low %v2595, %v2596
        %v2623 = vcombine.low %v2597, %v2598
        %v2624 = vcombine.low %v2599, %v2600
        %2633 = vst [vmem:[%s701] sm:$0x77] %v2617
        %2634 = vst [vmem:[%s701 + $0x8] sm:$0x77] %v2618
        %2635 = vst [vmem:[%s701 + $0x10] sm:$0x77] %v2619
        %2636 = vst [vmem:[%s701 + $0x18] sm:$0x77] %v2620
        %2637 = vst [vmem:[%s701 + $0x20] sm:$0x77] %v2621
        %2638 = vst [vmem:[%s701 + $0x28] sm:$0x77] %v2622
        %2639 = vst [vmem:[%s701 + $0x30] sm:$0x77] %v2623
        %2640 = vst [vmem:[%s701 + $0x38] sm:$0x77] %v2624
        %s2641 = smul.u32 16, %s14
        %p2642 = scmp.lt.s32.totalorder %s2641, 63
        %s2643 = scalar_select %p2642, %s2641, 63
        %s2644 = smul.addr %s2643, 4
        %s2645 = scalar_lea.vmem %s3, %s2644
        // Predicated region
        $region56: #{a_call__.9} parent=50 // pred_check
          %p2646 = pneg %p100
        $region57: #{a_call__.9} parent=50 // pred_check_branch
          %2648 = sbr.rel (%p2646) target = $region59
        $region58: #{a_call__.9} parent=50 // pred_region
          %s2649 = smul.u32 16, %s14
        $region59: #{a_call__.9} parent=50 // pred_fallthru
          _
      $region51: #{a_call__.9} parent=5 // pred_fallthru
        _
      %p2650 = scmp.le.s32.totalorder 2, %s9
      // Predicated region
      $region60: #{a_call__.9} parent=5 // pred_check
        %p2651 = pneg %p2650
      $region61: #{a_call__.9} parent=5 // pred_check_branch
        %2653 = sbr.rel (%p2651) target = $region63
      $region62: #{a_call__.9} parent=5 // pred_region
        %s2654 = ssub.s32 %s9, 2
        // Predicated region
        $region64: #{a_call__.9} parent=62 // pred_check
          %p2655 = pneg %p106
        $region65: #{a_call__.9} parent=62 // pred_check_branch
          %2657 = sbr.rel (%p2655) target = $region67
        $region66: #{a_call__.9} parent=62 // pred_region
          %s2658 = smul.u32 16, %s15
          %p2659 = scmp.lt.s32.totalorder %s2658, 63
          %s2660 = scalar_select %p2659, %s2658, 63
          %s2661 = smul.addr %s2660, 4
          %s2662 = scalar_lea.vmem %s3, %s2661
        $region67: #{a_call__.9} parent=62 // pred_fallthru
          _
      $region63: #{a_call__.9} parent=5 // pred_fallthru
        _
    $region6: #{a_call__.9} parent=1 // loop_footer
      %s13 = sadd.s32 1, %s9
    $region7: #{a_call__.9} parent=1 // loop_footer_branch
      %8 = sbr.rel target = $region3
    $region8: #{a_call__.9} parent=1 // loop_exit
      _

</llo_original>
